<compile_context>
chip_gen: v6e
topology: v6e:2x2x1
jax: 0.10.0
libtpu: 0.0.40
codegen_flags: <defaults>
</compile_context>

<pallas_src>
import functools

import jax
import jax.numpy as jnp
from jax.experimental import pallas as pl
from jax.experimental.pallas import tpu as pltpu

EPS = 1e-5                        # PyTorch LayerNorm default eps
NEG_INF = -1e9                    # additive key-padding mask value (safe: logits << 1e9)
MATMUL_DTYPE = jnp.float32        # set to jnp.bfloat16 on v5e/v6e/v7x for 2x MXU / 0.5x DMA
VMEM_LIMIT_BYTES = 32 * 1024 * 1024   # budget against v7x's 32 MiB scoped default


# ------------------------------------------------------------------ in-kernel helpers
def _mm(a, b):
    """a @ b on the MXU, f32 accumulation (operands optionally bf16)."""
    return jnp.dot(a.astype(MATMUL_DTYPE), b.astype(MATMUL_DTYPE),
                   preferred_element_type=jnp.float32)


def _mm_nt(a, b):
    """a @ b.T (contraction over last dims) without materializing the transpose."""
    return jax.lax.dot_general(
        a.astype(MATMUL_DTYPE), b.astype(MATMUL_DTYPE),
        dimension_numbers=(((1,), (1,)), ((), ())),
        preferred_element_type=jnp.float32)


def _layer_norm(z, gamma, beta):
    """LayerNorm over the last dim, all in f32 (z already f32)."""
    mu = jnp.mean(z, axis=-1, keepdims=True)
    var = jnp.mean(jnp.square(z - mu), axis=-1, keepdims=True)
    return (z - mu) * jax.lax.rsqrt(var + EPS) * gamma + beta


def _attention(x, mem, add_mask, w_in, b_in, w_out, b_out, *, nhead, scale, self_attn):
    """Multi-head attention + out-projection for one batch element.

    x: (Lq, E) f32, mem: (Lk, E) f32.
    w_in: (E, 3E) = in_proj_weight.T, b_in: (1, 3E),
    w_out: (E, E) = out_proj.weight.T, b_out: (1, E).
    q/k/v come from one fused MXU matmul; head concat is replaced by a sum of
    per-head partial out-projections (sublane-aligned W_o row slices).
    """
    Lq, E = x.shape
    Dh = E // nhead
    if self_attn:
        qkv = _mm(x, w_in) + b_in                            # (Lq, 3E) single matmul
        q = qkv[:, :E] * scale                               # scale folded into q
        k = qkv[:, E:2 * E]
        v = qkv[:, 2 * E:]
    else:
        q = (_mm(x, w_in[:, :E]) + b_in[:, :E]) * scale      # (Lq, E)
        kv = _mm(mem, w_in[:, E:]) + b_in[:, E:]             # (Lk, 2E) single matmul
        k = kv[:, :E]
        v = kv[:, E:]

    acc = jnp.zeros((Lq, E), jnp.float32)
    for h in range(nhead):                                   # static unroll over heads
        sl = slice(h * Dh, (h + 1) * Dh)
        s = _mm_nt(q[:, sl], k[:, sl])                       # (Lq, Lk) scores, f32
        if add_mask is not None:
            s = s + add_mask                                 # mask applied in f32
        s = s - jnp.max(s, axis=-1, keepdims=True)
        p = jnp.exp(s)
        inv = pl.reciprocal(jnp.sum(p, axis=-1, keepdims=True), approx=True)
        oh = _mm(p, v[:, sl]) * inv                          # (Lq, Dh)
        acc = acc + _mm(oh, w_out[sl, :])                    # partial out-projection
    return acc + b_out


# ------------------------------------------------------------------ fused forward kernel
def _radar_forward_kernel(
        x_ref, mask_ref, pw_ref, pb_ref, q_ref,
        sa_w, sa_b, sa_ow, sa_ob, n1g, n1b,
        ca_w, ca_b, ca_ow, ca_ob, n2g, n2b,
        f1w, f1b, f2w, f2b, n3g, n3b,
        ow_ref, ob_ref, o_ref, *, nhead, layers, scale):
    """One batch element: input proj -> `layers` decoder layers -> output head."""
    # Input projection: memory never touches HBM.
    memory = _mm(x_ref[0], pw_ref[...]) + pb_ref[...]        # (n, E) f32
    add_mask = mask_ref[0]                                   # (1, n) additive f32
    tgt = q_ref[...].astype(jnp.float32)                     # (Q, E) learned queries

    for l in range(layers):                                  # static unroll over layers
        # --- self-attention sub-layer (post-LN) ---
        a = _attention(tgt, tgt, None, sa_w[l], sa_b[l], sa_ow[l], sa_ob[l],
                       nhead=nhead, scale=scale, self_attn=True)
        tgt = _layer_norm(tgt + a, n1g[l], n1b[l])
        # --- cross-attention sub-layer (memory_key_padding_mask) ---
        a = _attention(tgt, memory, add_mask, ca_w[l], ca_b[l], ca_ow[l], ca_ob[l],
                       nhead=nhead, scale=scale, self_attn=False)
        tgt = _layer_norm(tgt + a, n2g[l], n2b[l])
        # --- FFN sub-layer (ReLU, eval / dropout=0) ---
        h = jnp.maximum(_mm(tgt, f1w[l]) + f1b[l], 0.0)
        y = _mm(h, f2w[l]) + f2b[l]
        tgt = _layer_norm(tgt + y, n3g[l], n3b[l])

    # Output head folded into the same kernel: (1, E) @ (Q, E)^T -> lane-dense (1, Q).
    emb = _mm_nt(ow_ref[...], tgt) + ob_ref[...]
    o_ref[0] = emb.astype(o_ref.dtype)


# ------------------------------------------------------------------ wrapper
def _const_spec(shape):
    """Grid-invariant input: constant index map + single buffering."""
    return pl.BlockSpec(shape, lambda i, nd=len(shape): (0,) * nd,
                        pipeline_mode=pl.Buffered(1))


def radar_encoder_forward(params, x, pad_mask, nhead):
    """RadarEncoder forward (need_attention_map=False path).

    x: (n, b, features) seq-first (PyTorch layout); pad_mask: (b, n) bool (True = padded)
    or None.  Returns (b, Q) for b > 1, (Q,) for b == 1 (torch.squeeze semantics).
    """
    n, b, F = x.shape
    E = params["proj_w"].shape[1]
    Q = params["queries"].shape[0]
    L = params["sa_w"].shape[0]
    dff = params["ff1_w"].shape[2]
    Dh = E // nhead
    scale = 1.0 / float(Dh) ** 0.5

    # Only relayout in the whole forward: tiny raw input to batch-first.
    x_bf = jnp.transpose(x, (1, 0, 2))                       # (b, n, F)
    if pad_mask is None:
        add_mask = jnp.zeros((b, 1, n), jnp.float32)
    else:
        # NOTE: a fully padded batch element yields a uniform distribution over
        # the padded keys (PyTorch would give NaNs there).
        add_mask = jnp.where(pad_mask, NEG_INF, 0.0).astype(jnp.float32).reshape(b, 1, n)

    kernel = functools.partial(_radar_forward_kernel, nhead=nhead, layers=L, scale=scale)

    in_specs = [
        pl.BlockSpec((1, n, F), lambda i: (i, 0, 0)),        # x (per batch)
        pl.BlockSpec((1, 1, n), lambda i: (i, 0, 0)),        # additive mask (per batch)
        _const_spec((F, E)), _const_spec((1, E)),            # input projection
        _const_spec((Q, E)),                                 # learned queries
        _const_spec((L, E, 3 * E)), _const_spec((L, 1, 3 * E)),   # self-attn in-proj
        _const_spec((L, E, E)), _const_spec((L, 1, E)),            # self-attn out-proj
        _const_spec((L, 1, E)), _const_spec((L, 1, E)),            # norm1
        _const_spec((L, E, 3 * E)), _const_spec((L, 1, 3 * E)),   # cross-attn in-proj
        _const_spec((L, E, E)), _const_spec((L, 1, E)),            # cross-attn out-proj
        _const_spec((L, 1, E)), _const_spec((L, 1, E)),            # norm2
        _const_spec((L, E, dff)), _const_spec((L, 1, dff)),        # FFN linear1
        _const_spec((L, dff, E)), _const_spec((L, 1, E)),          # FFN linear2
        _const_spec((L, 1, E)), _const_spec((L, 1, E)),            # norm3
        _const_spec((1, E)), _const_spec((1, 1)),                  # output head
    ]

    out = pl.pallas_call(
        kernel,
        out_shape=jax.ShapeDtypeStruct((b, 1, Q), jnp.float32),
        grid=(b,),
        in_specs=in_specs,
        out_specs=pl.BlockSpec((1, 1, Q), lambda i: (i, 0, 0)),
        compiler_params=pltpu.CompilerParams(
            dimension_semantics=("parallel",),
            vmem_limit_bytes=VMEM_LIMIT_BYTES),
    )(x_bf, add_mask,
      params["proj_w"], params["proj_b"], params["queries"],
      params["sa_w"], params["sa_b"], params["sa_ow"], params["sa_ob"],
      params["ln1_g"], params["ln1_b"],
      params["ca_w"], params["ca_b"], params["ca_ow"], params["ca_ob"],
      params["ln2_g"], params["ln2_b"],
      params["ff1_w"], params["ff1_b"], params["ff2_w"], params["ff2_b"],
      params["ln3_g"], params["ln3_b"],
      params["out_w"], params["out_b"])

    # TODO(synk): attention maps (dcd_att_map / need_attention_map=True) are not materialized.
    emb = out.reshape(b, Q)
    if b == 1:
        emb = emb.reshape(Q)
    return emb


# ------------------------------------------------------------------ params
def init_params(key, features, embed_dim, nhead, layers, output_embeding, dff):
    """Random params stored directly in kernel-friendly layout:
       * every weight pre-transposed for `x @ W` (== torch weight.T),
       * attention in-proj fused as (E, 3E) (q|k|v columns), out-proj (E, E),
       * per-layer weights stacked along a leading layer axis,
       * biases / LayerNorm params stored as (1, N) rows,
       * learned queries stored as (Q, E) (torch param is (Q, 1, E))."""
    E = embed_dim

    def nrm(k, shape, scale=0.05):
        return (scale * jax.random.normal(k, shape)).astype(jnp.float32)

    keys = jax.random.split(key, 17)
    params = {
        "proj_w": nrm(keys[0], (features, E)),               # linear_projection.weight.T
        "proj_b": nrm(keys[1], (1, E)),
        "queries": nrm(keys[2], (output_embeding, E), scale=1.0),
        "out_w": nrm(keys[3], (1, E)),                       # linear_to_output.weight
        "out_b": nrm(keys[4], (1, 1)),
        # self-attention (per-layer stacks)
        "sa_w": nrm(keys[5], (layers, E, 3 * E)),
        "sa_b": nrm(keys[6], (layers, 1, 3 * E)),
        "sa_ow": nrm(keys[7], (layers, E, E)),
        "sa_ob": nrm(keys[8], (layers, 1, E)),
        # cross-attention
        "ca_w": nrm(keys[9], (layers, E, 3 * E)),
        "ca_b": nrm(keys[10], (layers, 1, 3 * E)),
        "ca_ow": nrm(keys[11], (layers, E, E)),
        "ca_ob": nrm(keys[12], (layers, 1, E)),
        # FFN
        "ff1_w": nrm(keys[13], (layers, E, dff)),
        "ff1_b": nrm(keys[14], (layers, 1, dff)),
        "ff2_w": nrm(keys[15], (layers, dff, E)),
        "ff2_b": nrm(keys[16], (layers, 1, E)),
        # LayerNorms
        "ln1_g": jnp.ones((layers, 1, E), jnp.float32), "ln1_b": jnp.zeros((layers, 1, E), jnp.float32),
        "ln2_g": jnp.ones((layers, 1, E), jnp.float32), "ln2_b": jnp.zeros((layers, 1, E), jnp.float32),
        "ln3_g": jnp.ones((layers, 1, E), jnp.float32), "ln3_b": jnp.zeros((layers, 1, E), jnp.float32),
    }
    return params


# ------------------------------------------------------------------ main
if __name__ == "__main__":
    # Small, shape-consistent config (original: features=7, embed_dim=64, nhead=8,
    # layers=6, output_embeding=512, dim_feedforward=2048).
    FEATURES = 7
    EMBED_DIM = 32
    NHEAD = 4
    LAYERS = 2
    OUTPUT_EMBED = 8     # number of learned queries Q
    DFF = 64
    N_POINTS = 10        # sequence length n
    BATCH = 2            # b

    key = jax.random.PRNGKey(0)
    kp, kx = jax.random.split(key)

    params = init_params(kp, FEATURES, EMBED_DIM, NHEAD, LAYERS, OUTPUT_EMBED, DFF)

    x = jax.random.normal(kx, (N_POINTS, BATCH, FEATURES), dtype=jnp.float32)
    # key-padding mask: True = padded.  batch 0 has 10 valid points, batch 1 has 7.
    lengths = jnp.array([10, 7])
    pad_mask = jnp.arange(N_POINTS)[None, :] >= lengths[:, None]     # (b, n) bool

    fwd = jax.jit(functools.partial(radar_encoder_forward, nhead=NHEAD))
    out = jax.block_until_ready(fwd(params, x, pad_mask))

    assert out.shape == (BATCH, OUTPUT_EMBED), out.shape
    assert bool(jnp.all(jnp.isfinite(out)))
    print("KERNEL_OK")
</pallas_src>

<mosaic_0001>
module attributes {stable_mosaic.version = 11 : i64} {
  func.func @_radar_forward_kernel(%arg0: i32, %arg1: memref<1x10x7xf32, #tpu.memory_space<vmem>>, %arg2: memref<1x1x10xf32, #tpu.memory_space<vmem>>, %arg3: memref<7x32xf32, #tpu.memory_space<vmem>>, %arg4: memref<1x32xf32, #tpu.memory_space<vmem>>, %arg5: memref<8x32xf32, #tpu.memory_space<vmem>>, %arg6: memref<2x32x96xf32, #tpu.memory_space<vmem>>, %arg7: memref<2x1x96xf32, #tpu.memory_space<vmem>>, %arg8: memref<2x32x32xf32, #tpu.memory_space<vmem>>, %arg9: memref<2x1x32xf32, #tpu.memory_space<vmem>>, %arg10: memref<2x1x32xf32, #tpu.memory_space<vmem>>, %arg11: memref<2x1x32xf32, #tpu.memory_space<vmem>>, %arg12: memref<2x32x96xf32, #tpu.memory_space<vmem>>, %arg13: memref<2x1x96xf32, #tpu.memory_space<vmem>>, %arg14: memref<2x32x32xf32, #tpu.memory_space<vmem>>, %arg15: memref<2x1x32xf32, #tpu.memory_space<vmem>>, %arg16: memref<2x1x32xf32, #tpu.memory_space<vmem>>, %arg17: memref<2x1x32xf32, #tpu.memory_space<vmem>>, %arg18: memref<2x32x64xf32, #tpu.memory_space<vmem>>, %arg19: memref<2x1x64xf32, #tpu.memory_space<vmem>>, %arg20: memref<2x64x32xf32, #tpu.memory_space<vmem>>, %arg21: memref<2x1x32xf32, #tpu.memory_space<vmem>>, %arg22: memref<2x1x32xf32, #tpu.memory_space<vmem>>, %arg23: memref<2x1x32xf32, #tpu.memory_space<vmem>>, %arg24: memref<1x32xf32, #tpu.memory_space<vmem>>, %arg25: memref<1x1xf32, #tpu.memory_space<vmem>>, %arg26: memref<1x1x8xf32, #tpu.memory_space<vmem>>) attributes {dimension_semantics = [#tpu.dimension_semantics<parallel>], iteration_bounds = array<i64: 2>, scalar_prefetch = 0 : i64, scratch_operands = 0 : i64, tpu.core_type = #tpu.core_type<tc>, window_params = [{transform_indices = @transform_0, window_bounds = array<i64: 1, 10, 7>}, {transform_indices = @transform_1, window_bounds = array<i64: 1, 1, 10>}, {pipeline_mode = #tpu.pipeline_mode<synchronous>, transform_indices = @transform_2, window_bounds = array<i64: 7, 32>}, {pipeline_mode = #tpu.pipeline_mode<synchronous>, transform_indices = @transform_3, window_bounds = array<i64: 1, 32>}, {pipeline_mode = #tpu.pipeline_mode<synchronous>, transform_indices = @transform_4, window_bounds = array<i64: 8, 32>}, {pipeline_mode = #tpu.pipeline_mode<synchronous>, transform_indices = @transform_5, window_bounds = array<i64: 2, 32, 96>}, {pipeline_mode = #tpu.pipeline_mode<synchronous>, transform_indices = @transform_6, window_bounds = array<i64: 2, 1, 96>}, {pipeline_mode = #tpu.pipeline_mode<synchronous>, transform_indices = @transform_7, window_bounds = array<i64: 2, 32, 32>}, {pipeline_mode = #tpu.pipeline_mode<synchronous>, transform_indices = @transform_8, window_bounds = array<i64: 2, 1, 32>}, {pipeline_mode = #tpu.pipeline_mode<synchronous>, transform_indices = @transform_9, window_bounds = array<i64: 2, 1, 32>}, {pipeline_mode = #tpu.pipeline_mode<synchronous>, transform_indices = @transform_10, window_bounds = array<i64: 2, 1, 32>}, {pipeline_mode = #tpu.pipeline_mode<synchronous>, transform_indices = @transform_11, window_bounds = array<i64: 2, 32, 96>}, {pipeline_mode = #tpu.pipeline_mode<synchronous>, transform_indices = @transform_12, window_bounds = array<i64: 2, 1, 96>}, {pipeline_mode = #tpu.pipeline_mode<synchronous>, transform_indices = @transform_13, window_bounds = array<i64: 2, 32, 32>}, {pipeline_mode = #tpu.pipeline_mode<synchronous>, transform_indices = @transform_14, window_bounds = array<i64: 2, 1, 32>}, {pipeline_mode = #tpu.pipeline_mode<synchronous>, transform_indices = @transform_15, window_bounds = array<i64: 2, 1, 32>}, {pipeline_mode = #tpu.pipeline_mode<synchronous>, transform_indices = @transform_16, window_bounds = array<i64: 2, 1, 32>}, {pipeline_mode = #tpu.pipeline_mode<synchronous>, transform_indices = @transform_17, window_bounds = array<i64: 2, 32, 64>}, {pipeline_mode = #tpu.pipeline_mode<synchronous>, transform_indices = @transform_18, window_bounds = array<i64: 2, 1, 64>}, {pipeline_mode = #tpu.pipeline_mode<synchronous>, transform_indices = @transform_19, window_bounds = array<i64: 2, 64, 32>}, {pipeline_mode = #tpu.pipeline_mode<synchronous>, transform_indices = @transform_20, window_bounds = array<i64: 2, 1, 32>}, {pipeline_mode = #tpu.pipeline_mode<synchronous>, transform_indices = @transform_21, window_bounds = array<i64: 2, 1, 32>}, {pipeline_mode = #tpu.pipeline_mode<synchronous>, transform_indices = @transform_22, window_bounds = array<i64: 2, 1, 32>}, {pipeline_mode = #tpu.pipeline_mode<synchronous>, transform_indices = @transform_23, window_bounds = array<i64: 1, 32>}, {pipeline_mode = #tpu.pipeline_mode<synchronous>, transform_indices = @transform_24, window_bounds = array<i64: 1, 1>}, {transform_indices = @transform_25, window_bounds = array<i64: 1, 1, 8>}]} {
    %c0 = arith.constant 0 : index
    %c0_0 = arith.constant 0 : index
    %c0_1 = arith.constant 0 : index
    %0 = vector.load %arg1[%c0, %c0_0, %c0_1] : memref<1x10x7xf32, #tpu.memory_space<vmem>>, vector<1x10x7xf32>
    %1 = vector.shape_cast %0 : vector<1x10x7xf32> to vector<10x7xf32>
    %c0_2 = arith.constant 0 : index
    %c0_3 = arith.constant 0 : index
    %2 = vector.load %arg3[%c0_2, %c0_3] : memref<7x32xf32, #tpu.memory_space<vmem>>, vector<7x32xf32>
    %cst = arith.constant dense<0.000000e+00> : vector<10x32xf32>
    %3 = tpu.matmul %1, %2, %cst {dimension_numbers = #tpu.dot_dimension_numbers<[1], [0], [0], [1], [0, 0, 1, 1], [], []>} : vector<10x7xf32>, vector<7x32xf32>, vector<10x32xf32> -> vector<10x32xf32>
    %c0_4 = arith.constant 0 : index
    %c0_5 = arith.constant 0 : index
    %4 = vector.load %arg4[%c0_4, %c0_5] : memref<1x32xf32, #tpu.memory_space<vmem>>, vector<1x32xf32>
    %5 = vector.broadcast %4 : vector<1x32xf32> to vector<10x32xf32>
    %6 = arith.addf %3, %5 : vector<10x32xf32>
    %c0_6 = arith.constant 0 : index
    %c0_7 = arith.constant 0 : index
    %c0_8 = arith.constant 0 : index
    %7 = vector.load %arg2[%c0_6, %c0_7, %c0_8] : memref<1x1x10xf32, #tpu.memory_space<vmem>>, vector<1x1x10xf32>
    %8 = vector.shape_cast %7 : vector<1x1x10xf32> to vector<1x10xf32>
    %c0_9 = arith.constant 0 : index
    %c0_10 = arith.constant 0 : index
    %9 = vector.load %arg5[%c0_9, %c0_10] : memref<8x32xf32, #tpu.memory_space<vmem>>, vector<8x32xf32>
    %c0_11 = arith.constant 0 : index
    %c0_12 = arith.constant 0 : index
    %c0_13 = arith.constant 0 : index
    %10 = vector.load %arg6[%c0_11, %c0_12, %c0_13] : memref<2x32x96xf32, #tpu.memory_space<vmem>>, vector<1x32x96xf32>
    %11 = vector.shape_cast %10 : vector<1x32x96xf32> to vector<32x96xf32>
    %c0_14 = arith.constant 0 : index
    %c0_15 = arith.constant 0 : index
    %c0_16 = arith.constant 0 : index
    %12 = vector.load %arg7[%c0_14, %c0_15, %c0_16] : memref<2x1x96xf32, #tpu.memory_space<vmem>>, vector<1x1x96xf32>
    %13 = vector.shape_cast %12 : vector<1x1x96xf32> to vector<1x96xf32>
    %c0_17 = arith.constant 0 : index
    %c0_18 = arith.constant 0 : index
    %c0_19 = arith.constant 0 : index
    %14 = vector.load %arg8[%c0_17, %c0_18, %c0_19] : memref<2x32x32xf32, #tpu.memory_space<vmem>>, vector<1x32x32xf32>
    %15 = vector.shape_cast %14 : vector<1x32x32xf32> to vector<32x32xf32>
    %c0_20 = arith.constant 0 : index
    %c0_21 = arith.constant 0 : index
    %c0_22 = arith.constant 0 : index
    %16 = vector.load %arg9[%c0_20, %c0_21, %c0_22] : memref<2x1x32xf32, #tpu.memory_space<vmem>>, vector<1x1x32xf32>
    %17 = vector.shape_cast %16 : vector<1x1x32xf32> to vector<1x32xf32>
    %cst_23 = arith.constant dense<0.000000e+00> : vector<8x96xf32>
    %18 = tpu.matmul %9, %11, %cst_23 {dimension_numbers = #tpu.dot_dimension_numbers<[1], [0], [0], [1], [0, 0, 1, 1], [], []>} : vector<8x32xf32>, vector<32x96xf32>, vector<8x96xf32> -> vector<8x96xf32>
    %19 = vector.broadcast %13 : vector<1x96xf32> to vector<8x96xf32>
    %20 = arith.addf %18, %19 : vector<8x96xf32>
    %21 = vector.extract_strided_slice %20 {offsets = [0, 0], sizes = [8, 32], strides = [1, 1]} : vector<8x96xf32> to vector<8x32xf32>
    %cst_24 = arith.constant 0.353553385 : f32
    %22 = vector.broadcast %cst_24 : f32 to vector<8x32xf32>
    %23 = arith.mulf %21, %22 : vector<8x32xf32>
    %24 = vector.extract_strided_slice %20 {offsets = [0, 32], sizes = [8, 32], strides = [1, 1]} : vector<8x96xf32> to vector<8x32xf32>
    %25 = vector.extract_strided_slice %20 {offsets = [0, 64], sizes = [8, 32], strides = [1, 1]} : vector<8x96xf32> to vector<8x32xf32>
    %cst_25 = arith.constant 0.000000e+00 : f32
    %26 = vector.broadcast %cst_25 : f32 to vector<8x32xf32>
    %27 = vector.extract_strided_slice %23 {offsets = [0, 0], sizes = [8, 8], strides = [1, 1]} : vector<8x32xf32> to vector<8x8xf32>
    %28 = vector.extract_strided_slice %24 {offsets = [0, 0], sizes = [8, 8], strides = [1, 1]} : vector<8x32xf32> to vector<8x8xf32>
    %cst_26 = arith.constant dense<0.000000e+00> : vector<8x8xf32>
    %29 = tpu.matmul %27, %28, %cst_26 {dimension_numbers = #tpu.dot_dimension_numbers<[1], [1], [0], [0], [0, 0, 1, 0], [], []>} : vector<8x8xf32>, vector<8x8xf32>, vector<8x8xf32> -> vector<8x8xf32>
    %cst_27 = arith.constant dense<0xFF800000> : vector<8xf32>
    %30 = vector.multi_reduction <maximumf>, %29, %cst_27 [1] : vector<8x8xf32> to vector<8xf32>
    %31 = vector.shape_cast %30 : vector<8xf32> to vector<8x1xf32>
    %32 = vector.broadcast %31 : vector<8x1xf32> to vector<8x8xf32>
    %33 = arith.subf %29, %32 : vector<8x8xf32>
    %34 = math.exp %33 : vector<8x8xf32>
    %cst_28 = arith.constant dense<0.000000e+00> : vector<8xf32>
    %35 = vector.multi_reduction <add>, %34, %cst_28 [1] : vector<8x8xf32> to vector<8xf32>
    %36 = vector.shape_cast %35 : vector<8xf32> to vector<8x1xf32>
    %37 = tpu.reciprocal %36 {approx = true} : vector<8x1xf32> -> vector<8x1xf32>
    %38 = vector.extract_strided_slice %25 {offsets = [0, 0], sizes = [8, 8], strides = [1, 1]} : vector<8x32xf32> to vector<8x8xf32>
    %cst_29 = arith.constant dense<0.000000e+00> : vector<8x8xf32>
    %39 = tpu.matmul %34, %38, %cst_29 {dimension_numbers = #tpu.dot_dimension_numbers<[1], [0], [0], [1], [0, 0, 1, 1], [], []>} : vector<8x8xf32>, vector<8x8xf32>, vector<8x8xf32> -> vector<8x8xf32>
    %40 = vector.broadcast %37 : vector<8x1xf32> to vector<8x8xf32>
    %41 = arith.mulf %39, %40 : vector<8x8xf32>
    %42 = vector.extract_strided_slice %15 {offsets = [0, 0], sizes = [8, 32], strides = [1, 1]} : vector<32x32xf32> to vector<8x32xf32>
    %cst_30 = arith.constant dense<0.000000e+00> : vector<8x32xf32>
    %43 = tpu.matmul %41, %42, %cst_30 {dimension_numbers = #tpu.dot_dimension_numbers<[1], [0], [0], [1], [0, 0, 1, 1], [], []>} : vector<8x8xf32>, vector<8x32xf32>, vector<8x32xf32> -> vector<8x32xf32>
    %44 = arith.addf %26, %43 : vector<8x32xf32>
    %45 = vector.extract_strided_slice %23 {offsets = [0, 8], sizes = [8, 8], strides = [1, 1]} : vector<8x32xf32> to vector<8x8xf32>
    %46 = vector.extract_strided_slice %24 {offsets = [0, 8], sizes = [8, 8], strides = [1, 1]} : vector<8x32xf32> to vector<8x8xf32>
    %cst_31 = arith.constant dense<0.000000e+00> : vector<8x8xf32>
    %47 = tpu.matmul %45, %46, %cst_31 {dimension_numbers = #tpu.dot_dimension_numbers<[1], [1], [0], [0], [0, 0, 1, 0], [], []>} : vector<8x8xf32>, vector<8x8xf32>, vector<8x8xf32> -> vector<8x8xf32>
    %cst_32 = arith.constant dense<0xFF800000> : vector<8xf32>
    %48 = vector.multi_reduction <maximumf>, %47, %cst_32 [1] : vector<8x8xf32> to vector<8xf32>
    %49 = vector.shape_cast %48 : vector<8xf32> to vector<8x1xf32>
    %50 = vector.broadcast %49 : vector<8x1xf32> to vector<8x8xf32>
    %51 = arith.subf %47, %50 : vector<8x8xf32>
    %52 = math.exp %51 : vector<8x8xf32>
    %cst_33 = arith.constant dense<0.000000e+00> : vector<8xf32>
    %53 = vector.multi_reduction <add>, %52, %cst_33 [1] : vector<8x8xf32> to vector<8xf32>
    %54 = vector.shape_cast %53 : vector<8xf32> to vector<8x1xf32>
    %55 = tpu.reciprocal %54 {approx = true} : vector<8x1xf32> -> vector<8x1xf32>
    %56 = vector.extract_strided_slice %25 {offsets = [0, 8], sizes = [8, 8], strides = [1, 1]} : vector<8x32xf32> to vector<8x8xf32>
    %cst_34 = arith.constant dense<0.000000e+00> : vector<8x8xf32>
    %57 = tpu.matmul %52, %56, %cst_34 {dimension_numbers = #tpu.dot_dimension_numbers<[1], [0], [0], [1], [0, 0, 1, 1], [], []>} : vector<8x8xf32>, vector<8x8xf32>, vector<8x8xf32> -> vector<8x8xf32>
    %58 = vector.broadcast %55 : vector<8x1xf32> to vector<8x8xf32>
    %59 = arith.mulf %57, %58 : vector<8x8xf32>
    %60 = vector.extract_strided_slice %15 {offsets = [8, 0], sizes = [8, 32], strides = [1, 1]} : vector<32x32xf32> to vector<8x32xf32>
    %cst_35 = arith.constant dense<0.000000e+00> : vector<8x32xf32>
    %61 = tpu.matmul %59, %60, %cst_35 {dimension_numbers = #tpu.dot_dimension_numbers<[1], [0], [0], [1], [0, 0, 1, 1], [], []>} : vector<8x8xf32>, vector<8x32xf32>, vector<8x32xf32> -> vector<8x32xf32>
    %62 = arith.addf %44, %61 : vector<8x32xf32>
    %63 = vector.extract_strided_slice %23 {offsets = [0, 16], sizes = [8, 8], strides = [1, 1]} : vector<8x32xf32> to vector<8x8xf32>
    %64 = vector.extract_strided_slice %24 {offsets = [0, 16], sizes = [8, 8], strides = [1, 1]} : vector<8x32xf32> to vector<8x8xf32>
    %cst_36 = arith.constant dense<0.000000e+00> : vector<8x8xf32>
    %65 = tpu.matmul %63, %64, %cst_36 {dimension_numbers = #tpu.dot_dimension_numbers<[1], [1], [0], [0], [0, 0, 1, 0], [], []>} : vector<8x8xf32>, vector<8x8xf32>, vector<8x8xf32> -> vector<8x8xf32>
    %cst_37 = arith.constant dense<0xFF800000> : vector<8xf32>
    %66 = vector.multi_reduction <maximumf>, %65, %cst_37 [1] : vector<8x8xf32> to vector<8xf32>
    %67 = vector.shape_cast %66 : vector<8xf32> to vector<8x1xf32>
    %68 = vector.broadcast %67 : vector<8x1xf32> to vector<8x8xf32>
    %69 = arith.subf %65, %68 : vector<8x8xf32>
    %70 = math.exp %69 : vector<8x8xf32>
    %cst_38 = arith.constant dense<0.000000e+00> : vector<8xf32>
    %71 = vector.multi_reduction <add>, %70, %cst_38 [1] : vector<8x8xf32> to vector<8xf32>
    %72 = vector.shape_cast %71 : vector<8xf32> to vector<8x1xf32>
    %73 = tpu.reciprocal %72 {approx = true} : vector<8x1xf32> -> vector<8x1xf32>
    %74 = vector.extract_strided_slice %25 {offsets = [0, 16], sizes = [8, 8], strides = [1, 1]} : vector<8x32xf32> to vector<8x8xf32>
    %cst_39 = arith.constant dense<0.000000e+00> : vector<8x8xf32>
    %75 = tpu.matmul %70, %74, %cst_39 {dimension_numbers = #tpu.dot_dimension_numbers<[1], [0], [0], [1], [0, 0, 1, 1], [], []>} : vector<8x8xf32>, vector<8x8xf32>, vector<8x8xf32> -> vector<8x8xf32>
    %76 = vector.broadcast %73 : vector<8x1xf32> to vector<8x8xf32>
    %77 = arith.mulf %75, %76 : vector<8x8xf32>
    %78 = vector.extract_strided_slice %15 {offsets = [16, 0], sizes = [8, 32], strides = [1, 1]} : vector<32x32xf32> to vector<8x32xf32>
    %cst_40 = arith.constant dense<0.000000e+00> : vector<8x32xf32>
    %79 = tpu.matmul %77, %78, %cst_40 {dimension_numbers = #tpu.dot_dimension_numbers<[1], [0], [0], [1], [0, 0, 1, 1], [], []>} : vector<8x8xf32>, vector<8x32xf32>, vector<8x32xf32> -> vector<8x32xf32>
    %80 = arith.addf %62, %79 : vector<8x32xf32>
    %81 = vector.extract_strided_slice %23 {offsets = [0, 24], sizes = [8, 8], strides = [1, 1]} : vector<8x32xf32> to vector<8x8xf32>
    %82 = vector.extract_strided_slice %24 {offsets = [0, 24], sizes = [8, 8], strides = [1, 1]} : vector<8x32xf32> to vector<8x8xf32>
    %cst_41 = arith.constant dense<0.000000e+00> : vector<8x8xf32>
    %83 = tpu.matmul %81, %82, %cst_41 {dimension_numbers = #tpu.dot_dimension_numbers<[1], [1], [0], [0], [0, 0, 1, 0], [], []>} : vector<8x8xf32>, vector<8x8xf32>, vector<8x8xf32> -> vector<8x8xf32>
    %cst_42 = arith.constant dense<0xFF800000> : vector<8xf32>
    %84 = vector.multi_reduction <maximumf>, %83, %cst_42 [1] : vector<8x8xf32> to vector<8xf32>
    %85 = vector.shape_cast %84 : vector<8xf32> to vector<8x1xf32>
    %86 = vector.broadcast %85 : vector<8x1xf32> to vector<8x8xf32>
    %87 = arith.subf %83, %86 : vector<8x8xf32>
    %88 = math.exp %87 : vector<8x8xf32>
    %cst_43 = arith.constant dense<0.000000e+00> : vector<8xf32>
    %89 = vector.multi_reduction <add>, %88, %cst_43 [1] : vector<8x8xf32> to vector<8xf32>
    %90 = vector.shape_cast %89 : vector<8xf32> to vector<8x1xf32>
    %91 = tpu.reciprocal %90 {approx = true} : vector<8x1xf32> -> vector<8x1xf32>
    %92 = vector.extract_strided_slice %25 {offsets = [0, 24], sizes = [8, 8], strides = [1, 1]} : vector<8x32xf32> to vector<8x8xf32>
    %cst_44 = arith.constant dense<0.000000e+00> : vector<8x8xf32>
    %93 = tpu.matmul %88, %92, %cst_44 {dimension_numbers = #tpu.dot_dimension_numbers<[1], [0], [0], [1], [0, 0, 1, 1], [], []>} : vector<8x8xf32>, vector<8x8xf32>, vector<8x8xf32> -> vector<8x8xf32>
    %94 = vector.broadcast %91 : vector<8x1xf32> to vector<8x8xf32>
    %95 = arith.mulf %93, %94 : vector<8x8xf32>
    %96 = vector.extract_strided_slice %15 {offsets = [24, 0], sizes = [8, 32], strides = [1, 1]} : vector<32x32xf32> to vector<8x32xf32>
    %cst_45 = arith.constant dense<0.000000e+00> : vector<8x32xf32>
    %97 = tpu.matmul %95, %96, %cst_45 {dimension_numbers = #tpu.dot_dimension_numbers<[1], [0], [0], [1], [0, 0, 1, 1], [], []>} : vector<8x8xf32>, vector<8x32xf32>, vector<8x32xf32> -> vector<8x32xf32>
    %98 = arith.addf %80, %97 : vector<8x32xf32>
    %99 = vector.broadcast %17 : vector<1x32xf32> to vector<8x32xf32>
    %100 = arith.addf %98, %99 : vector<8x32xf32>
    %101 = arith.addf %9, %100 : vector<8x32xf32>
    %c0_46 = arith.constant 0 : index
    %c0_47 = arith.constant 0 : index
    %c0_48 = arith.constant 0 : index
    %102 = vector.load %arg10[%c0_46, %c0_47, %c0_48] : memref<2x1x32xf32, #tpu.memory_space<vmem>>, vector<1x1x32xf32>
    %103 = vector.shape_cast %102 : vector<1x1x32xf32> to vector<1x32xf32>
    %c0_49 = arith.constant 0 : index
    %c0_50 = arith.constant 0 : index
    %c0_51 = arith.constant 0 : index
    %104 = vector.load %arg11[%c0_49, %c0_50, %c0_51] : memref<2x1x32xf32, #tpu.memory_space<vmem>>, vector<1x1x32xf32>
    %105 = vector.shape_cast %104 : vector<1x1x32xf32> to vector<1x32xf32>
    %cst_52 = arith.constant dense<0.000000e+00> : vector<8xf32>
    %106 = vector.multi_reduction <add>, %101, %cst_52 [1] : vector<8x32xf32> to vector<8xf32>
    %107 = vector.shape_cast %106 : vector<8xf32> to vector<8x1xf32>
    %cst_53 = arith.constant 3.200000e+01 : f32
    %108 = vector.broadcast %cst_53 : f32 to vector<8x1xf32>
    %109 = arith.divf %107, %108 : vector<8x1xf32>
    %110 = vector.broadcast %109 : vector<8x1xf32> to vector<8x32xf32>
    %111 = arith.subf %101, %110 : vector<8x32xf32>
    %112 = arith.mulf %111, %111 : vector<8x32xf32>
    %cst_54 = arith.constant dense<0.000000e+00> : vector<8xf32>
    %113 = vector.multi_reduction <add>, %112, %cst_54 [1] : vector<8x32xf32> to vector<8xf32>
    %114 = vector.shape_cast %113 : vector<8xf32> to vector<8x1xf32>
    %cst_55 = arith.constant 3.200000e+01 : f32
    %115 = vector.broadcast %cst_55 : f32 to vector<8x1xf32>
    %116 = arith.divf %114, %115 : vector<8x1xf32>
    %117 = vector.broadcast %109 : vector<8x1xf32> to vector<8x32xf32>
    %118 = arith.subf %101, %117 : vector<8x32xf32>
    %cst_56 = arith.constant 9.99999974E-6 : f32
    %119 = vector.broadcast %cst_56 : f32 to vector<8x1xf32>
    %120 = arith.addf %116, %119 : vector<8x1xf32>
    %121 = math.rsqrt %120 : vector<8x1xf32>
    %122 = vector.broadcast %121 : vector<8x1xf32> to vector<8x32xf32>
    %123 = arith.mulf %118, %122 : vector<8x32xf32>
    %124 = vector.broadcast %103 : vector<1x32xf32> to vector<8x32xf32>
    %125 = arith.mulf %123, %124 : vector<8x32xf32>
    %126 = vector.broadcast %105 : vector<1x32xf32> to vector<8x32xf32>
    %127 = arith.addf %125, %126 : vector<8x32xf32>
    %c0_57 = arith.constant 0 : index
    %c0_58 = arith.constant 0 : index
    %c0_59 = arith.constant 0 : index
    %128 = vector.load %arg12[%c0_57, %c0_58, %c0_59] : memref<2x32x96xf32, #tpu.memory_space<vmem>>, vector<1x32x96xf32>
    %129 = vector.shape_cast %128 : vector<1x32x96xf32> to vector<32x96xf32>
    %c0_60 = arith.constant 0 : index
    %c0_61 = arith.constant 0 : index
    %c0_62 = arith.constant 0 : index
    %130 = vector.load %arg13[%c0_60, %c0_61, %c0_62] : memref<2x1x96xf32, #tpu.memory_space<vmem>>, vector<1x1x96xf32>
    %131 = vector.shape_cast %130 : vector<1x1x96xf32> to vector<1x96xf32>
    %c0_63 = arith.constant 0 : index
    %c0_64 = arith.constant 0 : index
    %c0_65 = arith.constant 0 : index
    %132 = vector.load %arg14[%c0_63, %c0_64, %c0_65] : memref<2x32x32xf32, #tpu.memory_space<vmem>>, vector<1x32x32xf32>
    %133 = vector.shape_cast %132 : vector<1x32x32xf32> to vector<32x32xf32>
    %c0_66 = arith.constant 0 : index
    %c0_67 = arith.constant 0 : index
    %c0_68 = arith.constant 0 : index
    %134 = vector.load %arg15[%c0_66, %c0_67, %c0_68] : memref<2x1x32xf32, #tpu.memory_space<vmem>>, vector<1x1x32xf32>
    %135 = vector.shape_cast %134 : vector<1x1x32xf32> to vector<1x32xf32>
    %136 = vector.extract_strided_slice %129 {offsets = [0, 0], sizes = [32, 32], strides = [1, 1]} : vector<32x96xf32> to vector<32x32xf32>
    %cst_69 = arith.constant dense<0.000000e+00> : vector<8x32xf32>
    %137 = tpu.matmul %127, %136, %cst_69 {dimension_numbers = #tpu.dot_dimension_numbers<[1], [0], [0], [1], [0, 0, 1, 1], [], []>} : vector<8x32xf32>, vector<32x32xf32>, vector<8x32xf32> -> vector<8x32xf32>
    %138 = vector.extract_strided_slice %131 {offsets = [0, 0], sizes = [1, 32], strides = [1, 1]} : vector<1x96xf32> to vector<1x32xf32>
    %139 = vector.broadcast %138 : vector<1x32xf32> to vector<8x32xf32>
    %140 = arith.addf %137, %139 : vector<8x32xf32>
    %cst_70 = arith.constant 0.353553385 : f32
    %141 = vector.broadcast %cst_70 : f32 to vector<8x32xf32>
    %142 = arith.mulf %140, %141 : vector<8x32xf32>
    %143 = vector.extract_strided_slice %129 {offsets = [0, 32], sizes = [32, 64], strides = [1, 1]} : vector<32x96xf32> to vector<32x64xf32>
    %cst_71 = arith.constant dense<0.000000e+00> : vector<10x64xf32>
    %144 = tpu.matmul %6, %143, %cst_71 {dimension_numbers = #tpu.dot_dimension_numbers<[1], [0], [0], [1], [0, 0, 1, 1], [], []>} : vector<10x32xf32>, vector<32x64xf32>, vector<10x64xf32> -> vector<10x64xf32>
    %145 = vector.extract_strided_slice %131 {offsets = [0, 32], sizes = [1, 64], strides = [1, 1]} : vector<1x96xf32> to vector<1x64xf32>
    %146 = vector.broadcast %145 : vector<1x64xf32> to vector<10x64xf32>
    %147 = arith.addf %144, %146 : vector<10x64xf32>
    %148 = vector.extract_strided_slice %147 {offsets = [0, 0], sizes = [10, 32], strides = [1, 1]} : vector<10x64xf32> to vector<10x32xf32>
    %149 = vector.extract_strided_slice %147 {offsets = [0, 32], sizes = [10, 32], strides = [1, 1]} : vector<10x64xf32> to vector<10x32xf32>
    %cst_72 = arith.constant 0.000000e+00 : f32
    %150 = vector.broadcast %cst_72 : f32 to vector<8x32xf32>
    %151 = vector.extract_strided_slice %142 {offsets = [0, 0], sizes = [8, 8], strides = [1, 1]} : vector<8x32xf32> to vector<8x8xf32>
    %152 = vector.extract_strided_slice %148 {offsets = [0, 0], sizes = [10, 8], strides = [1, 1]} : vector<10x32xf32> to vector<10x8xf32>
    %cst_73 = arith.constant dense<0.000000e+00> : vector<8x10xf32>
    %153 = tpu.matmul %151, %152, %cst_73 {dimension_numbers = #tpu.dot_dimension_numbers<[1], [1], [0], [0], [0, 0, 1, 0], [], []>} : vector<8x8xf32>, vector<10x8xf32>, vector<8x10xf32> -> vector<8x10xf32>
    %154 = vector.broadcast %8 : vector<1x10xf32> to vector<8x10xf32>
    %155 = arith.addf %153, %154 : vector<8x10xf32>
    %cst_74 = arith.constant dense<0xFF800000> : vector<8xf32>
    %156 = vector.multi_reduction <maximumf>, %155, %cst_74 [1] : vector<8x10xf32> to vector<8xf32>
    %157 = vector.shape_cast %156 : vector<8xf32> to vector<8x1xf32>
    %158 = vector.broadcast %157 : vector<8x1xf32> to vector<8x10xf32>
    %159 = arith.subf %155, %158 : vector<8x10xf32>
    %160 = math.exp %159 : vector<8x10xf32>
    %cst_75 = arith.constant dense<0.000000e+00> : vector<8xf32>
    %161 = vector.multi_reduction <add>, %160, %cst_75 [1] : vector<8x10xf32> to vector<8xf32>
    %162 = vector.shape_cast %161 : vector<8xf32> to vector<8x1xf32>
    %163 = tpu.reciprocal %162 {approx = true} : vector<8x1xf32> -> vector<8x1xf32>
    %164 = vector.extract_strided_slice %149 {offsets = [0, 0], sizes = [10, 8], strides = [1, 1]} : vector<10x32xf32> to vector<10x8xf32>
    %cst_76 = arith.constant dense<0.000000e+00> : vector<8x8xf32>
    %165 = tpu.matmul %160, %164, %cst_76 {dimension_numbers = #tpu.dot_dimension_numbers<[1], [0], [0], [1], [0, 0, 1, 1], [], []>} : vector<8x10xf32>, vector<10x8xf32>, vector<8x8xf32> -> vector<8x8xf32>
    %166 = vector.broadcast %163 : vector<8x1xf32> to vector<8x8xf32>
    %167 = arith.mulf %165, %166 : vector<8x8xf32>
    %168 = vector.extract_strided_slice %133 {offsets = [0, 0], sizes = [8, 32], strides = [1, 1]} : vector<32x32xf32> to vector<8x32xf32>
    %cst_77 = arith.constant dense<0.000000e+00> : vector<8x32xf32>
    %169 = tpu.matmul %167, %168, %cst_77 {dimension_numbers = #tpu.dot_dimension_numbers<[1], [0], [0], [1], [0, 0, 1, 1], [], []>} : vector<8x8xf32>, vector<8x32xf32>, vector<8x32xf32> -> vector<8x32xf32>
    %170 = arith.addf %150, %169 : vector<8x32xf32>
    %171 = vector.extract_strided_slice %142 {offsets = [0, 8], sizes = [8, 8], strides = [1, 1]} : vector<8x32xf32> to vector<8x8xf32>
    %172 = vector.extract_strided_slice %148 {offsets = [0, 8], sizes = [10, 8], strides = [1, 1]} : vector<10x32xf32> to vector<10x8xf32>
    %cst_78 = arith.constant dense<0.000000e+00> : vector<8x10xf32>
    %173 = tpu.matmul %171, %172, %cst_78 {dimension_numbers = #tpu.dot_dimension_numbers<[1], [1], [0], [0], [0, 0, 1, 0], [], []>} : vector<8x8xf32>, vector<10x8xf32>, vector<8x10xf32> -> vector<8x10xf32>
    %174 = vector.broadcast %8 : vector<1x10xf32> to vector<8x10xf32>
    %175 = arith.addf %173, %174 : vector<8x10xf32>
    %cst_79 = arith.constant dense<0xFF800000> : vector<8xf32>
    %176 = vector.multi_reduction <maximumf>, %175, %cst_79 [1] : vector<8x10xf32> to vector<8xf32>
    %177 = vector.shape_cast %176 : vector<8xf32> to vector<8x1xf32>
    %178 = vector.broadcast %177 : vector<8x1xf32> to vector<8x10xf32>
    %179 = arith.subf %175, %178 : vector<8x10xf32>
    %180 = math.exp %179 : vector<8x10xf32>
    %cst_80 = arith.constant dense<0.000000e+00> : vector<8xf32>
    %181 = vector.multi_reduction <add>, %180, %cst_80 [1] : vector<8x10xf32> to vector<8xf32>
    %182 = vector.shape_cast %181 : vector<8xf32> to vector<8x1xf32>
    %183 = tpu.reciprocal %182 {approx = true} : vector<8x1xf32> -> vector<8x1xf32>
    %184 = vector.extract_strided_slice %149 {offsets = [0, 8], sizes = [10, 8], strides = [1, 1]} : vector<10x32xf32> to vector<10x8xf32>
    %cst_81 = arith.constant dense<0.000000e+00> : vector<8x8xf32>
    %185 = tpu.matmul %180, %184, %cst_81 {dimension_numbers = #tpu.dot_dimension_numbers<[1], [0], [0], [1], [0, 0, 1, 1], [], []>} : vector<8x10xf32>, vector<10x8xf32>, vector<8x8xf32> -> vector<8x8xf32>
    %186 = vector.broadcast %183 : vector<8x1xf32> to vector<8x8xf32>
    %187 = arith.mulf %185, %186 : vector<8x8xf32>
    %188 = vector.extract_strided_slice %133 {offsets = [8, 0], sizes = [8, 32], strides = [1, 1]} : vector<32x32xf32> to vector<8x32xf32>
    %cst_82 = arith.constant dense<0.000000e+00> : vector<8x32xf32>
    %189 = tpu.matmul %187, %188, %cst_82 {dimension_numbers = #tpu.dot_dimension_numbers<[1], [0], [0], [1], [0, 0, 1, 1], [], []>} : vector<8x8xf32>, vector<8x32xf32>, vector<8x32xf32> -> vector<8x32xf32>
    %190 = arith.addf %170, %189 : vector<8x32xf32>
    %191 = vector.extract_strided_slice %142 {offsets = [0, 16], sizes = [8, 8], strides = [1, 1]} : vector<8x32xf32> to vector<8x8xf32>
    %192 = vector.extract_strided_slice %148 {offsets = [0, 16], sizes = [10, 8], strides = [1, 1]} : vector<10x32xf32> to vector<10x8xf32>
    %cst_83 = arith.constant dense<0.000000e+00> : vector<8x10xf32>
    %193 = tpu.matmul %191, %192, %cst_83 {dimension_numbers = #tpu.dot_dimension_numbers<[1], [1], [0], [0], [0, 0, 1, 0], [], []>} : vector<8x8xf32>, vector<10x8xf32>, vector<8x10xf32> -> vector<8x10xf32>
    %194 = vector.broadcast %8 : vector<1x10xf32> to vector<8x10xf32>
    %195 = arith.addf %193, %194 : vector<8x10xf32>
    %cst_84 = arith.constant dense<0xFF800000> : vector<8xf32>
    %196 = vector.multi_reduction <maximumf>, %195, %cst_84 [1] : vector<8x10xf32> to vector<8xf32>
    %197 = vector.shape_cast %196 : vector<8xf32> to vector<8x1xf32>
    %198 = vector.broadcast %197 : vector<8x1xf32> to vector<8x10xf32>
    %199 = arith.subf %195, %198 : vector<8x10xf32>
    %200 = math.exp %199 : vector<8x10xf32>
    %cst_85 = arith.constant dense<0.000000e+00> : vector<8xf32>
    %201 = vector.multi_reduction <add>, %200, %cst_85 [1] : vector<8x10xf32> to vector<8xf32>
    %202 = vector.shape_cast %201 : vector<8xf32> to vector<8x1xf32>
    %203 = tpu.reciprocal %202 {approx = true} : vector<8x1xf32> -> vector<8x1xf32>
    %204 = vector.extract_strided_slice %149 {offsets = [0, 16], sizes = [10, 8], strides = [1, 1]} : vector<10x32xf32> to vector<10x8xf32>
    %cst_86 = arith.constant dense<0.000000e+00> : vector<8x8xf32>
    %205 = tpu.matmul %200, %204, %cst_86 {dimension_numbers = #tpu.dot_dimension_numbers<[1], [0], [0], [1], [0, 0, 1, 1], [], []>} : vector<8x10xf32>, vector<10x8xf32>, vector<8x8xf32> -> vector<8x8xf32>
    %206 = vector.broadcast %203 : vector<8x1xf32> to vector<8x8xf32>
    %207 = arith.mulf %205, %206 : vector<8x8xf32>
    %208 = vector.extract_strided_slice %133 {offsets = [16, 0], sizes = [8, 32], strides = [1, 1]} : vector<32x32xf32> to vector<8x32xf32>
    %cst_87 = arith.constant dense<0.000000e+00> : vector<8x32xf32>
    %209 = tpu.matmul %207, %208, %cst_87 {dimension_numbers = #tpu.dot_dimension_numbers<[1], [0], [0], [1], [0, 0, 1, 1], [], []>} : vector<8x8xf32>, vector<8x32xf32>, vector<8x32xf32> -> vector<8x32xf32>
    %210 = arith.addf %190, %209 : vector<8x32xf32>
    %211 = vector.extract_strided_slice %142 {offsets = [0, 24], sizes = [8, 8], strides = [1, 1]} : vector<8x32xf32> to vector<8x8xf32>
    %212 = vector.extract_strided_slice %148 {offsets = [0, 24], sizes = [10, 8], strides = [1, 1]} : vector<10x32xf32> to vector<10x8xf32>
    %cst_88 = arith.constant dense<0.000000e+00> : vector<8x10xf32>
    %213 = tpu.matmul %211, %212, %cst_88 {dimension_numbers = #tpu.dot_dimension_numbers<[1], [1], [0], [0], [0, 0, 1, 0], [], []>} : vector<8x8xf32>, vector<10x8xf32>, vector<8x10xf32> -> vector<8x10xf32>
    %214 = vector.broadcast %8 : vector<1x10xf32> to vector<8x10xf32>
    %215 = arith.addf %213, %214 : vector<8x10xf32>
    %cst_89 = arith.constant dense<0xFF800000> : vector<8xf32>
    %216 = vector.multi_reduction <maximumf>, %215, %cst_89 [1] : vector<8x10xf32> to vector<8xf32>
    %217 = vector.shape_cast %216 : vector<8xf32> to vector<8x1xf32>
    %218 = vector.broadcast %217 : vector<8x1xf32> to vector<8x10xf32>
    %219 = arith.subf %215, %218 : vector<8x10xf32>
    %220 = math.exp %219 : vector<8x10xf32>
    %cst_90 = arith.constant dense<0.000000e+00> : vector<8xf32>
    %221 = vector.multi_reduction <add>, %220, %cst_90 [1] : vector<8x10xf32> to vector<8xf32>
    %222 = vector.shape_cast %221 : vector<8xf32> to vector<8x1xf32>
    %223 = tpu.reciprocal %222 {approx = true} : vector<8x1xf32> -> vector<8x1xf32>
    %224 = vector.extract_strided_slice %149 {offsets = [0, 24], sizes = [10, 8], strides = [1, 1]} : vector<10x32xf32> to vector<10x8xf32>
    %cst_91 = arith.constant dense<0.000000e+00> : vector<8x8xf32>
    %225 = tpu.matmul %220, %224, %cst_91 {dimension_numbers = #tpu.dot_dimension_numbers<[1], [0], [0], [1], [0, 0, 1, 1], [], []>} : vector<8x10xf32>, vector<10x8xf32>, vector<8x8xf32> -> vector<8x8xf32>
    %226 = vector.broadcast %223 : vector<8x1xf32> to vector<8x8xf32>
    %227 = arith.mulf %225, %226 : vector<8x8xf32>
    %228 = vector.extract_strided_slice %133 {offsets = [24, 0], sizes = [8, 32], strides = [1, 1]} : vector<32x32xf32> to vector<8x32xf32>
    %cst_92 = arith.constant dense<0.000000e+00> : vector<8x32xf32>
    %229 = tpu.matmul %227, %228, %cst_92 {dimension_numbers = #tpu.dot_dimension_numbers<[1], [0], [0], [1], [0, 0, 1, 1], [], []>} : vector<8x8xf32>, vector<8x32xf32>, vector<8x32xf32> -> vector<8x32xf32>
    %230 = arith.addf %210, %229 : vector<8x32xf32>
    %231 = vector.broadcast %135 : vector<1x32xf32> to vector<8x32xf32>
    %232 = arith.addf %230, %231 : vector<8x32xf32>
    %233 = arith.addf %127, %232 : vector<8x32xf32>
    %c0_93 = arith.constant 0 : index
    %c0_94 = arith.constant 0 : index
    %c0_95 = arith.constant 0 : index
    %234 = vector.load %arg16[%c0_93, %c0_94, %c0_95] : memref<2x1x32xf32, #tpu.memory_space<vmem>>, vector<1x1x32xf32>
    %235 = vector.shape_cast %234 : vector<1x1x32xf32> to vector<1x32xf32>
    %c0_96 = arith.constant 0 : index
    %c0_97 = arith.constant 0 : index
    %c0_98 = arith.constant 0 : index
    %236 = vector.load %arg17[%c0_96, %c0_97, %c0_98] : memref<2x1x32xf32, #tpu.memory_space<vmem>>, vector<1x1x32xf32>
    %237 = vector.shape_cast %236 : vector<1x1x32xf32> to vector<1x32xf32>
    %cst_99 = arith.constant dense<0.000000e+00> : vector<8xf32>
    %238 = vector.multi_reduction <add>, %233, %cst_99 [1] : vector<8x32xf32> to vector<8xf32>
    %239 = vector.shape_cast %238 : vector<8xf32> to vector<8x1xf32>
    %cst_100 = arith.constant 3.200000e+01 : f32
    %240 = vector.broadcast %cst_100 : f32 to vector<8x1xf32>
    %241 = arith.divf %239, %240 : vector<8x1xf32>
    %242 = vector.broadcast %241 : vector<8x1xf32> to vector<8x32xf32>
    %243 = arith.subf %233, %242 : vector<8x32xf32>
    %244 = arith.mulf %243, %243 : vector<8x32xf32>
    %cst_101 = arith.constant dense<0.000000e+00> : vector<8xf32>
    %245 = vector.multi_reduction <add>, %244, %cst_101 [1] : vector<8x32xf32> to vector<8xf32>
    %246 = vector.shape_cast %245 : vector<8xf32> to vector<8x1xf32>
    %cst_102 = arith.constant 3.200000e+01 : f32
    %247 = vector.broadcast %cst_102 : f32 to vector<8x1xf32>
    %248 = arith.divf %246, %247 : vector<8x1xf32>
    %249 = vector.broadcast %241 : vector<8x1xf32> to vector<8x32xf32>
    %250 = arith.subf %233, %249 : vector<8x32xf32>
    %cst_103 = arith.constant 9.99999974E-6 : f32
    %251 = vector.broadcast %cst_103 : f32 to vector<8x1xf32>
    %252 = arith.addf %248, %251 : vector<8x1xf32>
    %253 = math.rsqrt %252 : vector<8x1xf32>
    %254 = vector.broadcast %253 : vector<8x1xf32> to vector<8x32xf32>
    %255 = arith.mulf %250, %254 : vector<8x32xf32>
    %256 = vector.broadcast %235 : vector<1x32xf32> to vector<8x32xf32>
    %257 = arith.mulf %255, %256 : vector<8x32xf32>
    %258 = vector.broadcast %237 : vector<1x32xf32> to vector<8x32xf32>
    %259 = arith.addf %257, %258 : vector<8x32xf32>
    %c0_104 = arith.constant 0 : index
    %c0_105 = arith.constant 0 : index
    %c0_106 = arith.constant 0 : index
    %260 = vector.load %arg18[%c0_104, %c0_105, %c0_106] : memref<2x32x64xf32, #tpu.memory_space<vmem>>, vector<1x32x64xf32>
    %261 = vector.shape_cast %260 : vector<1x32x64xf32> to vector<32x64xf32>
    %cst_107 = arith.constant dense<0.000000e+00> : vector<8x64xf32>
    %262 = tpu.matmul %259, %261, %cst_107 {dimension_numbers = #tpu.dot_dimension_numbers<[1], [0], [0], [1], [0, 0, 1, 1], [], []>} : vector<8x32xf32>, vector<32x64xf32>, vector<8x64xf32> -> vector<8x64xf32>
    %c0_108 = arith.constant 0 : index
    %c0_109 = arith.constant 0 : index
    %c0_110 = arith.constant 0 : index
    %263 = vector.load %arg19[%c0_108, %c0_109, %c0_110] : memref<2x1x64xf32, #tpu.memory_space<vmem>>, vector<1x1x64xf32>
    %264 = vector.shape_cast %263 : vector<1x1x64xf32> to vector<1x64xf32>
    %265 = vector.broadcast %264 : vector<1x64xf32> to vector<8x64xf32>
    %266 = arith.addf %262, %265 : vector<8x64xf32>
    %cst_111 = arith.constant 0.000000e+00 : f32
    %267 = vector.broadcast %cst_111 : f32 to vector<8x64xf32>
    %268 = arith.maximumf %266, %267 : vector<8x64xf32>
    %c0_112 = arith.constant 0 : index
    %c0_113 = arith.constant 0 : index
    %c0_114 = arith.constant 0 : index
    %269 = vector.load %arg20[%c0_112, %c0_113, %c0_114] : memref<2x64x32xf32, #tpu.memory_space<vmem>>, vector<1x64x32xf32>
    %270 = vector.shape_cast %269 : vector<1x64x32xf32> to vector<64x32xf32>
    %cst_115 = arith.constant dense<0.000000e+00> : vector<8x32xf32>
    %271 = tpu.matmul %268, %270, %cst_115 {dimension_numbers = #tpu.dot_dimension_numbers<[1], [0], [0], [1], [0, 0, 1, 1], [], []>} : vector<8x64xf32>, vector<64x32xf32>, vector<8x32xf32> -> vector<8x32xf32>
    %c0_116 = arith.constant 0 : index
    %c0_117 = arith.constant 0 : index
    %c0_118 = arith.constant 0 : index
    %272 = vector.load %arg21[%c0_116, %c0_117, %c0_118] : memref<2x1x32xf32, #tpu.memory_space<vmem>>, vector<1x1x32xf32>
    %273 = vector.shape_cast %272 : vector<1x1x32xf32> to vector<1x32xf32>
    %274 = vector.broadcast %273 : vector<1x32xf32> to vector<8x32xf32>
    %275 = arith.addf %271, %274 : vector<8x32xf32>
    %276 = arith.addf %259, %275 : vector<8x32xf32>
    %c0_119 = arith.constant 0 : index
    %c0_120 = arith.constant 0 : index
    %c0_121 = arith.constant 0 : index
    %277 = vector.load %arg22[%c0_119, %c0_120, %c0_121] : memref<2x1x32xf32, #tpu.memory_space<vmem>>, vector<1x1x32xf32>
    %278 = vector.shape_cast %277 : vector<1x1x32xf32> to vector<1x32xf32>
    %c0_122 = arith.constant 0 : index
    %c0_123 = arith.constant 0 : index
    %c0_124 = arith.constant 0 : index
    %279 = vector.load %arg23[%c0_122, %c0_123, %c0_124] : memref<2x1x32xf32, #tpu.memory_space<vmem>>, vector<1x1x32xf32>
    %280 = vector.shape_cast %279 : vector<1x1x32xf32> to vector<1x32xf32>
    %cst_125 = arith.constant dense<0.000000e+00> : vector<8xf32>
    %281 = vector.multi_reduction <add>, %276, %cst_125 [1] : vector<8x32xf32> to vector<8xf32>
    %282 = vector.shape_cast %281 : vector<8xf32> to vector<8x1xf32>
    %cst_126 = arith.constant 3.200000e+01 : f32
    %283 = vector.broadcast %cst_126 : f32 to vector<8x1xf32>
    %284 = arith.divf %282, %283 : vector<8x1xf32>
    %285 = vector.broadcast %284 : vector<8x1xf32> to vector<8x32xf32>
    %286 = arith.subf %276, %285 : vector<8x32xf32>
    %287 = arith.mulf %286, %286 : vector<8x32xf32>
    %cst_127 = arith.constant dense<0.000000e+00> : vector<8xf32>
    %288 = vector.multi_reduction <add>, %287, %cst_127 [1] : vector<8x32xf32> to vector<8xf32>
    %289 = vector.shape_cast %288 : vector<8xf32> to vector<8x1xf32>
    %cst_128 = arith.constant 3.200000e+01 : f32
    %290 = vector.broadcast %cst_128 : f32 to vector<8x1xf32>
    %291 = arith.divf %289, %290 : vector<8x1xf32>
    %292 = vector.broadcast %284 : vector<8x1xf32> to vector<8x32xf32>
    %293 = arith.subf %276, %292 : vector<8x32xf32>
    %cst_129 = arith.constant 9.99999974E-6 : f32
    %294 = vector.broadcast %cst_129 : f32 to vector<8x1xf32>
    %295 = arith.addf %291, %294 : vector<8x1xf32>
    %296 = math.rsqrt %295 : vector<8x1xf32>
    %297 = vector.broadcast %296 : vector<8x1xf32> to vector<8x32xf32>
    %298 = arith.mulf %293, %297 : vector<8x32xf32>
    %299 = vector.broadcast %278 : vector<1x32xf32> to vector<8x32xf32>
    %300 = arith.mulf %298, %299 : vector<8x32xf32>
    %301 = vector.broadcast %280 : vector<1x32xf32> to vector<8x32xf32>
    %302 = arith.addf %300, %301 : vector<8x32xf32>
    %c1 = arith.constant 1 : index
    %c0_130 = arith.constant 0 : index
    %c0_131 = arith.constant 0 : index
    %303 = vector.load %arg6[%c1, %c0_130, %c0_131] : memref<2x32x96xf32, #tpu.memory_space<vmem>>, vector<1x32x96xf32>
    %304 = vector.shape_cast %303 : vector<1x32x96xf32> to vector<32x96xf32>
    %c1_132 = arith.constant 1 : index
    %c0_133 = arith.constant 0 : index
    %c0_134 = arith.constant 0 : index
    %305 = vector.load %arg7[%c1_132, %c0_133, %c0_134] : memref<2x1x96xf32, #tpu.memory_space<vmem>>, vector<1x1x96xf32>
    %306 = vector.shape_cast %305 : vector<1x1x96xf32> to vector<1x96xf32>
    %c1_135 = arith.constant 1 : index
    %c0_136 = arith.constant 0 : index
    %c0_137 = arith.constant 0 : index
    %307 = vector.load %arg8[%c1_135, %c0_136, %c0_137] : memref<2x32x32xf32, #tpu.memory_space<vmem>>, vector<1x32x32xf32>
    %308 = vector.shape_cast %307 : vector<1x32x32xf32> to vector<32x32xf32>
    %c1_138 = arith.constant 1 : index
    %c0_139 = arith.constant 0 : index
    %c0_140 = arith.constant 0 : index
    %309 = vector.load %arg9[%c1_138, %c0_139, %c0_140] : memref<2x1x32xf32, #tpu.memory_space<vmem>>, vector<1x1x32xf32>
    %310 = vector.shape_cast %309 : vector<1x1x32xf32> to vector<1x32xf32>
    %cst_141 = arith.constant dense<0.000000e+00> : vector<8x96xf32>
    %311 = tpu.matmul %302, %304, %cst_141 {dimension_numbers = #tpu.dot_dimension_numbers<[1], [0], [0], [1], [0, 0, 1, 1], [], []>} : vector<8x32xf32>, vector<32x96xf32>, vector<8x96xf32> -> vector<8x96xf32>
    %312 = vector.broadcast %306 : vector<1x96xf32> to vector<8x96xf32>
    %313 = arith.addf %311, %312 : vector<8x96xf32>
    %314 = vector.extract_strided_slice %313 {offsets = [0, 0], sizes = [8, 32], strides = [1, 1]} : vector<8x96xf32> to vector<8x32xf32>
    %cst_142 = arith.constant 0.353553385 : f32
    %315 = vector.broadcast %cst_142 : f32 to vector<8x32xf32>
    %316 = arith.mulf %314, %315 : vector<8x32xf32>
    %317 = vector.extract_strided_slice %313 {offsets = [0, 32], sizes = [8, 32], strides = [1, 1]} : vector<8x96xf32> to vector<8x32xf32>
    %318 = vector.extract_strided_slice %313 {offsets = [0, 64], sizes = [8, 32], strides = [1, 1]} : vector<8x96xf32> to vector<8x32xf32>
    %cst_143 = arith.constant 0.000000e+00 : f32
    %319 = vector.broadcast %cst_143 : f32 to vector<8x32xf32>
    %320 = vector.extract_strided_slice %316 {offsets = [0, 0], sizes = [8, 8], strides = [1, 1]} : vector<8x32xf32> to vector<8x8xf32>
    %321 = vector.extract_strided_slice %317 {offsets = [0, 0], sizes = [8, 8], strides = [1, 1]} : vector<8x32xf32> to vector<8x8xf32>
    %cst_144 = arith.constant dense<0.000000e+00> : vector<8x8xf32>
    %322 = tpu.matmul %320, %321, %cst_144 {dimension_numbers = #tpu.dot_dimension_numbers<[1], [1], [0], [0], [0, 0, 1, 0], [], []>} : vector<8x8xf32>, vector<8x8xf32>, vector<8x8xf32> -> vector<8x8xf32>
    %cst_145 = arith.constant dense<0xFF800000> : vector<8xf32>
    %323 = vector.multi_reduction <maximumf>, %322, %cst_145 [1] : vector<8x8xf32> to vector<8xf32>
    %324 = vector.shape_cast %323 : vector<8xf32> to vector<8x1xf32>
    %325 = vector.broadcast %324 : vector<8x1xf32> to vector<8x8xf32>
    %326 = arith.subf %322, %325 : vector<8x8xf32>
    %327 = math.exp %326 : vector<8x8xf32>
    %cst_146 = arith.constant dense<0.000000e+00> : vector<8xf32>
    %328 = vector.multi_reduction <add>, %327, %cst_146 [1] : vector<8x8xf32> to vector<8xf32>
    %329 = vector.shape_cast %328 : vector<8xf32> to vector<8x1xf32>
    %330 = tpu.reciprocal %329 {approx = true} : vector<8x1xf32> -> vector<8x1xf32>
    %331 = vector.extract_strided_slice %318 {offsets = [0, 0], sizes = [8, 8], strides = [1, 1]} : vector<8x32xf32> to vector<8x8xf32>
    %cst_147 = arith.constant dense<0.000000e+00> : vector<8x8xf32>
    %332 = tpu.matmul %327, %331, %cst_147 {dimension_numbers = #tpu.dot_dimension_numbers<[1], [0], [0], [1], [0, 0, 1, 1], [], []>} : vector<8x8xf32>, vector<8x8xf32>, vector<8x8xf32> -> vector<8x8xf32>
    %333 = vector.broadcast %330 : vector<8x1xf32> to vector<8x8xf32>
    %334 = arith.mulf %332, %333 : vector<8x8xf32>
    %335 = vector.extract_strided_slice %308 {offsets = [0, 0], sizes = [8, 32], strides = [1, 1]} : vector<32x32xf32> to vector<8x32xf32>
    %cst_148 = arith.constant dense<0.000000e+00> : vector<8x32xf32>
    %336 = tpu.matmul %334, %335, %cst_148 {dimension_numbers = #tpu.dot_dimension_numbers<[1], [0], [0], [1], [0, 0, 1, 1], [], []>} : vector<8x8xf32>, vector<8x32xf32>, vector<8x32xf32> -> vector<8x32xf32>
    %337 = arith.addf %319, %336 : vector<8x32xf32>
    %338 = vector.extract_strided_slice %316 {offsets = [0, 8], sizes = [8, 8], strides = [1, 1]} : vector<8x32xf32> to vector<8x8xf32>
    %339 = vector.extract_strided_slice %317 {offsets = [0, 8], sizes = [8, 8], strides = [1, 1]} : vector<8x32xf32> to vector<8x8xf32>
    %cst_149 = arith.constant dense<0.000000e+00> : vector<8x8xf32>
    %340 = tpu.matmul %338, %339, %cst_149 {dimension_numbers = #tpu.dot_dimension_numbers<[1], [1], [0], [0], [0, 0, 1, 0], [], []>} : vector<8x8xf32>, vector<8x8xf32>, vector<8x8xf32> -> vector<8x8xf32>
    %cst_150 = arith.constant dense<0xFF800000> : vector<8xf32>
    %341 = vector.multi_reduction <maximumf>, %340, %cst_150 [1] : vector<8x8xf32> to vector<8xf32>
    %342 = vector.shape_cast %341 : vector<8xf32> to vector<8x1xf32>
    %343 = vector.broadcast %342 : vector<8x1xf32> to vector<8x8xf32>
    %344 = arith.subf %340, %343 : vector<8x8xf32>
    %345 = math.exp %344 : vector<8x8xf32>
    %cst_151 = arith.constant dense<0.000000e+00> : vector<8xf32>
    %346 = vector.multi_reduction <add>, %345, %cst_151 [1] : vector<8x8xf32> to vector<8xf32>
    %347 = vector.shape_cast %346 : vector<8xf32> to vector<8x1xf32>
    %348 = tpu.reciprocal %347 {approx = true} : vector<8x1xf32> -> vector<8x1xf32>
    %349 = vector.extract_strided_slice %318 {offsets = [0, 8], sizes = [8, 8], strides = [1, 1]} : vector<8x32xf32> to vector<8x8xf32>
    %cst_152 = arith.constant dense<0.000000e+00> : vector<8x8xf32>
    %350 = tpu.matmul %345, %349, %cst_152 {dimension_numbers = #tpu.dot_dimension_numbers<[1], [0], [0], [1], [0, 0, 1, 1], [], []>} : vector<8x8xf32>, vector<8x8xf32>, vector<8x8xf32> -> vector<8x8xf32>
    %351 = vector.broadcast %348 : vector<8x1xf32> to vector<8x8xf32>
    %352 = arith.mulf %350, %351 : vector<8x8xf32>
    %353 = vector.extract_strided_slice %308 {offsets = [8, 0], sizes = [8, 32], strides = [1, 1]} : vector<32x32xf32> to vector<8x32xf32>
    %cst_153 = arith.constant dense<0.000000e+00> : vector<8x32xf32>
    %354 = tpu.matmul %352, %353, %cst_153 {dimension_numbers = #tpu.dot_dimension_numbers<[1], [0], [0], [1], [0, 0, 1, 1], [], []>} : vector<8x8xf32>, vector<8x32xf32>, vector<8x32xf32> -> vector<8x32xf32>
    %355 = arith.addf %337, %354 : vector<8x32xf32>
    %356 = vector.extract_strided_slice %316 {offsets = [0, 16], sizes = [8, 8], strides = [1, 1]} : vector<8x32xf32> to vector<8x8xf32>
    %357 = vector.extract_strided_slice %317 {offsets = [0, 16], sizes = [8, 8], strides = [1, 1]} : vector<8x32xf32> to vector<8x8xf32>
    %cst_154 = arith.constant dense<0.000000e+00> : vector<8x8xf32>
    %358 = tpu.matmul %356, %357, %cst_154 {dimension_numbers = #tpu.dot_dimension_numbers<[1], [1], [0], [0], [0, 0, 1, 0], [], []>} : vector<8x8xf32>, vector<8x8xf32>, vector<8x8xf32> -> vector<8x8xf32>
    %cst_155 = arith.constant dense<0xFF800000> : vector<8xf32>
    %359 = vector.multi_reduction <maximumf>, %358, %cst_155 [1] : vector<8x8xf32> to vector<8xf32>
    %360 = vector.shape_cast %359 : vector<8xf32> to vector<8x1xf32>
    %361 = vector.broadcast %360 : vector<8x1xf32> to vector<8x8xf32>
    %362 = arith.subf %358, %361 : vector<8x8xf32>
    %363 = math.exp %362 : vector<8x8xf32>
    %cst_156 = arith.constant dense<0.000000e+00> : vector<8xf32>
    %364 = vector.multi_reduction <add>, %363, %cst_156 [1] : vector<8x8xf32> to vector<8xf32>
    %365 = vector.shape_cast %364 : vector<8xf32> to vector<8x1xf32>
    %366 = tpu.reciprocal %365 {approx = true} : vector<8x1xf32> -> vector<8x1xf32>
    %367 = vector.extract_strided_slice %318 {offsets = [0, 16], sizes = [8, 8], strides = [1, 1]} : vector<8x32xf32> to vector<8x8xf32>
    %cst_157 = arith.constant dense<0.000000e+00> : vector<8x8xf32>
    %368 = tpu.matmul %363, %367, %cst_157 {dimension_numbers = #tpu.dot_dimension_numbers<[1], [0], [0], [1], [0, 0, 1, 1], [], []>} : vector<8x8xf32>, vector<8x8xf32>, vector<8x8xf32> -> vector<8x8xf32>
    %369 = vector.broadcast %366 : vector<8x1xf32> to vector<8x8xf32>
    %370 = arith.mulf %368, %369 : vector<8x8xf32>
    %371 = vector.extract_strided_slice %308 {offsets = [16, 0], sizes = [8, 32], strides = [1, 1]} : vector<32x32xf32> to vector<8x32xf32>
    %cst_158 = arith.constant dense<0.000000e+00> : vector<8x32xf32>
    %372 = tpu.matmul %370, %371, %cst_158 {dimension_numbers = #tpu.dot_dimension_numbers<[1], [0], [0], [1], [0, 0, 1, 1], [], []>} : vector<8x8xf32>, vector<8x32xf32>, vector<8x32xf32> -> vector<8x32xf32>
    %373 = arith.addf %355, %372 : vector<8x32xf32>
    %374 = vector.extract_strided_slice %316 {offsets = [0, 24], sizes = [8, 8], strides = [1, 1]} : vector<8x32xf32> to vector<8x8xf32>
    %375 = vector.extract_strided_slice %317 {offsets = [0, 24], sizes = [8, 8], strides = [1, 1]} : vector<8x32xf32> to vector<8x8xf32>
    %cst_159 = arith.constant dense<0.000000e+00> : vector<8x8xf32>
    %376 = tpu.matmul %374, %375, %cst_159 {dimension_numbers = #tpu.dot_dimension_numbers<[1], [1], [0], [0], [0, 0, 1, 0], [], []>} : vector<8x8xf32>, vector<8x8xf32>, vector<8x8xf32> -> vector<8x8xf32>
    %cst_160 = arith.constant dense<0xFF800000> : vector<8xf32>
    %377 = vector.multi_reduction <maximumf>, %376, %cst_160 [1] : vector<8x8xf32> to vector<8xf32>
    %378 = vector.shape_cast %377 : vector<8xf32> to vector<8x1xf32>
    %379 = vector.broadcast %378 : vector<8x1xf32> to vector<8x8xf32>
    %380 = arith.subf %376, %379 : vector<8x8xf32>
    %381 = math.exp %380 : vector<8x8xf32>
    %cst_161 = arith.constant dense<0.000000e+00> : vector<8xf32>
    %382 = vector.multi_reduction <add>, %381, %cst_161 [1] : vector<8x8xf32> to vector<8xf32>
    %383 = vector.shape_cast %382 : vector<8xf32> to vector<8x1xf32>
    %384 = tpu.reciprocal %383 {approx = true} : vector<8x1xf32> -> vector<8x1xf32>
    %385 = vector.extract_strided_slice %318 {offsets = [0, 24], sizes = [8, 8], strides = [1, 1]} : vector<8x32xf32> to vector<8x8xf32>
    %cst_162 = arith.constant dense<0.000000e+00> : vector<8x8xf32>
    %386 = tpu.matmul %381, %385, %cst_162 {dimension_numbers = #tpu.dot_dimension_numbers<[1], [0], [0], [1], [0, 0, 1, 1], [], []>} : vector<8x8xf32>, vector<8x8xf32>, vector<8x8xf32> -> vector<8x8xf32>
    %387 = vector.broadcast %384 : vector<8x1xf32> to vector<8x8xf32>
    %388 = arith.mulf %386, %387 : vector<8x8xf32>
    %389 = vector.extract_strided_slice %308 {offsets = [24, 0], sizes = [8, 32], strides = [1, 1]} : vector<32x32xf32> to vector<8x32xf32>
    %cst_163 = arith.constant dense<0.000000e+00> : vector<8x32xf32>
    %390 = tpu.matmul %388, %389, %cst_163 {dimension_numbers = #tpu.dot_dimension_numbers<[1], [0], [0], [1], [0, 0, 1, 1], [], []>} : vector<8x8xf32>, vector<8x32xf32>, vector<8x32xf32> -> vector<8x32xf32>
    %391 = arith.addf %373, %390 : vector<8x32xf32>
    %392 = vector.broadcast %310 : vector<1x32xf32> to vector<8x32xf32>
    %393 = arith.addf %391, %392 : vector<8x32xf32>
    %394 = arith.addf %302, %393 : vector<8x32xf32>
    %c1_164 = arith.constant 1 : index
    %c0_165 = arith.constant 0 : index
    %c0_166 = arith.constant 0 : index
    %395 = vector.load %arg10[%c1_164, %c0_165, %c0_166] : memref<2x1x32xf32, #tpu.memory_space<vmem>>, vector<1x1x32xf32>
    %396 = vector.shape_cast %395 : vector<1x1x32xf32> to vector<1x32xf32>
    %c1_167 = arith.constant 1 : index
    %c0_168 = arith.constant 0 : index
    %c0_169 = arith.constant 0 : index
    %397 = vector.load %arg11[%c1_167, %c0_168, %c0_169] : memref<2x1x32xf32, #tpu.memory_space<vmem>>, vector<1x1x32xf32>
    %398 = vector.shape_cast %397 : vector<1x1x32xf32> to vector<1x32xf32>
    %cst_170 = arith.constant dense<0.000000e+00> : vector<8xf32>
    %399 = vector.multi_reduction <add>, %394, %cst_170 [1] : vector<8x32xf32> to vector<8xf32>
    %400 = vector.shape_cast %399 : vector<8xf32> to vector<8x1xf32>
    %cst_171 = arith.constant 3.200000e+01 : f32
    %401 = vector.broadcast %cst_171 : f32 to vector<8x1xf32>
    %402 = arith.divf %400, %401 : vector<8x1xf32>
    %403 = vector.broadcast %402 : vector<8x1xf32> to vector<8x32xf32>
    %404 = arith.subf %394, %403 : vector<8x32xf32>
    %405 = arith.mulf %404, %404 : vector<8x32xf32>
    %cst_172 = arith.constant dense<0.000000e+00> : vector<8xf32>
    %406 = vector.multi_reduction <add>, %405, %cst_172 [1] : vector<8x32xf32> to vector<8xf32>
    %407 = vector.shape_cast %406 : vector<8xf32> to vector<8x1xf32>
    %cst_173 = arith.constant 3.200000e+01 : f32
    %408 = vector.broadcast %cst_173 : f32 to vector<8x1xf32>
    %409 = arith.divf %407, %408 : vector<8x1xf32>
    %410 = vector.broadcast %402 : vector<8x1xf32> to vector<8x32xf32>
    %411 = arith.subf %394, %410 : vector<8x32xf32>
    %cst_174 = arith.constant 9.99999974E-6 : f32
    %412 = vector.broadcast %cst_174 : f32 to vector<8x1xf32>
    %413 = arith.addf %409, %412 : vector<8x1xf32>
    %414 = math.rsqrt %413 : vector<8x1xf32>
    %415 = vector.broadcast %414 : vector<8x1xf32> to vector<8x32xf32>
    %416 = arith.mulf %411, %415 : vector<8x32xf32>
    %417 = vector.broadcast %396 : vector<1x32xf32> to vector<8x32xf32>
    %418 = arith.mulf %416, %417 : vector<8x32xf32>
    %419 = vector.broadcast %398 : vector<1x32xf32> to vector<8x32xf32>
    %420 = arith.addf %418, %419 : vector<8x32xf32>
    %c1_175 = arith.constant 1 : index
    %c0_176 = arith.constant 0 : index
    %c0_177 = arith.constant 0 : index
    %421 = vector.load %arg12[%c1_175, %c0_176, %c0_177] : memref<2x32x96xf32, #tpu.memory_space<vmem>>, vector<1x32x96xf32>
    %422 = vector.shape_cast %421 : vector<1x32x96xf32> to vector<32x96xf32>
    %c1_178 = arith.constant 1 : index
    %c0_179 = arith.constant 0 : index
    %c0_180 = arith.constant 0 : index
    %423 = vector.load %arg13[%c1_178, %c0_179, %c0_180] : memref<2x1x96xf32, #tpu.memory_space<vmem>>, vector<1x1x96xf32>
    %424 = vector.shape_cast %423 : vector<1x1x96xf32> to vector<1x96xf32>
    %c1_181 = arith.constant 1 : index
    %c0_182 = arith.constant 0 : index
    %c0_183 = arith.constant 0 : index
    %425 = vector.load %arg14[%c1_181, %c0_182, %c0_183] : memref<2x32x32xf32, #tpu.memory_space<vmem>>, vector<1x32x32xf32>
    %426 = vector.shape_cast %425 : vector<1x32x32xf32> to vector<32x32xf32>
    %c1_184 = arith.constant 1 : index
    %c0_185 = arith.constant 0 : index
    %c0_186 = arith.constant 0 : index
    %427 = vector.load %arg15[%c1_184, %c0_185, %c0_186] : memref<2x1x32xf32, #tpu.memory_space<vmem>>, vector<1x1x32xf32>
    %428 = vector.shape_cast %427 : vector<1x1x32xf32> to vector<1x32xf32>
    %429 = vector.extract_strided_slice %422 {offsets = [0, 0], sizes = [32, 32], strides = [1, 1]} : vector<32x96xf32> to vector<32x32xf32>
    %cst_187 = arith.constant dense<0.000000e+00> : vector<8x32xf32>
    %430 = tpu.matmul %420, %429, %cst_187 {dimension_numbers = #tpu.dot_dimension_numbers<[1], [0], [0], [1], [0, 0, 1, 1], [], []>} : vector<8x32xf32>, vector<32x32xf32>, vector<8x32xf32> -> vector<8x32xf32>
    %431 = vector.extract_strided_slice %424 {offsets = [0, 0], sizes = [1, 32], strides = [1, 1]} : vector<1x96xf32> to vector<1x32xf32>
    %432 = vector.broadcast %431 : vector<1x32xf32> to vector<8x32xf32>
    %433 = arith.addf %430, %432 : vector<8x32xf32>
    %cst_188 = arith.constant 0.353553385 : f32
    %434 = vector.broadcast %cst_188 : f32 to vector<8x32xf32>
    %435 = arith.mulf %433, %434 : vector<8x32xf32>
    %436 = vector.extract_strided_slice %422 {offsets = [0, 32], sizes = [32, 64], strides = [1, 1]} : vector<32x96xf32> to vector<32x64xf32>
    %cst_189 = arith.constant dense<0.000000e+00> : vector<10x64xf32>
    %437 = tpu.matmul %6, %436, %cst_189 {dimension_numbers = #tpu.dot_dimension_numbers<[1], [0], [0], [1], [0, 0, 1, 1], [], []>} : vector<10x32xf32>, vector<32x64xf32>, vector<10x64xf32> -> vector<10x64xf32>
    %438 = vector.extract_strided_slice %424 {offsets = [0, 32], sizes = [1, 64], strides = [1, 1]} : vector<1x96xf32> to vector<1x64xf32>
    %439 = vector.broadcast %438 : vector<1x64xf32> to vector<10x64xf32>
    %440 = arith.addf %437, %439 : vector<10x64xf32>
    %441 = vector.extract_strided_slice %440 {offsets = [0, 0], sizes = [10, 32], strides = [1, 1]} : vector<10x64xf32> to vector<10x32xf32>
    %442 = vector.extract_strided_slice %440 {offsets = [0, 32], sizes = [10, 32], strides = [1, 1]} : vector<10x64xf32> to vector<10x32xf32>
    %cst_190 = arith.constant 0.000000e+00 : f32
    %443 = vector.broadcast %cst_190 : f32 to vector<8x32xf32>
    %444 = vector.extract_strided_slice %435 {offsets = [0, 0], sizes = [8, 8], strides = [1, 1]} : vector<8x32xf32> to vector<8x8xf32>
    %445 = vector.extract_strided_slice %441 {offsets = [0, 0], sizes = [10, 8], strides = [1, 1]} : vector<10x32xf32> to vector<10x8xf32>
    %cst_191 = arith.constant dense<0.000000e+00> : vector<8x10xf32>
    %446 = tpu.matmul %444, %445, %cst_191 {dimension_numbers = #tpu.dot_dimension_numbers<[1], [1], [0], [0], [0, 0, 1, 0], [], []>} : vector<8x8xf32>, vector<10x8xf32>, vector<8x10xf32> -> vector<8x10xf32>
    %447 = vector.broadcast %8 : vector<1x10xf32> to vector<8x10xf32>
    %448 = arith.addf %446, %447 : vector<8x10xf32>
    %cst_192 = arith.constant dense<0xFF800000> : vector<8xf32>
    %449 = vector.multi_reduction <maximumf>, %448, %cst_192 [1] : vector<8x10xf32> to vector<8xf32>
    %450 = vector.shape_cast %449 : vector<8xf32> to vector<8x1xf32>
    %451 = vector.broadcast %450 : vector<8x1xf32> to vector<8x10xf32>
    %452 = arith.subf %448, %451 : vector<8x10xf32>
    %453 = math.exp %452 : vector<8x10xf32>
    %cst_193 = arith.constant dense<0.000000e+00> : vector<8xf32>
    %454 = vector.multi_reduction <add>, %453, %cst_193 [1] : vector<8x10xf32> to vector<8xf32>
    %455 = vector.shape_cast %454 : vector<8xf32> to vector<8x1xf32>
    %456 = tpu.reciprocal %455 {approx = true} : vector<8x1xf32> -> vector<8x1xf32>
    %457 = vector.extract_strided_slice %442 {offsets = [0, 0], sizes = [10, 8], strides = [1, 1]} : vector<10x32xf32> to vector<10x8xf32>
    %cst_194 = arith.constant dense<0.000000e+00> : vector<8x8xf32>
    %458 = tpu.matmul %453, %457, %cst_194 {dimension_numbers = #tpu.dot_dimension_numbers<[1], [0], [0], [1], [0, 0, 1, 1], [], []>} : vector<8x10xf32>, vector<10x8xf32>, vector<8x8xf32> -> vector<8x8xf32>
    %459 = vector.broadcast %456 : vector<8x1xf32> to vector<8x8xf32>
    %460 = arith.mulf %458, %459 : vector<8x8xf32>
    %461 = vector.extract_strided_slice %426 {offsets = [0, 0], sizes = [8, 32], strides = [1, 1]} : vector<32x32xf32> to vector<8x32xf32>
    %cst_195 = arith.constant dense<0.000000e+00> : vector<8x32xf32>
    %462 = tpu.matmul %460, %461, %cst_195 {dimension_numbers = #tpu.dot_dimension_numbers<[1], [0], [0], [1], [0, 0, 1, 1], [], []>} : vector<8x8xf32>, vector<8x32xf32>, vector<8x32xf32> -> vector<8x32xf32>
    %463 = arith.addf %443, %462 : vector<8x32xf32>
    %464 = vector.extract_strided_slice %435 {offsets = [0, 8], sizes = [8, 8], strides = [1, 1]} : vector<8x32xf32> to vector<8x8xf32>
    %465 = vector.extract_strided_slice %441 {offsets = [0, 8], sizes = [10, 8], strides = [1, 1]} : vector<10x32xf32> to vector<10x8xf32>
    %cst_196 = arith.constant dense<0.000000e+00> : vector<8x10xf32>
    %466 = tpu.matmul %464, %465, %cst_196 {dimension_numbers = #tpu.dot_dimension_numbers<[1], [1], [0], [0], [0, 0, 1, 0], [], []>} : vector<8x8xf32>, vector<10x8xf32>, vector<8x10xf32> -> vector<8x10xf32>
    %467 = vector.broadcast %8 : vector<1x10xf32> to vector<8x10xf32>
    %468 = arith.addf %466, %467 : vector<8x10xf32>
    %cst_197 = arith.constant dense<0xFF800000> : vector<8xf32>
    %469 = vector.multi_reduction <maximumf>, %468, %cst_197 [1] : vector<8x10xf32> to vector<8xf32>
    %470 = vector.shape_cast %469 : vector<8xf32> to vector<8x1xf32>
    %471 = vector.broadcast %470 : vector<8x1xf32> to vector<8x10xf32>
    %472 = arith.subf %468, %471 : vector<8x10xf32>
    %473 = math.exp %472 : vector<8x10xf32>
    %cst_198 = arith.constant dense<0.000000e+00> : vector<8xf32>
    %474 = vector.multi_reduction <add>, %473, %cst_198 [1] : vector<8x10xf32> to vector<8xf32>
    %475 = vector.shape_cast %474 : vector<8xf32> to vector<8x1xf32>
    %476 = tpu.reciprocal %475 {approx = true} : vector<8x1xf32> -> vector<8x1xf32>
    %477 = vector.extract_strided_slice %442 {offsets = [0, 8], sizes = [10, 8], strides = [1, 1]} : vector<10x32xf32> to vector<10x8xf32>
    %cst_199 = arith.constant dense<0.000000e+00> : vector<8x8xf32>
    %478 = tpu.matmul %473, %477, %cst_199 {dimension_numbers = #tpu.dot_dimension_numbers<[1], [0], [0], [1], [0, 0, 1, 1], [], []>} : vector<8x10xf32>, vector<10x8xf32>, vector<8x8xf32> -> vector<8x8xf32>
    %479 = vector.broadcast %476 : vector<8x1xf32> to vector<8x8xf32>
    %480 = arith.mulf %478, %479 : vector<8x8xf32>
    %481 = vector.extract_strided_slice %426 {offsets = [8, 0], sizes = [8, 32], strides = [1, 1]} : vector<32x32xf32> to vector<8x32xf32>
    %cst_200 = arith.constant dense<0.000000e+00> : vector<8x32xf32>
    %482 = tpu.matmul %480, %481, %cst_200 {dimension_numbers = #tpu.dot_dimension_numbers<[1], [0], [0], [1], [0, 0, 1, 1], [], []>} : vector<8x8xf32>, vector<8x32xf32>, vector<8x32xf32> -> vector<8x32xf32>
    %483 = arith.addf %463, %482 : vector<8x32xf32>
    %484 = vector.extract_strided_slice %435 {offsets = [0, 16], sizes = [8, 8], strides = [1, 1]} : vector<8x32xf32> to vector<8x8xf32>
    %485 = vector.extract_strided_slice %441 {offsets = [0, 16], sizes = [10, 8], strides = [1, 1]} : vector<10x32xf32> to vector<10x8xf32>
    %cst_201 = arith.constant dense<0.000000e+00> : vector<8x10xf32>
    %486 = tpu.matmul %484, %485, %cst_201 {dimension_numbers = #tpu.dot_dimension_numbers<[1], [1], [0], [0], [0, 0, 1, 0], [], []>} : vector<8x8xf32>, vector<10x8xf32>, vector<8x10xf32> -> vector<8x10xf32>
    %487 = vector.broadcast %8 : vector<1x10xf32> to vector<8x10xf32>
    %488 = arith.addf %486, %487 : vector<8x10xf32>
    %cst_202 = arith.constant dense<0xFF800000> : vector<8xf32>
    %489 = vector.multi_reduction <maximumf>, %488, %cst_202 [1] : vector<8x10xf32> to vector<8xf32>
    %490 = vector.shape_cast %489 : vector<8xf32> to vector<8x1xf32>
    %491 = vector.broadcast %490 : vector<8x1xf32> to vector<8x10xf32>
    %492 = arith.subf %488, %491 : vector<8x10xf32>
    %493 = math.exp %492 : vector<8x10xf32>
    %cst_203 = arith.constant dense<0.000000e+00> : vector<8xf32>
    %494 = vector.multi_reduction <add>, %493, %cst_203 [1] : vector<8x10xf32> to vector<8xf32>
    %495 = vector.shape_cast %494 : vector<8xf32> to vector<8x1xf32>
    %496 = tpu.reciprocal %495 {approx = true} : vector<8x1xf32> -> vector<8x1xf32>
    %497 = vector.extract_strided_slice %442 {offsets = [0, 16], sizes = [10, 8], strides = [1, 1]} : vector<10x32xf32> to vector<10x8xf32>
    %cst_204 = arith.constant dense<0.000000e+00> : vector<8x8xf32>
    %498 = tpu.matmul %493, %497, %cst_204 {dimension_numbers = #tpu.dot_dimension_numbers<[1], [0], [0], [1], [0, 0, 1, 1], [], []>} : vector<8x10xf32>, vector<10x8xf32>, vector<8x8xf32> -> vector<8x8xf32>
    %499 = vector.broadcast %496 : vector<8x1xf32> to vector<8x8xf32>
    %500 = arith.mulf %498, %499 : vector<8x8xf32>
    %501 = vector.extract_strided_slice %426 {offsets = [16, 0], sizes = [8, 32], strides = [1, 1]} : vector<32x32xf32> to vector<8x32xf32>
    %cst_205 = arith.constant dense<0.000000e+00> : vector<8x32xf32>
    %502 = tpu.matmul %500, %501, %cst_205 {dimension_numbers = #tpu.dot_dimension_numbers<[1], [0], [0], [1], [0, 0, 1, 1], [], []>} : vector<8x8xf32>, vector<8x32xf32>, vector<8x32xf32> -> vector<8x32xf32>
    %503 = arith.addf %483, %502 : vector<8x32xf32>
    %504 = vector.extract_strided_slice %435 {offsets = [0, 24], sizes = [8, 8], strides = [1, 1]} : vector<8x32xf32> to vector<8x8xf32>
    %505 = vector.extract_strided_slice %441 {offsets = [0, 24], sizes = [10, 8], strides = [1, 1]} : vector<10x32xf32> to vector<10x8xf32>
    %cst_206 = arith.constant dense<0.000000e+00> : vector<8x10xf32>
    %506 = tpu.matmul %504, %505, %cst_206 {dimension_numbers = #tpu.dot_dimension_numbers<[1], [1], [0], [0], [0, 0, 1, 0], [], []>} : vector<8x8xf32>, vector<10x8xf32>, vector<8x10xf32> -> vector<8x10xf32>
    %507 = vector.broadcast %8 : vector<1x10xf32> to vector<8x10xf32>
    %508 = arith.addf %506, %507 : vector<8x10xf32>
    %cst_207 = arith.constant dense<0xFF800000> : vector<8xf32>
    %509 = vector.multi_reduction <maximumf>, %508, %cst_207 [1] : vector<8x10xf32> to vector<8xf32>
    %510 = vector.shape_cast %509 : vector<8xf32> to vector<8x1xf32>
    %511 = vector.broadcast %510 : vector<8x1xf32> to vector<8x10xf32>
    %512 = arith.subf %508, %511 : vector<8x10xf32>
    %513 = math.exp %512 : vector<8x10xf32>
    %cst_208 = arith.constant dense<0.000000e+00> : vector<8xf32>
    %514 = vector.multi_reduction <add>, %513, %cst_208 [1] : vector<8x10xf32> to vector<8xf32>
    %515 = vector.shape_cast %514 : vector<8xf32> to vector<8x1xf32>
    %516 = tpu.reciprocal %515 {approx = true} : vector<8x1xf32> -> vector<8x1xf32>
    %517 = vector.extract_strided_slice %442 {offsets = [0, 24], sizes = [10, 8], strides = [1, 1]} : vector<10x32xf32> to vector<10x8xf32>
    %cst_209 = arith.constant dense<0.000000e+00> : vector<8x8xf32>
    %518 = tpu.matmul %513, %517, %cst_209 {dimension_numbers = #tpu.dot_dimension_numbers<[1], [0], [0], [1], [0, 0, 1, 1], [], []>} : vector<8x10xf32>, vector<10x8xf32>, vector<8x8xf32> -> vector<8x8xf32>
    %519 = vector.broadcast %516 : vector<8x1xf32> to vector<8x8xf32>
    %520 = arith.mulf %518, %519 : vector<8x8xf32>
    %521 = vector.extract_strided_slice %426 {offsets = [24, 0], sizes = [8, 32], strides = [1, 1]} : vector<32x32xf32> to vector<8x32xf32>
    %cst_210 = arith.constant dense<0.000000e+00> : vector<8x32xf32>
    %522 = tpu.matmul %520, %521, %cst_210 {dimension_numbers = #tpu.dot_dimension_numbers<[1], [0], [0], [1], [0, 0, 1, 1], [], []>} : vector<8x8xf32>, vector<8x32xf32>, vector<8x32xf32> -> vector<8x32xf32>
    %523 = arith.addf %503, %522 : vector<8x32xf32>
    %524 = vector.broadcast %428 : vector<1x32xf32> to vector<8x32xf32>
    %525 = arith.addf %523, %524 : vector<8x32xf32>
    %526 = arith.addf %420, %525 : vector<8x32xf32>
    %c1_211 = arith.constant 1 : index
    %c0_212 = arith.constant 0 : index
    %c0_213 = arith.constant 0 : index
    %527 = vector.load %arg16[%c1_211, %c0_212, %c0_213] : memref<2x1x32xf32, #tpu.memory_space<vmem>>, vector<1x1x32xf32>
    %528 = vector.shape_cast %527 : vector<1x1x32xf32> to vector<1x32xf32>
    %c1_214 = arith.constant 1 : index
    %c0_215 = arith.constant 0 : index
    %c0_216 = arith.constant 0 : index
    %529 = vector.load %arg17[%c1_214, %c0_215, %c0_216] : memref<2x1x32xf32, #tpu.memory_space<vmem>>, vector<1x1x32xf32>
    %530 = vector.shape_cast %529 : vector<1x1x32xf32> to vector<1x32xf32>
    %cst_217 = arith.constant dense<0.000000e+00> : vector<8xf32>
    %531 = vector.multi_reduction <add>, %526, %cst_217 [1] : vector<8x32xf32> to vector<8xf32>
    %532 = vector.shape_cast %531 : vector<8xf32> to vector<8x1xf32>
    %cst_218 = arith.constant 3.200000e+01 : f32
    %533 = vector.broadcast %cst_218 : f32 to vector<8x1xf32>
    %534 = arith.divf %532, %533 : vector<8x1xf32>
    %535 = vector.broadcast %534 : vector<8x1xf32> to vector<8x32xf32>
    %536 = arith.subf %526, %535 : vector<8x32xf32>
    %537 = arith.mulf %536, %536 : vector<8x32xf32>
    %cst_219 = arith.constant dense<0.000000e+00> : vector<8xf32>
    %538 = vector.multi_reduction <add>, %537, %cst_219 [1] : vector<8x32xf32> to vector<8xf32>
    %539 = vector.shape_cast %538 : vector<8xf32> to vector<8x1xf32>
    %cst_220 = arith.constant 3.200000e+01 : f32
    %540 = vector.broadcast %cst_220 : f32 to vector<8x1xf32>
    %541 = arith.divf %539, %540 : vector<8x1xf32>
    %542 = vector.broadcast %534 : vector<8x1xf32> to vector<8x32xf32>
    %543 = arith.subf %526, %542 : vector<8x32xf32>
    %cst_221 = arith.constant 9.99999974E-6 : f32
    %544 = vector.broadcast %cst_221 : f32 to vector<8x1xf32>
    %545 = arith.addf %541, %544 : vector<8x1xf32>
    %546 = math.rsqrt %545 : vector<8x1xf32>
    %547 = vector.broadcast %546 : vector<8x1xf32> to vector<8x32xf32>
    %548 = arith.mulf %543, %547 : vector<8x32xf32>
    %549 = vector.broadcast %528 : vector<1x32xf32> to vector<8x32xf32>
    %550 = arith.mulf %548, %549 : vector<8x32xf32>
    %551 = vector.broadcast %530 : vector<1x32xf32> to vector<8x32xf32>
    %552 = arith.addf %550, %551 : vector<8x32xf32>
    %c1_222 = arith.constant 1 : index
    %c0_223 = arith.constant 0 : index
    %c0_224 = arith.constant 0 : index
    %553 = vector.load %arg18[%c1_222, %c0_223, %c0_224] : memref<2x32x64xf32, #tpu.memory_space<vmem>>, vector<1x32x64xf32>
    %554 = vector.shape_cast %553 : vector<1x32x64xf32> to vector<32x64xf32>
    %cst_225 = arith.constant dense<0.000000e+00> : vector<8x64xf32>
    %555 = tpu.matmul %552, %554, %cst_225 {dimension_numbers = #tpu.dot_dimension_numbers<[1], [0], [0], [1], [0, 0, 1, 1], [], []>} : vector<8x32xf32>, vector<32x64xf32>, vector<8x64xf32> -> vector<8x64xf32>
    %c1_226 = arith.constant 1 : index
    %c0_227 = arith.constant 0 : index
    %c0_228 = arith.constant 0 : index
    %556 = vector.load %arg19[%c1_226, %c0_227, %c0_228] : memref<2x1x64xf32, #tpu.memory_space<vmem>>, vector<1x1x64xf32>
    %557 = vector.shape_cast %556 : vector<1x1x64xf32> to vector<1x64xf32>
    %558 = vector.broadcast %557 : vector<1x64xf32> to vector<8x64xf32>
    %559 = arith.addf %555, %558 : vector<8x64xf32>
    %cst_229 = arith.constant 0.000000e+00 : f32
    %560 = vector.broadcast %cst_229 : f32 to vector<8x64xf32>
    %561 = arith.maximumf %559, %560 : vector<8x64xf32>
    %c1_230 = arith.constant 1 : index
    %c0_231 = arith.constant 0 : index
    %c0_232 = arith.constant 0 : index
    %562 = vector.load %arg20[%c1_230, %c0_231, %c0_232] : memref<2x64x32xf32, #tpu.memory_space<vmem>>, vector<1x64x32xf32>
    %563 = vector.shape_cast %562 : vector<1x64x32xf32> to vector<64x32xf32>
    %cst_233 = arith.constant dense<0.000000e+00> : vector<8x32xf32>
    %564 = tpu.matmul %561, %563, %cst_233 {dimension_numbers = #tpu.dot_dimension_numbers<[1], [0], [0], [1], [0, 0, 1, 1], [], []>} : vector<8x64xf32>, vector<64x32xf32>, vector<8x32xf32> -> vector<8x32xf32>
    %c1_234 = arith.constant 1 : index
    %c0_235 = arith.constant 0 : index
    %c0_236 = arith.constant 0 : index
    %565 = vector.load %arg21[%c1_234, %c0_235, %c0_236] : memref<2x1x32xf32, #tpu.memory_space<vmem>>, vector<1x1x32xf32>
    %566 = vector.shape_cast %565 : vector<1x1x32xf32> to vector<1x32xf32>
    %567 = vector.broadcast %566 : vector<1x32xf32> to vector<8x32xf32>
    %568 = arith.addf %564, %567 : vector<8x32xf32>
    %569 = arith.addf %552, %568 : vector<8x32xf32>
    %c1_237 = arith.constant 1 : index
    %c0_238 = arith.constant 0 : index
    %c0_239 = arith.constant 0 : index
    %570 = vector.load %arg22[%c1_237, %c0_238, %c0_239] : memref<2x1x32xf32, #tpu.memory_space<vmem>>, vector<1x1x32xf32>
    %571 = vector.shape_cast %570 : vector<1x1x32xf32> to vector<1x32xf32>
    %c1_240 = arith.constant 1 : index
    %c0_241 = arith.constant 0 : index
    %c0_242 = arith.constant 0 : index
    %572 = vector.load %arg23[%c1_240, %c0_241, %c0_242] : memref<2x1x32xf32, #tpu.memory_space<vmem>>, vector<1x1x32xf32>
    %573 = vector.shape_cast %572 : vector<1x1x32xf32> to vector<1x32xf32>
    %cst_243 = arith.constant dense<0.000000e+00> : vector<8xf32>
    %574 = vector.multi_reduction <add>, %569, %cst_243 [1] : vector<8x32xf32> to vector<8xf32>
    %575 = vector.shape_cast %574 : vector<8xf32> to vector<8x1xf32>
    %cst_244 = arith.constant 3.200000e+01 : f32
    %576 = vector.broadcast %cst_244 : f32 to vector<8x1xf32>
    %577 = arith.divf %575, %576 : vector<8x1xf32>
    %578 = vector.broadcast %577 : vector<8x1xf32> to vector<8x32xf32>
    %579 = arith.subf %569, %578 : vector<8x32xf32>
    %580 = arith.mulf %579, %579 : vector<8x32xf32>
    %cst_245 = arith.constant dense<0.000000e+00> : vector<8xf32>
    %581 = vector.multi_reduction <add>, %580, %cst_245 [1] : vector<8x32xf32> to vector<8xf32>
    %582 = vector.shape_cast %581 : vector<8xf32> to vector<8x1xf32>
    %cst_246 = arith.constant 3.200000e+01 : f32
    %583 = vector.broadcast %cst_246 : f32 to vector<8x1xf32>
    %584 = arith.divf %582, %583 : vector<8x1xf32>
    %585 = vector.broadcast %577 : vector<8x1xf32> to vector<8x32xf32>
    %586 = arith.subf %569, %585 : vector<8x32xf32>
    %cst_247 = arith.constant 9.99999974E-6 : f32
    %587 = vector.broadcast %cst_247 : f32 to vector<8x1xf32>
    %588 = arith.addf %584, %587 : vector<8x1xf32>
    %589 = math.rsqrt %588 : vector<8x1xf32>
    %590 = vector.broadcast %589 : vector<8x1xf32> to vector<8x32xf32>
    %591 = arith.mulf %586, %590 : vector<8x32xf32>
    %592 = vector.broadcast %571 : vector<1x32xf32> to vector<8x32xf32>
    %593 = arith.mulf %591, %592 : vector<8x32xf32>
    %594 = vector.broadcast %573 : vector<1x32xf32> to vector<8x32xf32>
    %595 = arith.addf %593, %594 : vector<8x32xf32>
    %c0_248 = arith.constant 0 : index
    %c0_249 = arith.constant 0 : index
    %596 = vector.load %arg24[%c0_248, %c0_249] : memref<1x32xf32, #tpu.memory_space<vmem>>, vector<1x32xf32>
    %cst_250 = arith.constant dense<0.000000e+00> : vector<1x8xf32>
    %597 = tpu.matmul %596, %595, %cst_250 {dimension_numbers = #tpu.dot_dimension_numbers<[1], [1], [0], [0], [0, 0, 1, 0], [], []>} : vector<1x32xf32>, vector<8x32xf32>, vector<1x8xf32> -> vector<1x8xf32>
    %c0_251 = arith.constant 0 : index
    %c0_252 = arith.constant 0 : index
    %598 = vector.load %arg25[%c0_251, %c0_252] : memref<1x1xf32, #tpu.memory_space<vmem>>, vector<1x1xf32>
    %599 = vector.broadcast %598 : vector<1x1xf32> to vector<1x8xf32>
    %600 = arith.addf %597, %599 : vector<1x8xf32>
    %c0_253 = arith.constant 0 : index
    %c0_254 = arith.constant 0 : index
    %c0_255 = arith.constant 0 : index
    %601 = vector.load %arg26[%c0_253, %c0_254, %c0_255] : memref<1x1x8xf32, #tpu.memory_space<vmem>>, vector<1x1x8xf32>
    %602 = vector.shape_cast %601 : vector<1x1x8xf32> to vector<1x8xf32>
    %603 = vector.shape_cast %600 : vector<1x8xf32> to vector<1x1x8xf32>
    tpu.vector_store %arg26[%c0_253, %c0_254, %c0_255], %603 {strides = array<i32>} : memref<1x1x8xf32, #tpu.memory_space<vmem>>, vector<1x1x8xf32>,
    return
  }
  func.func @transform_0(%arg0: i32) -> (i32, i32, i32) {
    %c0_i32 = arith.constant 0 : i32
    %c0_i32_0 = arith.constant 0 : i32
    %c0_i32_1 = arith.constant 0 : i32
    return %arg0, %c0_i32, %c0_i32_0 : i32, i32, i32
  }
  func.func @transform_1(%arg0: i32) -> (i32, i32, i32) {
    %c0_i32 = arith.constant 0 : i32
    %c0_i32_0 = arith.constant 0 : i32
    %c0_i32_1 = arith.constant 0 : i32
    return %arg0, %c0_i32, %c0_i32_0 : i32, i32, i32
  }
  func.func @transform_2(%arg0: i32) -> (i32, i32) {
    %c0_i32 = arith.constant 0 : i32
    %c0_i32_0 = arith.constant 0 : i32
    %c0_i32_1 = arith.constant 0 : i32
    return %c0_i32, %c0_i32_0 : i32, i32
  }
  func.func @transform_3(%arg0: i32) -> (i32, i32) {
    %c0_i32 = arith.constant 0 : i32
    %c0_i32_0 = arith.constant 0 : i32
    %c0_i32_1 = arith.constant 0 : i32
    return %c0_i32, %c0_i32_0 : i32, i32
  }
  func.func @transform_4(%arg0: i32) -> (i32, i32) {
    %c0_i32 = arith.constant 0 : i32
    %c0_i32_0 = arith.constant 0 : i32
    %c0_i32_1 = arith.constant 0 : i32
    return %c0_i32, %c0_i32_0 : i32, i32
  }
  func.func @transform_5(%arg0: i32) -> (i32, i32, i32) {
    %c0_i32 = arith.constant 0 : i32
    %c0_i32_0 = arith.constant 0 : i32
    %c0_i32_1 = arith.constant 0 : i32
    %c0_i32_2 = arith.constant 0 : i32
    return %c0_i32, %c0_i32_0, %c0_i32_1 : i32, i32, i32
  }
  func.func @transform_6(%arg0: i32) -> (i32, i32, i32) {
    %c0_i32 = arith.constant 0 : i32
    %c0_i32_0 = arith.constant 0 : i32
    %c0_i32_1 = arith.constant 0 : i32
    %c0_i32_2 = arith.constant 0 : i32
    return %c0_i32, %c0_i32_0, %c0_i32_1 : i32, i32, i32
  }
  func.func @transform_7(%arg0: i32) -> (i32, i32, i32) {
    %c0_i32 = arith.constant 0 : i32
    %c0_i32_0 = arith.constant 0 : i32
    %c0_i32_1 = arith.constant 0 : i32
    %c0_i32_2 = arith.constant 0 : i32
    return %c0_i32, %c0_i32_0, %c0_i32_1 : i32, i32, i32
  }
  func.func @transform_8(%arg0: i32) -> (i32, i32, i32) {
    %c0_i32 = arith.constant 0 : i32
    %c0_i32_0 = arith.constant 0 : i32
    %c0_i32_1 = arith.constant 0 : i32
    %c0_i32_2 = arith.constant 0 : i32
    return %c0_i32, %c0_i32_0, %c0_i32_1 : i32, i32, i32
  }
  func.func @transform_9(%arg0: i32) -> (i32, i32, i32) {
    %c0_i32 = arith.constant 0 : i32
    %c0_i32_0 = arith.constant 0 : i32
    %c0_i32_1 = arith.constant 0 : i32
    %c0_i32_2 = arith.constant 0 : i32
    return %c0_i32, %c0_i32_0, %c0_i32_1 : i32, i32, i32
  }
  func.func @transform_10(%arg0: i32) -> (i32, i32, i32) {
    %c0_i32 = arith.constant 0 : i32
    %c0_i32_0 = arith.constant 0 : i32
    %c0_i32_1 = arith.constant 0 : i32
    %c0_i32_2 = arith.constant 0 : i32
    return %c0_i32, %c0_i32_0, %c0_i32_1 : i32, i32, i32
  }
  func.func @transform_11(%arg0: i32) -> (i32, i32, i32) {
    %c0_i32 = arith.constant 0 : i32
    %c0_i32_0 = arith.constant 0 : i32
    %c0_i32_1 = arith.constant 0 : i32
    %c0_i32_2 = arith.constant 0 : i32
    return %c0_i32, %c0_i32_0, %c0_i32_1 : i32, i32, i32
  }
  func.func @transform_12(%arg0: i32) -> (i32, i32, i32) {
    %c0_i32 = arith.constant 0 : i32
    %c0_i32_0 = arith.constant 0 : i32
    %c0_i32_1 = arith.constant 0 : i32
    %c0_i32_2 = arith.constant 0 : i32
    return %c0_i32, %c0_i32_0, %c0_i32_1 : i32, i32, i32
  }
  func.func @transform_13(%arg0: i32) -> (i32, i32, i32) {
    %c0_i32 = arith.constant 0 : i32
    %c0_i32_0 = arith.constant 0 : i32
    %c0_i32_1 = arith.constant 0 : i32
    %c0_i32_2 = arith.constant 0 : i32
    return %c0_i32, %c0_i32_0, %c0_i32_1 : i32, i32, i32
  }
  func.func @transform_14(%arg0: i32) -> (i32, i32, i32) {
    %c0_i32 = arith.constant 0 : i32
    %c0_i32_0 = arith.constant 0 : i32
    %c0_i32_1 = arith.constant 0 : i32
    %c0_i32_2 = arith.constant 0 : i32
    return %c0_i32, %c0_i32_0, %c0_i32_1 : i32, i32, i32
  }
  func.func @transform_15(%arg0: i32) -> (i32, i32, i32) {
    %c0_i32 = arith.constant 0 : i32
    %c0_i32_0 = arith.constant 0 : i32
    %c0_i32_1 = arith.constant 0 : i32
    %c0_i32_2 = arith.constant 0 : i32
    return %c0_i32, %c0_i32_0, %c0_i32_1 : i32, i32, i32
  }
  func.func @transform_16(%arg0: i32) -> (i32, i32, i32) {
    %c0_i32 = arith.constant 0 : i32
    %c0_i32_0 = arith.constant 0 : i32
    %c0_i32_1 = arith.constant 0 : i32
    %c0_i32_2 = arith.constant 0 : i32
    return %c0_i32, %c0_i32_0, %c0_i32_1 : i32, i32, i32
  }
  func.func @transform_17(%arg0: i32) -> (i32, i32, i32) {
    %c0_i32 = arith.constant 0 : i32
    %c0_i32_0 = arith.constant 0 : i32
    %c0_i32_1 = arith.constant 0 : i32
    %c0_i32_2 = arith.constant 0 : i32
    return %c0_i32, %c0_i32_0, %c0_i32_1 : i32, i32, i32
  }
  func.func @transform_18(%arg0: i32) -> (i32, i32, i32) {
    %c0_i32 = arith.constant 0 : i32
    %c0_i32_0 = arith.constant 0 : i32
    %c0_i32_1 = arith.constant 0 : i32
    %c0_i32_2 = arith.constant 0 : i32
    return %c0_i32, %c0_i32_0, %c0_i32_1 : i32, i32, i32
  }
  func.func @transform_19(%arg0: i32) -> (i32, i32, i32) {
    %c0_i32 = arith.constant 0 : i32
    %c0_i32_0 = arith.constant 0 : i32
    %c0_i32_1 = arith.constant 0 : i32
    %c0_i32_2 = arith.constant 0 : i32
    return %c0_i32, %c0_i32_0, %c0_i32_1 : i32, i32, i32
  }
  func.func @transform_20(%arg0: i32) -> (i32, i32, i32) {
    %c0_i32 = arith.constant 0 : i32
    %c0_i32_0 = arith.constant 0 : i32
    %c0_i32_1 = arith.constant 0 : i32
    %c0_i32_2 = arith.constant 0 : i32
    return %c0_i32, %c0_i32_0, %c0_i32_1 : i32, i32, i32
  }
  func.func @transform_21(%arg0: i32) -> (i32, i32, i32) {
    %c0_i32 = arith.constant 0 : i32
    %c0_i32_0 = arith.constant 0 : i32
    %c0_i32_1 = arith.constant 0 : i32
    %c0_i32_2 = arith.constant 0 : i32
    return %c0_i32, %c0_i32_0, %c0_i32_1 : i32, i32, i32
  }
  func.func @transform_22(%arg0: i32) -> (i32, i32, i32) {
    %c0_i32 = arith.constant 0 : i32
    %c0_i32_0 = arith.constant 0 : i32
    %c0_i32_1 = arith.constant 0 : i32
    %c0_i32_2 = arith.constant 0 : i32
    return %c0_i32, %c0_i32_0, %c0_i32_1 : i32, i32, i32
  }
  func.func @transform_23(%arg0: i32) -> (i32, i32) {
    %c0_i32 = arith.constant 0 : i32
    %c0_i32_0 = arith.constant 0 : i32
    %c0_i32_1 = arith.constant 0 : i32
    return %c0_i32, %c0_i32_0 : i32, i32
  }
  func.func @transform_24(%arg0: i32) -> (i32, i32) {
    %c0_i32 = arith.constant 0 : i32
    %c0_i32_0 = arith.constant 0 : i32
    %c0_i32_1 = arith.constant 0 : i32
    return %c0_i32, %c0_i32_0 : i32, i32
  }
  func.func @transform_25(%arg0: i32) -> (i32, i32, i32) {
    %c0_i32 = arith.constant 0 : i32
    %c0_i32_0 = arith.constant 0 : i32
    %c0_i32_1 = arith.constant 0 : i32
    return %arg0, %c0_i32, %c0_i32_0 : i32, i32, i32
  }
}

</mosaic_0001>

<llo_original>
// kernel: radar_encoder_forward.1
$region0: #{radar_encoder_forward.1}
  #allocation0 [shape = 'u32[]', space=smem, size = 0x4, offset = 0x4, fixed_abs, tag = 'smem constant byte address 0x4 - core index']
  #allocation1 [shape = 'u32[144,128]{1,0:T(1,128)}', space=vmem, size = 0x12000, scoped, tag = 'internal scratch']
  #allocation2 [shape = 'f32[1,1]{1,0:T(1,128)S(1)}', space=vmem, size = 0x200, scoped, tag = 'scoped memory for radar_encoder_forward.1']
  %s0 = inlined_call_operand.vmem [shape: f32[2,10,7], index: 0, kind: input, shape index: {}]
  %s1 = inlined_call_operand.vmem [shape: f32[2,1,10], index: 1, kind: input, shape index: {}]
  %s2 = inlined_call_operand.hbm [shape: f32[7,32], index: 2, kind: input, shape index: {}]
  %s3 = inlined_call_operand.hbm [shape: f32[1,32], index: 3, kind: input, shape index: {}]
  %s4 = inlined_call_operand.hbm [shape: f32[8,32], index: 4, kind: input, shape index: {}]
  %s5 = inlined_call_operand.vmem [shape: f32[2,32,96], index: 5, kind: input, shape index: {}]
  %s6 = inlined_call_operand.vmem [shape: f32[2,1,96], index: 6, kind: input, shape index: {}]
  %s7 = inlined_call_operand.vmem [shape: f32[2,32,32], index: 7, kind: input, shape index: {}]
  %s8 = inlined_call_operand.vmem [shape: f32[2,1,32], index: 8, kind: input, shape index: {}]
  %s9 = inlined_call_operand.hbm [shape: f32[2,1,32], index: 9, kind: input, shape index: {}]
  %s10 = inlined_call_operand.hbm [shape: f32[2,1,32], index: 10, kind: input, shape index: {}]
  %s11 = inlined_call_operand.vmem [shape: f32[2,32,96], index: 11, kind: input, shape index: {}]
  %s12 = inlined_call_operand.hbm [shape: f32[2,1,96], index: 12, kind: input, shape index: {}]
  %s13 = inlined_call_operand.hbm [shape: f32[2,32,32], index: 13, kind: input, shape index: {}]
  %s14 = inlined_call_operand.hbm [shape: f32[2,1,32], index: 14, kind: input, shape index: {}]
  %s15 = inlined_call_operand.hbm [shape: f32[2,1,32], index: 15, kind: input, shape index: {}]
  %s16 = inlined_call_operand.hbm [shape: f32[2,1,32], index: 16, kind: input, shape index: {}]
  %s17 = inlined_call_operand.hbm [shape: f32[2,32,64], index: 17, kind: input, shape index: {}]
  %s18 = inlined_call_operand.hbm [shape: f32[2,1,64], index: 18, kind: input, shape index: {}]
  %s19 = inlined_call_operand.vmem [shape: f32[2,64,32], index: 19, kind: input, shape index: {}]
  %s20 = inlined_call_operand.hbm [shape: f32[2,1,32], index: 20, kind: input, shape index: {}]
  %s21 = inlined_call_operand.hbm [shape: f32[2,1,32], index: 21, kind: input, shape index: {}]
  %s22 = inlined_call_operand.hbm [shape: f32[2,1,32], index: 22, kind: input, shape index: {}]
  %s23 = inlined_call_operand.hbm [shape: f32[1,32], index: 23, kind: input, shape index: {}]
  %s24 = inlined_call_operand.<no memory space> [shape: f32[1,1], index: 24, kind: input, shape index: {}]
  %s25 = inlined_call_operand.hbm [shape: f32[2,1,8], index: 25, kind: output, shape index: {}]
  %s26 = sld [smem:[#allocation0]]
  $region197: #{radar_encoder_forward.1} parent=0
    _
  %s28 = ssub.s32 1, %s26
  %s29 = scalar_select 0, %s28, %s26
  %v30 = vstv %s24
  %31 = vst [vmem:[#allocation2] sm:$0x1] %v30
  $region1: #{radar_encoder_forward.1} parent=0
    #allocation3 [shape = 'u8[4096]{0}', space=vmem, size = 0x1000, scoped, tag = 'input window, operand 2, single buffered']
    #allocation4 [shape = 's32[2]{0}', space=sflag, size = 0x8, scoped, tag = 'scoped memory for radar_encoder_forward.1']
    #allocation5 [shape = 's32[2]{0}', space=sflag, size = 0x8, scoped, tag = 'scoped memory for radar_encoder_forward.1']
    #allocation6 [shape = 'u8[512]{0}', space=vmem, size = 0x400, scoped, tag = 'input window, operand 3, single buffered']
    #allocation7 [shape = 's32[1]{0}', space=sflag, size = 0x4, scoped, tag = 'scoped memory for radar_encoder_forward.1']
    #allocation8 [shape = 'u8[4096]{0}', space=vmem, size = 0x1000, scoped, tag = 'input window, operand 4, single buffered']
    #allocation9 [shape = 'u8[1024]{0}', space=vmem, size = 0x400, scoped, tag = 'input window, operand 9, single buffered']
    #allocation10 [shape = 's32[1]{0}', space=sflag, size = 0x4, scoped, tag = 'scoped memory for radar_encoder_forward.1']
    #allocation11 [shape = 'u8[1024]{0}', space=vmem, size = 0x400, scoped, tag = 'input window, operand 10, single buffered']
    #allocation12 [shape = 'u8[1024]{0}', space=vmem, size = 0x400, scoped, tag = 'input window, operand 12, single buffered']
    #allocation13 [shape = 's32[1]{0}', space=sflag, size = 0x4, scoped, tag = 'scoped memory for radar_encoder_forward.1']
    #allocation14 [shape = 'u8[32768]{0}', space=vmem, size = 0x8000, scoped, tag = 'input window, operand 13, single buffered']
    #allocation15 [shape = 'u8[1024]{0}', space=vmem, size = 0x400, scoped, tag = 'input window, operand 14, single buffered']
    #allocation16 [shape = 's32[1]{0}', space=sflag, size = 0x4, scoped, tag = 'scoped memory for radar_encoder_forward.1']
    #allocation17 [shape = 'u8[1024]{0}', space=vmem, size = 0x400, scoped, tag = 'input window, operand 15, single buffered']
    #allocation18 [shape = 'u8[1024]{0}', space=vmem, size = 0x400, scoped, tag = 'input window, operand 16, single buffered']
    #allocation19 [shape = 's32[1]{0}', space=sflag, size = 0x4, scoped, tag = 'scoped memory for radar_encoder_forward.1']
    #allocation20 [shape = 'u8[32768]{0}', space=vmem, size = 0x8000, scoped, tag = 'input window, operand 17, single buffered']
    #allocation21 [shape = 'u8[1024]{0}', space=vmem, size = 0x400, scoped, tag = 'input window, operand 18, single buffered']
    #allocation22 [shape = 's32[1]{0}', space=sflag, size = 0x4, scoped, tag = 'scoped memory for radar_encoder_forward.1']
    #allocation23 [shape = 'u8[1024]{0}', space=vmem, size = 0x400, scoped, tag = 'input window, operand 20, single buffered']
    #allocation24 [shape = 'u8[1024]{0}', space=vmem, size = 0x400, scoped, tag = 'input window, operand 21, single buffered']
    #allocation25 [shape = 's32[1]{0}', space=sflag, size = 0x4, scoped, tag = 'scoped memory for radar_encoder_forward.1']
    #allocation26 [shape = 'u8[1024]{0}', space=vmem, size = 0x400, scoped, tag = 'input window, operand 22, single buffered']
    #allocation27 [shape = 'u8[512]{0}', space=vmem, size = 0x400, scoped, tag = 'input window, operand 23, single buffered']
    #allocation28 [shape = 's32[1]{0}', space=sflag, size = 0x4, scoped, tag = 'scoped memory for radar_encoder_forward.1']
    #allocation29 [shape = 'u8[1024]{0}', space=vmem, size = 0x400, scoped, tag = 'output window, operand 0']
    %32 = vsyncpa [#allocation4], 0
    %33 = vsyncpa [#allocation7], 0
    %34 = vsyncpa [#allocation10], 0
    %35 = vsyncpa [#allocation13], 0
    %36 = vsyncpa [#allocation16], 0
    %37 = vsyncpa [#allocation19], 0
    %38 = vsyncpa [#allocation22], 0
    %39 = vsyncpa [#allocation25], 0
    %40 = vsyncpa [#allocation28], 0
    %41 = vsyncpa [#allocation5], 0
    %s42 = scalar_lea.sflag [#allocation5], 1
    %43 = vsyncpa %s42, 0
    loop: start=0, step=1, limit=4
    $region2: #{radar_encoder_forward.1} parent=1 // loop_pre_header
      _
    $region3: #{radar_encoder_forward.1} parent=1 // loop_header
      %s45 = sphi 0, %s49
      %p46 = scmp.ge.s32.totalorder %s45, 4
      %s55 = sphi 0, %s57
      %s58 = sphi 0, %s55
      %s59 = sphi 0, %s58
      %s75 = sphi 0, %s59
      %s81 = sphi 0, %s83
      %s84 = sphi 0, %s81
      %s85 = sphi 0, %s84
      %s101 = sphi 0, %s85
      %s105 = sphi 0, %s105
      %s107 = sphi 0, %s105
      %s108 = sphi 0, %s107
      %s122 = sphi 0, %s108
      %s126 = sphi 0, %s126
      %s128 = sphi 0, %s126
      %s129 = sphi 0, %s128
      %s143 = sphi 0, %s129
      %s147 = sphi 0, %s147
      %s149 = sphi 0, %s147
      %s150 = sphi 0, %s149
      %s164 = sphi 0, %s150
      %s168 = sphi 0, %s168
      %s170 = sphi 0, %s168
      %s171 = sphi 0, %s170
      %s185 = sphi 0, %s171
      %s189 = sphi 0, %s189
      %s191 = sphi 0, %s189
      %s192 = sphi 0, %s191
      %s206 = sphi 0, %s192
      %s210 = sphi 0, %s210
      %s212 = sphi 0, %s210
      %s213 = sphi 0, %s212
      %s227 = sphi 0, %s213
      %s231 = sphi 0, %s231
      %s233 = sphi 0, %s231
      %s234 = sphi 0, %s233
      %s248 = sphi 0, %s234
      %s252 = sphi 0, %s252
      %s254 = sphi 0, %s252
      %s255 = sphi 0, %s254
      %s269 = sphi 0, %s255
      %s273 = sphi 0, %s273
      %s275 = sphi 0, %s273
      %s276 = sphi 0, %s275
      %s290 = sphi 0, %s276
      %s294 = sphi 0, %s294
      %s296 = sphi 0, %s294
      %s297 = sphi 0, %s296
      %s311 = sphi 0, %s297
      %s315 = sphi 0, %s315
      %s317 = sphi 0, %s315
      %s318 = sphi 0, %s317
      %s332 = sphi 0, %s318
      %s336 = sphi 0, %s336
      %s338 = sphi 0, %s336
      %s339 = sphi 0, %s338
      %s353 = sphi 0, %s339
      %s357 = sphi 0, %s357
      %s359 = sphi 0, %s357
      %s360 = sphi 0, %s359
      %s374 = sphi 0, %s360
      %s378 = sphi 0, %s378
      %s380 = sphi 0, %s378
      %s381 = sphi 0, %s380
      %s395 = sphi 0, %s381
      %s399 = sphi 0, %s399
      %s401 = sphi 0, %s399
      %s402 = sphi 0, %s401
      %s416 = sphi 0, %s402
      %s420 = sphi 0, %s420
      %s422 = sphi 0, %s420
      %s423 = sphi 0, %s422
      %s437 = sphi 0, %s423
      %s441 = sphi 0, %s441
      %s443 = sphi 0, %s441
      %s444 = sphi 0, %s443
      %s458 = sphi 0, %s444
      %s462 = sphi 0, %s462
      %s464 = sphi 0, %s462
      %s465 = sphi 0, %s464
      %s479 = sphi 0, %s465
      %s483 = sphi 0, %s483
      %s485 = sphi 0, %s483
      %s486 = sphi 0, %s485
      %s500 = sphi 0, %s486
      %s504 = sphi 0, %s504
      %s506 = sphi 0, %s504
      %s507 = sphi 0, %s506
      %s521 = sphi 0, %s507
      %s525 = sphi 0, %s525
      %s527 = sphi 0, %s525
      %s528 = sphi 0, %s527
      %s542 = sphi 0, %s528
      %s546 = sphi 0, %s546
      %s548 = sphi 0, %s546
      %s549 = sphi 0, %s548
      %s563 = sphi 0, %s549
      %s567 = sphi 0, %s567
      %s569 = sphi 0, %s567
      %s570 = sphi 0, %s569
      %s584 = sphi 0, %s570
      %s590 = sphi 0, %s592
      %s593 = sphi 0, %s590
      %s594 = sphi 0, %s593
      %s610 = sphi 0, %s594
    $region4: #{radar_encoder_forward.1} parent=1 // loop_header_branch
      %48 = sbr.rel (%p46) target = $region8
    $region5: #{radar_encoder_forward.1} parent=1 // loop_body
      %s50 = ssub.s32 %s45, 1
      %s51 = ssub.s32 %s45, 2
      %s52 = sadd.s32 %s45, 1
      %s53 = ssub.s32 %s45, %s52
      %p54 = scmp.eq.s32.totalorder %s53, 0
      %s56 = sadd.s32 %s55, 1
      %s57 = scalar_select %p54, %s55, %s56
      %p60 = pneg %p54
      %p61 = scmp.eq.s32.totalorder %s45, 1
      %p62 = por %p60, %p61
      %p63 = scmp.ne.s32.totalorder %s55, %s58
      %p64 = scmp.eq.s32.totalorder %s45, 0
      %p65 = por %p63, %p64
      %p66 = scmp.ne.s32.totalorder %s55, %s58
      %p67 = scmp.eq.s32.totalorder %s50, 1
      %p68 = por %p66, %p67
      %p69 = scmp.ne.s32.totalorder %s58, %s59
      %p70 = scmp.eq.s32.totalorder %s50, 0
      %p71 = por %p69, %p70
      %p72 = scmp.ne.s32.totalorder %s58, %s59
      %p73 = scmp.eq.s32.totalorder %s51, 1
      %p74 = por %p72, %p73
      %p76 = scmp.ne.s32.totalorder %s59, %s75
      %p77 = scmp.eq.s32.totalorder %s51, 0
      %p78 = por %p76, %p77
      %s79 = ssub.s32 %s45, %s52
      %p80 = scmp.eq.s32.totalorder %s79, 0
      %s82 = sadd.s32 %s81, 1
      %s83 = scalar_select %p80, %s81, %s82
      %p86 = pneg %p80
      %p87 = scmp.eq.s32.totalorder %s45, 1
      %p88 = por %p86, %p87
      %p89 = scmp.ne.s32.totalorder %s81, %s84
      %p90 = scmp.eq.s32.totalorder %s45, 0
      %p91 = por %p89, %p90
      %p92 = scmp.ne.s32.totalorder %s81, %s84
      %p93 = scmp.eq.s32.totalorder %s50, 1
      %p94 = por %p92, %p93
      %p95 = scmp.ne.s32.totalorder %s84, %s85
      %p96 = scmp.eq.s32.totalorder %s50, 0
      %p97 = por %p95, %p96
      %p98 = scmp.ne.s32.totalorder %s84, %s85
      %p99 = scmp.eq.s32.totalorder %s51, 1
      %p100 = por %p98, %p99
      %p102 = scmp.ne.s32.totalorder %s85, %s101
      %p103 = scmp.eq.s32.totalorder %s51, 0
      %p104 = por %p102, %p103
      %s106 = sadd.s32 %s105, 1
      %p109 = scmp.eq.s32.totalorder %s45, 1
      %p110 = scmp.ne.s32.totalorder %s105, %s107
      %p111 = scmp.eq.s32.totalorder %s45, 0
      %p112 = por %p110, %p111
      %p113 = scmp.ne.s32.totalorder %s105, %s107
      %p114 = scmp.eq.s32.totalorder %s50, 1
      %p115 = por %p113, %p114
      %p116 = scmp.ne.s32.totalorder %s107, %s108
      %p117 = scmp.eq.s32.totalorder %s50, 0
      %p118 = por %p116, %p117
      %p119 = scmp.ne.s32.totalorder %s107, %s108
      %p120 = scmp.eq.s32.totalorder %s51, 1
      %p121 = por %p119, %p120
      %p123 = scmp.ne.s32.totalorder %s108, %s122
      %p124 = scmp.eq.s32.totalorder %s51, 0
      %p125 = por %p123, %p124
      %s127 = sadd.s32 %s126, 1
      %p130 = scmp.eq.s32.totalorder %s45, 1
      %p131 = scmp.ne.s32.totalorder %s126, %s128
      %p132 = scmp.eq.s32.totalorder %s45, 0
      %p133 = por %p131, %p132
      %p134 = scmp.ne.s32.totalorder %s126, %s128
      %p135 = scmp.eq.s32.totalorder %s50, 1
      %p136 = por %p134, %p135
      %p137 = scmp.ne.s32.totalorder %s128, %s129
      %p138 = scmp.eq.s32.totalorder %s50, 0
      %p139 = por %p137, %p138
      %p140 = scmp.ne.s32.totalorder %s128, %s129
      %p141 = scmp.eq.s32.totalorder %s51, 1
      %p142 = por %p140, %p141
      %p144 = scmp.ne.s32.totalorder %s129, %s143
      %p145 = scmp.eq.s32.totalorder %s51, 0
      %p146 = por %p144, %p145
      %s148 = sadd.s32 %s147, 1
      %p151 = scmp.eq.s32.totalorder %s45, 1
      %p152 = scmp.ne.s32.totalorder %s147, %s149
      %p153 = scmp.eq.s32.totalorder %s45, 0
      %p154 = por %p152, %p153
      %p155 = scmp.ne.s32.totalorder %s147, %s149
      %p156 = scmp.eq.s32.totalorder %s50, 1
      %p157 = por %p155, %p156
      %p158 = scmp.ne.s32.totalorder %s149, %s150
      %p159 = scmp.eq.s32.totalorder %s50, 0
      %p160 = por %p158, %p159
      %p161 = scmp.ne.s32.totalorder %s149, %s150
      %p162 = scmp.eq.s32.totalorder %s51, 1
      %p163 = por %p161, %p162
      %p165 = scmp.ne.s32.totalorder %s150, %s164
      %p166 = scmp.eq.s32.totalorder %s51, 0
      %p167 = por %p165, %p166
      %s169 = sadd.s32 %s168, 1
      %p172 = scmp.eq.s32.totalorder %s45, 1
      %p173 = scmp.ne.s32.totalorder %s168, %s170
      %p174 = scmp.eq.s32.totalorder %s45, 0
      %p175 = por %p173, %p174
      %p176 = scmp.ne.s32.totalorder %s168, %s170
      %p177 = scmp.eq.s32.totalorder %s50, 1
      %p178 = por %p176, %p177
      %p179 = scmp.ne.s32.totalorder %s170, %s171
      %p180 = scmp.eq.s32.totalorder %s50, 0
      %p181 = por %p179, %p180
      %p182 = scmp.ne.s32.totalorder %s170, %s171
      %p183 = scmp.eq.s32.totalorder %s51, 1
      %p184 = por %p182, %p183
      %p186 = scmp.ne.s32.totalorder %s171, %s185
      %p187 = scmp.eq.s32.totalorder %s51, 0
      %p188 = por %p186, %p187
      %s190 = sadd.s32 %s189, 1
      %p193 = scmp.eq.s32.totalorder %s45, 1
      %p194 = scmp.ne.s32.totalorder %s189, %s191
      %p195 = scmp.eq.s32.totalorder %s45, 0
      %p196 = por %p194, %p195
      %p197 = scmp.ne.s32.totalorder %s189, %s191
      %p198 = scmp.eq.s32.totalorder %s50, 1
      %p199 = por %p197, %p198
      %p200 = scmp.ne.s32.totalorder %s191, %s192
      %p201 = scmp.eq.s32.totalorder %s50, 0
      %p202 = por %p200, %p201
      %p203 = scmp.ne.s32.totalorder %s191, %s192
      %p204 = scmp.eq.s32.totalorder %s51, 1
      %p205 = por %p203, %p204
      %p207 = scmp.ne.s32.totalorder %s192, %s206
      %p208 = scmp.eq.s32.totalorder %s51, 0
      %p209 = por %p207, %p208
      %s211 = sadd.s32 %s210, 1
      %p214 = scmp.eq.s32.totalorder %s45, 1
      %p215 = scmp.ne.s32.totalorder %s210, %s212
      %p216 = scmp.eq.s32.totalorder %s45, 0
      %p217 = por %p215, %p216
      %p218 = scmp.ne.s32.totalorder %s210, %s212
      %p219 = scmp.eq.s32.totalorder %s50, 1
      %p220 = por %p218, %p219
      %p221 = scmp.ne.s32.totalorder %s212, %s213
      %p222 = scmp.eq.s32.totalorder %s50, 0
      %p223 = por %p221, %p222
      %p224 = scmp.ne.s32.totalorder %s212, %s213
      %p225 = scmp.eq.s32.totalorder %s51, 1
      %p226 = por %p224, %p225
      %p228 = scmp.ne.s32.totalorder %s213, %s227
      %p229 = scmp.eq.s32.totalorder %s51, 0
      %p230 = por %p228, %p229
      %s232 = sadd.s32 %s231, 1
      %p235 = scmp.eq.s32.totalorder %s45, 1
      %p236 = scmp.ne.s32.totalorder %s231, %s233
      %p237 = scmp.eq.s32.totalorder %s45, 0
      %p238 = por %p236, %p237
      %p239 = scmp.ne.s32.totalorder %s231, %s233
      %p240 = scmp.eq.s32.totalorder %s50, 1
      %p241 = por %p239, %p240
      %p242 = scmp.ne.s32.totalorder %s233, %s234
      %p243 = scmp.eq.s32.totalorder %s50, 0
      %p244 = por %p242, %p243
      %p245 = scmp.ne.s32.totalorder %s233, %s234
      %p246 = scmp.eq.s32.totalorder %s51, 1
      %p247 = por %p245, %p246
      %p249 = scmp.ne.s32.totalorder %s234, %s248
      %p250 = scmp.eq.s32.totalorder %s51, 0
      %p251 = por %p249, %p250
      %s253 = sadd.s32 %s252, 1
      %p256 = scmp.eq.s32.totalorder %s45, 1
      %p257 = scmp.ne.s32.totalorder %s252, %s254
      %p258 = scmp.eq.s32.totalorder %s45, 0
      %p259 = por %p257, %p258
      %p260 = scmp.ne.s32.totalorder %s252, %s254
      %p261 = scmp.eq.s32.totalorder %s50, 1
      %p262 = por %p260, %p261
      %p263 = scmp.ne.s32.totalorder %s254, %s255
      %p264 = scmp.eq.s32.totalorder %s50, 0
      %p265 = por %p263, %p264
      %p266 = scmp.ne.s32.totalorder %s254, %s255
      %p267 = scmp.eq.s32.totalorder %s51, 1
      %p268 = por %p266, %p267
      %p270 = scmp.ne.s32.totalorder %s255, %s269
      %p271 = scmp.eq.s32.totalorder %s51, 0
      %p272 = por %p270, %p271
      %s274 = sadd.s32 %s273, 1
      %p277 = scmp.eq.s32.totalorder %s45, 1
      %p278 = scmp.ne.s32.totalorder %s273, %s275
      %p279 = scmp.eq.s32.totalorder %s45, 0
      %p280 = por %p278, %p279
      %p281 = scmp.ne.s32.totalorder %s273, %s275
      %p282 = scmp.eq.s32.totalorder %s50, 1
      %p283 = por %p281, %p282
      %p284 = scmp.ne.s32.totalorder %s275, %s276
      %p285 = scmp.eq.s32.totalorder %s50, 0
      %p286 = por %p284, %p285
      %p287 = scmp.ne.s32.totalorder %s275, %s276
      %p288 = scmp.eq.s32.totalorder %s51, 1
      %p289 = por %p287, %p288
      %p291 = scmp.ne.s32.totalorder %s276, %s290
      %p292 = scmp.eq.s32.totalorder %s51, 0
      %p293 = por %p291, %p292
      %s295 = sadd.s32 %s294, 1
      %p298 = scmp.eq.s32.totalorder %s45, 1
      %p299 = scmp.ne.s32.totalorder %s294, %s296
      %p300 = scmp.eq.s32.totalorder %s45, 0
      %p301 = por %p299, %p300
      %p302 = scmp.ne.s32.totalorder %s294, %s296
      %p303 = scmp.eq.s32.totalorder %s50, 1
      %p304 = por %p302, %p303
      %p305 = scmp.ne.s32.totalorder %s296, %s297
      %p306 = scmp.eq.s32.totalorder %s50, 0
      %p307 = por %p305, %p306
      %p308 = scmp.ne.s32.totalorder %s296, %s297
      %p309 = scmp.eq.s32.totalorder %s51, 1
      %p310 = por %p308, %p309
      %p312 = scmp.ne.s32.totalorder %s297, %s311
      %p313 = scmp.eq.s32.totalorder %s51, 0
      %p314 = por %p312, %p313
      %s316 = sadd.s32 %s315, 1
      %p319 = scmp.eq.s32.totalorder %s45, 1
      %p320 = scmp.ne.s32.totalorder %s315, %s317
      %p321 = scmp.eq.s32.totalorder %s45, 0
      %p322 = por %p320, %p321
      %p323 = scmp.ne.s32.totalorder %s315, %s317
      %p324 = scmp.eq.s32.totalorder %s50, 1
      %p325 = por %p323, %p324
      %p326 = scmp.ne.s32.totalorder %s317, %s318
      %p327 = scmp.eq.s32.totalorder %s50, 0
      %p328 = por %p326, %p327
      %p329 = scmp.ne.s32.totalorder %s317, %s318
      %p330 = scmp.eq.s32.totalorder %s51, 1
      %p331 = por %p329, %p330
      %p333 = scmp.ne.s32.totalorder %s318, %s332
      %p334 = scmp.eq.s32.totalorder %s51, 0
      %p335 = por %p333, %p334
      %s337 = sadd.s32 %s336, 1
      %p340 = scmp.eq.s32.totalorder %s45, 1
      %p341 = scmp.ne.s32.totalorder %s336, %s338
      %p342 = scmp.eq.s32.totalorder %s45, 0
      %p343 = por %p341, %p342
      %p344 = scmp.ne.s32.totalorder %s336, %s338
      %p345 = scmp.eq.s32.totalorder %s50, 1
      %p346 = por %p344, %p345
      %p347 = scmp.ne.s32.totalorder %s338, %s339
      %p348 = scmp.eq.s32.totalorder %s50, 0
      %p349 = por %p347, %p348
      %p350 = scmp.ne.s32.totalorder %s338, %s339
      %p351 = scmp.eq.s32.totalorder %s51, 1
      %p352 = por %p350, %p351
      %p354 = scmp.ne.s32.totalorder %s339, %s353
      %p355 = scmp.eq.s32.totalorder %s51, 0
      %p356 = por %p354, %p355
      %s358 = sadd.s32 %s357, 1
      %p361 = scmp.eq.s32.totalorder %s45, 1
      %p362 = scmp.ne.s32.totalorder %s357, %s359
      %p363 = scmp.eq.s32.totalorder %s45, 0
      %p364 = por %p362, %p363
      %p365 = scmp.ne.s32.totalorder %s357, %s359
      %p366 = scmp.eq.s32.totalorder %s50, 1
      %p367 = por %p365, %p366
      %p368 = scmp.ne.s32.totalorder %s359, %s360
      %p369 = scmp.eq.s32.totalorder %s50, 0
      %p370 = por %p368, %p369
      %p371 = scmp.ne.s32.totalorder %s359, %s360
      %p372 = scmp.eq.s32.totalorder %s51, 1
      %p373 = por %p371, %p372
      %p375 = scmp.ne.s32.totalorder %s360, %s374
      %p376 = scmp.eq.s32.totalorder %s51, 0
      %p377 = por %p375, %p376
      %s379 = sadd.s32 %s378, 1
      %p382 = scmp.eq.s32.totalorder %s45, 1
      %p383 = scmp.ne.s32.totalorder %s378, %s380
      %p384 = scmp.eq.s32.totalorder %s45, 0
      %p385 = por %p383, %p384
      %p386 = scmp.ne.s32.totalorder %s378, %s380
      %p387 = scmp.eq.s32.totalorder %s50, 1
      %p388 = por %p386, %p387
      %p389 = scmp.ne.s32.totalorder %s380, %s381
      %p390 = scmp.eq.s32.totalorder %s50, 0
      %p391 = por %p389, %p390
      %p392 = scmp.ne.s32.totalorder %s380, %s381
      %p393 = scmp.eq.s32.totalorder %s51, 1
      %p394 = por %p392, %p393
      %p396 = scmp.ne.s32.totalorder %s381, %s395
      %p397 = scmp.eq.s32.totalorder %s51, 0
      %p398 = por %p396, %p397
      %s400 = sadd.s32 %s399, 1
      %p403 = scmp.eq.s32.totalorder %s45, 1
      %p404 = scmp.ne.s32.totalorder %s399, %s401
      %p405 = scmp.eq.s32.totalorder %s45, 0
      %p406 = por %p404, %p405
      %p407 = scmp.ne.s32.totalorder %s399, %s401
      %p408 = scmp.eq.s32.totalorder %s50, 1
      %p409 = por %p407, %p408
      %p410 = scmp.ne.s32.totalorder %s401, %s402
      %p411 = scmp.eq.s32.totalorder %s50, 0
      %p412 = por %p410, %p411
      %p413 = scmp.ne.s32.totalorder %s401, %s402
      %p414 = scmp.eq.s32.totalorder %s51, 1
      %p415 = por %p413, %p414
      %p417 = scmp.ne.s32.totalorder %s402, %s416
      %p418 = scmp.eq.s32.totalorder %s51, 0
      %p419 = por %p417, %p418
      %s421 = sadd.s32 %s420, 1
      %p424 = scmp.eq.s32.totalorder %s45, 1
      %p425 = scmp.ne.s32.totalorder %s420, %s422
      %p426 = scmp.eq.s32.totalorder %s45, 0
      %p427 = por %p425, %p426
      %p428 = scmp.ne.s32.totalorder %s420, %s422
      %p429 = scmp.eq.s32.totalorder %s50, 1
      %p430 = por %p428, %p429
      %p431 = scmp.ne.s32.totalorder %s422, %s423
      %p432 = scmp.eq.s32.totalorder %s50, 0
      %p433 = por %p431, %p432
      %p434 = scmp.ne.s32.totalorder %s422, %s423
      %p435 = scmp.eq.s32.totalorder %s51, 1
      %p436 = por %p434, %p435
      %p438 = scmp.ne.s32.totalorder %s423, %s437
      %p439 = scmp.eq.s32.totalorder %s51, 0
      %p440 = por %p438, %p439
      %s442 = sadd.s32 %s441, 1
      %p445 = scmp.eq.s32.totalorder %s45, 1
      %p446 = scmp.ne.s32.totalorder %s441, %s443
      %p447 = scmp.eq.s32.totalorder %s45, 0
      %p448 = por %p446, %p447
      %p449 = scmp.ne.s32.totalorder %s441, %s443
      %p450 = scmp.eq.s32.totalorder %s50, 1
      %p451 = por %p449, %p450
      %p452 = scmp.ne.s32.totalorder %s443, %s444
      %p453 = scmp.eq.s32.totalorder %s50, 0
      %p454 = por %p452, %p453
      %p455 = scmp.ne.s32.totalorder %s443, %s444
      %p456 = scmp.eq.s32.totalorder %s51, 1
      %p457 = por %p455, %p456
      %p459 = scmp.ne.s32.totalorder %s444, %s458
      %p460 = scmp.eq.s32.totalorder %s51, 0
      %p461 = por %p459, %p460
      %s463 = sadd.s32 %s462, 1
      %p466 = scmp.eq.s32.totalorder %s45, 1
      %p467 = scmp.ne.s32.totalorder %s462, %s464
      %p468 = scmp.eq.s32.totalorder %s45, 0
      %p469 = por %p467, %p468
      %p470 = scmp.ne.s32.totalorder %s462, %s464
      %p471 = scmp.eq.s32.totalorder %s50, 1
      %p472 = por %p470, %p471
      %p473 = scmp.ne.s32.totalorder %s464, %s465
      %p474 = scmp.eq.s32.totalorder %s50, 0
      %p475 = por %p473, %p474
      %p476 = scmp.ne.s32.totalorder %s464, %s465
      %p477 = scmp.eq.s32.totalorder %s51, 1
      %p478 = por %p476, %p477
      %p480 = scmp.ne.s32.totalorder %s465, %s479
      %p481 = scmp.eq.s32.totalorder %s51, 0
      %p482 = por %p480, %p481
      %s484 = sadd.s32 %s483, 1
      %p487 = scmp.eq.s32.totalorder %s45, 1
      %p488 = scmp.ne.s32.totalorder %s483, %s485
      %p489 = scmp.eq.s32.totalorder %s45, 0
      %p490 = por %p488, %p489
      %p491 = scmp.ne.s32.totalorder %s483, %s485
      %p492 = scmp.eq.s32.totalorder %s50, 1
      %p493 = por %p491, %p492
      %p494 = scmp.ne.s32.totalorder %s485, %s486
      %p495 = scmp.eq.s32.totalorder %s50, 0
      %p496 = por %p494, %p495
      %p497 = scmp.ne.s32.totalorder %s485, %s486
      %p498 = scmp.eq.s32.totalorder %s51, 1
      %p499 = por %p497, %p498
      %p501 = scmp.ne.s32.totalorder %s486, %s500
      %p502 = scmp.eq.s32.totalorder %s51, 0
      %p503 = por %p501, %p502
      %s505 = sadd.s32 %s504, 1
      %p508 = scmp.eq.s32.totalorder %s45, 1
      %p509 = scmp.ne.s32.totalorder %s504, %s506
      %p510 = scmp.eq.s32.totalorder %s45, 0
      %p511 = por %p509, %p510
      %p512 = scmp.ne.s32.totalorder %s504, %s506
      %p513 = scmp.eq.s32.totalorder %s50, 1
      %p514 = por %p512, %p513
      %p515 = scmp.ne.s32.totalorder %s506, %s507
      %p516 = scmp.eq.s32.totalorder %s50, 0
      %p517 = por %p515, %p516
      %p518 = scmp.ne.s32.totalorder %s506, %s507
      %p519 = scmp.eq.s32.totalorder %s51, 1
      %p520 = por %p518, %p519
      %p522 = scmp.ne.s32.totalorder %s507, %s521
      %p523 = scmp.eq.s32.totalorder %s51, 0
      %p524 = por %p522, %p523
      %s526 = sadd.s32 %s525, 1
      %p529 = scmp.eq.s32.totalorder %s45, 1
      %p530 = scmp.ne.s32.totalorder %s525, %s527
      %p531 = scmp.eq.s32.totalorder %s45, 0
      %p532 = por %p530, %p531
      %p533 = scmp.ne.s32.totalorder %s525, %s527
      %p534 = scmp.eq.s32.totalorder %s50, 1
      %p535 = por %p533, %p534
      %p536 = scmp.ne.s32.totalorder %s527, %s528
      %p537 = scmp.eq.s32.totalorder %s50, 0
      %p538 = por %p536, %p537
      %p539 = scmp.ne.s32.totalorder %s527, %s528
      %p540 = scmp.eq.s32.totalorder %s51, 1
      %p541 = por %p539, %p540
      %p543 = scmp.ne.s32.totalorder %s528, %s542
      %p544 = scmp.eq.s32.totalorder %s51, 0
      %p545 = por %p543, %p544
      %s547 = sadd.s32 %s546, 1
      %p550 = scmp.eq.s32.totalorder %s45, 1
      %p551 = scmp.ne.s32.totalorder %s546, %s548
      %p552 = scmp.eq.s32.totalorder %s45, 0
      %p553 = por %p551, %p552
      %p554 = scmp.ne.s32.totalorder %s546, %s548
      %p555 = scmp.eq.s32.totalorder %s50, 1
      %p556 = por %p554, %p555
      %p557 = scmp.ne.s32.totalorder %s548, %s549
      %p558 = scmp.eq.s32.totalorder %s50, 0
      %p559 = por %p557, %p558
      %p560 = scmp.ne.s32.totalorder %s548, %s549
      %p561 = scmp.eq.s32.totalorder %s51, 1
      %p562 = por %p560, %p561
      %p564 = scmp.ne.s32.totalorder %s549, %s563
      %p565 = scmp.eq.s32.totalorder %s51, 0
      %p566 = por %p564, %p565
      %s568 = sadd.s32 %s567, 1
      %p571 = scmp.eq.s32.totalorder %s45, 1
      %p572 = scmp.ne.s32.totalorder %s567, %s569
      %p573 = scmp.eq.s32.totalorder %s45, 0
      %p574 = por %p572, %p573
      %p575 = scmp.ne.s32.totalorder %s567, %s569
      %p576 = scmp.eq.s32.totalorder %s50, 1
      %p577 = por %p575, %p576
      %p578 = scmp.ne.s32.totalorder %s569, %s570
      %p579 = scmp.eq.s32.totalorder %s50, 0
      %p580 = por %p578, %p579
      %p581 = scmp.ne.s32.totalorder %s569, %s570
      %p582 = scmp.eq.s32.totalorder %s51, 1
      %p583 = por %p581, %p582
      %p585 = scmp.ne.s32.totalorder %s570, %s584
      %p586 = scmp.eq.s32.totalorder %s51, 0
      %p587 = por %p585, %p586
      %s588 = ssub.s32 %s45, %s52
      %p589 = scmp.eq.s32.totalorder %s588, 0
      %s591 = sadd.s32 %s590, 1
      %s592 = scalar_select %p589, %s590, %s591
      %p595 = pneg %p589
      %p596 = scmp.eq.s32.totalorder %s45, 1
      %p597 = por %p595, %p596
      %p598 = scmp.ne.s32.totalorder %s590, %s593
      %p599 = scmp.eq.s32.totalorder %s45, 0
      %p600 = por %p598, %p599
      %p601 = scmp.ne.s32.totalorder %s590, %s593
      %p602 = scmp.eq.s32.totalorder %s50, 1
      %p603 = por %p601, %p602
      %p604 = scmp.ne.s32.totalorder %s593, %s594
      %p605 = scmp.eq.s32.totalorder %s50, 0
      %p606 = por %p604, %p605
      %p607 = scmp.ne.s32.totalorder %s593, %s594
      %p608 = scmp.eq.s32.totalorder %s51, 1
      %p609 = por %p607, %p608
      %p611 = scmp.ne.s32.totalorder %s594, %s610
      %p612 = scmp.eq.s32.totalorder %s51, 0
      %p613 = por %p611, %p612
      %p614 = scmp.le.s32.totalorder 1, %s45
      %p615 = scmp.lt.s32.totalorder %s45, 3
      %p616 = pnand %p614, %p615
      %p617 = pneg %p616
      // Predicated region
      $region9: #{radar_encoder_forward.1} parent=5 // pred_check
        _
      $region10: #{radar_encoder_forward.1} parent=5 // pred_check_branch
        %619 = sbr.rel (%p616) target = $region12
      $region11: #{radar_encoder_forward.1} parent=5 // pred_region
        %s620 = ssub.s32 %s45, 1
        // Predicated region
        $region13: #{radar_encoder_forward.1} parent=11 // pred_check
          %p621 = pneg %p118
        $region14: #{radar_encoder_forward.1} parent=11 // pred_check_branch
          %623 = sbr.rel (%p621) target = $region16
        $region15: #{radar_encoder_forward.1} parent=11 // pred_region
          %s625 = ssub.s32 128, 128
          %626 = vsyncadd [#allocation4], %s625
          %s628 = sshll.u32 [#allocation3], 4
          %s629 = int_to_ptr.vmem [resolvable:$true] %s628
          %631 = dma.hbm_to_vmem [thread:$0]  %s2, 128, %s629, [#allocation4]
        $region16: #{radar_encoder_forward.1} parent=11 // pred_fallthru
          _
        // Predicated region
        $region17: #{radar_encoder_forward.1} parent=11 // pred_check
          %p632 = pneg %p139
        $region18: #{radar_encoder_forward.1} parent=11 // pred_check_branch
          %634 = sbr.rel (%p632) target = $region20
        $region19: #{radar_encoder_forward.1} parent=11 // pred_region
          %s636 = ssub.s32 16, 16
          %637 = vsyncadd [#allocation7], %s636
          %s639 = sshll.u32 [#allocation6], 4
          %s640 = int_to_ptr.vmem [resolvable:$true] %s639
          %642 = dma.hbm_to_vmem [thread:$0]  %s3, 16, %s640, [#allocation7]
        $region20: #{radar_encoder_forward.1} parent=11 // pred_fallthru
          _
        // Predicated region
        $region21: #{radar_encoder_forward.1} parent=11 // pred_check
          %p643 = pneg %p160
        $region22: #{radar_encoder_forward.1} parent=11 // pred_check_branch
          %645 = sbr.rel (%p643) target = $region24
        $region23: #{radar_encoder_forward.1} parent=11 // pred_region
          %s647 = ssub.s32 128, 128
          %648 = vsyncadd [#allocation7], %s647
          %s650 = sshll.u32 [#allocation8], 4
          %s651 = int_to_ptr.vmem [resolvable:$true] %s650
          %653 = dma.hbm_to_vmem [thread:$0]  %s4, 128, %s651, [#allocation7]
        $region24: #{radar_encoder_forward.1} parent=11 // pred_fallthru
          _
        // Predicated region
        $region25: #{radar_encoder_forward.1} parent=11 // pred_check
          %p654 = pneg %p181
        $region26: #{radar_encoder_forward.1} parent=11 // pred_check_branch
          %656 = sbr.rel (%p654) target = $region28
        $region27: #{radar_encoder_forward.1} parent=11 // pred_region
          _
        $region28: #{radar_encoder_forward.1} parent=11 // pred_fallthru
          _
        // Predicated region
        $region29: #{radar_encoder_forward.1} parent=11 // pred_check
          %p657 = pneg %p202
        $region30: #{radar_encoder_forward.1} parent=11 // pred_check_branch
          %659 = sbr.rel (%p657) target = $region32
        $region31: #{radar_encoder_forward.1} parent=11 // pred_region
          _
        $region32: #{radar_encoder_forward.1} parent=11 // pred_fallthru
          _
        // Predicated region
        $region33: #{radar_encoder_forward.1} parent=11 // pred_check
          %p660 = pneg %p223
        $region34: #{radar_encoder_forward.1} parent=11 // pred_check_branch
          %662 = sbr.rel (%p660) target = $region36
        $region35: #{radar_encoder_forward.1} parent=11 // pred_region
          _
        $region36: #{radar_encoder_forward.1} parent=11 // pred_fallthru
          _
        // Predicated region
        $region37: #{radar_encoder_forward.1} parent=11 // pred_check
          %p663 = pneg %p244
        $region38: #{radar_encoder_forward.1} parent=11 // pred_check_branch
          %665 = sbr.rel (%p663) target = $region40
        $region39: #{radar_encoder_forward.1} parent=11 // pred_region
          _
        $region40: #{radar_encoder_forward.1} parent=11 // pred_fallthru
          _
        // Predicated region
        $region41: #{radar_encoder_forward.1} parent=11 // pred_check
          %p666 = pneg %p265
        $region42: #{radar_encoder_forward.1} parent=11 // pred_check_branch
          %668 = sbr.rel (%p666) target = $region44
        $region43: #{radar_encoder_forward.1} parent=11 // pred_region
          %s670 = ssub.s32 32, 32
          %671 = vsyncadd [#allocation10], %s670
          %s672 = sshll.u32 [#allocation9], 4
          %s673 = int_to_ptr.vmem [resolvable:$true] %s672
          %678 = dma.hbm_to_vmem [thread:$0]  %s9, 32, %s673, [#allocation10], 16, 16, 1
        $region44: #{radar_encoder_forward.1} parent=11 // pred_fallthru
          _
        // Predicated region
        $region45: #{radar_encoder_forward.1} parent=11 // pred_check
          %p679 = pneg %p286
        $region46: #{radar_encoder_forward.1} parent=11 // pred_check_branch
          %681 = sbr.rel (%p679) target = $region48
        $region47: #{radar_encoder_forward.1} parent=11 // pred_region
          %s683 = ssub.s32 32, 32
          %684 = vsyncadd [#allocation10], %s683
          %s685 = sshll.u32 [#allocation11], 4
          %s686 = int_to_ptr.vmem [resolvable:$true] %s685
          %691 = dma.hbm_to_vmem [thread:$0]  %s10, 32, %s686, [#allocation10], 16, 16, 1
        $region48: #{radar_encoder_forward.1} parent=11 // pred_fallthru
          _
        // Predicated region
        $region49: #{radar_encoder_forward.1} parent=11 // pred_check
          %p692 = pneg %p307
        $region50: #{radar_encoder_forward.1} parent=11 // pred_check_branch
          %694 = sbr.rel (%p692) target = $region52
        $region51: #{radar_encoder_forward.1} parent=11 // pred_region
          _
        $region52: #{radar_encoder_forward.1} parent=11 // pred_fallthru
          _
        // Predicated region
        $region53: #{radar_encoder_forward.1} parent=11 // pred_check
          %p695 = pneg %p328
        $region54: #{radar_encoder_forward.1} parent=11 // pred_check_branch
          %697 = sbr.rel (%p695) target = $region56
        $region55: #{radar_encoder_forward.1} parent=11 // pred_region
          %s699 = ssub.s32 32, 32
          %700 = vsyncadd [#allocation13], %s699
          %s701 = sshll.u32 [#allocation12], 4
          %s702 = int_to_ptr.vmem [resolvable:$true] %s701
          %707 = dma.hbm_to_vmem [thread:$0]  %s12, 32, %s702, [#allocation13], 16, 16, 1
        $region56: #{radar_encoder_forward.1} parent=11 // pred_fallthru
          _
        // Predicated region
        $region57: #{radar_encoder_forward.1} parent=11 // pred_check
          %p708 = pneg %p349
        $region58: #{radar_encoder_forward.1} parent=11 // pred_check_branch
          %710 = sbr.rel (%p708) target = $region60
        $region59: #{radar_encoder_forward.1} parent=11 // pred_region
          %s712 = ssub.s32 1024, 1024
          %713 = vsyncadd [#allocation13], %s712
          %s714 = sshll.u32 [#allocation14], 4
          %s715 = int_to_ptr.vmem [resolvable:$true] %s714
          %720 = dma.hbm_to_vmem [thread:$0]  %s13, 1024, %s715, [#allocation13], 128, 128, 8
        $region60: #{radar_encoder_forward.1} parent=11 // pred_fallthru
          _
        // Predicated region
        $region61: #{radar_encoder_forward.1} parent=11 // pred_check
          %p721 = pneg %p370
        $region62: #{radar_encoder_forward.1} parent=11 // pred_check_branch
          %723 = sbr.rel (%p721) target = $region64
        $region63: #{radar_encoder_forward.1} parent=11 // pred_region
          %s725 = ssub.s32 32, 32
          %726 = vsyncadd [#allocation16], %s725
          %s727 = sshll.u32 [#allocation15], 4
          %s728 = int_to_ptr.vmem [resolvable:$true] %s727
          %733 = dma.hbm_to_vmem [thread:$0]  %s14, 32, %s728, [#allocation16], 16, 16, 1
        $region64: #{radar_encoder_forward.1} parent=11 // pred_fallthru
          _
        // Predicated region
        $region65: #{radar_encoder_forward.1} parent=11 // pred_check
          %p734 = pneg %p391
        $region66: #{radar_encoder_forward.1} parent=11 // pred_check_branch
          %736 = sbr.rel (%p734) target = $region68
        $region67: #{radar_encoder_forward.1} parent=11 // pred_region
          %s738 = ssub.s32 32, 32
          %739 = vsyncadd [#allocation16], %s738
          %s740 = sshll.u32 [#allocation17], 4
          %s741 = int_to_ptr.vmem [resolvable:$true] %s740
          %746 = dma.hbm_to_vmem [thread:$0]  %s15, 32, %s741, [#allocation16], 16, 16, 1
        $region68: #{radar_encoder_forward.1} parent=11 // pred_fallthru
          _
        // Predicated region
        $region69: #{radar_encoder_forward.1} parent=11 // pred_check
          %p747 = pneg %p412
        $region70: #{radar_encoder_forward.1} parent=11 // pred_check_branch
          %749 = sbr.rel (%p747) target = $region72
        $region71: #{radar_encoder_forward.1} parent=11 // pred_region
          %s751 = ssub.s32 32, 32
          %752 = vsyncadd [#allocation19], %s751
          %s753 = sshll.u32 [#allocation18], 4
          %s754 = int_to_ptr.vmem [resolvable:$true] %s753
          %759 = dma.hbm_to_vmem [thread:$0]  %s16, 32, %s754, [#allocation19], 16, 16, 1
        $region72: #{radar_encoder_forward.1} parent=11 // pred_fallthru
          _
        // Predicated region
        $region73: #{radar_encoder_forward.1} parent=11 // pred_check
          %p760 = pneg %p433
        $region74: #{radar_encoder_forward.1} parent=11 // pred_check_branch
          %762 = sbr.rel (%p760) target = $region76
        $region75: #{radar_encoder_forward.1} parent=11 // pred_region
          %s764 = ssub.s32 1024, 1024
          %765 = vsyncadd [#allocation19], %s764
          %s766 = sshll.u32 [#allocation20], 4
          %s767 = int_to_ptr.vmem [resolvable:$true] %s766
          %772 = dma.hbm_to_vmem [thread:$0]  %s17, 1024, %s767, [#allocation19], 128, 128, 8
        $region76: #{radar_encoder_forward.1} parent=11 // pred_fallthru
          _
        // Predicated region
        $region77: #{radar_encoder_forward.1} parent=11 // pred_check
          %p773 = pneg %p454
        $region78: #{radar_encoder_forward.1} parent=11 // pred_check_branch
          %775 = sbr.rel (%p773) target = $region80
        $region79: #{radar_encoder_forward.1} parent=11 // pred_region
          %s777 = ssub.s32 32, 32
          %778 = vsyncadd [#allocation22], %s777
          %s779 = sshll.u32 [#allocation21], 4
          %s780 = int_to_ptr.vmem [resolvable:$true] %s779
          %785 = dma.hbm_to_vmem [thread:$0]  %s18, 32, %s780, [#allocation22], 16, 16, 1
        $region80: #{radar_encoder_forward.1} parent=11 // pred_fallthru
          _
        // Predicated region
        $region81: #{radar_encoder_forward.1} parent=11 // pred_check
          %p786 = pneg %p475
        $region82: #{radar_encoder_forward.1} parent=11 // pred_check_branch
          %788 = sbr.rel (%p786) target = $region84
        $region83: #{radar_encoder_forward.1} parent=11 // pred_region
          _
        $region84: #{radar_encoder_forward.1} parent=11 // pred_fallthru
          _
        // Predicated region
        $region85: #{radar_encoder_forward.1} parent=11 // pred_check
          %p789 = pneg %p496
        $region86: #{radar_encoder_forward.1} parent=11 // pred_check_branch
          %791 = sbr.rel (%p789) target = $region88
        $region87: #{radar_encoder_forward.1} parent=11 // pred_region
          %s793 = ssub.s32 32, 32
          %794 = vsyncadd [#allocation22], %s793
          %s795 = sshll.u32 [#allocation23], 4
          %s796 = int_to_ptr.vmem [resolvable:$true] %s795
          %801 = dma.hbm_to_vmem [thread:$0]  %s20, 32, %s796, [#allocation22], 16, 16, 1
        $region88: #{radar_encoder_forward.1} parent=11 // pred_fallthru
          _
        // Predicated region
        $region89: #{radar_encoder_forward.1} parent=11 // pred_check
          %p802 = pneg %p517
        $region90: #{radar_encoder_forward.1} parent=11 // pred_check_branch
          %804 = sbr.rel (%p802) target = $region92
        $region91: #{radar_encoder_forward.1} parent=11 // pred_region
          %s806 = ssub.s32 32, 32
          %807 = vsyncadd [#allocation25], %s806
          %s808 = sshll.u32 [#allocation24], 4
          %s809 = int_to_ptr.vmem [resolvable:$true] %s808
          %814 = dma.hbm_to_vmem [thread:$0]  %s21, 32, %s809, [#allocation25], 16, 16, 1
        $region92: #{radar_encoder_forward.1} parent=11 // pred_fallthru
          _
        // Predicated region
        $region93: #{radar_encoder_forward.1} parent=11 // pred_check
          %p815 = pneg %p538
        $region94: #{radar_encoder_forward.1} parent=11 // pred_check_branch
          %817 = sbr.rel (%p815) target = $region96
        $region95: #{radar_encoder_forward.1} parent=11 // pred_region
          %s819 = ssub.s32 32, 32
          %820 = vsyncadd [#allocation25], %s819
          %s821 = sshll.u32 [#allocation26], 4
          %s822 = int_to_ptr.vmem [resolvable:$true] %s821
          %827 = dma.hbm_to_vmem [thread:$0]  %s22, 32, %s822, [#allocation25], 16, 16, 1
        $region96: #{radar_encoder_forward.1} parent=11 // pred_fallthru
          _
        // Predicated region
        $region97: #{radar_encoder_forward.1} parent=11 // pred_check
          %p828 = pneg %p559
        $region98: #{radar_encoder_forward.1} parent=11 // pred_check_branch
          %830 = sbr.rel (%p828) target = $region100
        $region99: #{radar_encoder_forward.1} parent=11 // pred_region
          %s832 = ssub.s32 16, 16
          %833 = vsyncadd [#allocation28], %s832
          %s835 = sshll.u32 [#allocation27], 4
          %s836 = int_to_ptr.vmem [resolvable:$true] %s835
          %838 = dma.hbm_to_vmem [thread:$0]  %s23, 16, %s836, [#allocation28]
        $region100: #{radar_encoder_forward.1} parent=11 // pred_fallthru
          _
        // Predicated region
        $region101: #{radar_encoder_forward.1} parent=11 // pred_check
          %p839 = pneg %p580
        $region102: #{radar_encoder_forward.1} parent=11 // pred_check_branch
          %841 = sbr.rel (%p839) target = $region104
        $region103: #{radar_encoder_forward.1} parent=11 // pred_region
          _
        $region104: #{radar_encoder_forward.1} parent=11 // pred_fallthru
          _
      $region12: #{radar_encoder_forward.1} parent=5 // pred_fallthru
        _
      %p842 = scmp.lt.s32.totalorder %s45, 2
      // Predicated region
      $region105: #{radar_encoder_forward.1} parent=5 // pred_check
        %p843 = pneg %p842
      $region106: #{radar_encoder_forward.1} parent=5 // pred_check_branch
        %845 = sbr.rel (%p843) target = $region108
      $region107: #{radar_encoder_forward.1} parent=5 // pred_region
        // Predicated region
        $region109: #{radar_encoder_forward.1} parent=107 // pred_check
          %p846 = pneg %p65
        $region110: #{radar_encoder_forward.1} parent=107 // pred_check_branch
          %848 = sbr.rel (%p846) target = $region112
        $region111: #{radar_encoder_forward.1} parent=107 // pred_region
          %p849 = scmp.lt.s32.totalorder %s45, 1
          %s850 = scalar_select %p849, %s45, 1
          %s851 = smul.addr %s850, 2
          %s852 = smul.addr %s851, 8
          %s853 = scalar_lea.vmem %s0, %s852
        $region112: #{radar_encoder_forward.1} parent=107 // pred_fallthru
          _
        // Predicated region
        $region113: #{radar_encoder_forward.1} parent=107 // pred_check
          %p854 = pneg %p91
        $region114: #{radar_encoder_forward.1} parent=107 // pred_check_branch
          %856 = sbr.rel (%p854) target = $region116
        $region115: #{radar_encoder_forward.1} parent=107 // pred_region
          %p857 = scmp.lt.s32.totalorder %s45, 1
          %s858 = scalar_select %p857, %s45, 1
          %s859 = scalar_lea.vmem %s1, %s858
        $region116: #{radar_encoder_forward.1} parent=107 // pred_fallthru
          _
      $region108: #{radar_encoder_forward.1} parent=5 // pred_fallthru
        _
      %p860 = scmp.le.s32.totalorder 1, %s45
      %p861 = scmp.lt.s32.totalorder %s45, 3
      %p862 = pnand %p860, %p861
      %p863 = pneg %p862
      // Predicated region
      $region117: #{radar_encoder_forward.1} parent=5 // pred_check
        _
      $region118: #{radar_encoder_forward.1} parent=5 // pred_check_branch
        %865 = sbr.rel (%p862) target = $region120
      $region119: #{radar_encoder_forward.1} parent=5 // pred_region
        %s866 = ssub.s32 %s45, 1
        // Predicated region
        $region121: #{radar_encoder_forward.1} parent=119 // pred_check
          %p867 = pneg %p118
        $region122: #{radar_encoder_forward.1} parent=119 // pred_check_branch
          %869 = sbr.rel (%p867) target = $region124
        $region123: #{radar_encoder_forward.1} parent=119 // pred_region
          %870 = dma.done [#allocation4], 128
        $region124: #{radar_encoder_forward.1} parent=119 // pred_fallthru
          _
        // Predicated region
        $region125: #{radar_encoder_forward.1} parent=119 // pred_check
          %p871 = pneg %p139
        $region126: #{radar_encoder_forward.1} parent=119 // pred_check_branch
          %873 = sbr.rel (%p871) target = $region128
        $region127: #{radar_encoder_forward.1} parent=119 // pred_region
          %874 = dma.done [#allocation7], 16
        $region128: #{radar_encoder_forward.1} parent=119 // pred_fallthru
          _
        // Predicated region
        $region129: #{radar_encoder_forward.1} parent=119 // pred_check
          %p875 = pneg %p160
        $region130: #{radar_encoder_forward.1} parent=119 // pred_check_branch
          %877 = sbr.rel (%p875) target = $region132
        $region131: #{radar_encoder_forward.1} parent=119 // pred_region
          %878 = dma.done [#allocation7], 128
        $region132: #{radar_encoder_forward.1} parent=119 // pred_fallthru
          _
        // Predicated region
        $region133: #{radar_encoder_forward.1} parent=119 // pred_check
          %p879 = pneg %p265
        $region134: #{radar_encoder_forward.1} parent=119 // pred_check_branch
          %881 = sbr.rel (%p879) target = $region136
        $region135: #{radar_encoder_forward.1} parent=119 // pred_region
          %882 = dma.done [#allocation10], 32
        $region136: #{radar_encoder_forward.1} parent=119 // pred_fallthru
          _
        // Predicated region
        $region137: #{radar_encoder_forward.1} parent=119 // pred_check
          %p883 = pneg %p286
        $region138: #{radar_encoder_forward.1} parent=119 // pred_check_branch
          %885 = sbr.rel (%p883) target = $region140
        $region139: #{radar_encoder_forward.1} parent=119 // pred_region
          %886 = dma.done [#allocation10], 32
        $region140: #{radar_encoder_forward.1} parent=119 // pred_fallthru
          _
        // Predicated region
        $region141: #{radar_encoder_forward.1} parent=119 // pred_check
          %p887 = pneg %p328
        $region142: #{radar_encoder_forward.1} parent=119 // pred_check_branch
          %889 = sbr.rel (%p887) target = $region144
        $region143: #{radar_encoder_forward.1} parent=119 // pred_region
          %890 = dma.done [#allocation13], 32
        $region144: #{radar_encoder_forward.1} parent=119 // pred_fallthru
          _
        // Predicated region
        $region145: #{radar_encoder_forward.1} parent=119 // pred_check
          %p891 = pneg %p349
        $region146: #{radar_encoder_forward.1} parent=119 // pred_check_branch
          %893 = sbr.rel (%p891) target = $region148
        $region147: #{radar_encoder_forward.1} parent=119 // pred_region
          %894 = dma.done [#allocation13], 1024
        $region148: #{radar_encoder_forward.1} parent=119 // pred_fallthru
          _
        // Predicated region
        $region149: #{radar_encoder_forward.1} parent=119 // pred_check
          %p895 = pneg %p370
        $region150: #{radar_encoder_forward.1} parent=119 // pred_check_branch
          %897 = sbr.rel (%p895) target = $region152
        $region151: #{radar_encoder_forward.1} parent=119 // pred_region
          %898 = dma.done [#allocation16], 32
        $region152: #{radar_encoder_forward.1} parent=119 // pred_fallthru
          _
        // Predicated region
        $region153: #{radar_encoder_forward.1} parent=119 // pred_check
          %p899 = pneg %p391
        $region154: #{radar_encoder_forward.1} parent=119 // pred_check_branch
          %901 = sbr.rel (%p899) target = $region156
        $region155: #{radar_encoder_forward.1} parent=119 // pred_region
          %902 = dma.done [#allocation16], 32
        $region156: #{radar_encoder_forward.1} parent=119 // pred_fallthru
          _
        // Predicated region
        $region157: #{radar_encoder_forward.1} parent=119 // pred_check
          %p903 = pneg %p412
        $region158: #{radar_encoder_forward.1} parent=119 // pred_check_branch
          %905 = sbr.rel (%p903) target = $region160
        $region159: #{radar_encoder_forward.1} parent=119 // pred_region
          %906 = dma.done [#allocation19], 32
        $region160: #{radar_encoder_forward.1} parent=119 // pred_fallthru
          _
        // Predicated region
        $region161: #{radar_encoder_forward.1} parent=119 // pred_check
          %p907 = pneg %p433
        $region162: #{radar_encoder_forward.1} parent=119 // pred_check_branch
          %909 = sbr.rel (%p907) target = $region164
        $region163: #{radar_encoder_forward.1} parent=119 // pred_region
          %910 = dma.done [#allocation19], 1024
        $region164: #{radar_encoder_forward.1} parent=119 // pred_fallthru
          _
        // Predicated region
        $region165: #{radar_encoder_forward.1} parent=119 // pred_check
          %p911 = pneg %p454
        $region166: #{radar_encoder_forward.1} parent=119 // pred_check_branch
          %913 = sbr.rel (%p911) target = $region168
        $region167: #{radar_encoder_forward.1} parent=119 // pred_region
          %914 = dma.done [#allocation22], 32
        $region168: #{radar_encoder_forward.1} parent=119 // pred_fallthru
          _
        // Predicated region
        $region169: #{radar_encoder_forward.1} parent=119 // pred_check
          %p915 = pneg %p496
        $region170: #{radar_encoder_forward.1} parent=119 // pred_check_branch
          %917 = sbr.rel (%p915) target = $region172
        $region171: #{radar_encoder_forward.1} parent=119 // pred_region
          %918 = dma.done [#allocation22], 32
        $region172: #{radar_encoder_forward.1} parent=119 // pred_fallthru
          _
        // Predicated region
        $region173: #{radar_encoder_forward.1} parent=119 // pred_check
          %p919 = pneg %p517
        $region174: #{radar_encoder_forward.1} parent=119 // pred_check_branch
          %921 = sbr.rel (%p919) target = $region176
        $region175: #{radar_encoder_forward.1} parent=119 // pred_region
          %922 = dma.done [#allocation25], 32
        $region176: #{radar_encoder_forward.1} parent=119 // pred_fallthru
          _
        // Predicated region
        $region177: #{radar_encoder_forward.1} parent=119 // pred_check
          %p923 = pneg %p538
        $region178: #{radar_encoder_forward.1} parent=119 // pred_check_branch
          %925 = sbr.rel (%p923) target = $region180
        $region179: #{radar_encoder_forward.1} parent=119 // pred_region
          %926 = dma.done [#allocation25], 32
        $region180: #{radar_encoder_forward.1} parent=119 // pred_fallthru
          _
        // Predicated region
        $region181: #{radar_encoder_forward.1} parent=119 // pred_check
          %p927 = pneg %p559
        $region182: #{radar_encoder_forward.1} parent=119 // pred_check_branch
          %929 = sbr.rel (%p927) target = $region184
        $region183: #{radar_encoder_forward.1} parent=119 // pred_region
          %930 = dma.done [#allocation28], 16
        $region184: #{radar_encoder_forward.1} parent=119 // pred_fallthru
          _
        %p931 = scmp.lt.s32.totalorder %s50, 1
        %s932 = scalar_select %p931, %s50, 1
        %s933 = smul.addr %s932, 2
        %s934 = smul.addr %s933, 8
        %s935 = scalar_lea.vmem %s0, %s934
        %p936 = pneg %p71
        %p937 = pneg %p68
        %p938 = scmp.lt.s32.totalorder %s50, 1
        %s939 = scalar_select %p938, %s50, 1
        %s940 = scalar_lea.vmem %s1, %s939
        %p941 = pneg %p97
        %p942 = pneg %p94
        %p943 = pneg %p118
        %p944 = pneg %p115
        %p945 = pneg %p139
        %p946 = pneg %p136
        %p947 = pneg %p160
        %p948 = pneg %p157
        %p949 = pneg %p181
        %p950 = pneg %p178
        %p951 = pneg %p202
        %p952 = pneg %p199
        %p953 = pneg %p223
        %p954 = pneg %p220
        %p955 = pneg %p244
        %p956 = pneg %p241
        %p957 = pneg %p265
        %p958 = pneg %p262
        %p959 = pneg %p286
        %p960 = pneg %p283
        %p961 = pneg %p307
        %p962 = pneg %p304
        %p963 = pneg %p328
        %p964 = pneg %p325
        %p965 = pneg %p349
        %p966 = pneg %p346
        %p967 = pneg %p370
        %p968 = pneg %p367
        %p969 = pneg %p391
        %p970 = pneg %p388
        %p971 = pneg %p412
        %p972 = pneg %p409
        %p973 = pneg %p433
        %p974 = pneg %p430
        %p975 = pneg %p454
        %p976 = pneg %p451
        %p977 = pneg %p475
        %p978 = pneg %p472
        %p979 = pneg %p496
        %p980 = pneg %p493
        %p981 = pneg %p517
        %p982 = pneg %p514
        %p983 = pneg %p538
        %p984 = pneg %p535
        %p985 = pneg %p559
        %p986 = pneg %p556
        %p987 = pneg %p580
        %p988 = pneg %p577
        %p989 = pneg %p606
        %p990 = pneg %p603
        %s991 = sand.u32 %s593, 1
        %s992 = scalar_lea.sflag [#allocation5], %s991
        %s993 = sand.u32 %s593, 1
        %s994 = scalar_lea.vmem [#allocation29], %s993
        %p995 = scmp.lt.s32.totalorder %s50, 1
        %s996 = scalar_select %p995, %s50, 1
        %s997 = smul.addr %s996, 2
        %s998 = smul.addr %s997, 8
        %s999 = scalar_lea.vmem %s0, %s998
        %p1000 = scmp.lt.s32.totalorder %s50, 1
        %s1001 = scalar_select %p1000, %s50, 1
        %s1002 = scalar_lea.vmem %s1, %s1001
        %v1003 = vld [vmem:[%s999] sm:$0xff]
        %v1004 = vld [vmem:[%s999 + $0x8] sm:$0x3]
        %v1005 = vld [vmem:[#allocation3] sm:$0x7f]
        %v1006 = vld [vmem:[#allocation6] sm:$0x1]
        %v1008 = vlaneseq
        %v1009 = vshrl.u32 %v1008, 7
        %v1010 = vsub.s32 0, %v1009
        %v1011 = vrot.slane %v1006, %v1010
        %vm1013 = vcmask 56320
        %v1015 = vsel %vm1013, %v1003, 0
        %v1018 = vsel %vm1013, %v1004, 0
        %vm1020 = vcmask 1046528
        %v1022 = vsel %vm1020, %v1005, 0
        %1024 = vmatprep.subr.mxu0 0.0
        %1025 = vmatpush1.msra.mxu0 0.0
        %1026 = vmatprep.subr.mxu0 0.0
        %1027 = vmatpush1.msra.mxu0 0.0
        %1028 = vmatprep.subr.mxu0 0.0
        %1029 = vmatpush1.msra.mxu0 0.0
        %1030 = vmatprep.subr.mxu0 0.0
        %1031 = vmatpush1.msra.mxu0 0.0
        %1032 = vmatprep.subr.mxu0 0.0
        %1033 = vmatpush1.msra.mxu0 0.0
        %1034 = vmatprep.subr.mxu0 0.0
        %1035 = vmatpush1.msra.mxu0 0.0
        %1036 = vmatprep.subr.mxu0 0.0
        %1037 = vmatpush1.msra.mxu0 0.0
        %1038 = vmatprep.subr.mxu0 0.0
        %1039 = vmatpush1.msra.mxu0 0.0
        %1040 = vmatprep.subr.mxu0 0.0
        %1041 = vmatpush1.msra.mxu0 0.0
        %1042 = vmatprep.subr.mxu0 0.0
        %1043 = vmatpush1.msra.mxu0 0.0
        %1044 = vmatprep.subr.mxu0 0.0
        %1045 = vmatpush1.msra.mxu0 0.0
        %1046 = vmatprep.subr.mxu0 0.0
        %1047 = vmatpush1.msra.mxu0 0.0
        %1048 = vmatprep.subr.mxu0 0.0
        %1049 = vmatpush1.msra.mxu0 0.0
        %1050 = vmatprep.subr.mxu0 0.0
        %1051 = vmatpush1.msra.mxu0 0.0
        %1052 = vmatprep.subr.mxu0 0.0
        %1053 = vmatpush1.msra.mxu0 0.0
        %1054 = vmatprep.subr.mxu0 0.0
        %1055 = vmatpush1.msra.mxu0 %v1022
        %1056 = vmatprep.subr.mxu0 0.0
        %1057 = vmatpush2.msra.mxu0 0.0
        %1058 = vmatprep.subr.mxu0 0.0
        %1059 = vmatpush2.msra.mxu0 0.0
        %1060 = vmatprep.subr.mxu0 0.0
        %1061 = vmatpush2.msra.mxu0 0.0
        %1062 = vmatprep.subr.mxu0 0.0
        %1063 = vmatpush2.msra.mxu0 0.0
        %1064 = vmatprep.subr.mxu0 0.0
        %1065 = vmatpush2.msra.mxu0 0.0
        %1066 = vmatprep.subr.mxu0 0.0
        %1067 = vmatpush2.msra.mxu0 0.0
        %1068 = vmatprep.subr.mxu0 0.0
        %1069 = vmatpush2.msra.mxu0 0.0
        %1070 = vmatprep.subr.mxu0 0.0
        %1071 = vmatpush2.msra.mxu0 0.0
        %1072 = vmatprep.subr.mxu0 0.0
        %1073 = vmatpush2.msra.mxu0 0.0
        %1074 = vmatprep.subr.mxu0 0.0
        %1075 = vmatpush2.msra.mxu0 0.0
        %1076 = vmatprep.subr.mxu0 0.0
        %1077 = vmatpush2.msra.mxu0 0.0
        %1078 = vmatprep.subr.mxu0 0.0
        %1079 = vmatpush2.msra.mxu0 0.0
        %1080 = vmatprep.subr.mxu0 0.0
        %1081 = vmatpush2.msra.mxu0 0.0
        %1082 = vmatprep.subr.mxu0 0.0
        %1083 = vmatpush2.msra.mxu0 0.0
        %1084 = vmatprep.subr.mxu0 0.0
        %1085 = vmatpush2.msra.mxu0 0.0
        %1086 = vmatprep.subr.mxu0 0.0
        %1087 = vmatpush2.msra.mxu0 0.0
        %1088 = vmatprep.mubr.f32.mxu0 0.0
        %1089 = vmatmul.mubr.f32.gmra.mxu0 %v1015
        %v1090 = vpop.f32.mrf.mxu0
        %v1091 = vadd.f32 %v1011, %v1090
        %v1092 = vpop.f32.mrf.mxu0
        %1093 = vmatprep.mubr.f32.mxu0 0.0
        %1094 = vmatmul.mubr.f32.gmra.mxu0 %v1018
        %v1095 = vpop.f32.mrf.mxu0
        %v1096 = vadd.f32 %v1011, %v1095
        %v1097 = vpop.f32.mrf.mxu0
        %1098 = vdwg.mxu0
        %v1099 = vld [vmem:[%s1002] sm:$0x1]
        %v1100 = vld [vmem:[#allocation8] sm:$0xff]
        %v1101 = vld [vmem:[%s5] sm:$0xff]
        %v1102 = vld [vmem:[%s5 + $0x8] sm:$0xff]
        %v1103 = vld [vmem:[%s5 + $0x10] sm:$0xff]
        %v1104 = vld [vmem:[%s5 + $0x18] sm:$0xff]
        %v1105 = vld [vmem:[%s6] sm:$0x1]
        %v1106 = vld [vmem:[%s7] sm:$0xff]
        %v1107 = vld [vmem:[%s7 + $0x8] sm:$0xff]
        %v1108 = vld [vmem:[%s7 + $0x10] sm:$0xff]
        %v1109 = vld [vmem:[%s7 + $0x18] sm:$0xff]
        %v1110 = vld [vmem:[%s8] sm:$0x1]
        %v1112 = vlaneseq
        %v1113 = vshrl.u32 %v1112, 7
        %v1114 = vsub.s32 0, %v1113
        %v1115 = vrot.slane %v1105, %v1114
        %vm1117 = vcmask 261120
        %v1119 = vsel %vm1117, %v1100, 0
        %1121 = vmatprep.subr.mxu0 0.0
        %1122 = vmatpush1.msra.mxu0 0.0
        %1123 = vmatprep.subr.mxu0 0.0
        %1124 = vmatpush1.msra.mxu0 0.0
        %1125 = vmatprep.subr.mxu0 0.0
        %1126 = vmatpush1.msra.mxu0 0.0
        %1127 = vmatprep.subr.mxu0 0.0
        %1128 = vmatpush1.msra.mxu0 0.0
        %1129 = vmatprep.subr.mxu0 0.0
        %1130 = vmatpush1.msra.mxu0 0.0
        %1131 = vmatprep.subr.mxu0 0.0
        %1132 = vmatpush1.msra.mxu0 0.0
        %1133 = vmatprep.subr.mxu0 0.0
        %1134 = vmatpush1.msra.mxu0 0.0
        %1135 = vmatprep.subr.mxu0 0.0
        %1136 = vmatpush1.msra.mxu0 0.0
        %1137 = vmatprep.subr.mxu0 0.0
        %1138 = vmatpush1.msra.mxu0 0.0
        %1139 = vmatprep.subr.mxu0 0.0
        %1140 = vmatpush1.msra.mxu0 0.0
        %1141 = vmatprep.subr.mxu0 0.0
        %1142 = vmatpush1.msra.mxu0 0.0
        %1143 = vmatprep.subr.mxu0 0.0
        %1144 = vmatpush1.msra.mxu0 0.0
        %1145 = vmatprep.subr.mxu0 0.0
        %1146 = vmatpush1.msra.mxu0 %v1104
        %1147 = vmatprep.subr.mxu0 0.0
        %1148 = vmatpush1.msra.mxu0 %v1103
        %1149 = vmatprep.subr.mxu0 0.0
        %1150 = vmatpush1.msra.mxu0 %v1102
        %1151 = vmatprep.subr.mxu0 0.0
        %1152 = vmatpush1.msra.mxu0 %v1101
        %1153 = vmatprep.subr.mxu0 0.0
        %1154 = vmatpush2.msra.mxu0 0.0
        %1155 = vmatprep.subr.mxu0 0.0
        %1156 = vmatpush2.msra.mxu0 0.0
        %1157 = vmatprep.subr.mxu0 0.0
        %1158 = vmatpush2.msra.mxu0 0.0
        %1159 = vmatprep.subr.mxu0 0.0
        %1160 = vmatpush2.msra.mxu0 0.0
        %1161 = vmatprep.subr.mxu0 0.0
        %1162 = vmatpush2.msra.mxu0 0.0
        %1163 = vmatprep.subr.mxu0 0.0
        %1164 = vmatpush2.msra.mxu0 0.0
        %1165 = vmatprep.subr.mxu0 0.0
        %1166 = vmatpush2.msra.mxu0 0.0
        %1167 = vmatprep.subr.mxu0 0.0
        %1168 = vmatpush2.msra.mxu0 0.0
        %1169 = vmatprep.subr.mxu0 0.0
        %1170 = vmatpush2.msra.mxu0 0.0
        %1171 = vmatprep.subr.mxu0 0.0
        %1172 = vmatpush2.msra.mxu0 0.0
        %1173 = vmatprep.subr.mxu0 0.0
        %1174 = vmatpush2.msra.mxu0 0.0
        %1175 = vmatprep.subr.mxu0 0.0
        %1176 = vmatpush2.msra.mxu0 0.0
        %1177 = vmatprep.subr.mxu0 0.0
        %1178 = vmatpush2.msra.mxu0 0.0
        %1179 = vmatprep.subr.mxu0 0.0
        %1180 = vmatpush2.msra.mxu0 0.0
        %1181 = vmatprep.subr.mxu0 0.0
        %1182 = vmatpush2.msra.mxu0 0.0
        %1183 = vmatprep.subr.mxu0 0.0
        %1184 = vmatpush2.msra.mxu0 0.0
        %1185 = vmatprep.mubr.f32.mxu0 0.0
        %1186 = vmatmul.mubr.f32.gmra.mxu0 %v1119
        %v1187 = vpop.f32.mrf.mxu0
        %v1188 = vadd.f32 %v1115, %v1187
        %v1189 = vpop.f32.mrf.mxu0
        %1190 = vdwg.mxu0
        %v1191 = vmul.f32 %v1188, 0.35355338
        %1193 = vrot.lane.b32.xlu0 %v1188, 96
        %v1194 = vpop.permute.xlu0 %1193
        %vm1195 = vcmask 64512
        %v1197 = vsel %vm1195, %v1191, 0
        %v1199 = vsel %vm1195, %v1194, 0
        %1201 = vmatprep.subr.mxu0 0.0
        %1202 = vmatpush1.xpose.msra.mxu0 0.0
        %1203 = vmatprep.subr.mxu0 0.0
        %1204 = vmatpush1.xpose.msra.mxu0 0.0
        %1205 = vmatprep.subr.mxu0 0.0
        %1206 = vmatpush1.xpose.msra.mxu0 0.0
        %1207 = vmatprep.subr.mxu0 0.0
        %1208 = vmatpush1.xpose.msra.mxu0 0.0
        %1209 = vmatprep.subr.mxu0 0.0
        %1210 = vmatpush1.xpose.msra.mxu0 0.0
        %1211 = vmatprep.subr.mxu0 0.0
        %1212 = vmatpush1.xpose.msra.mxu0 0.0
        %1213 = vmatprep.subr.mxu0 0.0
        %1214 = vmatpush1.xpose.msra.mxu0 0.0
        %1215 = vmatprep.subr.mxu0 0.0
        %1216 = vmatpush1.xpose.msra.mxu0 0.0
        %1217 = vmatprep.subr.mxu0 0.0
        %1218 = vmatpush1.xpose.msra.mxu0 0.0
        %1219 = vmatprep.subr.mxu0 0.0
        %1220 = vmatpush1.xpose.msra.mxu0 0.0
        %1221 = vmatprep.subr.mxu0 0.0
        %1222 = vmatpush1.xpose.msra.mxu0 0.0
        %1223 = vmatprep.subr.mxu0 0.0
        %1224 = vmatpush1.xpose.msra.mxu0 0.0
        %1225 = vmatprep.subr.mxu0 0.0
        %1226 = vmatpush1.xpose.msra.mxu0 0.0
        %1227 = vmatprep.subr.mxu0 0.0
        %1228 = vmatpush1.xpose.msra.mxu0 0.0
        %1229 = vmatprep.subr.mxu0 0.0
        %1230 = vmatpush1.xpose.msra.mxu0 0.0
        %1231 = vmatprep.subr.mxu0 0.0
        %1232 = vmatpush1.xpose.msra.mxu0 %v1199
        %1233 = vmatprep.subr.mxu0 0.0
        %1234 = vmatpush2.xpose.msra.mxu0 0.0
        %1235 = vmatprep.subr.mxu0 0.0
        %1236 = vmatpush2.xpose.msra.mxu0 0.0
        %1237 = vmatprep.subr.mxu0 0.0
        %1238 = vmatpush2.xpose.msra.mxu0 0.0
        %1239 = vmatprep.subr.mxu0 0.0
        %1240 = vmatpush2.xpose.msra.mxu0 0.0
        %1241 = vmatprep.subr.mxu0 0.0
        %1242 = vmatpush2.xpose.msra.mxu0 0.0
        %1243 = vmatprep.subr.mxu0 0.0
        %1244 = vmatpush2.xpose.msra.mxu0 0.0
        %1245 = vmatprep.subr.mxu0 0.0
        %1246 = vmatpush2.xpose.msra.mxu0 0.0
        %1247 = vmatprep.subr.mxu0 0.0
        %1248 = vmatpush2.xpose.msra.mxu0 0.0
        %1249 = vmatprep.subr.mxu0 0.0
        %1250 = vmatpush2.xpose.msra.mxu0 0.0
        %1251 = vmatprep.subr.mxu0 0.0
        %1252 = vmatpush2.xpose.msra.mxu0 0.0
        %1253 = vmatprep.subr.mxu0 0.0
        %1254 = vmatpush2.xpose.msra.mxu0 0.0
        %1255 = vmatprep.subr.mxu0 0.0
        %1256 = vmatpush2.xpose.msra.mxu0 0.0
        %1257 = vmatprep.subr.mxu0 0.0
        %1258 = vmatpush2.xpose.msra.mxu0 0.0
        %1259 = vmatprep.subr.mxu0 0.0
        %1260 = vmatpush2.xpose.msra.mxu0 0.0
        %1261 = vmatprep.subr.mxu0 0.0
        %1262 = vmatpush2.xpose.msra.mxu0 0.0
        %1263 = vmatprep.subr.mxu0 0.0
        %1264 = vmatpush2.xpose.msra.mxu0 0.0
        %1265 = vmatprep.mubr.f32.mxu0 0.0
        %1266 = vmatmul.mubr.f32.gmra.mxu0 %v1197
        %v1267 = vpop.f32.mrf.mxu0
        %v1268 = vadd.f32 0.0, %v1267
        %v1269 = vpop.f32.mrf.mxu0
        %1270 = vdwg.mxu0
        %v1271 = vsel %vm1195, %v1268, -inf
        %1272 = vmax.xlane.f32.xlu0 %v1271
        %v1273 = vpop.xlane.xlu0 %1272
        %v1274 = vsub.f32 %v1268, %v1273
        %v1275 = vmul.f32 %v1274, 1.442695
        %v1276 = vpow.pop %v1275
        %v1277 = vsel %vm1195, %v1276, 0.0
        %1278 = vadd.xlane.f32.xlu0 %v1277
        %v1279 = vpop.xlane.xlu0 %1278
        %v1280 = vrcp.pop %v1279
        %1281 = vrot.lane.b32.xlu0 %v1188, 64
        %v1282 = vpop.permute.xlu0 %1281
        %v1285 = vsel %vm1195, %v1276, 0
        %1287 = vmatprep.subr.mxu0 0.0
        %1288 = vmatpush1.msra.mxu0 0.0
        %1289 = vmatprep.subr.mxu0 0.0
        %1290 = vmatpush1.msra.mxu0 0.0
        %1291 = vmatprep.subr.mxu0 0.0
        %1292 = vmatpush1.msra.mxu0 0.0
        %1293 = vmatprep.subr.mxu0 0.0
        %1294 = vmatpush1.msra.mxu0 0.0
        %1295 = vmatprep.subr.mxu0 0.0
        %1296 = vmatpush1.msra.mxu0 0.0
        %1297 = vmatprep.subr.mxu0 0.0
        %1298 = vmatpush1.msra.mxu0 0.0
        %1299 = vmatprep.subr.mxu0 0.0
        %1300 = vmatpush1.msra.mxu0 0.0
        %1301 = vmatprep.subr.mxu0 0.0
        %1302 = vmatpush1.msra.mxu0 0.0
        %1303 = vmatprep.subr.mxu0 0.0
        %1304 = vmatpush1.msra.mxu0 0.0
        %1305 = vmatprep.subr.mxu0 0.0
        %1306 = vmatpush1.msra.mxu0 0.0
        %1307 = vmatprep.subr.mxu0 0.0
        %1308 = vmatpush1.msra.mxu0 0.0
        %1309 = vmatprep.subr.mxu0 0.0
        %1310 = vmatpush1.msra.mxu0 0.0
        %1311 = vmatprep.subr.mxu0 0.0
        %1312 = vmatpush1.msra.mxu0 0.0
        %1313 = vmatprep.subr.mxu0 0.0
        %1314 = vmatpush1.msra.mxu0 0.0
        %1315 = vmatprep.subr.mxu0 0.0
        %1316 = vmatpush1.msra.mxu0 0.0
        %1317 = vmatprep.subr.mxu0 0.0
        %1318 = vmatpush1.msra.mxu0 %v1282
        %1319 = vmatprep.subr.mxu0 0.0
        %1320 = vmatpush2.msra.mxu0 0.0
        %1321 = vmatprep.subr.mxu0 0.0
        %1322 = vmatpush2.msra.mxu0 0.0
        %1323 = vmatprep.subr.mxu0 0.0
        %1324 = vmatpush2.msra.mxu0 0.0
        %1325 = vmatprep.subr.mxu0 0.0
        %1326 = vmatpush2.msra.mxu0 0.0
        %1327 = vmatprep.subr.mxu0 0.0
        %1328 = vmatpush2.msra.mxu0 0.0
        %1329 = vmatprep.subr.mxu0 0.0
        %1330 = vmatpush2.msra.mxu0 0.0
        %1331 = vmatprep.subr.mxu0 0.0
        %1332 = vmatpush2.msra.mxu0 0.0
        %1333 = vmatprep.subr.mxu0 0.0
        %1334 = vmatpush2.msra.mxu0 0.0
        %1335 = vmatprep.subr.mxu0 0.0
        %1336 = vmatpush2.msra.mxu0 0.0
        %1337 = vmatprep.subr.mxu0 0.0
        %1338 = vmatpush2.msra.mxu0 0.0
        %1339 = vmatprep.subr.mxu0 0.0
        %1340 = vmatpush2.msra.mxu0 0.0
        %1341 = vmatprep.subr.mxu0 0.0
        %1342 = vmatpush2.msra.mxu0 0.0
        %1343 = vmatprep.subr.mxu0 0.0
        %1344 = vmatpush2.msra.mxu0 0.0
        %1345 = vmatprep.subr.mxu0 0.0
        %1346 = vmatpush2.msra.mxu0 0.0
        %1347 = vmatprep.subr.mxu0 0.0
        %1348 = vmatpush2.msra.mxu0 0.0
        %1349 = vmatprep.subr.mxu0 0.0
        %1350 = vmatpush2.msra.mxu0 0.0
        %1351 = vmatprep.mubr.f32.mxu0 0.0
        %1352 = vmatmul.mubr.f32.gmra.mxu0 %v1285
        %v1353 = vpop.f32.mrf.mxu0
        %v1354 = vadd.f32 0.0, %v1353
        %v1355 = vpop.f32.mrf.mxu0
        %1356 = vdwg.mxu0
        %v1357 = vmul.f32 %v1354, %v1280
        %1358 = vrot.lane.b32.xlu0 %v1191, 120
        %v1359 = vpop.permute.xlu0 %1358
        %1360 = vrot.lane.b32.xlu0 %v1188, 88
        %v1361 = vpop.permute.xlu0 %1360
        %v1362 = vsel %vm1195, %v1359, 0
        %v1364 = vsel %vm1195, %v1361, 0
        %1366 = vmatprep.subr.mxu0 0.0
        %1367 = vmatpush1.xpose.msra.mxu0 0.0
        %1368 = vmatprep.subr.mxu0 0.0
        %1369 = vmatpush1.xpose.msra.mxu0 0.0
        %1370 = vmatprep.subr.mxu0 0.0
        %1371 = vmatpush1.xpose.msra.mxu0 0.0
        %1372 = vmatprep.subr.mxu0 0.0
        %1373 = vmatpush1.xpose.msra.mxu0 0.0
        %1374 = vmatprep.subr.mxu0 0.0
        %1375 = vmatpush1.xpose.msra.mxu0 0.0
        %1376 = vmatprep.subr.mxu0 0.0
        %1377 = vmatpush1.xpose.msra.mxu0 0.0
        %1378 = vmatprep.subr.mxu0 0.0
        %1379 = vmatpush1.xpose.msra.mxu0 0.0
        %1380 = vmatprep.subr.mxu0 0.0
        %1381 = vmatpush1.xpose.msra.mxu0 0.0
        %1382 = vmatprep.subr.mxu0 0.0
        %1383 = vmatpush1.xpose.msra.mxu0 0.0
        %1384 = vmatprep.subr.mxu0 0.0
        %1385 = vmatpush1.xpose.msra.mxu0 0.0
        %1386 = vmatprep.subr.mxu0 0.0
        %1387 = vmatpush1.xpose.msra.mxu0 0.0
        %1388 = vmatprep.subr.mxu0 0.0
        %1389 = vmatpush1.xpose.msra.mxu0 0.0
        %1390 = vmatprep.subr.mxu0 0.0
        %1391 = vmatpush1.xpose.msra.mxu0 0.0
        %1392 = vmatprep.subr.mxu0 0.0
        %1393 = vmatpush1.xpose.msra.mxu0 0.0
        %1394 = vmatprep.subr.mxu0 0.0
        %1395 = vmatpush1.xpose.msra.mxu0 0.0
        %1396 = vmatprep.subr.mxu0 0.0
        %1397 = vmatpush1.xpose.msra.mxu0 %v1364
        %1398 = vmatprep.subr.mxu0 0.0
        %1399 = vmatpush2.xpose.msra.mxu0 0.0
        %1400 = vmatprep.subr.mxu0 0.0
        %1401 = vmatpush2.xpose.msra.mxu0 0.0
        %1402 = vmatprep.subr.mxu0 0.0
        %1403 = vmatpush2.xpose.msra.mxu0 0.0
        %1404 = vmatprep.subr.mxu0 0.0
        %1405 = vmatpush2.xpose.msra.mxu0 0.0
        %1406 = vmatprep.subr.mxu0 0.0
        %1407 = vmatpush2.xpose.msra.mxu0 0.0
        %1408 = vmatprep.subr.mxu0 0.0
        %1409 = vmatpush2.xpose.msra.mxu0 0.0
        %1410 = vmatprep.subr.mxu0 0.0
        %1411 = vmatpush2.xpose.msra.mxu0 0.0
        %1412 = vmatprep.subr.mxu0 0.0
        %1413 = vmatpush2.xpose.msra.mxu0 0.0
        %1414 = vmatprep.subr.mxu0 0.0
        %1415 = vmatpush2.xpose.msra.mxu0 0.0
        %1416 = vmatprep.subr.mxu0 0.0
        %1417 = vmatpush2.xpose.msra.mxu0 0.0
        %1418 = vmatprep.subr.mxu0 0.0
        %1419 = vmatpush2.xpose.msra.mxu0 0.0
        %1420 = vmatprep.subr.mxu0 0.0
        %1421 = vmatpush2.xpose.msra.mxu0 0.0
        %1422 = vmatprep.subr.mxu0 0.0
        %1423 = vmatpush2.xpose.msra.mxu0 0.0
        %1424 = vmatprep.subr.mxu0 0.0
        %1425 = vmatpush2.xpose.msra.mxu0 0.0
        %1426 = vmatprep.subr.mxu0 0.0
        %1427 = vmatpush2.xpose.msra.mxu0 0.0
        %1428 = vmatprep.subr.mxu0 0.0
        %1429 = vmatpush2.xpose.msra.mxu0 0.0
        %1430 = vmatprep.mubr.f32.mxu0 0.0
        %1431 = vmatmul.mubr.f32.gmra.mxu0 %v1362
        %v1432 = vpop.f32.mrf.mxu0
        %v1433 = vadd.f32 0.0, %v1432
        %v1434 = vpop.f32.mrf.mxu0
        %1435 = vdwg.mxu0
        %v1436 = vsel %vm1195, %v1433, -inf
        %1437 = vmax.xlane.f32.xlu0 %v1436
        %v1438 = vpop.xlane.xlu0 %1437
        %v1439 = vsub.f32 %v1433, %v1438
        %v1440 = vmul.f32 %v1439, 1.442695
        %v1441 = vpow.pop %v1440
        %v1442 = vsel %vm1195, %v1441, 0.0
        %1443 = vadd.xlane.f32.xlu0 %v1442
        %v1444 = vpop.xlane.xlu0 %1443
        %v1445 = vrcp.pop %v1444
        %1446 = vrot.lane.b32.xlu0 %v1188, 56
        %v1447 = vpop.permute.xlu0 %1446
        %v1450 = vsel %vm1195, %v1441, 0
        %1452 = vmatprep.subr.mxu0 0.0
        %1453 = vmatpush1.msra.mxu0 0.0
        %1454 = vmatprep.subr.mxu0 0.0
        %1455 = vmatpush1.msra.mxu0 0.0
        %1456 = vmatprep.subr.mxu0 0.0
        %1457 = vmatpush1.msra.mxu0 0.0
        %1458 = vmatprep.subr.mxu0 0.0
        %1459 = vmatpush1.msra.mxu0 0.0
        %1460 = vmatprep.subr.mxu0 0.0
        %1461 = vmatpush1.msra.mxu0 0.0
        %1462 = vmatprep.subr.mxu0 0.0
        %1463 = vmatpush1.msra.mxu0 0.0
        %1464 = vmatprep.subr.mxu0 0.0
        %1465 = vmatpush1.msra.mxu0 0.0
        %1466 = vmatprep.subr.mxu0 0.0
        %1467 = vmatpush1.msra.mxu0 0.0
        %1468 = vmatprep.subr.mxu0 0.0
        %1469 = vmatpush1.msra.mxu0 0.0
        %1470 = vmatprep.subr.mxu0 0.0
        %1471 = vmatpush1.msra.mxu0 0.0
        %1472 = vmatprep.subr.mxu0 0.0
        %1473 = vmatpush1.msra.mxu0 0.0
        %1474 = vmatprep.subr.mxu0 0.0
        %1475 = vmatpush1.msra.mxu0 0.0
        %1476 = vmatprep.subr.mxu0 0.0
        %1477 = vmatpush1.msra.mxu0 0.0
        %1478 = vmatprep.subr.mxu0 0.0
        %1479 = vmatpush1.msra.mxu0 0.0
        %1480 = vmatprep.subr.mxu0 0.0
        %1481 = vmatpush1.msra.mxu0 0.0
        %1482 = vmatprep.subr.mxu0 0.0
        %1483 = vmatpush1.msra.mxu0 %v1447
        %1484 = vmatprep.subr.mxu0 0.0
        %1485 = vmatpush2.msra.mxu0 0.0
        %1486 = vmatprep.subr.mxu0 0.0
        %1487 = vmatpush2.msra.mxu0 0.0
        %1488 = vmatprep.subr.mxu0 0.0
        %1489 = vmatpush2.msra.mxu0 0.0
        %1490 = vmatprep.subr.mxu0 0.0
        %1491 = vmatpush2.msra.mxu0 0.0
        %1492 = vmatprep.subr.mxu0 0.0
        %1493 = vmatpush2.msra.mxu0 0.0
        %1494 = vmatprep.subr.mxu0 0.0
        %1495 = vmatpush2.msra.mxu0 0.0
        %1496 = vmatprep.subr.mxu0 0.0
        %1497 = vmatpush2.msra.mxu0 0.0
        %1498 = vmatprep.subr.mxu0 0.0
        %1499 = vmatpush2.msra.mxu0 0.0
        %1500 = vmatprep.subr.mxu0 0.0
        %1501 = vmatpush2.msra.mxu0 0.0
        %1502 = vmatprep.subr.mxu0 0.0
        %1503 = vmatpush2.msra.mxu0 0.0
        %1504 = vmatprep.subr.mxu0 0.0
        %1505 = vmatpush2.msra.mxu0 0.0
        %1506 = vmatprep.subr.mxu0 0.0
        %1507 = vmatpush2.msra.mxu0 0.0
        %1508 = vmatprep.subr.mxu0 0.0
        %1509 = vmatpush2.msra.mxu0 0.0
        %1510 = vmatprep.subr.mxu0 0.0
        %1511 = vmatpush2.msra.mxu0 0.0
        %1512 = vmatprep.subr.mxu0 0.0
        %1513 = vmatpush2.msra.mxu0 0.0
        %1514 = vmatprep.subr.mxu0 0.0
        %1515 = vmatpush2.msra.mxu0 0.0
        %1516 = vmatprep.mubr.f32.mxu0 0.0
        %1517 = vmatmul.mubr.f32.gmra.mxu0 %v1450
        %v1518 = vpop.f32.mrf.mxu0
        %v1519 = vadd.f32 0.0, %v1518
        %v1520 = vpop.f32.mrf.mxu0
        %1521 = vdwg.mxu0
        %v1522 = vmul.f32 %v1519, %v1445
        %v1524 = vsel %vm1195, %v1522, 0
        %1526 = vmatprep.subr.mxu0 0.0
        %1527 = vmatpush1.msra.mxu0 0.0
        %1528 = vmatprep.subr.mxu0 0.0
        %1529 = vmatpush1.msra.mxu0 0.0
        %1530 = vmatprep.subr.mxu0 0.0
        %1531 = vmatpush1.msra.mxu0 0.0
        %1532 = vmatprep.subr.mxu0 0.0
        %1533 = vmatpush1.msra.mxu0 0.0
        %1534 = vmatprep.subr.mxu0 0.0
        %1535 = vmatpush1.msra.mxu0 0.0
        %1536 = vmatprep.subr.mxu0 0.0
        %1537 = vmatpush1.msra.mxu0 0.0
        %1538 = vmatprep.subr.mxu0 0.0
        %1539 = vmatpush1.msra.mxu0 0.0
        %1540 = vmatprep.subr.mxu0 0.0
        %1541 = vmatpush1.msra.mxu0 0.0
        %1542 = vmatprep.subr.mxu0 0.0
        %1543 = vmatpush1.msra.mxu0 0.0
        %1544 = vmatprep.subr.mxu0 0.0
        %1545 = vmatpush1.msra.mxu0 0.0
        %1546 = vmatprep.subr.mxu0 0.0
        %1547 = vmatpush1.msra.mxu0 0.0
        %1548 = vmatprep.subr.mxu0 0.0
        %1549 = vmatpush1.msra.mxu0 0.0
        %1550 = vmatprep.subr.mxu0 0.0
        %1551 = vmatpush1.msra.mxu0 0.0
        %1552 = vmatprep.subr.mxu0 0.0
        %1553 = vmatpush1.msra.mxu0 0.0
        %1554 = vmatprep.subr.mxu0 0.0
        %1555 = vmatpush1.msra.mxu0 0.0
        %1556 = vmatprep.subr.mxu0 0.0
        %1557 = vmatpush1.msra.mxu0 %v1107
        %1558 = vmatprep.subr.mxu0 0.0
        %1559 = vmatpush2.msra.mxu0 0.0
        %1560 = vmatprep.subr.mxu0 0.0
        %1561 = vmatpush2.msra.mxu0 0.0
        %1562 = vmatprep.subr.mxu0 0.0
        %1563 = vmatpush2.msra.mxu0 0.0
        %1564 = vmatprep.subr.mxu0 0.0
        %1565 = vmatpush2.msra.mxu0 0.0
        %1566 = vmatprep.subr.mxu0 0.0
        %1567 = vmatpush2.msra.mxu0 0.0
        %1568 = vmatprep.subr.mxu0 0.0
        %1569 = vmatpush2.msra.mxu0 0.0
        %1570 = vmatprep.subr.mxu0 0.0
        %1571 = vmatpush2.msra.mxu0 0.0
        %1572 = vmatprep.subr.mxu0 0.0
        %1573 = vmatpush2.msra.mxu0 0.0
        %1574 = vmatprep.subr.mxu0 0.0
        %1575 = vmatpush2.msra.mxu0 0.0
        %1576 = vmatprep.subr.mxu0 0.0
        %1577 = vmatpush2.msra.mxu0 0.0
        %1578 = vmatprep.subr.mxu0 0.0
        %1579 = vmatpush2.msra.mxu0 0.0
        %1580 = vmatprep.subr.mxu0 0.0
        %1581 = vmatpush2.msra.mxu0 0.0
        %1582 = vmatprep.subr.mxu0 0.0
        %1583 = vmatpush2.msra.mxu0 0.0
        %1584 = vmatprep.subr.mxu0 0.0
        %1585 = vmatpush2.msra.mxu0 0.0
        %1586 = vmatprep.subr.mxu0 0.0
        %1587 = vmatpush2.msra.mxu0 0.0
        %1588 = vmatprep.subr.mxu0 0.0
        %1589 = vmatpush2.msra.mxu0 0.0
        %1590 = vmatprep.mubr.f32.mxu0 0.0
        %1591 = vmatmul.mubr.f32.gmra.mxu0 %v1524
        %v1592 = vpop.f32.mrf.mxu0
        %v1593 = vadd.f32 0.0, %v1592
        %v1594 = vpop.f32.mrf.mxu0
        %1595 = vdwg.mxu0
        %v1597 = vsel %vm1195, %v1357, 0
        %1599 = vmatprep.subr.mxu0 0.0
        %1600 = vmatpush1.msra.mxu0 0.0
        %1601 = vmatprep.subr.mxu0 0.0
        %1602 = vmatpush1.msra.mxu0 0.0
        %1603 = vmatprep.subr.mxu0 0.0
        %1604 = vmatpush1.msra.mxu0 0.0
        %1605 = vmatprep.subr.mxu0 0.0
        %1606 = vmatpush1.msra.mxu0 0.0
        %1607 = vmatprep.subr.mxu0 0.0
        %1608 = vmatpush1.msra.mxu0 0.0
        %1609 = vmatprep.subr.mxu0 0.0
        %1610 = vmatpush1.msra.mxu0 0.0
        %1611 = vmatprep.subr.mxu0 0.0
        %1612 = vmatpush1.msra.mxu0 0.0
        %1613 = vmatprep.subr.mxu0 0.0
        %1614 = vmatpush1.msra.mxu0 0.0
        %1615 = vmatprep.subr.mxu0 0.0
        %1616 = vmatpush1.msra.mxu0 0.0
        %1617 = vmatprep.subr.mxu0 0.0
        %1618 = vmatpush1.msra.mxu0 0.0
        %1619 = vmatprep.subr.mxu0 0.0
        %1620 = vmatpush1.msra.mxu0 0.0
        %1621 = vmatprep.subr.mxu0 0.0
        %1622 = vmatpush1.msra.mxu0 0.0
        %1623 = vmatprep.subr.mxu0 0.0
        %1624 = vmatpush1.msra.mxu0 0.0
        %1625 = vmatprep.subr.mxu0 0.0
        %1626 = vmatpush1.msra.mxu0 0.0
        %1627 = vmatprep.subr.mxu0 0.0
        %1628 = vmatpush1.msra.mxu0 0.0
        %1629 = vmatprep.subr.mxu0 0.0
        %1630 = vmatpush1.msra.mxu0 %v1106
        %1631 = vmatprep.subr.mxu0 0.0
        %1632 = vmatpush2.msra.mxu0 0.0
        %1633 = vmatprep.subr.mxu0 0.0
        %1634 = vmatpush2.msra.mxu0 0.0
        %1635 = vmatprep.subr.mxu0 0.0
        %1636 = vmatpush2.msra.mxu0 0.0
        %1637 = vmatprep.subr.mxu0 0.0
        %1638 = vmatpush2.msra.mxu0 0.0
        %1639 = vmatprep.subr.mxu0 0.0
        %1640 = vmatpush2.msra.mxu0 0.0
        %1641 = vmatprep.subr.mxu0 0.0
        %1642 = vmatpush2.msra.mxu0 0.0
        %1643 = vmatprep.subr.mxu0 0.0
        %1644 = vmatpush2.msra.mxu0 0.0
        %1645 = vmatprep.subr.mxu0 0.0
        %1646 = vmatpush2.msra.mxu0 0.0
        %1647 = vmatprep.subr.mxu0 0.0
        %1648 = vmatpush2.msra.mxu0 0.0
        %1649 = vmatprep.subr.mxu0 0.0
        %1650 = vmatpush2.msra.mxu0 0.0
        %1651 = vmatprep.subr.mxu0 0.0
        %1652 = vmatpush2.msra.mxu0 0.0
        %1653 = vmatprep.subr.mxu0 0.0
        %1654 = vmatpush2.msra.mxu0 0.0
        %1655 = vmatprep.subr.mxu0 0.0
        %1656 = vmatpush2.msra.mxu0 0.0
        %1657 = vmatprep.subr.mxu0 0.0
        %1658 = vmatpush2.msra.mxu0 0.0
        %1659 = vmatprep.subr.mxu0 0.0
        %1660 = vmatpush2.msra.mxu0 0.0
        %1661 = vmatprep.subr.mxu0 0.0
        %1662 = vmatpush2.msra.mxu0 0.0
        %1663 = vmatprep.mubr.f32.mxu0 0.0
        %1664 = vmatmul.mubr.f32.gmra.mxu0 %v1597
        %v1665 = vpop.f32.mrf.mxu0
        %v1666 = vadd.f32 %v1593, %v1665
        %v1667 = vpop.f32.mrf.mxu0
        %1668 = vdwg.mxu0
        %1669 = vrot.lane.b32.xlu0 %v1191, 112
        %v1670 = vpop.permute.xlu0 %1669
        %1671 = vrot.lane.b32.xlu0 %v1188, 80
        %v1672 = vpop.permute.xlu0 %1671
        %v1673 = vsel %vm1195, %v1670, 0
        %v1675 = vsel %vm1195, %v1672, 0
        %1677 = vmatprep.subr.mxu0 0.0
        %1678 = vmatpush1.xpose.msra.mxu0 0.0
        %1679 = vmatprep.subr.mxu0 0.0
        %1680 = vmatpush1.xpose.msra.mxu0 0.0
        %1681 = vmatprep.subr.mxu0 0.0
        %1682 = vmatpush1.xpose.msra.mxu0 0.0
        %1683 = vmatprep.subr.mxu0 0.0
        %1684 = vmatpush1.xpose.msra.mxu0 0.0
        %1685 = vmatprep.subr.mxu0 0.0
        %1686 = vmatpush1.xpose.msra.mxu0 0.0
        %1687 = vmatprep.subr.mxu0 0.0
        %1688 = vmatpush1.xpose.msra.mxu0 0.0
        %1689 = vmatprep.subr.mxu0 0.0
        %1690 = vmatpush1.xpose.msra.mxu0 0.0
        %1691 = vmatprep.subr.mxu0 0.0
        %1692 = vmatpush1.xpose.msra.mxu0 0.0
        %1693 = vmatprep.subr.mxu0 0.0
        %1694 = vmatpush1.xpose.msra.mxu0 0.0
        %1695 = vmatprep.subr.mxu0 0.0
        %1696 = vmatpush1.xpose.msra.mxu0 0.0
        %1697 = vmatprep.subr.mxu0 0.0
        %1698 = vmatpush1.xpose.msra.mxu0 0.0
        %1699 = vmatprep.subr.mxu0 0.0
        %1700 = vmatpush1.xpose.msra.mxu0 0.0
        %1701 = vmatprep.subr.mxu0 0.0
        %1702 = vmatpush1.xpose.msra.mxu0 0.0
        %1703 = vmatprep.subr.mxu0 0.0
        %1704 = vmatpush1.xpose.msra.mxu0 0.0
        %1705 = vmatprep.subr.mxu0 0.0
        %1706 = vmatpush1.xpose.msra.mxu0 0.0
        %1707 = vmatprep.subr.mxu0 0.0
        %1708 = vmatpush1.xpose.msra.mxu0 %v1675
        %1709 = vmatprep.subr.mxu0 0.0
        %1710 = vmatpush2.xpose.msra.mxu0 0.0
        %1711 = vmatprep.subr.mxu0 0.0
        %1712 = vmatpush2.xpose.msra.mxu0 0.0
        %1713 = vmatprep.subr.mxu0 0.0
        %1714 = vmatpush2.xpose.msra.mxu0 0.0
        %1715 = vmatprep.subr.mxu0 0.0
        %1716 = vmatpush2.xpose.msra.mxu0 0.0
        %1717 = vmatprep.subr.mxu0 0.0
        %1718 = vmatpush2.xpose.msra.mxu0 0.0
        %1719 = vmatprep.subr.mxu0 0.0
        %1720 = vmatpush2.xpose.msra.mxu0 0.0
        %1721 = vmatprep.subr.mxu0 0.0
        %1722 = vmatpush2.xpose.msra.mxu0 0.0
        %1723 = vmatprep.subr.mxu0 0.0
        %1724 = vmatpush2.xpose.msra.mxu0 0.0
        %1725 = vmatprep.subr.mxu0 0.0
        %1726 = vmatpush2.xpose.msra.mxu0 0.0
        %1727 = vmatprep.subr.mxu0 0.0
        %1728 = vmatpush2.xpose.msra.mxu0 0.0
        %1729 = vmatprep.subr.mxu0 0.0
        %1730 = vmatpush2.xpose.msra.mxu0 0.0
        %1731 = vmatprep.subr.mxu0 0.0
        %1732 = vmatpush2.xpose.msra.mxu0 0.0
        %1733 = vmatprep.subr.mxu0 0.0
        %1734 = vmatpush2.xpose.msra.mxu0 0.0
        %1735 = vmatprep.subr.mxu0 0.0
        %1736 = vmatpush2.xpose.msra.mxu0 0.0
        %1737 = vmatprep.subr.mxu0 0.0
        %1738 = vmatpush2.xpose.msra.mxu0 0.0
        %1739 = vmatprep.subr.mxu0 0.0
        %1740 = vmatpush2.xpose.msra.mxu0 0.0
        %1741 = vmatprep.mubr.f32.mxu0 0.0
        %1742 = vmatmul.mubr.f32.gmra.mxu0 %v1673
        %v1743 = vpop.f32.mrf.mxu0
        %v1744 = vadd.f32 0.0, %v1743
        %v1745 = vpop.f32.mrf.mxu0
        %1746 = vdwg.mxu0
        %v1747 = vsel %vm1195, %v1744, -inf
        %1748 = vmax.xlane.f32.xlu0 %v1747
        %v1749 = vpop.xlane.xlu0 %1748
        %v1750 = vsub.f32 %v1744, %v1749
        %v1751 = vmul.f32 %v1750, 1.442695
        %v1752 = vpow.pop %v1751
        %v1753 = vsel %vm1195, %v1752, 0.0
        %1754 = vadd.xlane.f32.xlu0 %v1753
        %v1755 = vpop.xlane.xlu0 %1754
        %v1756 = vrcp.pop %v1755
        %1757 = vrot.lane.b32.xlu0 %v1188, 48
        %v1758 = vpop.permute.xlu0 %1757
        %v1761 = vsel %vm1195, %v1752, 0
        %1763 = vmatprep.subr.mxu0 0.0
        %1764 = vmatpush1.msra.mxu0 0.0
        %1765 = vmatprep.subr.mxu0 0.0
        %1766 = vmatpush1.msra.mxu0 0.0
        %1767 = vmatprep.subr.mxu0 0.0
        %1768 = vmatpush1.msra.mxu0 0.0
        %1769 = vmatprep.subr.mxu0 0.0
        %1770 = vmatpush1.msra.mxu0 0.0
        %1771 = vmatprep.subr.mxu0 0.0
        %1772 = vmatpush1.msra.mxu0 0.0
        %1773 = vmatprep.subr.mxu0 0.0
        %1774 = vmatpush1.msra.mxu0 0.0
        %1775 = vmatprep.subr.mxu0 0.0
        %1776 = vmatpush1.msra.mxu0 0.0
        %1777 = vmatprep.subr.mxu0 0.0
        %1778 = vmatpush1.msra.mxu0 0.0
        %1779 = vmatprep.subr.mxu0 0.0
        %1780 = vmatpush1.msra.mxu0 0.0
        %1781 = vmatprep.subr.mxu0 0.0
        %1782 = vmatpush1.msra.mxu0 0.0
        %1783 = vmatprep.subr.mxu0 0.0
        %1784 = vmatpush1.msra.mxu0 0.0
        %1785 = vmatprep.subr.mxu0 0.0
        %1786 = vmatpush1.msra.mxu0 0.0
        %1787 = vmatprep.subr.mxu0 0.0
        %1788 = vmatpush1.msra.mxu0 0.0
        %1789 = vmatprep.subr.mxu0 0.0
        %1790 = vmatpush1.msra.mxu0 0.0
        %1791 = vmatprep.subr.mxu0 0.0
        %1792 = vmatpush1.msra.mxu0 0.0
        %1793 = vmatprep.subr.mxu0 0.0
        %1794 = vmatpush1.msra.mxu0 %v1758
        %1795 = vmatprep.subr.mxu0 0.0
        %1796 = vmatpush2.msra.mxu0 0.0
        %1797 = vmatprep.subr.mxu0 0.0
        %1798 = vmatpush2.msra.mxu0 0.0
        %1799 = vmatprep.subr.mxu0 0.0
        %1800 = vmatpush2.msra.mxu0 0.0
        %1801 = vmatprep.subr.mxu0 0.0
        %1802 = vmatpush2.msra.mxu0 0.0
        %1803 = vmatprep.subr.mxu0 0.0
        %1804 = vmatpush2.msra.mxu0 0.0
        %1805 = vmatprep.subr.mxu0 0.0
        %1806 = vmatpush2.msra.mxu0 0.0
        %1807 = vmatprep.subr.mxu0 0.0
        %1808 = vmatpush2.msra.mxu0 0.0
        %1809 = vmatprep.subr.mxu0 0.0
        %1810 = vmatpush2.msra.mxu0 0.0
        %1811 = vmatprep.subr.mxu0 0.0
        %1812 = vmatpush2.msra.mxu0 0.0
        %1813 = vmatprep.subr.mxu0 0.0
        %1814 = vmatpush2.msra.mxu0 0.0
        %1815 = vmatprep.subr.mxu0 0.0
        %1816 = vmatpush2.msra.mxu0 0.0
        %1817 = vmatprep.subr.mxu0 0.0
        %1818 = vmatpush2.msra.mxu0 0.0
        %1819 = vmatprep.subr.mxu0 0.0
        %1820 = vmatpush2.msra.mxu0 0.0
        %1821 = vmatprep.subr.mxu0 0.0
        %1822 = vmatpush2.msra.mxu0 0.0
        %1823 = vmatprep.subr.mxu0 0.0
        %1824 = vmatpush2.msra.mxu0 0.0
        %1825 = vmatprep.subr.mxu0 0.0
        %1826 = vmatpush2.msra.mxu0 0.0
        %1827 = vmatprep.mubr.f32.mxu0 0.0
        %1828 = vmatmul.mubr.f32.gmra.mxu0 %v1761
        %v1829 = vpop.f32.mrf.mxu0
        %v1830 = vadd.f32 0.0, %v1829
        %v1831 = vpop.f32.mrf.mxu0
        %1832 = vdwg.mxu0
        %v1833 = vmul.f32 %v1830, %v1756
        %v1835 = vsel %vm1195, %v1833, 0
        %1837 = vmatprep.subr.mxu0 0.0
        %1838 = vmatpush1.msra.mxu0 0.0
        %1839 = vmatprep.subr.mxu0 0.0
        %1840 = vmatpush1.msra.mxu0 0.0
        %1841 = vmatprep.subr.mxu0 0.0
        %1842 = vmatpush1.msra.mxu0 0.0
        %1843 = vmatprep.subr.mxu0 0.0
        %1844 = vmatpush1.msra.mxu0 0.0
        %1845 = vmatprep.subr.mxu0 0.0
        %1846 = vmatpush1.msra.mxu0 0.0
        %1847 = vmatprep.subr.mxu0 0.0
        %1848 = vmatpush1.msra.mxu0 0.0
        %1849 = vmatprep.subr.mxu0 0.0
        %1850 = vmatpush1.msra.mxu0 0.0
        %1851 = vmatprep.subr.mxu0 0.0
        %1852 = vmatpush1.msra.mxu0 0.0
        %1853 = vmatprep.subr.mxu0 0.0
        %1854 = vmatpush1.msra.mxu0 0.0
        %1855 = vmatprep.subr.mxu0 0.0
        %1856 = vmatpush1.msra.mxu0 0.0
        %1857 = vmatprep.subr.mxu0 0.0
        %1858 = vmatpush1.msra.mxu0 0.0
        %1859 = vmatprep.subr.mxu0 0.0
        %1860 = vmatpush1.msra.mxu0 0.0
        %1861 = vmatprep.subr.mxu0 0.0
        %1862 = vmatpush1.msra.mxu0 0.0
        %1863 = vmatprep.subr.mxu0 0.0
        %1864 = vmatpush1.msra.mxu0 0.0
        %1865 = vmatprep.subr.mxu0 0.0
        %1866 = vmatpush1.msra.mxu0 0.0
        %1867 = vmatprep.subr.mxu0 0.0
        %1868 = vmatpush1.msra.mxu0 %v1108
        %1869 = vmatprep.subr.mxu0 0.0
        %1870 = vmatpush2.msra.mxu0 0.0
        %1871 = vmatprep.subr.mxu0 0.0
        %1872 = vmatpush2.msra.mxu0 0.0
        %1873 = vmatprep.subr.mxu0 0.0
        %1874 = vmatpush2.msra.mxu0 0.0
        %1875 = vmatprep.subr.mxu0 0.0
        %1876 = vmatpush2.msra.mxu0 0.0
        %1877 = vmatprep.subr.mxu0 0.0
        %1878 = vmatpush2.msra.mxu0 0.0
        %1879 = vmatprep.subr.mxu0 0.0
        %1880 = vmatpush2.msra.mxu0 0.0
        %1881 = vmatprep.subr.mxu0 0.0
        %1882 = vmatpush2.msra.mxu0 0.0
        %1883 = vmatprep.subr.mxu0 0.0
        %1884 = vmatpush2.msra.mxu0 0.0
        %1885 = vmatprep.subr.mxu0 0.0
        %1886 = vmatpush2.msra.mxu0 0.0
        %1887 = vmatprep.subr.mxu0 0.0
        %1888 = vmatpush2.msra.mxu0 0.0
        %1889 = vmatprep.subr.mxu0 0.0
        %1890 = vmatpush2.msra.mxu0 0.0
        %1891 = vmatprep.subr.mxu0 0.0
        %1892 = vmatpush2.msra.mxu0 0.0
        %1893 = vmatprep.subr.mxu0 0.0
        %1894 = vmatpush2.msra.mxu0 0.0
        %1895 = vmatprep.subr.mxu0 0.0
        %1896 = vmatpush2.msra.mxu0 0.0
        %1897 = vmatprep.subr.mxu0 0.0
        %1898 = vmatpush2.msra.mxu0 0.0
        %1899 = vmatprep.subr.mxu0 0.0
        %1900 = vmatpush2.msra.mxu0 0.0
        %1901 = vmatprep.mubr.f32.mxu0 0.0
        %1902 = vmatmul.mubr.f32.gmra.mxu0 %v1835
        %v1903 = vpop.f32.mrf.mxu0
        %v1904 = vadd.f32 0.0, %v1903
        %v1905 = vpop.f32.mrf.mxu0
        %1906 = vdwg.mxu0
        %v1907 = vadd.f32 %v1666, %v1904
        %1908 = vrot.lane.b32.xlu0 %v1191, 104
        %v1909 = vpop.permute.xlu0 %1908
        %1910 = vrot.lane.b32.xlu0 %v1188, 72
        %v1911 = vpop.permute.xlu0 %1910
        %v1912 = vsel %vm1195, %v1909, 0
        %v1914 = vsel %vm1195, %v1911, 0
        %1916 = vmatprep.subr.mxu0 0.0
        %1917 = vmatpush1.xpose.msra.mxu0 0.0
        %1918 = vmatprep.subr.mxu0 0.0
        %1919 = vmatpush1.xpose.msra.mxu0 0.0
        %1920 = vmatprep.subr.mxu0 0.0
        %1921 = vmatpush1.xpose.msra.mxu0 0.0
        %1922 = vmatprep.subr.mxu0 0.0
        %1923 = vmatpush1.xpose.msra.mxu0 0.0
        %1924 = vmatprep.subr.mxu0 0.0
        %1925 = vmatpush1.xpose.msra.mxu0 0.0
        %1926 = vmatprep.subr.mxu0 0.0
        %1927 = vmatpush1.xpose.msra.mxu0 0.0
        %1928 = vmatprep.subr.mxu0 0.0
        %1929 = vmatpush1.xpose.msra.mxu0 0.0
        %1930 = vmatprep.subr.mxu0 0.0
        %1931 = vmatpush1.xpose.msra.mxu0 0.0
        %1932 = vmatprep.subr.mxu0 0.0
        %1933 = vmatpush1.xpose.msra.mxu0 0.0
        %1934 = vmatprep.subr.mxu0 0.0
        %1935 = vmatpush1.xpose.msra.mxu0 0.0
        %1936 = vmatprep.subr.mxu0 0.0
        %1937 = vmatpush1.xpose.msra.mxu0 0.0
        %1938 = vmatprep.subr.mxu0 0.0
        %1939 = vmatpush1.xpose.msra.mxu0 0.0
        %1940 = vmatprep.subr.mxu0 0.0
        %1941 = vmatpush1.xpose.msra.mxu0 0.0
        %1942 = vmatprep.subr.mxu0 0.0
        %1943 = vmatpush1.xpose.msra.mxu0 0.0
        %1944 = vmatprep.subr.mxu0 0.0
        %1945 = vmatpush1.xpose.msra.mxu0 0.0
        %1946 = vmatprep.subr.mxu0 0.0
        %1947 = vmatpush1.xpose.msra.mxu0 %v1914
        %1948 = vmatprep.subr.mxu0 0.0
        %1949 = vmatpush2.xpose.msra.mxu0 0.0
        %1950 = vmatprep.subr.mxu0 0.0
        %1951 = vmatpush2.xpose.msra.mxu0 0.0
        %1952 = vmatprep.subr.mxu0 0.0
        %1953 = vmatpush2.xpose.msra.mxu0 0.0
        %1954 = vmatprep.subr.mxu0 0.0
        %1955 = vmatpush2.xpose.msra.mxu0 0.0
        %1956 = vmatprep.subr.mxu0 0.0
        %1957 = vmatpush2.xpose.msra.mxu0 0.0
        %1958 = vmatprep.subr.mxu0 0.0
        %1959 = vmatpush2.xpose.msra.mxu0 0.0
        %1960 = vmatprep.subr.mxu0 0.0
        %1961 = vmatpush2.xpose.msra.mxu0 0.0
        %1962 = vmatprep.subr.mxu0 0.0
        %1963 = vmatpush2.xpose.msra.mxu0 0.0
        %1964 = vmatprep.subr.mxu0 0.0
        %1965 = vmatpush2.xpose.msra.mxu0 0.0
        %1966 = vmatprep.subr.mxu0 0.0
        %1967 = vmatpush2.xpose.msra.mxu0 0.0
        %1968 = vmatprep.subr.mxu0 0.0
        %1969 = vmatpush2.xpose.msra.mxu0 0.0
        %1970 = vmatprep.subr.mxu0 0.0
        %1971 = vmatpush2.xpose.msra.mxu0 0.0
        %1972 = vmatprep.subr.mxu0 0.0
        %1973 = vmatpush2.xpose.msra.mxu0 0.0
        %1974 = vmatprep.subr.mxu0 0.0
        %1975 = vmatpush2.xpose.msra.mxu0 0.0
        %1976 = vmatprep.subr.mxu0 0.0
        %1977 = vmatpush2.xpose.msra.mxu0 0.0
        %1978 = vmatprep.subr.mxu0 0.0
        %1979 = vmatpush2.xpose.msra.mxu0 0.0
        %1980 = vmatprep.mubr.f32.mxu0 0.0
        %1981 = vmatmul.mubr.f32.gmra.mxu0 %v1912
        %v1982 = vpop.f32.mrf.mxu0
        %v1983 = vadd.f32 0.0, %v1982
        %v1984 = vpop.f32.mrf.mxu0
        %1985 = vdwg.mxu0
        %v1986 = vsel %vm1195, %v1983, -inf
        %1987 = vmax.xlane.f32.xlu0 %v1986
        %v1988 = vpop.xlane.xlu0 %1987
        %v1989 = vsub.f32 %v1983, %v1988
        %v1990 = vmul.f32 %v1989, 1.442695
        %v1991 = vpow.pop %v1990
        %v1992 = vsel %vm1195, %v1991, 0.0
        %1993 = vadd.xlane.f32.xlu0 %v1992
        %v1994 = vpop.xlane.xlu0 %1993
        %v1995 = vrcp.pop %v1994
        %1996 = vrot.lane.b32.xlu0 %v1188, 40
        %v1997 = vpop.permute.xlu0 %1996
        %v2000 = vsel %vm1195, %v1991, 0
        %2002 = vmatprep.subr.mxu0 0.0
        %2003 = vmatpush1.msra.mxu0 0.0
        %2004 = vmatprep.subr.mxu0 0.0
        %2005 = vmatpush1.msra.mxu0 0.0
        %2006 = vmatprep.subr.mxu0 0.0
        %2007 = vmatpush1.msra.mxu0 0.0
        %2008 = vmatprep.subr.mxu0 0.0
        %2009 = vmatpush1.msra.mxu0 0.0
        %2010 = vmatprep.subr.mxu0 0.0
        %2011 = vmatpush1.msra.mxu0 0.0
        %2012 = vmatprep.subr.mxu0 0.0
        %2013 = vmatpush1.msra.mxu0 0.0
        %2014 = vmatprep.subr.mxu0 0.0
        %2015 = vmatpush1.msra.mxu0 0.0
        %2016 = vmatprep.subr.mxu0 0.0
        %2017 = vmatpush1.msra.mxu0 0.0
        %2018 = vmatprep.subr.mxu0 0.0
        %2019 = vmatpush1.msra.mxu0 0.0
        %2020 = vmatprep.subr.mxu0 0.0
        %2021 = vmatpush1.msra.mxu0 0.0
        %2022 = vmatprep.subr.mxu0 0.0
        %2023 = vmatpush1.msra.mxu0 0.0
        %2024 = vmatprep.subr.mxu0 0.0
        %2025 = vmatpush1.msra.mxu0 0.0
        %2026 = vmatprep.subr.mxu0 0.0
        %2027 = vmatpush1.msra.mxu0 0.0
        %2028 = vmatprep.subr.mxu0 0.0
        %2029 = vmatpush1.msra.mxu0 0.0
        %2030 = vmatprep.subr.mxu0 0.0
        %2031 = vmatpush1.msra.mxu0 0.0
        %2032 = vmatprep.subr.mxu0 0.0
        %2033 = vmatpush1.msra.mxu0 %v1997
        %2034 = vmatprep.subr.mxu0 0.0
        %2035 = vmatpush2.msra.mxu0 0.0
        %2036 = vmatprep.subr.mxu0 0.0
        %2037 = vmatpush2.msra.mxu0 0.0
        %2038 = vmatprep.subr.mxu0 0.0
        %2039 = vmatpush2.msra.mxu0 0.0
        %2040 = vmatprep.subr.mxu0 0.0
        %2041 = vmatpush2.msra.mxu0 0.0
        %2042 = vmatprep.subr.mxu0 0.0
        %2043 = vmatpush2.msra.mxu0 0.0
        %2044 = vmatprep.subr.mxu0 0.0
        %2045 = vmatpush2.msra.mxu0 0.0
        %2046 = vmatprep.subr.mxu0 0.0
        %2047 = vmatpush2.msra.mxu0 0.0
        %2048 = vmatprep.subr.mxu0 0.0
        %2049 = vmatpush2.msra.mxu0 0.0
        %2050 = vmatprep.subr.mxu0 0.0
        %2051 = vmatpush2.msra.mxu0 0.0
        %2052 = vmatprep.subr.mxu0 0.0
        %2053 = vmatpush2.msra.mxu0 0.0
        %2054 = vmatprep.subr.mxu0 0.0
        %2055 = vmatpush2.msra.mxu0 0.0
        %2056 = vmatprep.subr.mxu0 0.0
        %2057 = vmatpush2.msra.mxu0 0.0
        %2058 = vmatprep.subr.mxu0 0.0
        %2059 = vmatpush2.msra.mxu0 0.0
        %2060 = vmatprep.subr.mxu0 0.0
        %2061 = vmatpush2.msra.mxu0 0.0
        %2062 = vmatprep.subr.mxu0 0.0
        %2063 = vmatpush2.msra.mxu0 0.0
        %2064 = vmatprep.subr.mxu0 0.0
        %2065 = vmatpush2.msra.mxu0 0.0
        %2066 = vmatprep.mubr.f32.mxu0 0.0
        %2067 = vmatmul.mubr.f32.gmra.mxu0 %v2000
        %v2068 = vpop.f32.mrf.mxu0
        %v2069 = vadd.f32 0.0, %v2068
        %v2070 = vpop.f32.mrf.mxu0
        %2071 = vdwg.mxu0
        %v2072 = vmul.f32 %v2069, %v1995
        %v2074 = vsel %vm1195, %v2072, 0
        %2076 = vmatprep.subr.mxu0 0.0
        %2077 = vmatpush1.msra.mxu0 0.0
        %2078 = vmatprep.subr.mxu0 0.0
        %2079 = vmatpush1.msra.mxu0 0.0
        %2080 = vmatprep.subr.mxu0 0.0
        %2081 = vmatpush1.msra.mxu0 0.0
        %2082 = vmatprep.subr.mxu0 0.0
        %2083 = vmatpush1.msra.mxu0 0.0
        %2084 = vmatprep.subr.mxu0 0.0
        %2085 = vmatpush1.msra.mxu0 0.0
        %2086 = vmatprep.subr.mxu0 0.0
        %2087 = vmatpush1.msra.mxu0 0.0
        %2088 = vmatprep.subr.mxu0 0.0
        %2089 = vmatpush1.msra.mxu0 0.0
        %2090 = vmatprep.subr.mxu0 0.0
        %2091 = vmatpush1.msra.mxu0 0.0
        %2092 = vmatprep.subr.mxu0 0.0
        %2093 = vmatpush1.msra.mxu0 0.0
        %2094 = vmatprep.subr.mxu0 0.0
        %2095 = vmatpush1.msra.mxu0 0.0
        %2096 = vmatprep.subr.mxu0 0.0
        %2097 = vmatpush1.msra.mxu0 0.0
        %2098 = vmatprep.subr.mxu0 0.0
        %2099 = vmatpush1.msra.mxu0 0.0
        %2100 = vmatprep.subr.mxu0 0.0
        %2101 = vmatpush1.msra.mxu0 0.0
        %2102 = vmatprep.subr.mxu0 0.0
        %2103 = vmatpush1.msra.mxu0 0.0
        %2104 = vmatprep.subr.mxu0 0.0
        %2105 = vmatpush1.msra.mxu0 0.0
        %2106 = vmatprep.subr.mxu0 0.0
        %2107 = vmatpush1.msra.mxu0 %v1109
        %2108 = vmatprep.subr.mxu0 0.0
        %2109 = vmatpush2.msra.mxu0 0.0
        %2110 = vmatprep.subr.mxu0 0.0
        %2111 = vmatpush2.msra.mxu0 0.0
        %2112 = vmatprep.subr.mxu0 0.0
        %2113 = vmatpush2.msra.mxu0 0.0
        %2114 = vmatprep.subr.mxu0 0.0
        %2115 = vmatpush2.msra.mxu0 0.0
        %2116 = vmatprep.subr.mxu0 0.0
        %2117 = vmatpush2.msra.mxu0 0.0
        %2118 = vmatprep.subr.mxu0 0.0
        %2119 = vmatpush2.msra.mxu0 0.0
        %2120 = vmatprep.subr.mxu0 0.0
        %2121 = vmatpush2.msra.mxu0 0.0
        %2122 = vmatprep.subr.mxu0 0.0
        %2123 = vmatpush2.msra.mxu0 0.0
        %2124 = vmatprep.subr.mxu0 0.0
        %2125 = vmatpush2.msra.mxu0 0.0
        %2126 = vmatprep.subr.mxu0 0.0
        %2127 = vmatpush2.msra.mxu0 0.0
        %2128 = vmatprep.subr.mxu0 0.0
        %2129 = vmatpush2.msra.mxu0 0.0
        %2130 = vmatprep.subr.mxu0 0.0
        %2131 = vmatpush2.msra.mxu0 0.0
        %2132 = vmatprep.subr.mxu0 0.0
        %2133 = vmatpush2.msra.mxu0 0.0
        %2134 = vmatprep.subr.mxu0 0.0
        %2135 = vmatpush2.msra.mxu0 0.0
        %2136 = vmatprep.subr.mxu0 0.0
        %2137 = vmatpush2.msra.mxu0 0.0
        %2138 = vmatprep.subr.mxu0 0.0
        %2139 = vmatpush2.msra.mxu0 0.0
        %2140 = vmatprep.mubr.f32.mxu0 0.0
        %2141 = vmatmul.mubr.f32.gmra.mxu0 %v2074
        %v2142 = vpop.f32.mrf.mxu0
        %v2143 = vadd.f32 0.0, %v2142
        %v2144 = vpop.f32.mrf.mxu0
        %2145 = vdwg.mxu0
        %v2146 = vadd.f32 %v1907, %v2143
        %v2148 = vlaneseq
        %v2149 = vshrl.u32 %v2148, 7
        %v2150 = vsub.s32 0, %v2149
        %v2151 = vrot.slane %v1110, %v2150
        %v2153 = vadd.f32 %v2146, %v2151
        %v2154 = vadd.f32 %v1100, %v2153
        %v2155 = vld [vmem:[#allocation9] sm:$0x1]
        %v2156 = vld [vmem:[#allocation11] sm:$0x1]
        %v2157 = vsel %vm1117, %v2154, 0.0
        %2158 = vadd.xlane.f32.xlu0 %v2157
        %v2159 = vpop.xlane.xlu0 %2158
        %v2160 = vrcp.pop 32.0
        %v2161 = vmul.f32 %v2159, %v2160
        %v2162 = vsub.f32 %v2154, %v2161
        %v2163 = vmul.f32 %v2162, %v2162
        %v2164 = vsel %vm1117, %v2163, 0.0
        %2165 = vadd.xlane.f32.xlu0 %v2164
        %v2166 = vpop.xlane.xlu0 %2165
        %v2167 = vmul.f32 %v2166, %v2160
        %v2168 = vadd.f32 %v2167, 1e-05
        %v2169 = vrsqrt.pop %v2168
        %v2170 = vmul.f32 %v2162, %v2169
        %v2172 = vlaneseq
        %v2173 = vshrl.u32 %v2172, 7
        %v2174 = vsub.s32 0, %v2173
        %v2175 = vrot.slane %v2155, %v2174
        %v2177 = vmul.f32 %v2170, %v2175
        %v2179 = vlaneseq
        %v2180 = vshrl.u32 %v2179, 7
        %v2181 = vsub.s32 0, %v2180
        %v2182 = vrot.slane %v2156, %v2181
        %v2184 = vadd.f32 %v2177, %v2182
        %v2185 = vld [vmem:[%s11] sm:$0xff]
        %v2186 = vld [vmem:[%s11 + $0x8] sm:$0xff]
        %v2187 = vld [vmem:[%s11 + $0x10] sm:$0xff]
        %v2188 = vld [vmem:[%s11 + $0x18] sm:$0xff]
        %v2189 = vld [vmem:[#allocation12] sm:$0x1]
        %v2190 = vld [vmem:[#allocation14] sm:$0xff]
        %v2191 = vld [vmem:[#allocation14 + $0x8] sm:$0xff]
        %v2192 = vld [vmem:[#allocation14 + $0x10] sm:$0xff]
        %v2193 = vld [vmem:[#allocation14 + $0x18] sm:$0xff]
        %v2194 = vld [vmem:[#allocation15] sm:$0x1]
        %v2196 = vlaneseq
        %v2197 = vshrl.u32 %v2196, 7
        %v2198 = vsub.s32 0, %v2197
        %v2199 = vrot.slane %v2189, %v2198
        %v2202 = vsel %vm1117, %v2184, 0
        %2204 = vmatprep.subr.mxu0 0.0
        %2205 = vmatpush1.msra.mxu0 0.0
        %2206 = vmatprep.subr.mxu0 0.0
        %2207 = vmatpush1.msra.mxu0 0.0
        %2208 = vmatprep.subr.mxu0 0.0
        %2209 = vmatpush1.msra.mxu0 0.0
        %2210 = vmatprep.subr.mxu0 0.0
        %2211 = vmatpush1.msra.mxu0 0.0
        %2212 = vmatprep.subr.mxu0 0.0
        %2213 = vmatpush1.msra.mxu0 0.0
        %2214 = vmatprep.subr.mxu0 0.0
        %2215 = vmatpush1.msra.mxu0 0.0
        %2216 = vmatprep.subr.mxu0 0.0
        %2217 = vmatpush1.msra.mxu0 0.0
        %2218 = vmatprep.subr.mxu0 0.0
        %2219 = vmatpush1.msra.mxu0 0.0
        %2220 = vmatprep.subr.mxu0 0.0
        %2221 = vmatpush1.msra.mxu0 0.0
        %2222 = vmatprep.subr.mxu0 0.0
        %2223 = vmatpush1.msra.mxu0 0.0
        %2224 = vmatprep.subr.mxu0 0.0
        %2225 = vmatpush1.msra.mxu0 0.0
        %2226 = vmatprep.subr.mxu0 0.0
        %2227 = vmatpush1.msra.mxu0 0.0
        %2228 = vmatprep.subr.mxu0 0.0
        %2229 = vmatpush1.msra.mxu0 %v2188
        %2230 = vmatprep.subr.mxu0 0.0
        %2231 = vmatpush1.msra.mxu0 %v2187
        %2232 = vmatprep.subr.mxu0 0.0
        %2233 = vmatpush1.msra.mxu0 %v2186
        %2234 = vmatprep.subr.mxu0 0.0
        %2235 = vmatpush1.msra.mxu0 %v2185
        %2236 = vmatprep.subr.mxu0 0.0
        %2237 = vmatpush2.msra.mxu0 0.0
        %2238 = vmatprep.subr.mxu0 0.0
        %2239 = vmatpush2.msra.mxu0 0.0
        %2240 = vmatprep.subr.mxu0 0.0
        %2241 = vmatpush2.msra.mxu0 0.0
        %2242 = vmatprep.subr.mxu0 0.0
        %2243 = vmatpush2.msra.mxu0 0.0
        %2244 = vmatprep.subr.mxu0 0.0
        %2245 = vmatpush2.msra.mxu0 0.0
        %2246 = vmatprep.subr.mxu0 0.0
        %2247 = vmatpush2.msra.mxu0 0.0
        %2248 = vmatprep.subr.mxu0 0.0
        %2249 = vmatpush2.msra.mxu0 0.0
        %2250 = vmatprep.subr.mxu0 0.0
        %2251 = vmatpush2.msra.mxu0 0.0
        %2252 = vmatprep.subr.mxu0 0.0
        %2253 = vmatpush2.msra.mxu0 0.0
        %2254 = vmatprep.subr.mxu0 0.0
        %2255 = vmatpush2.msra.mxu0 0.0
        %2256 = vmatprep.subr.mxu0 0.0
        %2257 = vmatpush2.msra.mxu0 0.0
        %2258 = vmatprep.subr.mxu0 0.0
        %2259 = vmatpush2.msra.mxu0 0.0
        %2260 = vmatprep.subr.mxu0 0.0
        %2261 = vmatpush2.msra.mxu0 0.0
        %2262 = vmatprep.subr.mxu0 0.0
        %2263 = vmatpush2.msra.mxu0 0.0
        %2264 = vmatprep.subr.mxu0 0.0
        %2265 = vmatpush2.msra.mxu0 0.0
        %2266 = vmatprep.subr.mxu0 0.0
        %2267 = vmatpush2.msra.mxu0 0.0
        %2268 = vmatprep.mubr.f32.mxu0 0.0
        %2269 = vmatmul.mubr.f32.gmra.mxu0 %v2202
        %v2270 = vpop.f32.mrf.mxu0
        %v2271 = vadd.f32 %v2199, %v2270
        %v2272 = vpop.f32.mrf.mxu0
        %2273 = vdwg.mxu0
        %v2274 = vmul.f32 %v2271, 0.35355338
        %2279 = vrot.lane.b32.xlu0 %v2185, 96
        %v2280 = vpop.permute.xlu0 %2279
        %2281 = vrot.lane.b32.xlu0 %v2186, 96
        %v2282 = vpop.permute.xlu0 %2281
        %2283 = vrot.lane.b32.xlu0 %v2187, 96
        %v2284 = vpop.permute.xlu0 %2283
        %2285 = vrot.lane.b32.xlu0 %v2188, 96
        %v2286 = vpop.permute.xlu0 %2285
        %2291 = vrot.lane.b32.xlu0 %v2199, 96
        %v2292 = vpop.permute.xlu0 %2291
        %v2295 = vsel %vm1117, %v1091, 0
        %v2298 = vsel %vm1117, %v1096, 0
        %2300 = vmatprep.subr.mxu0 0.0
        %2301 = vmatpush1.msra.mxu0 0.0
        %2302 = vmatprep.subr.mxu0 0.0
        %2303 = vmatpush1.msra.mxu0 0.0
        %2304 = vmatprep.subr.mxu0 0.0
        %2305 = vmatpush1.msra.mxu0 0.0
        %2306 = vmatprep.subr.mxu0 0.0
        %2307 = vmatpush1.msra.mxu0 0.0
        %2308 = vmatprep.subr.mxu0 0.0
        %2309 = vmatpush1.msra.mxu0 0.0
        %2310 = vmatprep.subr.mxu0 0.0
        %2311 = vmatpush1.msra.mxu0 0.0
        %2312 = vmatprep.subr.mxu0 0.0
        %2313 = vmatpush1.msra.mxu0 0.0
        %2314 = vmatprep.subr.mxu0 0.0
        %2315 = vmatpush1.msra.mxu0 0.0
        %2316 = vmatprep.subr.mxu0 0.0
        %2317 = vmatpush1.msra.mxu0 0.0
        %2318 = vmatprep.subr.mxu0 0.0
        %2319 = vmatpush1.msra.mxu0 0.0
        %2320 = vmatprep.subr.mxu0 0.0
        %2321 = vmatpush1.msra.mxu0 0.0
        %2322 = vmatprep.subr.mxu0 0.0
        %2323 = vmatpush1.msra.mxu0 0.0
        %2324 = vmatprep.subr.mxu0 0.0
        %2325 = vmatpush1.msra.mxu0 %v2286
        %2326 = vmatprep.subr.mxu0 0.0
        %2327 = vmatpush1.msra.mxu0 %v2284
        %2328 = vmatprep.subr.mxu0 0.0
        %2329 = vmatpush1.msra.mxu0 %v2282
        %2330 = vmatprep.subr.mxu0 0.0
        %2331 = vmatpush1.msra.mxu0 %v2280
        %2332 = vmatprep.subr.mxu0 0.0
        %2333 = vmatpush2.msra.mxu0 0.0
        %2334 = vmatprep.subr.mxu0 0.0
        %2335 = vmatpush2.msra.mxu0 0.0
        %2336 = vmatprep.subr.mxu0 0.0
        %2337 = vmatpush2.msra.mxu0 0.0
        %2338 = vmatprep.subr.mxu0 0.0
        %2339 = vmatpush2.msra.mxu0 0.0
        %2340 = vmatprep.subr.mxu0 0.0
        %2341 = vmatpush2.msra.mxu0 0.0
        %2342 = vmatprep.subr.mxu0 0.0
        %2343 = vmatpush2.msra.mxu0 0.0
        %2344 = vmatprep.subr.mxu0 0.0
        %2345 = vmatpush2.msra.mxu0 0.0
        %2346 = vmatprep.subr.mxu0 0.0
        %2347 = vmatpush2.msra.mxu0 0.0
        %2348 = vmatprep.subr.mxu0 0.0
        %2349 = vmatpush2.msra.mxu0 0.0
        %2350 = vmatprep.subr.mxu0 0.0
        %2351 = vmatpush2.msra.mxu0 0.0
        %2352 = vmatprep.subr.mxu0 0.0
        %2353 = vmatpush2.msra.mxu0 0.0
        %2354 = vmatprep.subr.mxu0 0.0
        %2355 = vmatpush2.msra.mxu0 0.0
        %2356 = vmatprep.subr.mxu0 0.0
        %2357 = vmatpush2.msra.mxu0 0.0
        %2358 = vmatprep.subr.mxu0 0.0
        %2359 = vmatpush2.msra.mxu0 0.0
        %2360 = vmatprep.subr.mxu0 0.0
        %2361 = vmatpush2.msra.mxu0 0.0
        %2362 = vmatprep.subr.mxu0 0.0
        %2363 = vmatpush2.msra.mxu0 0.0
        %2364 = vmatprep.mubr.f32.mxu0 0.0
        %2365 = vmatmul.mubr.f32.gmra.mxu0 %v2295
        %v2366 = vpop.f32.mrf.mxu0
        %v2367 = vadd.f32 %v2292, %v2366
        %v2368 = vpop.f32.mrf.mxu0
        %2369 = vmatprep.mubr.f32.mxu0 0.0
        %2370 = vmatmul.mubr.f32.gmra.mxu0 %v2298
        %v2371 = vpop.f32.mrf.mxu0
        %v2372 = vadd.f32 %v2292, %v2371
        %v2373 = vpop.f32.mrf.mxu0
        %2374 = vdwg.mxu0
        %v2376 = vlaneseq
        %v2377 = vshrl.u32 %v2376, 7
        %v2378 = vsub.s32 0, %v2377
        %v2379 = vrot.slane %v1099, %v2378
        %v2382 = vsel %vm1195, %v2274, 0
        %v2385 = vsel %vm1195, %v2367, 0
        %v2388 = vsel %vm1195, %v2372, 0
        %2390 = vmatprep.subr.mxu0 0.0
        %2391 = vmatpush1.xpose.msra.mxu0 0.0
        %2392 = vmatprep.subr.mxu0 0.0
        %2393 = vmatpush1.xpose.msra.mxu0 0.0
        %2394 = vmatprep.subr.mxu0 0.0
        %2395 = vmatpush1.xpose.msra.mxu0 0.0
        %2396 = vmatprep.subr.mxu0 0.0
        %2397 = vmatpush1.xpose.msra.mxu0 0.0
        %2398 = vmatprep.subr.mxu0 0.0
        %2399 = vmatpush1.xpose.msra.mxu0 0.0
        %2400 = vmatprep.subr.mxu0 0.0
        %2401 = vmatpush1.xpose.msra.mxu0 0.0
        %2402 = vmatprep.subr.mxu0 0.0
        %2403 = vmatpush1.xpose.msra.mxu0 0.0
        %2404 = vmatprep.subr.mxu0 0.0
        %2405 = vmatpush1.xpose.msra.mxu0 0.0
        %2406 = vmatprep.subr.mxu0 0.0
        %2407 = vmatpush1.xpose.msra.mxu0 0.0
        %2408 = vmatprep.subr.mxu0 0.0
        %2409 = vmatpush1.xpose.msra.mxu0 0.0
        %2410 = vmatprep.subr.mxu0 0.0
        %2411 = vmatpush1.xpose.msra.mxu0 0.0
        %2412 = vmatprep.subr.mxu0 0.0
        %2413 = vmatpush1.xpose.msra.mxu0 0.0
        %2414 = vmatprep.subr.mxu0 0.0
        %2415 = vmatpush1.xpose.msra.mxu0 0.0
        %2416 = vmatprep.subr.mxu0 0.0
        %2417 = vmatpush1.xpose.msra.mxu0 0.0
        %2418 = vmatprep.subr.mxu0 0.0
        %2419 = vmatpush1.xpose.msra.mxu0 %v2388
        %2420 = vmatprep.subr.mxu0 0.0
        %2421 = vmatpush1.xpose.msra.mxu0 %v2385
        %2422 = vmatprep.subr.mxu0 0.0
        %2423 = vmatpush2.xpose.msra.mxu0 0.0
        %2424 = vmatprep.subr.mxu0 0.0
        %2425 = vmatpush2.xpose.msra.mxu0 0.0
        %2426 = vmatprep.subr.mxu0 0.0
        %2427 = vmatpush2.xpose.msra.mxu0 0.0
        %2428 = vmatprep.subr.mxu0 0.0
        %2429 = vmatpush2.xpose.msra.mxu0 0.0
        %2430 = vmatprep.subr.mxu0 0.0
        %2431 = vmatpush2.xpose.msra.mxu0 0.0
        %2432 = vmatprep.subr.mxu0 0.0
        %2433 = vmatpush2.xpose.msra.mxu0 0.0
        %2434 = vmatprep.subr.mxu0 0.0
        %2435 = vmatpush2.xpose.msra.mxu0 0.0
        %2436 = vmatprep.subr.mxu0 0.0
        %2437 = vmatpush2.xpose.msra.mxu0 0.0
        %2438 = vmatprep.subr.mxu0 0.0
        %2439 = vmatpush2.xpose.msra.mxu0 0.0
        %2440 = vmatprep.subr.mxu0 0.0
        %2441 = vmatpush2.xpose.msra.mxu0 0.0
        %2442 = vmatprep.subr.mxu0 0.0
        %2443 = vmatpush2.xpose.msra.mxu0 0.0
        %2444 = vmatprep.subr.mxu0 0.0
        %2445 = vmatpush2.xpose.msra.mxu0 0.0
        %2446 = vmatprep.subr.mxu0 0.0
        %2447 = vmatpush2.xpose.msra.mxu0 0.0
        %2448 = vmatprep.subr.mxu0 0.0
        %2449 = vmatpush2.xpose.msra.mxu0 0.0
        %2450 = vmatprep.subr.mxu0 0.0
        %2451 = vmatpush2.xpose.msra.mxu0 0.0
        %2452 = vmatprep.subr.mxu0 0.0
        %2453 = vmatpush2.xpose.msra.mxu0 0.0
        %2454 = vmatprep.mubr.f32.mxu0 0.0
        %2455 = vmatmul.mubr.f32.gmra.mxu0 %v2382
        %v2456 = vpop.f32.mrf.mxu0
        %v2457 = vadd.f32 %v2379, %v2456
        %v2458 = vpop.f32.mrf.mxu0
        %2459 = vdwg.mxu0
        %vm2460 = vcmask 80896
        %v2461 = vsel %vm2460, %v2457, -inf
        %2462 = vmax.xlane.f32.xlu0 %v2461
        %v2463 = vpop.xlane.xlu0 %2462
        %v2464 = vsub.f32 %v2457, %v2463
        %v2465 = vmul.f32 %v2464, 1.442695
        %v2466 = vpow.pop %v2465
        %v2467 = vsel %vm2460, %v2466, 0.0
        %2468 = vadd.xlane.f32.xlu0 %v2467
        %v2469 = vpop.xlane.xlu0 %2468
        %v2470 = vrcp.pop %v2469
        %2471 = vrot.lane.b32.xlu0 %v2367, 96
        %v2472 = vpop.permute.xlu0 %2471
        %2473 = vrot.lane.b32.xlu0 %v2372, 96
        %v2474 = vpop.permute.xlu0 %2473
        %v2477 = vsel %vm2460, %v2466, 0
        %vm2479 = vcmask 1041408
        %v2480 = vsel %vm2479, %v2474, 0
        %2482 = vmatprep.subr.mxu0 0.0
        %2483 = vmatpush1.msra.mxu0 0.0
        %2484 = vmatprep.subr.mxu0 0.0
        %2485 = vmatpush1.msra.mxu0 0.0
        %2486 = vmatprep.subr.mxu0 0.0
        %2487 = vmatpush1.msra.mxu0 0.0
        %2488 = vmatprep.subr.mxu0 0.0
        %2489 = vmatpush1.msra.mxu0 0.0
        %2490 = vmatprep.subr.mxu0 0.0
        %2491 = vmatpush1.msra.mxu0 0.0
        %2492 = vmatprep.subr.mxu0 0.0
        %2493 = vmatpush1.msra.mxu0 0.0
        %2494 = vmatprep.subr.mxu0 0.0
        %2495 = vmatpush1.msra.mxu0 0.0
        %2496 = vmatprep.subr.mxu0 0.0
        %2497 = vmatpush1.msra.mxu0 0.0
        %2498 = vmatprep.subr.mxu0 0.0
        %2499 = vmatpush1.msra.mxu0 0.0
        %2500 = vmatprep.subr.mxu0 0.0
        %2501 = vmatpush1.msra.mxu0 0.0
        %2502 = vmatprep.subr.mxu0 0.0
        %2503 = vmatpush1.msra.mxu0 0.0
        %2504 = vmatprep.subr.mxu0 0.0
        %2505 = vmatpush1.msra.mxu0 0.0
        %2506 = vmatprep.subr.mxu0 0.0
        %2507 = vmatpush1.msra.mxu0 0.0
        %2508 = vmatprep.subr.mxu0 0.0
        %2509 = vmatpush1.msra.mxu0 0.0
        %2510 = vmatprep.subr.mxu0 0.0
        %2511 = vmatpush1.msra.mxu0 %v2480
        %2512 = vmatprep.subr.mxu0 0.0
        %2513 = vmatpush1.msra.mxu0 %v2472
        %2514 = vmatprep.subr.mxu0 0.0
        %2515 = vmatpush2.msra.mxu0 0.0
        %2516 = vmatprep.subr.mxu0 0.0
        %2517 = vmatpush2.msra.mxu0 0.0
        %2518 = vmatprep.subr.mxu0 0.0
        %2519 = vmatpush2.msra.mxu0 0.0
        %2520 = vmatprep.subr.mxu0 0.0
        %2521 = vmatpush2.msra.mxu0 0.0
        %2522 = vmatprep.subr.mxu0 0.0
        %2523 = vmatpush2.msra.mxu0 0.0
        %2524 = vmatprep.subr.mxu0 0.0
        %2525 = vmatpush2.msra.mxu0 0.0
        %2526 = vmatprep.subr.mxu0 0.0
        %2527 = vmatpush2.msra.mxu0 0.0
        %2528 = vmatprep.subr.mxu0 0.0
        %2529 = vmatpush2.msra.mxu0 0.0
        %2530 = vmatprep.subr.mxu0 0.0
        %2531 = vmatpush2.msra.mxu0 0.0
        %2532 = vmatprep.subr.mxu0 0.0
        %2533 = vmatpush2.msra.mxu0 0.0
        %2534 = vmatprep.subr.mxu0 0.0
        %2535 = vmatpush2.msra.mxu0 0.0
        %2536 = vmatprep.subr.mxu0 0.0
        %2537 = vmatpush2.msra.mxu0 0.0
        %2538 = vmatprep.subr.mxu0 0.0
        %2539 = vmatpush2.msra.mxu0 0.0
        %2540 = vmatprep.subr.mxu0 0.0
        %2541 = vmatpush2.msra.mxu0 0.0
        %2542 = vmatprep.subr.mxu0 0.0
        %2543 = vmatpush2.msra.mxu0 0.0
        %2544 = vmatprep.subr.mxu0 0.0
        %2545 = vmatpush2.msra.mxu0 0.0
        %2546 = vmatprep.mubr.f32.mxu0 0.0
        %2547 = vmatmul.mubr.f32.gmra.mxu0 %v2477
        %v2548 = vpop.f32.mrf.mxu0
        %v2549 = vadd.f32 0.0, %v2548
        %v2550 = vpop.f32.mrf.mxu0
        %2551 = vdwg.mxu0
        %v2552 = vmul.f32 %v2549, %v2470
        %2553 = vrot.lane.b32.xlu0 %v2274, 120
        %v2554 = vpop.permute.xlu0 %2553
        %2555 = vrot.lane.b32.xlu0 %v2367, 120
        %v2556 = vpop.permute.xlu0 %2555
        %2557 = vrot.lane.b32.xlu0 %v2372, 120
        %v2558 = vpop.permute.xlu0 %2557
        %v2559 = vsel %vm1195, %v2554, 0
        %v2561 = vsel %vm1195, %v2556, 0
        %v2563 = vsel %vm1195, %v2558, 0
        %2565 = vmatprep.subr.mxu0 0.0
        %2566 = vmatpush1.xpose.msra.mxu0 0.0
        %2567 = vmatprep.subr.mxu0 0.0
        %2568 = vmatpush1.xpose.msra.mxu0 0.0
        %2569 = vmatprep.subr.mxu0 0.0
        %2570 = vmatpush1.xpose.msra.mxu0 0.0
        %2571 = vmatprep.subr.mxu0 0.0
        %2572 = vmatpush1.xpose.msra.mxu0 0.0
        %2573 = vmatprep.subr.mxu0 0.0
        %2574 = vmatpush1.xpose.msra.mxu0 0.0
        %2575 = vmatprep.subr.mxu0 0.0
        %2576 = vmatpush1.xpose.msra.mxu0 0.0
        %2577 = vmatprep.subr.mxu0 0.0
        %2578 = vmatpush1.xpose.msra.mxu0 0.0
        %2579 = vmatprep.subr.mxu0 0.0
        %2580 = vmatpush1.xpose.msra.mxu0 0.0
        %2581 = vmatprep.subr.mxu0 0.0
        %2582 = vmatpush1.xpose.msra.mxu0 0.0
        %2583 = vmatprep.subr.mxu0 0.0
        %2584 = vmatpush1.xpose.msra.mxu0 0.0
        %2585 = vmatprep.subr.mxu0 0.0
        %2586 = vmatpush1.xpose.msra.mxu0 0.0
        %2587 = vmatprep.subr.mxu0 0.0
        %2588 = vmatpush1.xpose.msra.mxu0 0.0
        %2589 = vmatprep.subr.mxu0 0.0
        %2590 = vmatpush1.xpose.msra.mxu0 0.0
        %2591 = vmatprep.subr.mxu0 0.0
        %2592 = vmatpush1.xpose.msra.mxu0 0.0
        %2593 = vmatprep.subr.mxu0 0.0
        %2594 = vmatpush1.xpose.msra.mxu0 %v2563
        %2595 = vmatprep.subr.mxu0 0.0
        %2596 = vmatpush1.xpose.msra.mxu0 %v2561
        %2597 = vmatprep.subr.mxu0 0.0
        %2598 = vmatpush2.xpose.msra.mxu0 0.0
        %2599 = vmatprep.subr.mxu0 0.0
        %2600 = vmatpush2.xpose.msra.mxu0 0.0
        %2601 = vmatprep.subr.mxu0 0.0
        %2602 = vmatpush2.xpose.msra.mxu0 0.0
        %2603 = vmatprep.subr.mxu0 0.0
        %2604 = vmatpush2.xpose.msra.mxu0 0.0
        %2605 = vmatprep.subr.mxu0 0.0
        %2606 = vmatpush2.xpose.msra.mxu0 0.0
        %2607 = vmatprep.subr.mxu0 0.0
        %2608 = vmatpush2.xpose.msra.mxu0 0.0
        %2609 = vmatprep.subr.mxu0 0.0
        %2610 = vmatpush2.xpose.msra.mxu0 0.0
        %2611 = vmatprep.subr.mxu0 0.0
        %2612 = vmatpush2.xpose.msra.mxu0 0.0
        %2613 = vmatprep.subr.mxu0 0.0
        %2614 = vmatpush2.xpose.msra.mxu0 0.0
        %2615 = vmatprep.subr.mxu0 0.0
        %2616 = vmatpush2.xpose.msra.mxu0 0.0
        %2617 = vmatprep.subr.mxu0 0.0
        %2618 = vmatpush2.xpose.msra.mxu0 0.0
        %2619 = vmatprep.subr.mxu0 0.0
        %2620 = vmatpush2.xpose.msra.mxu0 0.0
        %2621 = vmatprep.subr.mxu0 0.0
        %2622 = vmatpush2.xpose.msra.mxu0 0.0
        %2623 = vmatprep.subr.mxu0 0.0
        %2624 = vmatpush2.xpose.msra.mxu0 0.0
        %2625 = vmatprep.subr.mxu0 0.0
        %2626 = vmatpush2.xpose.msra.mxu0 0.0
        %2627 = vmatprep.subr.mxu0 0.0
        %2628 = vmatpush2.xpose.msra.mxu0 0.0
        %2629 = vmatprep.mubr.f32.mxu0 0.0
        %2630 = vmatmul.mubr.f32.gmra.mxu0 %v2559
        %v2631 = vpop.f32.mrf.mxu0
        %v2632 = vadd.f32 %v2379, %v2631
        %v2633 = vpop.f32.mrf.mxu0
        %2634 = vdwg.mxu0
        %v2635 = vsel %vm2460, %v2632, -inf
        %2636 = vmax.xlane.f32.xlu0 %v2635
        %v2637 = vpop.xlane.xlu0 %2636
        %v2638 = vsub.f32 %v2632, %v2637
        %v2639 = vmul.f32 %v2638, 1.442695
        %v2640 = vpow.pop %v2639
        %v2641 = vsel %vm2460, %v2640, 0.0
        %2642 = vadd.xlane.f32.xlu0 %v2641
        %v2643 = vpop.xlane.xlu0 %2642
        %v2644 = vrcp.pop %v2643
        %2645 = vrot.lane.b32.xlu0 %v2367, 88
        %v2646 = vpop.permute.xlu0 %2645
        %2647 = vrot.lane.b32.xlu0 %v2372, 88
        %v2648 = vpop.permute.xlu0 %2647
        %v2651 = vsel %vm2460, %v2640, 0
        %v2653 = vsel %vm2479, %v2648, 0
        %2655 = vmatprep.subr.mxu0 0.0
        %2656 = vmatpush1.msra.mxu0 0.0
        %2657 = vmatprep.subr.mxu0 0.0
        %2658 = vmatpush1.msra.mxu0 0.0
        %2659 = vmatprep.subr.mxu0 0.0
        %2660 = vmatpush1.msra.mxu0 0.0
        %2661 = vmatprep.subr.mxu0 0.0
        %2662 = vmatpush1.msra.mxu0 0.0
        %2663 = vmatprep.subr.mxu0 0.0
        %2664 = vmatpush1.msra.mxu0 0.0
        %2665 = vmatprep.subr.mxu0 0.0
        %2666 = vmatpush1.msra.mxu0 0.0
        %2667 = vmatprep.subr.mxu0 0.0
        %2668 = vmatpush1.msra.mxu0 0.0
        %2669 = vmatprep.subr.mxu0 0.0
        %2670 = vmatpush1.msra.mxu0 0.0
        %2671 = vmatprep.subr.mxu0 0.0
        %2672 = vmatpush1.msra.mxu0 0.0
        %2673 = vmatprep.subr.mxu0 0.0
        %2674 = vmatpush1.msra.mxu0 0.0
        %2675 = vmatprep.subr.mxu0 0.0
        %2676 = vmatpush1.msra.mxu0 0.0
        %2677 = vmatprep.subr.mxu0 0.0
        %2678 = vmatpush1.msra.mxu0 0.0
        %2679 = vmatprep.subr.mxu0 0.0
        %2680 = vmatpush1.msra.mxu0 0.0
        %2681 = vmatprep.subr.mxu0 0.0
        %2682 = vmatpush1.msra.mxu0 0.0
        %2683 = vmatprep.subr.mxu0 0.0
        %2684 = vmatpush1.msra.mxu0 %v2653
        %2685 = vmatprep.subr.mxu0 0.0
        %2686 = vmatpush1.msra.mxu0 %v2646
        %2687 = vmatprep.subr.mxu0 0.0
        %2688 = vmatpush2.msra.mxu0 0.0
        %2689 = vmatprep.subr.mxu0 0.0
        %2690 = vmatpush2.msra.mxu0 0.0
        %2691 = vmatprep.subr.mxu0 0.0
        %2692 = vmatpush2.msra.mxu0 0.0
        %2693 = vmatprep.subr.mxu0 0.0
        %2694 = vmatpush2.msra.mxu0 0.0
        %2695 = vmatprep.subr.mxu0 0.0
        %2696 = vmatpush2.msra.mxu0 0.0
        %2697 = vmatprep.subr.mxu0 0.0
        %2698 = vmatpush2.msra.mxu0 0.0
        %2699 = vmatprep.subr.mxu0 0.0
        %2700 = vmatpush2.msra.mxu0 0.0
        %2701 = vmatprep.subr.mxu0 0.0
        %2702 = vmatpush2.msra.mxu0 0.0
        %2703 = vmatprep.subr.mxu0 0.0
        %2704 = vmatpush2.msra.mxu0 0.0
        %2705 = vmatprep.subr.mxu0 0.0
        %2706 = vmatpush2.msra.mxu0 0.0
        %2707 = vmatprep.subr.mxu0 0.0
        %2708 = vmatpush2.msra.mxu0 0.0
        %2709 = vmatprep.subr.mxu0 0.0
        %2710 = vmatpush2.msra.mxu0 0.0
        %2711 = vmatprep.subr.mxu0 0.0
        %2712 = vmatpush2.msra.mxu0 0.0
        %2713 = vmatprep.subr.mxu0 0.0
        %2714 = vmatpush2.msra.mxu0 0.0
        %2715 = vmatprep.subr.mxu0 0.0
        %2716 = vmatpush2.msra.mxu0 0.0
        %2717 = vmatprep.subr.mxu0 0.0
        %2718 = vmatpush2.msra.mxu0 0.0
        %2719 = vmatprep.mubr.f32.mxu0 0.0
        %2720 = vmatmul.mubr.f32.gmra.mxu0 %v2651
        %v2721 = vpop.f32.mrf.mxu0
        %v2722 = vadd.f32 0.0, %v2721
        %v2723 = vpop.f32.mrf.mxu0
        %2724 = vdwg.mxu0
        %v2725 = vmul.f32 %v2722, %v2644
        %v2727 = vsel %vm1195, %v2725, 0
        %2729 = vmatprep.subr.mxu0 0.0
        %2730 = vmatpush1.msra.mxu0 0.0
        %2731 = vmatprep.subr.mxu0 0.0
        %2732 = vmatpush1.msra.mxu0 0.0
        %2733 = vmatprep.subr.mxu0 0.0
        %2734 = vmatpush1.msra.mxu0 0.0
        %2735 = vmatprep.subr.mxu0 0.0
        %2736 = vmatpush1.msra.mxu0 0.0
        %2737 = vmatprep.subr.mxu0 0.0
        %2738 = vmatpush1.msra.mxu0 0.0
        %2739 = vmatprep.subr.mxu0 0.0
        %2740 = vmatpush1.msra.mxu0 0.0
        %2741 = vmatprep.subr.mxu0 0.0
        %2742 = vmatpush1.msra.mxu0 0.0
        %2743 = vmatprep.subr.mxu0 0.0
        %2744 = vmatpush1.msra.mxu0 0.0
        %2745 = vmatprep.subr.mxu0 0.0
        %2746 = vmatpush1.msra.mxu0 0.0
        %2747 = vmatprep.subr.mxu0 0.0
        %2748 = vmatpush1.msra.mxu0 0.0
        %2749 = vmatprep.subr.mxu0 0.0
        %2750 = vmatpush1.msra.mxu0 0.0
        %2751 = vmatprep.subr.mxu0 0.0
        %2752 = vmatpush1.msra.mxu0 0.0
        %2753 = vmatprep.subr.mxu0 0.0
        %2754 = vmatpush1.msra.mxu0 0.0
        %2755 = vmatprep.subr.mxu0 0.0
        %2756 = vmatpush1.msra.mxu0 0.0
        %2757 = vmatprep.subr.mxu0 0.0
        %2758 = vmatpush1.msra.mxu0 0.0
        %2759 = vmatprep.subr.mxu0 0.0
        %2760 = vmatpush1.msra.mxu0 %v2191
        %2761 = vmatprep.subr.mxu0 0.0
        %2762 = vmatpush2.msra.mxu0 0.0
        %2763 = vmatprep.subr.mxu0 0.0
        %2764 = vmatpush2.msra.mxu0 0.0
        %2765 = vmatprep.subr.mxu0 0.0
        %2766 = vmatpush2.msra.mxu0 0.0
        %2767 = vmatprep.subr.mxu0 0.0
        %2768 = vmatpush2.msra.mxu0 0.0
        %2769 = vmatprep.subr.mxu0 0.0
        %2770 = vmatpush2.msra.mxu0 0.0
        %2771 = vmatprep.subr.mxu0 0.0
        %2772 = vmatpush2.msra.mxu0 0.0
        %2773 = vmatprep.subr.mxu0 0.0
        %2774 = vmatpush2.msra.mxu0 0.0
        %2775 = vmatprep.subr.mxu0 0.0
        %2776 = vmatpush2.msra.mxu0 0.0
        %2777 = vmatprep.subr.mxu0 0.0
        %2778 = vmatpush2.msra.mxu0 0.0
        %2779 = vmatprep.subr.mxu0 0.0
        %2780 = vmatpush2.msra.mxu0 0.0
        %2781 = vmatprep.subr.mxu0 0.0
        %2782 = vmatpush2.msra.mxu0 0.0
        %2783 = vmatprep.subr.mxu0 0.0
        %2784 = vmatpush2.msra.mxu0 0.0
        %2785 = vmatprep.subr.mxu0 0.0
        %2786 = vmatpush2.msra.mxu0 0.0
        %2787 = vmatprep.subr.mxu0 0.0
        %2788 = vmatpush2.msra.mxu0 0.0
        %2789 = vmatprep.subr.mxu0 0.0
        %2790 = vmatpush2.msra.mxu0 0.0
        %2791 = vmatprep.subr.mxu0 0.0
        %2792 = vmatpush2.msra.mxu0 0.0
        %2793 = vmatprep.mubr.f32.mxu0 0.0
        %2794 = vmatmul.mubr.f32.gmra.mxu0 %v2727
        %v2795 = vpop.f32.mrf.mxu0
        %v2796 = vadd.f32 0.0, %v2795
        %v2797 = vpop.f32.mrf.mxu0
        %2798 = vdwg.mxu0
        %v2800 = vsel %vm1195, %v2552, 0
        %2802 = vmatprep.subr.mxu0 0.0
        %2803 = vmatpush1.msra.mxu0 0.0
        %2804 = vmatprep.subr.mxu0 0.0
        %2805 = vmatpush1.msra.mxu0 0.0
        %2806 = vmatprep.subr.mxu0 0.0
        %2807 = vmatpush1.msra.mxu0 0.0
        %2808 = vmatprep.subr.mxu0 0.0
        %2809 = vmatpush1.msra.mxu0 0.0
        %2810 = vmatprep.subr.mxu0 0.0
        %2811 = vmatpush1.msra.mxu0 0.0
        %2812 = vmatprep.subr.mxu0 0.0
        %2813 = vmatpush1.msra.mxu0 0.0
        %2814 = vmatprep.subr.mxu0 0.0
        %2815 = vmatpush1.msra.mxu0 0.0
        %2816 = vmatprep.subr.mxu0 0.0
        %2817 = vmatpush1.msra.mxu0 0.0
        %2818 = vmatprep.subr.mxu0 0.0
        %2819 = vmatpush1.msra.mxu0 0.0
        %2820 = vmatprep.subr.mxu0 0.0
        %2821 = vmatpush1.msra.mxu0 0.0
        %2822 = vmatprep.subr.mxu0 0.0
        %2823 = vmatpush1.msra.mxu0 0.0
        %2824 = vmatprep.subr.mxu0 0.0
        %2825 = vmatpush1.msra.mxu0 0.0
        %2826 = vmatprep.subr.mxu0 0.0
        %2827 = vmatpush1.msra.mxu0 0.0
        %2828 = vmatprep.subr.mxu0 0.0
        %2829 = vmatpush1.msra.mxu0 0.0
        %2830 = vmatprep.subr.mxu0 0.0
        %2831 = vmatpush1.msra.mxu0 0.0
        %2832 = vmatprep.subr.mxu0 0.0
        %2833 = vmatpush1.msra.mxu0 %v2190
        %2834 = vmatprep.subr.mxu0 0.0
        %2835 = vmatpush2.msra.mxu0 0.0
        %2836 = vmatprep.subr.mxu0 0.0
        %2837 = vmatpush2.msra.mxu0 0.0
        %2838 = vmatprep.subr.mxu0 0.0
        %2839 = vmatpush2.msra.mxu0 0.0
        %2840 = vmatprep.subr.mxu0 0.0
        %2841 = vmatpush2.msra.mxu0 0.0
        %2842 = vmatprep.subr.mxu0 0.0
        %2843 = vmatpush2.msra.mxu0 0.0
        %2844 = vmatprep.subr.mxu0 0.0
        %2845 = vmatpush2.msra.mxu0 0.0
        %2846 = vmatprep.subr.mxu0 0.0
        %2847 = vmatpush2.msra.mxu0 0.0
        %2848 = vmatprep.subr.mxu0 0.0
        %2849 = vmatpush2.msra.mxu0 0.0
        %2850 = vmatprep.subr.mxu0 0.0
        %2851 = vmatpush2.msra.mxu0 0.0
        %2852 = vmatprep.subr.mxu0 0.0
        %2853 = vmatpush2.msra.mxu0 0.0
        %2854 = vmatprep.subr.mxu0 0.0
        %2855 = vmatpush2.msra.mxu0 0.0
        %2856 = vmatprep.subr.mxu0 0.0
        %2857 = vmatpush2.msra.mxu0 0.0
        %2858 = vmatprep.subr.mxu0 0.0
        %2859 = vmatpush2.msra.mxu0 0.0
        %2860 = vmatprep.subr.mxu0 0.0
        %2861 = vmatpush2.msra.mxu0 0.0
        %2862 = vmatprep.subr.mxu0 0.0
        %2863 = vmatpush2.msra.mxu0 0.0
        %2864 = vmatprep.subr.mxu0 0.0
        %2865 = vmatpush2.msra.mxu0 0.0
        %2866 = vmatprep.mubr.f32.mxu0 0.0
        %2867 = vmatmul.mubr.f32.gmra.mxu0 %v2800
        %v2868 = vpop.f32.mrf.mxu0
        %v2869 = vadd.f32 %v2796, %v2868
        %v2870 = vpop.f32.mrf.mxu0
        %2871 = vdwg.mxu0
        %2872 = vrot.lane.b32.xlu0 %v2274, 112
        %v2873 = vpop.permute.xlu0 %2872
        %2874 = vrot.lane.b32.xlu0 %v2367, 112
        %v2875 = vpop.permute.xlu0 %2874
        %2876 = vrot.lane.b32.xlu0 %v2372, 112
        %v2877 = vpop.permute.xlu0 %2876
        %v2878 = vsel %vm1195, %v2873, 0
        %v2880 = vsel %vm1195, %v2875, 0
        %v2882 = vsel %vm1195, %v2877, 0
        %2884 = vmatprep.subr.mxu0 0.0
        %2885 = vmatpush1.xpose.msra.mxu0 0.0
        %2886 = vmatprep.subr.mxu0 0.0
        %2887 = vmatpush1.xpose.msra.mxu0 0.0
        %2888 = vmatprep.subr.mxu0 0.0
        %2889 = vmatpush1.xpose.msra.mxu0 0.0
        %2890 = vmatprep.subr.mxu0 0.0
        %2891 = vmatpush1.xpose.msra.mxu0 0.0
        %2892 = vmatprep.subr.mxu0 0.0
        %2893 = vmatpush1.xpose.msra.mxu0 0.0
        %2894 = vmatprep.subr.mxu0 0.0
        %2895 = vmatpush1.xpose.msra.mxu0 0.0
        %2896 = vmatprep.subr.mxu0 0.0
        %2897 = vmatpush1.xpose.msra.mxu0 0.0
        %2898 = vmatprep.subr.mxu0 0.0
        %2899 = vmatpush1.xpose.msra.mxu0 0.0
        %2900 = vmatprep.subr.mxu0 0.0
        %2901 = vmatpush1.xpose.msra.mxu0 0.0
        %2902 = vmatprep.subr.mxu0 0.0
        %2903 = vmatpush1.xpose.msra.mxu0 0.0
        %2904 = vmatprep.subr.mxu0 0.0
        %2905 = vmatpush1.xpose.msra.mxu0 0.0
        %2906 = vmatprep.subr.mxu0 0.0
        %2907 = vmatpush1.xpose.msra.mxu0 0.0
        %2908 = vmatprep.subr.mxu0 0.0
        %2909 = vmatpush1.xpose.msra.mxu0 0.0
        %2910 = vmatprep.subr.mxu0 0.0
        %2911 = vmatpush1.xpose.msra.mxu0 0.0
        %2912 = vmatprep.subr.mxu0 0.0
        %2913 = vmatpush1.xpose.msra.mxu0 %v2882
        %2914 = vmatprep.subr.mxu0 0.0
        %2915 = vmatpush1.xpose.msra.mxu0 %v2880
        %2916 = vmatprep.subr.mxu0 0.0
        %2917 = vmatpush2.xpose.msra.mxu0 0.0
        %2918 = vmatprep.subr.mxu0 0.0
        %2919 = vmatpush2.xpose.msra.mxu0 0.0
        %2920 = vmatprep.subr.mxu0 0.0
        %2921 = vmatpush2.xpose.msra.mxu0 0.0
        %2922 = vmatprep.subr.mxu0 0.0
        %2923 = vmatpush2.xpose.msra.mxu0 0.0
        %2924 = vmatprep.subr.mxu0 0.0
        %2925 = vmatpush2.xpose.msra.mxu0 0.0
        %2926 = vmatprep.subr.mxu0 0.0
        %2927 = vmatpush2.xpose.msra.mxu0 0.0
        %2928 = vmatprep.subr.mxu0 0.0
        %2929 = vmatpush2.xpose.msra.mxu0 0.0
        %2930 = vmatprep.subr.mxu0 0.0
        %2931 = vmatpush2.xpose.msra.mxu0 0.0
        %2932 = vmatprep.subr.mxu0 0.0
        %2933 = vmatpush2.xpose.msra.mxu0 0.0
        %2934 = vmatprep.subr.mxu0 0.0
        %2935 = vmatpush2.xpose.msra.mxu0 0.0
        %2936 = vmatprep.subr.mxu0 0.0
        %2937 = vmatpush2.xpose.msra.mxu0 0.0
        %2938 = vmatprep.subr.mxu0 0.0
        %2939 = vmatpush2.xpose.msra.mxu0 0.0
        %2940 = vmatprep.subr.mxu0 0.0
        %2941 = vmatpush2.xpose.msra.mxu0 0.0
        %2942 = vmatprep.subr.mxu0 0.0
        %2943 = vmatpush2.xpose.msra.mxu0 0.0
        %2944 = vmatprep.subr.mxu0 0.0
        %2945 = vmatpush2.xpose.msra.mxu0 0.0
        %2946 = vmatprep.subr.mxu0 0.0
        %2947 = vmatpush2.xpose.msra.mxu0 0.0
        %2948 = vmatprep.mubr.f32.mxu0 0.0
        %2949 = vmatmul.mubr.f32.gmra.mxu0 %v2878
        %v2950 = vpop.f32.mrf.mxu0
        %v2951 = vadd.f32 %v2379, %v2950
        %v2952 = vpop.f32.mrf.mxu0
        %2953 = vdwg.mxu0
        %v2954 = vsel %vm2460, %v2951, -inf
        %2955 = vmax.xlane.f32.xlu0 %v2954
        %v2956 = vpop.xlane.xlu0 %2955
        %v2957 = vsub.f32 %v2951, %v2956
        %v2958 = vmul.f32 %v2957, 1.442695
        %v2959 = vpow.pop %v2958
        %v2960 = vsel %vm2460, %v2959, 0.0
        %2961 = vadd.xlane.f32.xlu0 %v2960
        %v2962 = vpop.xlane.xlu0 %2961
        %v2963 = vrcp.pop %v2962
        %2964 = vrot.lane.b32.xlu0 %v2367, 80
        %v2965 = vpop.permute.xlu0 %2964
        %2966 = vrot.lane.b32.xlu0 %v2372, 80
        %v2967 = vpop.permute.xlu0 %2966
        %v2970 = vsel %vm2460, %v2959, 0
        %v2972 = vsel %vm2479, %v2967, 0
        %2974 = vmatprep.subr.mxu0 0.0
        %2975 = vmatpush1.msra.mxu0 0.0
        %2976 = vmatprep.subr.mxu0 0.0
        %2977 = vmatpush1.msra.mxu0 0.0
        %2978 = vmatprep.subr.mxu0 0.0
        %2979 = vmatpush1.msra.mxu0 0.0
        %2980 = vmatprep.subr.mxu0 0.0
        %2981 = vmatpush1.msra.mxu0 0.0
        %2982 = vmatprep.subr.mxu0 0.0
        %2983 = vmatpush1.msra.mxu0 0.0
        %2984 = vmatprep.subr.mxu0 0.0
        %2985 = vmatpush1.msra.mxu0 0.0
        %2986 = vmatprep.subr.mxu0 0.0
        %2987 = vmatpush1.msra.mxu0 0.0
        %2988 = vmatprep.subr.mxu0 0.0
        %2989 = vmatpush1.msra.mxu0 0.0
        %2990 = vmatprep.subr.mxu0 0.0
        %2991 = vmatpush1.msra.mxu0 0.0
        %2992 = vmatprep.subr.mxu0 0.0
        %2993 = vmatpush1.msra.mxu0 0.0
        %2994 = vmatprep.subr.mxu0 0.0
        %2995 = vmatpush1.msra.mxu0 0.0
        %2996 = vmatprep.subr.mxu0 0.0
        %2997 = vmatpush1.msra.mxu0 0.0
        %2998 = vmatprep.subr.mxu0 0.0
        %2999 = vmatpush1.msra.mxu0 0.0
        %3000 = vmatprep.subr.mxu0 0.0
        %3001 = vmatpush1.msra.mxu0 0.0
        %3002 = vmatprep.subr.mxu0 0.0
        %3003 = vmatpush1.msra.mxu0 %v2972
        %3004 = vmatprep.subr.mxu0 0.0
        %3005 = vmatpush1.msra.mxu0 %v2965
        %3006 = vmatprep.subr.mxu0 0.0
        %3007 = vmatpush2.msra.mxu0 0.0
        %3008 = vmatprep.subr.mxu0 0.0
        %3009 = vmatpush2.msra.mxu0 0.0
        %3010 = vmatprep.subr.mxu0 0.0
        %3011 = vmatpush2.msra.mxu0 0.0
        %3012 = vmatprep.subr.mxu0 0.0
        %3013 = vmatpush2.msra.mxu0 0.0
        %3014 = vmatprep.subr.mxu0 0.0
        %3015 = vmatpush2.msra.mxu0 0.0
        %3016 = vmatprep.subr.mxu0 0.0
        %3017 = vmatpush2.msra.mxu0 0.0
        %3018 = vmatprep.subr.mxu0 0.0
        %3019 = vmatpush2.msra.mxu0 0.0
        %3020 = vmatprep.subr.mxu0 0.0
        %3021 = vmatpush2.msra.mxu0 0.0
        %3022 = vmatprep.subr.mxu0 0.0
        %3023 = vmatpush2.msra.mxu0 0.0
        %3024 = vmatprep.subr.mxu0 0.0
        %3025 = vmatpush2.msra.mxu0 0.0
        %3026 = vmatprep.subr.mxu0 0.0
        %3027 = vmatpush2.msra.mxu0 0.0
        %3028 = vmatprep.subr.mxu0 0.0
        %3029 = vmatpush2.msra.mxu0 0.0
        %3030 = vmatprep.subr.mxu0 0.0
        %3031 = vmatpush2.msra.mxu0 0.0
        %3032 = vmatprep.subr.mxu0 0.0
        %3033 = vmatpush2.msra.mxu0 0.0
        %3034 = vmatprep.subr.mxu0 0.0
        %3035 = vmatpush2.msra.mxu0 0.0
        %3036 = vmatprep.subr.mxu0 0.0
        %3037 = vmatpush2.msra.mxu0 0.0
        %3038 = vmatprep.mubr.f32.mxu0 0.0
        %3039 = vmatmul.mubr.f32.gmra.mxu0 %v2970
        %v3040 = vpop.f32.mrf.mxu0
        %v3041 = vadd.f32 0.0, %v3040
        %v3042 = vpop.f32.mrf.mxu0
        %3043 = vdwg.mxu0
        %v3044 = vmul.f32 %v3041, %v2963
        %v3046 = vsel %vm1195, %v3044, 0
        %3048 = vmatprep.subr.mxu0 0.0
        %3049 = vmatpush1.msra.mxu0 0.0
        %3050 = vmatprep.subr.mxu0 0.0
        %3051 = vmatpush1.msra.mxu0 0.0
        %3052 = vmatprep.subr.mxu0 0.0
        %3053 = vmatpush1.msra.mxu0 0.0
        %3054 = vmatprep.subr.mxu0 0.0
        %3055 = vmatpush1.msra.mxu0 0.0
        %3056 = vmatprep.subr.mxu0 0.0
        %3057 = vmatpush1.msra.mxu0 0.0
        %3058 = vmatprep.subr.mxu0 0.0
        %3059 = vmatpush1.msra.mxu0 0.0
        %3060 = vmatprep.subr.mxu0 0.0
        %3061 = vmatpush1.msra.mxu0 0.0
        %3062 = vmatprep.subr.mxu0 0.0
        %3063 = vmatpush1.msra.mxu0 0.0
        %3064 = vmatprep.subr.mxu0 0.0
        %3065 = vmatpush1.msra.mxu0 0.0
        %3066 = vmatprep.subr.mxu0 0.0
        %3067 = vmatpush1.msra.mxu0 0.0
        %3068 = vmatprep.subr.mxu0 0.0
        %3069 = vmatpush1.msra.mxu0 0.0
        %3070 = vmatprep.subr.mxu0 0.0
        %3071 = vmatpush1.msra.mxu0 0.0
        %3072 = vmatprep.subr.mxu0 0.0
        %3073 = vmatpush1.msra.mxu0 0.0
        %3074 = vmatprep.subr.mxu0 0.0
        %3075 = vmatpush1.msra.mxu0 0.0
        %3076 = vmatprep.subr.mxu0 0.0
        %3077 = vmatpush1.msra.mxu0 0.0
        %3078 = vmatprep.subr.mxu0 0.0
        %3079 = vmatpush1.msra.mxu0 %v2192
        %3080 = vmatprep.subr.mxu0 0.0
        %3081 = vmatpush2.msra.mxu0 0.0
        %3082 = vmatprep.subr.mxu0 0.0
        %3083 = vmatpush2.msra.mxu0 0.0
        %3084 = vmatprep.subr.mxu0 0.0
        %3085 = vmatpush2.msra.mxu0 0.0
        %3086 = vmatprep.subr.mxu0 0.0
        %3087 = vmatpush2.msra.mxu0 0.0
        %3088 = vmatprep.subr.mxu0 0.0
        %3089 = vmatpush2.msra.mxu0 0.0
        %3090 = vmatprep.subr.mxu0 0.0
        %3091 = vmatpush2.msra.mxu0 0.0
        %3092 = vmatprep.subr.mxu0 0.0
        %3093 = vmatpush2.msra.mxu0 0.0
        %3094 = vmatprep.subr.mxu0 0.0
        %3095 = vmatpush2.msra.mxu0 0.0
        %3096 = vmatprep.subr.mxu0 0.0
        %3097 = vmatpush2.msra.mxu0 0.0
        %3098 = vmatprep.subr.mxu0 0.0
        %3099 = vmatpush2.msra.mxu0 0.0
        %3100 = vmatprep.subr.mxu0 0.0
        %3101 = vmatpush2.msra.mxu0 0.0
        %3102 = vmatprep.subr.mxu0 0.0
        %3103 = vmatpush2.msra.mxu0 0.0
        %3104 = vmatprep.subr.mxu0 0.0
        %3105 = vmatpush2.msra.mxu0 0.0
        %3106 = vmatprep.subr.mxu0 0.0
        %3107 = vmatpush2.msra.mxu0 0.0
        %3108 = vmatprep.subr.mxu0 0.0
        %3109 = vmatpush2.msra.mxu0 0.0
        %3110 = vmatprep.subr.mxu0 0.0
        %3111 = vmatpush2.msra.mxu0 0.0
        %3112 = vmatprep.mubr.f32.mxu0 0.0
        %3113 = vmatmul.mubr.f32.gmra.mxu0 %v3046
        %v3114 = vpop.f32.mrf.mxu0
        %v3115 = vadd.f32 0.0, %v3114
        %v3116 = vpop.f32.mrf.mxu0
        %3117 = vdwg.mxu0
        %v3118 = vadd.f32 %v2869, %v3115
        %3119 = vrot.lane.b32.xlu0 %v2274, 104
        %v3120 = vpop.permute.xlu0 %3119
        %3121 = vrot.lane.b32.xlu0 %v2367, 104
        %v3122 = vpop.permute.xlu0 %3121
        %3123 = vrot.lane.b32.xlu0 %v2372, 104
        %v3124 = vpop.permute.xlu0 %3123
        %v3125 = vsel %vm1195, %v3120, 0
        %v3127 = vsel %vm1195, %v3122, 0
        %v3129 = vsel %vm1195, %v3124, 0
        %3131 = vmatprep.subr.mxu0 0.0
        %3132 = vmatpush1.xpose.msra.mxu0 0.0
        %3133 = vmatprep.subr.mxu0 0.0
        %3134 = vmatpush1.xpose.msra.mxu0 0.0
        %3135 = vmatprep.subr.mxu0 0.0
        %3136 = vmatpush1.xpose.msra.mxu0 0.0
        %3137 = vmatprep.subr.mxu0 0.0
        %3138 = vmatpush1.xpose.msra.mxu0 0.0
        %3139 = vmatprep.subr.mxu0 0.0
        %3140 = vmatpush1.xpose.msra.mxu0 0.0
        %3141 = vmatprep.subr.mxu0 0.0
        %3142 = vmatpush1.xpose.msra.mxu0 0.0
        %3143 = vmatprep.subr.mxu0 0.0
        %3144 = vmatpush1.xpose.msra.mxu0 0.0
        %3145 = vmatprep.subr.mxu0 0.0
        %3146 = vmatpush1.xpose.msra.mxu0 0.0
        %3147 = vmatprep.subr.mxu0 0.0
        %3148 = vmatpush1.xpose.msra.mxu0 0.0
        %3149 = vmatprep.subr.mxu0 0.0
        %3150 = vmatpush1.xpose.msra.mxu0 0.0
        %3151 = vmatprep.subr.mxu0 0.0
        %3152 = vmatpush1.xpose.msra.mxu0 0.0
        %3153 = vmatprep.subr.mxu0 0.0
        %3154 = vmatpush1.xpose.msra.mxu0 0.0
        %3155 = vmatprep.subr.mxu0 0.0
        %3156 = vmatpush1.xpose.msra.mxu0 0.0
        %3157 = vmatprep.subr.mxu0 0.0
        %3158 = vmatpush1.xpose.msra.mxu0 0.0
        %3159 = vmatprep.subr.mxu0 0.0
        %3160 = vmatpush1.xpose.msra.mxu0 %v3129
        %3161 = vmatprep.subr.mxu0 0.0
        %3162 = vmatpush1.xpose.msra.mxu0 %v3127
        %3163 = vmatprep.subr.mxu0 0.0
        %3164 = vmatpush2.xpose.msra.mxu0 0.0
        %3165 = vmatprep.subr.mxu0 0.0
        %3166 = vmatpush2.xpose.msra.mxu0 0.0
        %3167 = vmatprep.subr.mxu0 0.0
        %3168 = vmatpush2.xpose.msra.mxu0 0.0
        %3169 = vmatprep.subr.mxu0 0.0
        %3170 = vmatpush2.xpose.msra.mxu0 0.0
        %3171 = vmatprep.subr.mxu0 0.0
        %3172 = vmatpush2.xpose.msra.mxu0 0.0
        %3173 = vmatprep.subr.mxu0 0.0
        %3174 = vmatpush2.xpose.msra.mxu0 0.0
        %3175 = vmatprep.subr.mxu0 0.0
        %3176 = vmatpush2.xpose.msra.mxu0 0.0
        %3177 = vmatprep.subr.mxu0 0.0
        %3178 = vmatpush2.xpose.msra.mxu0 0.0
        %3179 = vmatprep.subr.mxu0 0.0
        %3180 = vmatpush2.xpose.msra.mxu0 0.0
        %3181 = vmatprep.subr.mxu0 0.0
        %3182 = vmatpush2.xpose.msra.mxu0 0.0
        %3183 = vmatprep.subr.mxu0 0.0
        %3184 = vmatpush2.xpose.msra.mxu0 0.0
        %3185 = vmatprep.subr.mxu0 0.0
        %3186 = vmatpush2.xpose.msra.mxu0 0.0
        %3187 = vmatprep.subr.mxu0 0.0
        %3188 = vmatpush2.xpose.msra.mxu0 0.0
        %3189 = vmatprep.subr.mxu0 0.0
        %3190 = vmatpush2.xpose.msra.mxu0 0.0
        %3191 = vmatprep.subr.mxu0 0.0
        %3192 = vmatpush2.xpose.msra.mxu0 0.0
        %3193 = vmatprep.subr.mxu0 0.0
        %3194 = vmatpush2.xpose.msra.mxu0 0.0
        %3195 = vmatprep.mubr.f32.mxu0 0.0
        %3196 = vmatmul.mubr.f32.gmra.mxu0 %v3125
        %v3197 = vpop.f32.mrf.mxu0
        %v3198 = vadd.f32 %v2379, %v3197
        %v3199 = vpop.f32.mrf.mxu0
        %3200 = vdwg.mxu0
        %v3201 = vsel %vm2460, %v3198, -inf
        %3202 = vmax.xlane.f32.xlu0 %v3201
        %v3203 = vpop.xlane.xlu0 %3202
        %v3204 = vsub.f32 %v3198, %v3203
        %v3205 = vmul.f32 %v3204, 1.442695
        %v3206 = vpow.pop %v3205
        %v3207 = vsel %vm2460, %v3206, 0.0
        %3208 = vadd.xlane.f32.xlu0 %v3207
        %v3209 = vpop.xlane.xlu0 %3208
        %v3210 = vrcp.pop %v3209
        %3211 = vrot.lane.b32.xlu0 %v2367, 72
        %v3212 = vpop.permute.xlu0 %3211
        %3213 = vrot.lane.b32.xlu0 %v2372, 72
        %v3214 = vpop.permute.xlu0 %3213
        %v3217 = vsel %vm2460, %v3206, 0
        %v3219 = vsel %vm2479, %v3214, 0
        %3221 = vmatprep.subr.mxu0 0.0
        %3222 = vmatpush1.msra.mxu0 0.0
        %3223 = vmatprep.subr.mxu0 0.0
        %3224 = vmatpush1.msra.mxu0 0.0
        %3225 = vmatprep.subr.mxu0 0.0
        %3226 = vmatpush1.msra.mxu0 0.0
        %3227 = vmatprep.subr.mxu0 0.0
        %3228 = vmatpush1.msra.mxu0 0.0
        %3229 = vmatprep.subr.mxu0 0.0
        %3230 = vmatpush1.msra.mxu0 0.0
        %3231 = vmatprep.subr.mxu0 0.0
        %3232 = vmatpush1.msra.mxu0 0.0
        %3233 = vmatprep.subr.mxu0 0.0
        %3234 = vmatpush1.msra.mxu0 0.0
        %3235 = vmatprep.subr.mxu0 0.0
        %3236 = vmatpush1.msra.mxu0 0.0
        %3237 = vmatprep.subr.mxu0 0.0
        %3238 = vmatpush1.msra.mxu0 0.0
        %3239 = vmatprep.subr.mxu0 0.0
        %3240 = vmatpush1.msra.mxu0 0.0
        %3241 = vmatprep.subr.mxu0 0.0
        %3242 = vmatpush1.msra.mxu0 0.0
        %3243 = vmatprep.subr.mxu0 0.0
        %3244 = vmatpush1.msra.mxu0 0.0
        %3245 = vmatprep.subr.mxu0 0.0
        %3246 = vmatpush1.msra.mxu0 0.0
        %3247 = vmatprep.subr.mxu0 0.0
        %3248 = vmatpush1.msra.mxu0 0.0
        %3249 = vmatprep.subr.mxu0 0.0
        %3250 = vmatpush1.msra.mxu0 %v3219
        %3251 = vmatprep.subr.mxu0 0.0
        %3252 = vmatpush1.msra.mxu0 %v3212
        %3253 = vmatprep.subr.mxu0 0.0
        %3254 = vmatpush2.msra.mxu0 0.0
        %3255 = vmatprep.subr.mxu0 0.0
        %3256 = vmatpush2.msra.mxu0 0.0
        %3257 = vmatprep.subr.mxu0 0.0
        %3258 = vmatpush2.msra.mxu0 0.0
        %3259 = vmatprep.subr.mxu0 0.0
        %3260 = vmatpush2.msra.mxu0 0.0
        %3261 = vmatprep.subr.mxu0 0.0
        %3262 = vmatpush2.msra.mxu0 0.0
        %3263 = vmatprep.subr.mxu0 0.0
        %3264 = vmatpush2.msra.mxu0 0.0
        %3265 = vmatprep.subr.mxu0 0.0
        %3266 = vmatpush2.msra.mxu0 0.0
        %3267 = vmatprep.subr.mxu0 0.0
        %3268 = vmatpush2.msra.mxu0 0.0
        %3269 = vmatprep.subr.mxu0 0.0
        %3270 = vmatpush2.msra.mxu0 0.0
        %3271 = vmatprep.subr.mxu0 0.0
        %3272 = vmatpush2.msra.mxu0 0.0
        %3273 = vmatprep.subr.mxu0 0.0
        %3274 = vmatpush2.msra.mxu0 0.0
        %3275 = vmatprep.subr.mxu0 0.0
        %3276 = vmatpush2.msra.mxu0 0.0
        %3277 = vmatprep.subr.mxu0 0.0
        %3278 = vmatpush2.msra.mxu0 0.0
        %3279 = vmatprep.subr.mxu0 0.0
        %3280 = vmatpush2.msra.mxu0 0.0
        %3281 = vmatprep.subr.mxu0 0.0
        %3282 = vmatpush2.msra.mxu0 0.0
        %3283 = vmatprep.subr.mxu0 0.0
        %3284 = vmatpush2.msra.mxu0 0.0
        %3285 = vmatprep.mubr.f32.mxu0 0.0
        %3286 = vmatmul.mubr.f32.gmra.mxu0 %v3217
        %v3287 = vpop.f32.mrf.mxu0
        %v3288 = vadd.f32 0.0, %v3287
        %v3289 = vpop.f32.mrf.mxu0
        %3290 = vdwg.mxu0
        %v3291 = vmul.f32 %v3288, %v3210
        %v3293 = vsel %vm1195, %v3291, 0
        %3295 = vmatprep.subr.mxu0 0.0
        %3296 = vmatpush1.msra.mxu0 0.0
        %3297 = vmatprep.subr.mxu0 0.0
        %3298 = vmatpush1.msra.mxu0 0.0
        %3299 = vmatprep.subr.mxu0 0.0
        %3300 = vmatpush1.msra.mxu0 0.0
        %3301 = vmatprep.subr.mxu0 0.0
        %3302 = vmatpush1.msra.mxu0 0.0
        %3303 = vmatprep.subr.mxu0 0.0
        %3304 = vmatpush1.msra.mxu0 0.0
        %3305 = vmatprep.subr.mxu0 0.0
        %3306 = vmatpush1.msra.mxu0 0.0
        %3307 = vmatprep.subr.mxu0 0.0
        %3308 = vmatpush1.msra.mxu0 0.0
        %3309 = vmatprep.subr.mxu0 0.0
        %3310 = vmatpush1.msra.mxu0 0.0
        %3311 = vmatprep.subr.mxu0 0.0
        %3312 = vmatpush1.msra.mxu0 0.0
        %3313 = vmatprep.subr.mxu0 0.0
        %3314 = vmatpush1.msra.mxu0 0.0
        %3315 = vmatprep.subr.mxu0 0.0
        %3316 = vmatpush1.msra.mxu0 0.0
        %3317 = vmatprep.subr.mxu0 0.0
        %3318 = vmatpush1.msra.mxu0 0.0
        %3319 = vmatprep.subr.mxu0 0.0
        %3320 = vmatpush1.msra.mxu0 0.0
        %3321 = vmatprep.subr.mxu0 0.0
        %3322 = vmatpush1.msra.mxu0 0.0
        %3323 = vmatprep.subr.mxu0 0.0
        %3324 = vmatpush1.msra.mxu0 0.0
        %3325 = vmatprep.subr.mxu0 0.0
        %3326 = vmatpush1.msra.mxu0 %v2193
        %3327 = vmatprep.subr.mxu0 0.0
        %3328 = vmatpush2.msra.mxu0 0.0
        %3329 = vmatprep.subr.mxu0 0.0
        %3330 = vmatpush2.msra.mxu0 0.0
        %3331 = vmatprep.subr.mxu0 0.0
        %3332 = vmatpush2.msra.mxu0 0.0
        %3333 = vmatprep.subr.mxu0 0.0
        %3334 = vmatpush2.msra.mxu0 0.0
        %3335 = vmatprep.subr.mxu0 0.0
        %3336 = vmatpush2.msra.mxu0 0.0
        %3337 = vmatprep.subr.mxu0 0.0
        %3338 = vmatpush2.msra.mxu0 0.0
        %3339 = vmatprep.subr.mxu0 0.0
        %3340 = vmatpush2.msra.mxu0 0.0
        %3341 = vmatprep.subr.mxu0 0.0
        %3342 = vmatpush2.msra.mxu0 0.0
        %3343 = vmatprep.subr.mxu0 0.0
        %3344 = vmatpush2.msra.mxu0 0.0
        %3345 = vmatprep.subr.mxu0 0.0
        %3346 = vmatpush2.msra.mxu0 0.0
        %3347 = vmatprep.subr.mxu0 0.0
        %3348 = vmatpush2.msra.mxu0 0.0
        %3349 = vmatprep.subr.mxu0 0.0
        %3350 = vmatpush2.msra.mxu0 0.0
        %3351 = vmatprep.subr.mxu0 0.0
        %3352 = vmatpush2.msra.mxu0 0.0
        %3353 = vmatprep.subr.mxu0 0.0
        %3354 = vmatpush2.msra.mxu0 0.0
        %3355 = vmatprep.subr.mxu0 0.0
        %3356 = vmatpush2.msra.mxu0 0.0
        %3357 = vmatprep.subr.mxu0 0.0
        %3358 = vmatpush2.msra.mxu0 0.0
        %3359 = vmatprep.mubr.f32.mxu0 0.0
        %3360 = vmatmul.mubr.f32.gmra.mxu0 %v3293
        %v3361 = vpop.f32.mrf.mxu0
        %v3362 = vadd.f32 0.0, %v3361
        %v3363 = vpop.f32.mrf.mxu0
        %3364 = vdwg.mxu0
        %v3365 = vadd.f32 %v3118, %v3362
        %v3367 = vlaneseq
        %v3368 = vshrl.u32 %v3367, 7
        %v3369 = vsub.s32 0, %v3368
        %v3370 = vrot.slane %v2194, %v3369
        %v3372 = vadd.f32 %v3365, %v3370
        %v3373 = vadd.f32 %v2184, %v3372
        %v3374 = vld [vmem:[#allocation17] sm:$0x1]
        %v3375 = vld [vmem:[#allocation18] sm:$0x1]
        %v3376 = vsel %vm1117, %v3373, 0.0
        %3377 = vadd.xlane.f32.xlu0 %v3376
        %v3378 = vpop.xlane.xlu0 %3377
        %v3379 = vmul.f32 %v3378, %v2160
        %v3380 = vsub.f32 %v3373, %v3379
        %v3381 = vmul.f32 %v3380, %v3380
        %v3382 = vsel %vm1117, %v3381, 0.0
        %3383 = vadd.xlane.f32.xlu0 %v3382
        %v3384 = vpop.xlane.xlu0 %3383
        %v3385 = vmul.f32 %v3384, %v2160
        %v3386 = vadd.f32 %v3385, 1e-05
        %v3387 = vrsqrt.pop %v3386
        %v3388 = vmul.f32 %v3380, %v3387
        %v3390 = vlaneseq
        %v3391 = vshrl.u32 %v3390, 7
        %v3392 = vsub.s32 0, %v3391
        %v3393 = vrot.slane %v3374, %v3392
        %v3395 = vmul.f32 %v3388, %v3393
        %v3397 = vlaneseq
        %v3398 = vshrl.u32 %v3397, 7
        %v3399 = vsub.s32 0, %v3398
        %v3400 = vrot.slane %v3375, %v3399
        %v3402 = vadd.f32 %v3395, %v3400
        %v3403 = vld [vmem:[#allocation20] sm:$0xff]
        %v3404 = vld [vmem:[#allocation20 + $0x8] sm:$0xff]
        %v3405 = vld [vmem:[#allocation20 + $0x10] sm:$0xff]
        %v3406 = vld [vmem:[#allocation20 + $0x18] sm:$0xff]
        %v3407 = vld [vmem:[#allocation21] sm:$0x1]
        %v3409 = vlaneseq
        %v3410 = vshrl.u32 %v3409, 7
        %v3411 = vsub.s32 0, %v3410
        %v3412 = vrot.slane %v3407, %v3411
        %v3415 = vsel %vm1117, %v3402, 0
        %3417 = vmatprep.subr.mxu0 0.0
        %3418 = vmatpush1.msra.mxu0 0.0
        %3419 = vmatprep.subr.mxu0 0.0
        %3420 = vmatpush1.msra.mxu0 0.0
        %3421 = vmatprep.subr.mxu0 0.0
        %3422 = vmatpush1.msra.mxu0 0.0
        %3423 = vmatprep.subr.mxu0 0.0
        %3424 = vmatpush1.msra.mxu0 0.0
        %3425 = vmatprep.subr.mxu0 0.0
        %3426 = vmatpush1.msra.mxu0 0.0
        %3427 = vmatprep.subr.mxu0 0.0
        %3428 = vmatpush1.msra.mxu0 0.0
        %3429 = vmatprep.subr.mxu0 0.0
        %3430 = vmatpush1.msra.mxu0 0.0
        %3431 = vmatprep.subr.mxu0 0.0
        %3432 = vmatpush1.msra.mxu0 0.0
        %3433 = vmatprep.subr.mxu0 0.0
        %3434 = vmatpush1.msra.mxu0 0.0
        %3435 = vmatprep.subr.mxu0 0.0
        %3436 = vmatpush1.msra.mxu0 0.0
        %3437 = vmatprep.subr.mxu0 0.0
        %3438 = vmatpush1.msra.mxu0 0.0
        %3439 = vmatprep.subr.mxu0 0.0
        %3440 = vmatpush1.msra.mxu0 0.0
        %3441 = vmatprep.subr.mxu0 0.0
        %3442 = vmatpush1.msra.mxu0 %v3406
        %3443 = vmatprep.subr.mxu0 0.0
        %3444 = vmatpush1.msra.mxu0 %v3405
        %3445 = vmatprep.subr.mxu0 0.0
        %3446 = vmatpush1.msra.mxu0 %v3404
        %3447 = vmatprep.subr.mxu0 0.0
        %3448 = vmatpush1.msra.mxu0 %v3403
        %3449 = vmatprep.subr.mxu0 0.0
        %3450 = vmatpush2.msra.mxu0 0.0
        %3451 = vmatprep.subr.mxu0 0.0
        %3452 = vmatpush2.msra.mxu0 0.0
        %3453 = vmatprep.subr.mxu0 0.0
        %3454 = vmatpush2.msra.mxu0 0.0
        %3455 = vmatprep.subr.mxu0 0.0
        %3456 = vmatpush2.msra.mxu0 0.0
        %3457 = vmatprep.subr.mxu0 0.0
        %3458 = vmatpush2.msra.mxu0 0.0
        %3459 = vmatprep.subr.mxu0 0.0
        %3460 = vmatpush2.msra.mxu0 0.0
        %3461 = vmatprep.subr.mxu0 0.0
        %3462 = vmatpush2.msra.mxu0 0.0
        %3463 = vmatprep.subr.mxu0 0.0
        %3464 = vmatpush2.msra.mxu0 0.0
        %3465 = vmatprep.subr.mxu0 0.0
        %3466 = vmatpush2.msra.mxu0 0.0
        %3467 = vmatprep.subr.mxu0 0.0
        %3468 = vmatpush2.msra.mxu0 0.0
        %3469 = vmatprep.subr.mxu0 0.0
        %3470 = vmatpush2.msra.mxu0 0.0
        %3471 = vmatprep.subr.mxu0 0.0
        %3472 = vmatpush2.msra.mxu0 0.0
        %3473 = vmatprep.subr.mxu0 0.0
        %3474 = vmatpush2.msra.mxu0 0.0
        %3475 = vmatprep.subr.mxu0 0.0
        %3476 = vmatpush2.msra.mxu0 0.0
        %3477 = vmatprep.subr.mxu0 0.0
        %3478 = vmatpush2.msra.mxu0 0.0
        %3479 = vmatprep.subr.mxu0 0.0
        %3480 = vmatpush2.msra.mxu0 0.0
        %3481 = vmatprep.mubr.f32.mxu0 0.0
        %3482 = vmatmul.mubr.f32.gmra.mxu0 %v3415
        %v3483 = vpop.f32.mrf.mxu0
        %v3484 = vadd.f32 %v3412, %v3483
        %v3485 = vpop.f32.mrf.mxu0
        %3486 = vdwg.mxu0
        %v3487 = vmax.f32 %v3484, 0.0
        %v3488 = vld [vmem:[%s19] sm:$0xff]
        %v3489 = vld [vmem:[%s19 + $0x8] sm:$0xff]
        %v3490 = vld [vmem:[%s19 + $0x10] sm:$0xff]
        %v3491 = vld [vmem:[%s19 + $0x18] sm:$0xff]
        %v3492 = vld [vmem:[%s19 + $0x20] sm:$0xff]
        %v3493 = vld [vmem:[%s19 + $0x28] sm:$0xff]
        %v3494 = vld [vmem:[%s19 + $0x30] sm:$0xff]
        %v3495 = vld [vmem:[%s19 + $0x38] sm:$0xff]
        %v3496 = vld [vmem:[#allocation23] sm:$0x1]
        %v3498 = vlaneseq
        %v3499 = vshrl.u32 %v3498, 7
        %v3500 = vsub.s32 0, %v3499
        %v3501 = vrot.slane %v3496, %v3500
        %vm3503 = vcmask 523264
        %v3505 = vsel %vm3503, %v3487, 0
        %3507 = vmatprep.subr.mxu0 0.0
        %3508 = vmatpush1.msra.mxu0 0.0
        %3509 = vmatprep.subr.mxu0 0.0
        %3510 = vmatpush1.msra.mxu0 0.0
        %3511 = vmatprep.subr.mxu0 0.0
        %3512 = vmatpush1.msra.mxu0 0.0
        %3513 = vmatprep.subr.mxu0 0.0
        %3514 = vmatpush1.msra.mxu0 0.0
        %3515 = vmatprep.subr.mxu0 0.0
        %3516 = vmatpush1.msra.mxu0 0.0
        %3517 = vmatprep.subr.mxu0 0.0
        %3518 = vmatpush1.msra.mxu0 0.0
        %3519 = vmatprep.subr.mxu0 0.0
        %3520 = vmatpush1.msra.mxu0 0.0
        %3521 = vmatprep.subr.mxu0 0.0
        %3522 = vmatpush1.msra.mxu0 0.0
        %3523 = vmatprep.subr.mxu0 0.0
        %3524 = vmatpush1.msra.mxu0 %v3495
        %3525 = vmatprep.subr.mxu0 0.0
        %3526 = vmatpush1.msra.mxu0 %v3494
        %3527 = vmatprep.subr.mxu0 0.0
        %3528 = vmatpush1.msra.mxu0 %v3493
        %3529 = vmatprep.subr.mxu0 0.0
        %3530 = vmatpush1.msra.mxu0 %v3492
        %3531 = vmatprep.subr.mxu0 0.0
        %3532 = vmatpush1.msra.mxu0 %v3491
        %3533 = vmatprep.subr.mxu0 0.0
        %3534 = vmatpush1.msra.mxu0 %v3490
        %3535 = vmatprep.subr.mxu0 0.0
        %3536 = vmatpush1.msra.mxu0 %v3489
        %3537 = vmatprep.subr.mxu0 0.0
        %3538 = vmatpush1.msra.mxu0 %v3488
        %3539 = vmatprep.subr.mxu0 0.0
        %3540 = vmatpush2.msra.mxu0 0.0
        %3541 = vmatprep.subr.mxu0 0.0
        %3542 = vmatpush2.msra.mxu0 0.0
        %3543 = vmatprep.subr.mxu0 0.0
        %3544 = vmatpush2.msra.mxu0 0.0
        %3545 = vmatprep.subr.mxu0 0.0
        %3546 = vmatpush2.msra.mxu0 0.0
        %3547 = vmatprep.subr.mxu0 0.0
        %3548 = vmatpush2.msra.mxu0 0.0
        %3549 = vmatprep.subr.mxu0 0.0
        %3550 = vmatpush2.msra.mxu0 0.0
        %3551 = vmatprep.subr.mxu0 0.0
        %3552 = vmatpush2.msra.mxu0 0.0
        %3553 = vmatprep.subr.mxu0 0.0
        %3554 = vmatpush2.msra.mxu0 0.0
        %3555 = vmatprep.subr.mxu0 0.0
        %3556 = vmatpush2.msra.mxu0 0.0
        %3557 = vmatprep.subr.mxu0 0.0
        %3558 = vmatpush2.msra.mxu0 0.0
        %3559 = vmatprep.subr.mxu0 0.0
        %3560 = vmatpush2.msra.mxu0 0.0
        %3561 = vmatprep.subr.mxu0 0.0
        %3562 = vmatpush2.msra.mxu0 0.0
        %3563 = vmatprep.subr.mxu0 0.0
        %3564 = vmatpush2.msra.mxu0 0.0
        %3565 = vmatprep.subr.mxu0 0.0
        %3566 = vmatpush2.msra.mxu0 0.0
        %3567 = vmatprep.subr.mxu0 0.0
        %3568 = vmatpush2.msra.mxu0 0.0
        %3569 = vmatprep.subr.mxu0 0.0
        %3570 = vmatpush2.msra.mxu0 0.0
        %3571 = vmatprep.mubr.f32.mxu0 0.0
        %3572 = vmatmul.mubr.f32.gmra.mxu0 %v3505
        %v3573 = vpop.f32.mrf.mxu0
        %v3574 = vadd.f32 %v3501, %v3573
        %v3575 = vpop.f32.mrf.mxu0
        %3576 = vdwg.mxu0
        %v3577 = vadd.f32 %v3402, %v3574
        %v3578 = vld [vmem:[#allocation24] sm:$0x1]
        %v3579 = vld [vmem:[#allocation26] sm:$0x1]
        %v3580 = vsel %vm1117, %v3577, 0.0
        %3581 = vadd.xlane.f32.xlu0 %v3580
        %v3582 = vpop.xlane.xlu0 %3581
        %v3583 = vmul.f32 %v3582, %v2160
        %v3584 = vsub.f32 %v3577, %v3583
        %v3585 = vmul.f32 %v3584, %v3584
        %v3586 = vsel %vm1117, %v3585, 0.0
        %3587 = vadd.xlane.f32.xlu0 %v3586
        %v3588 = vpop.xlane.xlu0 %3587
        %v3589 = vmul.f32 %v3588, %v2160
        %v3590 = vadd.f32 %v3589, 1e-05
        %v3591 = vrsqrt.pop %v3590
        %v3592 = vmul.f32 %v3584, %v3591
        %v3594 = vlaneseq
        %v3595 = vshrl.u32 %v3594, 7
        %v3596 = vsub.s32 0, %v3595
        %v3597 = vrot.slane %v3578, %v3596
        %v3599 = vmul.f32 %v3592, %v3597
        %v3601 = vlaneseq
        %v3602 = vshrl.u32 %v3601, 7
        %v3603 = vsub.s32 0, %v3602
        %v3604 = vrot.slane %v3579, %v3603
        %v3606 = vadd.f32 %v3599, %v3604
        %s3607 = scalar_lea.vmem %s5, 32
        %v3608 = vld [vmem:[%s3607] sm:$0xff]
        %v3609 = vld [vmem:[%s3607 + $0x8] sm:$0xff]
        %v3610 = vld [vmem:[%s3607 + $0x10] sm:$0xff]
        %v3611 = vld [vmem:[%s3607 + $0x18] sm:$0xff]
        %s3612 = scalar_lea.vmem %s6, 1
        %v3613 = vld [vmem:[%s3612] sm:$0x1]
        %s3614 = scalar_lea.vmem %s7, 32
        %v3615 = vld [vmem:[%s3614] sm:$0xff]
        %v3616 = vld [vmem:[%s3614 + $0x8] sm:$0xff]
        %v3617 = vld [vmem:[%s3614 + $0x10] sm:$0xff]
        %v3618 = vld [vmem:[%s3614 + $0x18] sm:$0xff]
        %s3619 = scalar_lea.vmem %s8, 1
        %v3620 = vld [vmem:[%s3619] sm:$0x1]
        %v3622 = vlaneseq
        %v3623 = vshrl.u32 %v3622, 7
        %v3624 = vsub.s32 0, %v3623
        %v3625 = vrot.slane %v3613, %v3624
        %v3628 = vsel %vm1117, %v3606, 0
        %3630 = vmatprep.subr.mxu0 0.0
        %3631 = vmatpush1.msra.mxu0 0.0
        %3632 = vmatprep.subr.mxu0 0.0
        %3633 = vmatpush1.msra.mxu0 0.0
        %3634 = vmatprep.subr.mxu0 0.0
        %3635 = vmatpush1.msra.mxu0 0.0
        %3636 = vmatprep.subr.mxu0 0.0
        %3637 = vmatpush1.msra.mxu0 0.0
        %3638 = vmatprep.subr.mxu0 0.0
        %3639 = vmatpush1.msra.mxu0 0.0
        %3640 = vmatprep.subr.mxu0 0.0
        %3641 = vmatpush1.msra.mxu0 0.0
        %3642 = vmatprep.subr.mxu0 0.0
        %3643 = vmatpush1.msra.mxu0 0.0
        %3644 = vmatprep.subr.mxu0 0.0
        %3645 = vmatpush1.msra.mxu0 0.0
        %3646 = vmatprep.subr.mxu0 0.0
        %3647 = vmatpush1.msra.mxu0 0.0
        %3648 = vmatprep.subr.mxu0 0.0
        %3649 = vmatpush1.msra.mxu0 0.0
        %3650 = vmatprep.subr.mxu0 0.0
        %3651 = vmatpush1.msra.mxu0 0.0
        %3652 = vmatprep.subr.mxu0 0.0
        %3653 = vmatpush1.msra.mxu0 0.0
        %3654 = vmatprep.subr.mxu0 0.0
        %3655 = vmatpush1.msra.mxu0 %v3611
        %3656 = vmatprep.subr.mxu0 0.0
        %3657 = vmatpush1.msra.mxu0 %v3610
        %3658 = vmatprep.subr.mxu0 0.0
        %3659 = vmatpush1.msra.mxu0 %v3609
        %3660 = vmatprep.subr.mxu0 0.0
        %3661 = vmatpush1.msra.mxu0 %v3608
        %3662 = vmatprep.subr.mxu0 0.0
        %3663 = vmatpush2.msra.mxu0 0.0
        %3664 = vmatprep.subr.mxu0 0.0
        %3665 = vmatpush2.msra.mxu0 0.0
        %3666 = vmatprep.subr.mxu0 0.0
        %3667 = vmatpush2.msra.mxu0 0.0
        %3668 = vmatprep.subr.mxu0 0.0
        %3669 = vmatpush2.msra.mxu0 0.0
        %3670 = vmatprep.subr.mxu0 0.0
        %3671 = vmatpush2.msra.mxu0 0.0
        %3672 = vmatprep.subr.mxu0 0.0
        %3673 = vmatpush2.msra.mxu0 0.0
        %3674 = vmatprep.subr.mxu0 0.0
        %3675 = vmatpush2.msra.mxu0 0.0
        %3676 = vmatprep.subr.mxu0 0.0
        %3677 = vmatpush2.msra.mxu0 0.0
        %3678 = vmatprep.subr.mxu0 0.0
        %3679 = vmatpush2.msra.mxu0 0.0
        %3680 = vmatprep.subr.mxu0 0.0
        %3681 = vmatpush2.msra.mxu0 0.0
        %3682 = vmatprep.subr.mxu0 0.0
        %3683 = vmatpush2.msra.mxu0 0.0
        %3684 = vmatprep.subr.mxu0 0.0
        %3685 = vmatpush2.msra.mxu0 0.0
        %3686 = vmatprep.subr.mxu0 0.0
        %3687 = vmatpush2.msra.mxu0 0.0
        %3688 = vmatprep.subr.mxu0 0.0
        %3689 = vmatpush2.msra.mxu0 0.0
        %3690 = vmatprep.subr.mxu0 0.0
        %3691 = vmatpush2.msra.mxu0 0.0
        %3692 = vmatprep.subr.mxu0 0.0
        %3693 = vmatpush2.msra.mxu0 0.0
        %3694 = vmatprep.mubr.f32.mxu0 0.0
        %3695 = vmatmul.mubr.f32.gmra.mxu0 %v3628
        %v3696 = vpop.f32.mrf.mxu0
        %v3697 = vadd.f32 %v3625, %v3696
        %v3698 = vpop.f32.mrf.mxu0
        %3699 = vdwg.mxu0
        %v3700 = vmul.f32 %v3697, 0.35355338
        %3702 = vrot.lane.b32.xlu0 %v3697, 96
        %v3703 = vpop.permute.xlu0 %3702
        %v3705 = vsel %vm1195, %v3700, 0
        %v3707 = vsel %vm1195, %v3703, 0
        %3709 = vmatprep.subr.mxu0 0.0
        %3710 = vmatpush1.xpose.msra.mxu0 0.0
        %3711 = vmatprep.subr.mxu0 0.0
        %3712 = vmatpush1.xpose.msra.mxu0 0.0
        %3713 = vmatprep.subr.mxu0 0.0
        %3714 = vmatpush1.xpose.msra.mxu0 0.0
        %3715 = vmatprep.subr.mxu0 0.0
        %3716 = vmatpush1.xpose.msra.mxu0 0.0
        %3717 = vmatprep.subr.mxu0 0.0
        %3718 = vmatpush1.xpose.msra.mxu0 0.0
        %3719 = vmatprep.subr.mxu0 0.0
        %3720 = vmatpush1.xpose.msra.mxu0 0.0
        %3721 = vmatprep.subr.mxu0 0.0
        %3722 = vmatpush1.xpose.msra.mxu0 0.0
        %3723 = vmatprep.subr.mxu0 0.0
        %3724 = vmatpush1.xpose.msra.mxu0 0.0
        %3725 = vmatprep.subr.mxu0 0.0
        %3726 = vmatpush1.xpose.msra.mxu0 0.0
        %3727 = vmatprep.subr.mxu0 0.0
        %3728 = vmatpush1.xpose.msra.mxu0 0.0
        %3729 = vmatprep.subr.mxu0 0.0
        %3730 = vmatpush1.xpose.msra.mxu0 0.0
        %3731 = vmatprep.subr.mxu0 0.0
        %3732 = vmatpush1.xpose.msra.mxu0 0.0
        %3733 = vmatprep.subr.mxu0 0.0
        %3734 = vmatpush1.xpose.msra.mxu0 0.0
        %3735 = vmatprep.subr.mxu0 0.0
        %3736 = vmatpush1.xpose.msra.mxu0 0.0
        %3737 = vmatprep.subr.mxu0 0.0
        %3738 = vmatpush1.xpose.msra.mxu0 0.0
        %3739 = vmatprep.subr.mxu0 0.0
        %3740 = vmatpush1.xpose.msra.mxu0 %v3707
        %3741 = vmatprep.subr.mxu0 0.0
        %3742 = vmatpush2.xpose.msra.mxu0 0.0
        %3743 = vmatprep.subr.mxu0 0.0
        %3744 = vmatpush2.xpose.msra.mxu0 0.0
        %3745 = vmatprep.subr.mxu0 0.0
        %3746 = vmatpush2.xpose.msra.mxu0 0.0
        %3747 = vmatprep.subr.mxu0 0.0
        %3748 = vmatpush2.xpose.msra.mxu0 0.0
        %3749 = vmatprep.subr.mxu0 0.0
        %3750 = vmatpush2.xpose.msra.mxu0 0.0
        %3751 = vmatprep.subr.mxu0 0.0
        %3752 = vmatpush2.xpose.msra.mxu0 0.0
        %3753 = vmatprep.subr.mxu0 0.0
        %3754 = vmatpush2.xpose.msra.mxu0 0.0
        %3755 = vmatprep.subr.mxu0 0.0
        %3756 = vmatpush2.xpose.msra.mxu0 0.0
        %3757 = vmatprep.subr.mxu0 0.0
        %3758 = vmatpush2.xpose.msra.mxu0 0.0
        %3759 = vmatprep.subr.mxu0 0.0
        %3760 = vmatpush2.xpose.msra.mxu0 0.0
        %3761 = vmatprep.subr.mxu0 0.0
        %3762 = vmatpush2.xpose.msra.mxu0 0.0
        %3763 = vmatprep.subr.mxu0 0.0
        %3764 = vmatpush2.xpose.msra.mxu0 0.0
        %3765 = vmatprep.subr.mxu0 0.0
        %3766 = vmatpush2.xpose.msra.mxu0 0.0
        %3767 = vmatprep.subr.mxu0 0.0
        %3768 = vmatpush2.xpose.msra.mxu0 0.0
        %3769 = vmatprep.subr.mxu0 0.0
        %3770 = vmatpush2.xpose.msra.mxu0 0.0
        %3771 = vmatprep.subr.mxu0 0.0
        %3772 = vmatpush2.xpose.msra.mxu0 0.0
        %3773 = vmatprep.mubr.f32.mxu0 0.0
        %3774 = vmatmul.mubr.f32.gmra.mxu0 %v3705
        %v3775 = vpop.f32.mrf.mxu0
        %v3776 = vadd.f32 0.0, %v3775
        %v3777 = vpop.f32.mrf.mxu0
        %3778 = vdwg.mxu0
        %v3779 = vsel %vm1195, %v3776, -inf
        %3780 = vmax.xlane.f32.xlu0 %v3779
        %v3781 = vpop.xlane.xlu0 %3780
        %v3782 = vsub.f32 %v3776, %v3781
        %v3783 = vmul.f32 %v3782, 1.442695
        %v3784 = vpow.pop %v3783
        %v3785 = vsel %vm1195, %v3784, 0.0
        %3786 = vadd.xlane.f32.xlu0 %v3785
        %v3787 = vpop.xlane.xlu0 %3786
        %v3788 = vrcp.pop %v3787
        %3789 = vrot.lane.b32.xlu0 %v3697, 64
        %v3790 = vpop.permute.xlu0 %3789
        %v3793 = vsel %vm1195, %v3784, 0
        %3795 = vmatprep.subr.mxu0 0.0
        %3796 = vmatpush1.msra.mxu0 0.0
        %3797 = vmatprep.subr.mxu0 0.0
        %3798 = vmatpush1.msra.mxu0 0.0
        %3799 = vmatprep.subr.mxu0 0.0
        %3800 = vmatpush1.msra.mxu0 0.0
        %3801 = vmatprep.subr.mxu0 0.0
        %3802 = vmatpush1.msra.mxu0 0.0
        %3803 = vmatprep.subr.mxu0 0.0
        %3804 = vmatpush1.msra.mxu0 0.0
        %3805 = vmatprep.subr.mxu0 0.0
        %3806 = vmatpush1.msra.mxu0 0.0
        %3807 = vmatprep.subr.mxu0 0.0
        %3808 = vmatpush1.msra.mxu0 0.0
        %3809 = vmatprep.subr.mxu0 0.0
        %3810 = vmatpush1.msra.mxu0 0.0
        %3811 = vmatprep.subr.mxu0 0.0
        %3812 = vmatpush1.msra.mxu0 0.0
        %3813 = vmatprep.subr.mxu0 0.0
        %3814 = vmatpush1.msra.mxu0 0.0
        %3815 = vmatprep.subr.mxu0 0.0
        %3816 = vmatpush1.msra.mxu0 0.0
        %3817 = vmatprep.subr.mxu0 0.0
        %3818 = vmatpush1.msra.mxu0 0.0
        %3819 = vmatprep.subr.mxu0 0.0
        %3820 = vmatpush1.msra.mxu0 0.0
        %3821 = vmatprep.subr.mxu0 0.0
        %3822 = vmatpush1.msra.mxu0 0.0
        %3823 = vmatprep.subr.mxu0 0.0
        %3824 = vmatpush1.msra.mxu0 0.0
        %3825 = vmatprep.subr.mxu0 0.0
        %3826 = vmatpush1.msra.mxu0 %v3790
        %3827 = vmatprep.subr.mxu0 0.0
        %3828 = vmatpush2.msra.mxu0 0.0
        %3829 = vmatprep.subr.mxu0 0.0
        %3830 = vmatpush2.msra.mxu0 0.0
        %3831 = vmatprep.subr.mxu0 0.0
        %3832 = vmatpush2.msra.mxu0 0.0
        %3833 = vmatprep.subr.mxu0 0.0
        %3834 = vmatpush2.msra.mxu0 0.0
        %3835 = vmatprep.subr.mxu0 0.0
        %3836 = vmatpush2.msra.mxu0 0.0
        %3837 = vmatprep.subr.mxu0 0.0
        %3838 = vmatpush2.msra.mxu0 0.0
        %3839 = vmatprep.subr.mxu0 0.0
        %3840 = vmatpush2.msra.mxu0 0.0
        %3841 = vmatprep.subr.mxu0 0.0
        %3842 = vmatpush2.msra.mxu0 0.0
        %3843 = vmatprep.subr.mxu0 0.0
        %3844 = vmatpush2.msra.mxu0 0.0
        %3845 = vmatprep.subr.mxu0 0.0
        %3846 = vmatpush2.msra.mxu0 0.0
        %3847 = vmatprep.subr.mxu0 0.0
        %3848 = vmatpush2.msra.mxu0 0.0
        %3849 = vmatprep.subr.mxu0 0.0
        %3850 = vmatpush2.msra.mxu0 0.0
        %3851 = vmatprep.subr.mxu0 0.0
        %3852 = vmatpush2.msra.mxu0 0.0
        %3853 = vmatprep.subr.mxu0 0.0
        %3854 = vmatpush2.msra.mxu0 0.0
        %3855 = vmatprep.subr.mxu0 0.0
        %3856 = vmatpush2.msra.mxu0 0.0
        %3857 = vmatprep.subr.mxu0 0.0
        %3858 = vmatpush2.msra.mxu0 0.0
        %3859 = vmatprep.mubr.f32.mxu0 0.0
        %3860 = vmatmul.mubr.f32.gmra.mxu0 %v3793
        %v3861 = vpop.f32.mrf.mxu0
        %v3862 = vadd.f32 0.0, %v3861
        %v3863 = vpop.f32.mrf.mxu0
        %3864 = vdwg.mxu0
        %v3865 = vmul.f32 %v3862, %v3788
        %3866 = vrot.lane.b32.xlu0 %v3700, 120
        %v3867 = vpop.permute.xlu0 %3866
        %3868 = vrot.lane.b32.xlu0 %v3697, 88
        %v3869 = vpop.permute.xlu0 %3868
        %v3870 = vsel %vm1195, %v3867, 0
        %v3872 = vsel %vm1195, %v3869, 0
        %3874 = vmatprep.subr.mxu0 0.0
        %3875 = vmatpush1.xpose.msra.mxu0 0.0
        %3876 = vmatprep.subr.mxu0 0.0
        %3877 = vmatpush1.xpose.msra.mxu0 0.0
        %3878 = vmatprep.subr.mxu0 0.0
        %3879 = vmatpush1.xpose.msra.mxu0 0.0
        %3880 = vmatprep.subr.mxu0 0.0
        %3881 = vmatpush1.xpose.msra.mxu0 0.0
        %3882 = vmatprep.subr.mxu0 0.0
        %3883 = vmatpush1.xpose.msra.mxu0 0.0
        %3884 = vmatprep.subr.mxu0 0.0
        %3885 = vmatpush1.xpose.msra.mxu0 0.0
        %3886 = vmatprep.subr.mxu0 0.0
        %3887 = vmatpush1.xpose.msra.mxu0 0.0
        %3888 = vmatprep.subr.mxu0 0.0
        %3889 = vmatpush1.xpose.msra.mxu0 0.0
        %3890 = vmatprep.subr.mxu0 0.0
        %3891 = vmatpush1.xpose.msra.mxu0 0.0
        %3892 = vmatprep.subr.mxu0 0.0
        %3893 = vmatpush1.xpose.msra.mxu0 0.0
        %3894 = vmatprep.subr.mxu0 0.0
        %3895 = vmatpush1.xpose.msra.mxu0 0.0
        %3896 = vmatprep.subr.mxu0 0.0
        %3897 = vmatpush1.xpose.msra.mxu0 0.0
        %3898 = vmatprep.subr.mxu0 0.0
        %3899 = vmatpush1.xpose.msra.mxu0 0.0
        %3900 = vmatprep.subr.mxu0 0.0
        %3901 = vmatpush1.xpose.msra.mxu0 0.0
        %3902 = vmatprep.subr.mxu0 0.0
        %3903 = vmatpush1.xpose.msra.mxu0 0.0
        %3904 = vmatprep.subr.mxu0 0.0
        %3905 = vmatpush1.xpose.msra.mxu0 %v3872
        %3906 = vmatprep.subr.mxu0 0.0
        %3907 = vmatpush2.xpose.msra.mxu0 0.0
        %3908 = vmatprep.subr.mxu0 0.0
        %3909 = vmatpush2.xpose.msra.mxu0 0.0
        %3910 = vmatprep.subr.mxu0 0.0
        %3911 = vmatpush2.xpose.msra.mxu0 0.0
        %3912 = vmatprep.subr.mxu0 0.0
        %3913 = vmatpush2.xpose.msra.mxu0 0.0
        %3914 = vmatprep.subr.mxu0 0.0
        %3915 = vmatpush2.xpose.msra.mxu0 0.0
        %3916 = vmatprep.subr.mxu0 0.0
        %3917 = vmatpush2.xpose.msra.mxu0 0.0
        %3918 = vmatprep.subr.mxu0 0.0
        %3919 = vmatpush2.xpose.msra.mxu0 0.0
        %3920 = vmatprep.subr.mxu0 0.0
        %3921 = vmatpush2.xpose.msra.mxu0 0.0
        %3922 = vmatprep.subr.mxu0 0.0
        %3923 = vmatpush2.xpose.msra.mxu0 0.0
        %3924 = vmatprep.subr.mxu0 0.0
        %3925 = vmatpush2.xpose.msra.mxu0 0.0
        %3926 = vmatprep.subr.mxu0 0.0
        %3927 = vmatpush2.xpose.msra.mxu0 0.0
        %3928 = vmatprep.subr.mxu0 0.0
        %3929 = vmatpush2.xpose.msra.mxu0 0.0
        %3930 = vmatprep.subr.mxu0 0.0
        %3931 = vmatpush2.xpose.msra.mxu0 0.0
        %3932 = vmatprep.subr.mxu0 0.0
        %3933 = vmatpush2.xpose.msra.mxu0 0.0
        %3934 = vmatprep.subr.mxu0 0.0
        %3935 = vmatpush2.xpose.msra.mxu0 0.0
        %3936 = vmatprep.subr.mxu0 0.0
        %3937 = vmatpush2.xpose.msra.mxu0 0.0
        %3938 = vmatprep.mubr.f32.mxu0 0.0
        %3939 = vmatmul.mubr.f32.gmra.mxu0 %v3870
        %v3940 = vpop.f32.mrf.mxu0
        %v3941 = vadd.f32 0.0, %v3940
        %v3942 = vpop.f32.mrf.mxu0
        %3943 = vdwg.mxu0
        %v3944 = vsel %vm1195, %v3941, -inf
        %3945 = vmax.xlane.f32.xlu0 %v3944
        %v3946 = vpop.xlane.xlu0 %3945
        %v3947 = vsub.f32 %v3941, %v3946
        %v3948 = vmul.f32 %v3947, 1.442695
        %v3949 = vpow.pop %v3948
        %v3950 = vsel %vm1195, %v3949, 0.0
        %3951 = vadd.xlane.f32.xlu0 %v3950
        %v3952 = vpop.xlane.xlu0 %3951
        %v3953 = vrcp.pop %v3952
        %3954 = vrot.lane.b32.xlu0 %v3697, 56
        %v3955 = vpop.permute.xlu0 %3954
        %v3958 = vsel %vm1195, %v3949, 0
        %3960 = vmatprep.subr.mxu0 0.0
        %3961 = vmatpush1.msra.mxu0 0.0
        %3962 = vmatprep.subr.mxu0 0.0
        %3963 = vmatpush1.msra.mxu0 0.0
        %3964 = vmatprep.subr.mxu0 0.0
        %3965 = vmatpush1.msra.mxu0 0.0
        %3966 = vmatprep.subr.mxu0 0.0
        %3967 = vmatpush1.msra.mxu0 0.0
        %3968 = vmatprep.subr.mxu0 0.0
        %3969 = vmatpush1.msra.mxu0 0.0
        %3970 = vmatprep.subr.mxu0 0.0
        %3971 = vmatpush1.msra.mxu0 0.0
        %3972 = vmatprep.subr.mxu0 0.0
        %3973 = vmatpush1.msra.mxu0 0.0
        %3974 = vmatprep.subr.mxu0 0.0
        %3975 = vmatpush1.msra.mxu0 0.0
        %3976 = vmatprep.subr.mxu0 0.0
        %3977 = vmatpush1.msra.mxu0 0.0
        %3978 = vmatprep.subr.mxu0 0.0
        %3979 = vmatpush1.msra.mxu0 0.0
        %3980 = vmatprep.subr.mxu0 0.0
        %3981 = vmatpush1.msra.mxu0 0.0
        %3982 = vmatprep.subr.mxu0 0.0
        %3983 = vmatpush1.msra.mxu0 0.0
        %3984 = vmatprep.subr.mxu0 0.0
        %3985 = vmatpush1.msra.mxu0 0.0
        %3986 = vmatprep.subr.mxu0 0.0
        %3987 = vmatpush1.msra.mxu0 0.0
        %3988 = vmatprep.subr.mxu0 0.0
        %3989 = vmatpush1.msra.mxu0 0.0
        %3990 = vmatprep.subr.mxu0 0.0
        %3991 = vmatpush1.msra.mxu0 %v3955
        %3992 = vmatprep.subr.mxu0 0.0
        %3993 = vmatpush2.msra.mxu0 0.0
        %3994 = vmatprep.subr.mxu0 0.0
        %3995 = vmatpush2.msra.mxu0 0.0
        %3996 = vmatprep.subr.mxu0 0.0
        %3997 = vmatpush2.msra.mxu0 0.0
        %3998 = vmatprep.subr.mxu0 0.0
        %3999 = vmatpush2.msra.mxu0 0.0
        %4000 = vmatprep.subr.mxu0 0.0
        %4001 = vmatpush2.msra.mxu0 0.0
        %4002 = vmatprep.subr.mxu0 0.0
        %4003 = vmatpush2.msra.mxu0 0.0
        %4004 = vmatprep.subr.mxu0 0.0
        %4005 = vmatpush2.msra.mxu0 0.0
        %4006 = vmatprep.subr.mxu0 0.0
        %4007 = vmatpush2.msra.mxu0 0.0
        %4008 = vmatprep.subr.mxu0 0.0
        %4009 = vmatpush2.msra.mxu0 0.0
        %4010 = vmatprep.subr.mxu0 0.0
        %4011 = vmatpush2.msra.mxu0 0.0
        %4012 = vmatprep.subr.mxu0 0.0
        %4013 = vmatpush2.msra.mxu0 0.0
        %4014 = vmatprep.subr.mxu0 0.0
        %4015 = vmatpush2.msra.mxu0 0.0
        %4016 = vmatprep.subr.mxu0 0.0
        %4017 = vmatpush2.msra.mxu0 0.0
        %4018 = vmatprep.subr.mxu0 0.0
        %4019 = vmatpush2.msra.mxu0 0.0
        %4020 = vmatprep.subr.mxu0 0.0
        %4021 = vmatpush2.msra.mxu0 0.0
        %4022 = vmatprep.subr.mxu0 0.0
        %4023 = vmatpush2.msra.mxu0 0.0
        %4024 = vmatprep.mubr.f32.mxu0 0.0
        %4025 = vmatmul.mubr.f32.gmra.mxu0 %v3958
        %v4026 = vpop.f32.mrf.mxu0
        %v4027 = vadd.f32 0.0, %v4026
        %v4028 = vpop.f32.mrf.mxu0
        %4029 = vdwg.mxu0
        %v4030 = vmul.f32 %v4027, %v3953
        %v4032 = vsel %vm1195, %v4030, 0
        %4034 = vmatprep.subr.mxu0 0.0
        %4035 = vmatpush1.msra.mxu0 0.0
        %4036 = vmatprep.subr.mxu0 0.0
        %4037 = vmatpush1.msra.mxu0 0.0
        %4038 = vmatprep.subr.mxu0 0.0
        %4039 = vmatpush1.msra.mxu0 0.0
        %4040 = vmatprep.subr.mxu0 0.0
        %4041 = vmatpush1.msra.mxu0 0.0
        %4042 = vmatprep.subr.mxu0 0.0
        %4043 = vmatpush1.msra.mxu0 0.0
        %4044 = vmatprep.subr.mxu0 0.0
        %4045 = vmatpush1.msra.mxu0 0.0
        %4046 = vmatprep.subr.mxu0 0.0
        %4047 = vmatpush1.msra.mxu0 0.0
        %4048 = vmatprep.subr.mxu0 0.0
        %4049 = vmatpush1.msra.mxu0 0.0
        %4050 = vmatprep.subr.mxu0 0.0
        %4051 = vmatpush1.msra.mxu0 0.0
        %4052 = vmatprep.subr.mxu0 0.0
        %4053 = vmatpush1.msra.mxu0 0.0
        %4054 = vmatprep.subr.mxu0 0.0
        %4055 = vmatpush1.msra.mxu0 0.0
        %4056 = vmatprep.subr.mxu0 0.0
        %4057 = vmatpush1.msra.mxu0 0.0
        %4058 = vmatprep.subr.mxu0 0.0
        %4059 = vmatpush1.msra.mxu0 0.0
        %4060 = vmatprep.subr.mxu0 0.0
        %4061 = vmatpush1.msra.mxu0 0.0
        %4062 = vmatprep.subr.mxu0 0.0
        %4063 = vmatpush1.msra.mxu0 0.0
        %4064 = vmatprep.subr.mxu0 0.0
        %4065 = vmatpush1.msra.mxu0 %v3616
        %4066 = vmatprep.subr.mxu0 0.0
        %4067 = vmatpush2.msra.mxu0 0.0
        %4068 = vmatprep.subr.mxu0 0.0
        %4069 = vmatpush2.msra.mxu0 0.0
        %4070 = vmatprep.subr.mxu0 0.0
        %4071 = vmatpush2.msra.mxu0 0.0
        %4072 = vmatprep.subr.mxu0 0.0
        %4073 = vmatpush2.msra.mxu0 0.0
        %4074 = vmatprep.subr.mxu0 0.0
        %4075 = vmatpush2.msra.mxu0 0.0
        %4076 = vmatprep.subr.mxu0 0.0
        %4077 = vmatpush2.msra.mxu0 0.0
        %4078 = vmatprep.subr.mxu0 0.0
        %4079 = vmatpush2.msra.mxu0 0.0
        %4080 = vmatprep.subr.mxu0 0.0
        %4081 = vmatpush2.msra.mxu0 0.0
        %4082 = vmatprep.subr.mxu0 0.0
        %4083 = vmatpush2.msra.mxu0 0.0
        %4084 = vmatprep.subr.mxu0 0.0
        %4085 = vmatpush2.msra.mxu0 0.0
        %4086 = vmatprep.subr.mxu0 0.0
        %4087 = vmatpush2.msra.mxu0 0.0
        %4088 = vmatprep.subr.mxu0 0.0
        %4089 = vmatpush2.msra.mxu0 0.0
        %4090 = vmatprep.subr.mxu0 0.0
        %4091 = vmatpush2.msra.mxu0 0.0
        %4092 = vmatprep.subr.mxu0 0.0
        %4093 = vmatpush2.msra.mxu0 0.0
        %4094 = vmatprep.subr.mxu0 0.0
        %4095 = vmatpush2.msra.mxu0 0.0
        %4096 = vmatprep.subr.mxu0 0.0
        %4097 = vmatpush2.msra.mxu0 0.0
        %4098 = vmatprep.mubr.f32.mxu0 0.0
        %4099 = vmatmul.mubr.f32.gmra.mxu0 %v4032
        %v4100 = vpop.f32.mrf.mxu0
        %v4101 = vadd.f32 0.0, %v4100
        %v4102 = vpop.f32.mrf.mxu0
        %4103 = vdwg.mxu0
        %v4105 = vsel %vm1195, %v3865, 0
        %4107 = vmatprep.subr.mxu0 0.0
        %4108 = vmatpush1.msra.mxu0 0.0
        %4109 = vmatprep.subr.mxu0 0.0
        %4110 = vmatpush1.msra.mxu0 0.0
        %4111 = vmatprep.subr.mxu0 0.0
        %4112 = vmatpush1.msra.mxu0 0.0
        %4113 = vmatprep.subr.mxu0 0.0
        %4114 = vmatpush1.msra.mxu0 0.0
        %4115 = vmatprep.subr.mxu0 0.0
        %4116 = vmatpush1.msra.mxu0 0.0
        %4117 = vmatprep.subr.mxu0 0.0
        %4118 = vmatpush1.msra.mxu0 0.0
        %4119 = vmatprep.subr.mxu0 0.0
        %4120 = vmatpush1.msra.mxu0 0.0
        %4121 = vmatprep.subr.mxu0 0.0
        %4122 = vmatpush1.msra.mxu0 0.0
        %4123 = vmatprep.subr.mxu0 0.0
        %4124 = vmatpush1.msra.mxu0 0.0
        %4125 = vmatprep.subr.mxu0 0.0
        %4126 = vmatpush1.msra.mxu0 0.0
        %4127 = vmatprep.subr.mxu0 0.0
        %4128 = vmatpush1.msra.mxu0 0.0
        %4129 = vmatprep.subr.mxu0 0.0
        %4130 = vmatpush1.msra.mxu0 0.0
        %4131 = vmatprep.subr.mxu0 0.0
        %4132 = vmatpush1.msra.mxu0 0.0
        %4133 = vmatprep.subr.mxu0 0.0
        %4134 = vmatpush1.msra.mxu0 0.0
        %4135 = vmatprep.subr.mxu0 0.0
        %4136 = vmatpush1.msra.mxu0 0.0
        %4137 = vmatprep.subr.mxu0 0.0
        %4138 = vmatpush1.msra.mxu0 %v3615
        %4139 = vmatprep.subr.mxu0 0.0
        %4140 = vmatpush2.msra.mxu0 0.0
        %4141 = vmatprep.subr.mxu0 0.0
        %4142 = vmatpush2.msra.mxu0 0.0
        %4143 = vmatprep.subr.mxu0 0.0
        %4144 = vmatpush2.msra.mxu0 0.0
        %4145 = vmatprep.subr.mxu0 0.0
        %4146 = vmatpush2.msra.mxu0 0.0
        %4147 = vmatprep.subr.mxu0 0.0
        %4148 = vmatpush2.msra.mxu0 0.0
        %4149 = vmatprep.subr.mxu0 0.0
        %4150 = vmatpush2.msra.mxu0 0.0
        %4151 = vmatprep.subr.mxu0 0.0
        %4152 = vmatpush2.msra.mxu0 0.0
        %4153 = vmatprep.subr.mxu0 0.0
        %4154 = vmatpush2.msra.mxu0 0.0
        %4155 = vmatprep.subr.mxu0 0.0
        %4156 = vmatpush2.msra.mxu0 0.0
        %4157 = vmatprep.subr.mxu0 0.0
        %4158 = vmatpush2.msra.mxu0 0.0
        %4159 = vmatprep.subr.mxu0 0.0
        %4160 = vmatpush2.msra.mxu0 0.0
        %4161 = vmatprep.subr.mxu0 0.0
        %4162 = vmatpush2.msra.mxu0 0.0
        %4163 = vmatprep.subr.mxu0 0.0
        %4164 = vmatpush2.msra.mxu0 0.0
        %4165 = vmatprep.subr.mxu0 0.0
        %4166 = vmatpush2.msra.mxu0 0.0
        %4167 = vmatprep.subr.mxu0 0.0
        %4168 = vmatpush2.msra.mxu0 0.0
        %4169 = vmatprep.subr.mxu0 0.0
        %4170 = vmatpush2.msra.mxu0 0.0
        %4171 = vmatprep.mubr.f32.mxu0 0.0
        %4172 = vmatmul.mubr.f32.gmra.mxu0 %v4105
        %v4173 = vpop.f32.mrf.mxu0
        %v4174 = vadd.f32 %v4101, %v4173
        %v4175 = vpop.f32.mrf.mxu0
        %4176 = vdwg.mxu0
        %4177 = vrot.lane.b32.xlu0 %v3700, 112
        %v4178 = vpop.permute.xlu0 %4177
        %4179 = vrot.lane.b32.xlu0 %v3697, 80
        %v4180 = vpop.permute.xlu0 %4179
        %v4181 = vsel %vm1195, %v4178, 0
        %v4183 = vsel %vm1195, %v4180, 0
        %4185 = vmatprep.subr.mxu0 0.0
        %4186 = vmatpush1.xpose.msra.mxu0 0.0
        %4187 = vmatprep.subr.mxu0 0.0
        %4188 = vmatpush1.xpose.msra.mxu0 0.0
        %4189 = vmatprep.subr.mxu0 0.0
        %4190 = vmatpush1.xpose.msra.mxu0 0.0
        %4191 = vmatprep.subr.mxu0 0.0
        %4192 = vmatpush1.xpose.msra.mxu0 0.0
        %4193 = vmatprep.subr.mxu0 0.0
        %4194 = vmatpush1.xpose.msra.mxu0 0.0
        %4195 = vmatprep.subr.mxu0 0.0
        %4196 = vmatpush1.xpose.msra.mxu0 0.0
        %4197 = vmatprep.subr.mxu0 0.0
        %4198 = vmatpush1.xpose.msra.mxu0 0.0
        %4199 = vmatprep.subr.mxu0 0.0
        %4200 = vmatpush1.xpose.msra.mxu0 0.0
        %4201 = vmatprep.subr.mxu0 0.0
        %4202 = vmatpush1.xpose.msra.mxu0 0.0
        %4203 = vmatprep.subr.mxu0 0.0
        %4204 = vmatpush1.xpose.msra.mxu0 0.0
        %4205 = vmatprep.subr.mxu0 0.0
        %4206 = vmatpush1.xpose.msra.mxu0 0.0
        %4207 = vmatprep.subr.mxu0 0.0
        %4208 = vmatpush1.xpose.msra.mxu0 0.0
        %4209 = vmatprep.subr.mxu0 0.0
        %4210 = vmatpush1.xpose.msra.mxu0 0.0
        %4211 = vmatprep.subr.mxu0 0.0
        %4212 = vmatpush1.xpose.msra.mxu0 0.0
        %4213 = vmatprep.subr.mxu0 0.0
        %4214 = vmatpush1.xpose.msra.mxu0 0.0
        %4215 = vmatprep.subr.mxu0 0.0
        %4216 = vmatpush1.xpose.msra.mxu0 %v4183
        %4217 = vmatprep.subr.mxu0 0.0
        %4218 = vmatpush2.xpose.msra.mxu0 0.0
        %4219 = vmatprep.subr.mxu0 0.0
        %4220 = vmatpush2.xpose.msra.mxu0 0.0
        %4221 = vmatprep.subr.mxu0 0.0
        %4222 = vmatpush2.xpose.msra.mxu0 0.0
        %4223 = vmatprep.subr.mxu0 0.0
        %4224 = vmatpush2.xpose.msra.mxu0 0.0
        %4225 = vmatprep.subr.mxu0 0.0
        %4226 = vmatpush2.xpose.msra.mxu0 0.0
        %4227 = vmatprep.subr.mxu0 0.0
        %4228 = vmatpush2.xpose.msra.mxu0 0.0
        %4229 = vmatprep.subr.mxu0 0.0
        %4230 = vmatpush2.xpose.msra.mxu0 0.0
        %4231 = vmatprep.subr.mxu0 0.0
        %4232 = vmatpush2.xpose.msra.mxu0 0.0
        %4233 = vmatprep.subr.mxu0 0.0
        %4234 = vmatpush2.xpose.msra.mxu0 0.0
        %4235 = vmatprep.subr.mxu0 0.0
        %4236 = vmatpush2.xpose.msra.mxu0 0.0
        %4237 = vmatprep.subr.mxu0 0.0
        %4238 = vmatpush2.xpose.msra.mxu0 0.0
        %4239 = vmatprep.subr.mxu0 0.0
        %4240 = vmatpush2.xpose.msra.mxu0 0.0
        %4241 = vmatprep.subr.mxu0 0.0
        %4242 = vmatpush2.xpose.msra.mxu0 0.0
        %4243 = vmatprep.subr.mxu0 0.0
        %4244 = vmatpush2.xpose.msra.mxu0 0.0
        %4245 = vmatprep.subr.mxu0 0.0
        %4246 = vmatpush2.xpose.msra.mxu0 0.0
        %4247 = vmatprep.subr.mxu0 0.0
        %4248 = vmatpush2.xpose.msra.mxu0 0.0
        %4249 = vmatprep.mubr.f32.mxu0 0.0
        %4250 = vmatmul.mubr.f32.gmra.mxu0 %v4181
        %v4251 = vpop.f32.mrf.mxu0
        %v4252 = vadd.f32 0.0, %v4251
        %v4253 = vpop.f32.mrf.mxu0
        %4254 = vdwg.mxu0
        %v4255 = vsel %vm1195, %v4252, -inf
        %4256 = vmax.xlane.f32.xlu0 %v4255
        %v4257 = vpop.xlane.xlu0 %4256
        %v4258 = vsub.f32 %v4252, %v4257
        %v4259 = vmul.f32 %v4258, 1.442695
        %v4260 = vpow.pop %v4259
        %v4261 = vsel %vm1195, %v4260, 0.0
        %4262 = vadd.xlane.f32.xlu0 %v4261
        %v4263 = vpop.xlane.xlu0 %4262
        %v4264 = vrcp.pop %v4263
        %4265 = vrot.lane.b32.xlu0 %v3697, 48
        %v4266 = vpop.permute.xlu0 %4265
        %v4269 = vsel %vm1195, %v4260, 0
        %4271 = vmatprep.subr.mxu0 0.0
        %4272 = vmatpush1.msra.mxu0 0.0
        %4273 = vmatprep.subr.mxu0 0.0
        %4274 = vmatpush1.msra.mxu0 0.0
        %4275 = vmatprep.subr.mxu0 0.0
        %4276 = vmatpush1.msra.mxu0 0.0
        %4277 = vmatprep.subr.mxu0 0.0
        %4278 = vmatpush1.msra.mxu0 0.0
        %4279 = vmatprep.subr.mxu0 0.0
        %4280 = vmatpush1.msra.mxu0 0.0
        %4281 = vmatprep.subr.mxu0 0.0
        %4282 = vmatpush1.msra.mxu0 0.0
        %4283 = vmatprep.subr.mxu0 0.0
        %4284 = vmatpush1.msra.mxu0 0.0
        %4285 = vmatprep.subr.mxu0 0.0
        %4286 = vmatpush1.msra.mxu0 0.0
        %4287 = vmatprep.subr.mxu0 0.0
        %4288 = vmatpush1.msra.mxu0 0.0
        %4289 = vmatprep.subr.mxu0 0.0
        %4290 = vmatpush1.msra.mxu0 0.0
        %4291 = vmatprep.subr.mxu0 0.0
        %4292 = vmatpush1.msra.mxu0 0.0
        %4293 = vmatprep.subr.mxu0 0.0
        %4294 = vmatpush1.msra.mxu0 0.0
        %4295 = vmatprep.subr.mxu0 0.0
        %4296 = vmatpush1.msra.mxu0 0.0
        %4297 = vmatprep.subr.mxu0 0.0
        %4298 = vmatpush1.msra.mxu0 0.0
        %4299 = vmatprep.subr.mxu0 0.0
        %4300 = vmatpush1.msra.mxu0 0.0
        %4301 = vmatprep.subr.mxu0 0.0
        %4302 = vmatpush1.msra.mxu0 %v4266
        %4303 = vmatprep.subr.mxu0 0.0
        %4304 = vmatpush2.msra.mxu0 0.0
        %4305 = vmatprep.subr.mxu0 0.0
        %4306 = vmatpush2.msra.mxu0 0.0
        %4307 = vmatprep.subr.mxu0 0.0
        %4308 = vmatpush2.msra.mxu0 0.0
        %4309 = vmatprep.subr.mxu0 0.0
        %4310 = vmatpush2.msra.mxu0 0.0
        %4311 = vmatprep.subr.mxu0 0.0
        %4312 = vmatpush2.msra.mxu0 0.0
        %4313 = vmatprep.subr.mxu0 0.0
        %4314 = vmatpush2.msra.mxu0 0.0
        %4315 = vmatprep.subr.mxu0 0.0
        %4316 = vmatpush2.msra.mxu0 0.0
        %4317 = vmatprep.subr.mxu0 0.0
        %4318 = vmatpush2.msra.mxu0 0.0
        %4319 = vmatprep.subr.mxu0 0.0
        %4320 = vmatpush2.msra.mxu0 0.0
        %4321 = vmatprep.subr.mxu0 0.0
        %4322 = vmatpush2.msra.mxu0 0.0
        %4323 = vmatprep.subr.mxu0 0.0
        %4324 = vmatpush2.msra.mxu0 0.0
        %4325 = vmatprep.subr.mxu0 0.0
        %4326 = vmatpush2.msra.mxu0 0.0
        %4327 = vmatprep.subr.mxu0 0.0
        %4328 = vmatpush2.msra.mxu0 0.0
        %4329 = vmatprep.subr.mxu0 0.0
        %4330 = vmatpush2.msra.mxu0 0.0
        %4331 = vmatprep.subr.mxu0 0.0
        %4332 = vmatpush2.msra.mxu0 0.0
        %4333 = vmatprep.subr.mxu0 0.0
        %4334 = vmatpush2.msra.mxu0 0.0
        %4335 = vmatprep.mubr.f32.mxu0 0.0
        %4336 = vmatmul.mubr.f32.gmra.mxu0 %v4269
        %v4337 = vpop.f32.mrf.mxu0
        %v4338 = vadd.f32 0.0, %v4337
        %v4339 = vpop.f32.mrf.mxu0
        %4340 = vdwg.mxu0
        %v4341 = vmul.f32 %v4338, %v4264
        %v4343 = vsel %vm1195, %v4341, 0
        %4345 = vmatprep.subr.mxu0 0.0
        %4346 = vmatpush1.msra.mxu0 0.0
        %4347 = vmatprep.subr.mxu0 0.0
        %4348 = vmatpush1.msra.mxu0 0.0
        %4349 = vmatprep.subr.mxu0 0.0
        %4350 = vmatpush1.msra.mxu0 0.0
        %4351 = vmatprep.subr.mxu0 0.0
        %4352 = vmatpush1.msra.mxu0 0.0
        %4353 = vmatprep.subr.mxu0 0.0
        %4354 = vmatpush1.msra.mxu0 0.0
        %4355 = vmatprep.subr.mxu0 0.0
        %4356 = vmatpush1.msra.mxu0 0.0
        %4357 = vmatprep.subr.mxu0 0.0
        %4358 = vmatpush1.msra.mxu0 0.0
        %4359 = vmatprep.subr.mxu0 0.0
        %4360 = vmatpush1.msra.mxu0 0.0
        %4361 = vmatprep.subr.mxu0 0.0
        %4362 = vmatpush1.msra.mxu0 0.0
        %4363 = vmatprep.subr.mxu0 0.0
        %4364 = vmatpush1.msra.mxu0 0.0
        %4365 = vmatprep.subr.mxu0 0.0
        %4366 = vmatpush1.msra.mxu0 0.0
        %4367 = vmatprep.subr.mxu0 0.0
        %4368 = vmatpush1.msra.mxu0 0.0
        %4369 = vmatprep.subr.mxu0 0.0
        %4370 = vmatpush1.msra.mxu0 0.0
        %4371 = vmatprep.subr.mxu0 0.0
        %4372 = vmatpush1.msra.mxu0 0.0
        %4373 = vmatprep.subr.mxu0 0.0
        %4374 = vmatpush1.msra.mxu0 0.0
        %4375 = vmatprep.subr.mxu0 0.0
        %4376 = vmatpush1.msra.mxu0 %v3617
        %4377 = vmatprep.subr.mxu0 0.0
        %4378 = vmatpush2.msra.mxu0 0.0
        %4379 = vmatprep.subr.mxu0 0.0
        %4380 = vmatpush2.msra.mxu0 0.0
        %4381 = vmatprep.subr.mxu0 0.0
        %4382 = vmatpush2.msra.mxu0 0.0
        %4383 = vmatprep.subr.mxu0 0.0
        %4384 = vmatpush2.msra.mxu0 0.0
        %4385 = vmatprep.subr.mxu0 0.0
        %4386 = vmatpush2.msra.mxu0 0.0
        %4387 = vmatprep.subr.mxu0 0.0
        %4388 = vmatpush2.msra.mxu0 0.0
        %4389 = vmatprep.subr.mxu0 0.0
        %4390 = vmatpush2.msra.mxu0 0.0
        %4391 = vmatprep.subr.mxu0 0.0
        %4392 = vmatpush2.msra.mxu0 0.0
        %4393 = vmatprep.subr.mxu0 0.0
        %4394 = vmatpush2.msra.mxu0 0.0
        %4395 = vmatprep.subr.mxu0 0.0
        %4396 = vmatpush2.msra.mxu0 0.0
        %4397 = vmatprep.subr.mxu0 0.0
        %4398 = vmatpush2.msra.mxu0 0.0
        %4399 = vmatprep.subr.mxu0 0.0
        %4400 = vmatpush2.msra.mxu0 0.0
        %4401 = vmatprep.subr.mxu0 0.0
        %4402 = vmatpush2.msra.mxu0 0.0
        %4403 = vmatprep.subr.mxu0 0.0
        %4404 = vmatpush2.msra.mxu0 0.0
        %4405 = vmatprep.subr.mxu0 0.0
        %4406 = vmatpush2.msra.mxu0 0.0
        %4407 = vmatprep.subr.mxu0 0.0
        %4408 = vmatpush2.msra.mxu0 0.0
        %4409 = vmatprep.mubr.f32.mxu0 0.0
        %4410 = vmatmul.mubr.f32.gmra.mxu0 %v4343
        %v4411 = vpop.f32.mrf.mxu0
        %v4412 = vadd.f32 0.0, %v4411
        %v4413 = vpop.f32.mrf.mxu0
        %4414 = vdwg.mxu0
        %v4415 = vadd.f32 %v4174, %v4412
        %4416 = vrot.lane.b32.xlu0 %v3700, 104
        %v4417 = vpop.permute.xlu0 %4416
        %4418 = vrot.lane.b32.xlu0 %v3697, 72
        %v4419 = vpop.permute.xlu0 %4418
        %v4420 = vsel %vm1195, %v4417, 0
        %v4422 = vsel %vm1195, %v4419, 0
        %4424 = vmatprep.subr.mxu0 0.0
        %4425 = vmatpush1.xpose.msra.mxu0 0.0
        %4426 = vmatprep.subr.mxu0 0.0
        %4427 = vmatpush1.xpose.msra.mxu0 0.0
        %4428 = vmatprep.subr.mxu0 0.0
        %4429 = vmatpush1.xpose.msra.mxu0 0.0
        %4430 = vmatprep.subr.mxu0 0.0
        %4431 = vmatpush1.xpose.msra.mxu0 0.0
        %4432 = vmatprep.subr.mxu0 0.0
        %4433 = vmatpush1.xpose.msra.mxu0 0.0
        %4434 = vmatprep.subr.mxu0 0.0
        %4435 = vmatpush1.xpose.msra.mxu0 0.0
        %4436 = vmatprep.subr.mxu0 0.0
        %4437 = vmatpush1.xpose.msra.mxu0 0.0
        %4438 = vmatprep.subr.mxu0 0.0
        %4439 = vmatpush1.xpose.msra.mxu0 0.0
        %4440 = vmatprep.subr.mxu0 0.0
        %4441 = vmatpush1.xpose.msra.mxu0 0.0
        %4442 = vmatprep.subr.mxu0 0.0
        %4443 = vmatpush1.xpose.msra.mxu0 0.0
        %4444 = vmatprep.subr.mxu0 0.0
        %4445 = vmatpush1.xpose.msra.mxu0 0.0
        %4446 = vmatprep.subr.mxu0 0.0
        %4447 = vmatpush1.xpose.msra.mxu0 0.0
        %4448 = vmatprep.subr.mxu0 0.0
        %4449 = vmatpush1.xpose.msra.mxu0 0.0
        %4450 = vmatprep.subr.mxu0 0.0
        %4451 = vmatpush1.xpose.msra.mxu0 0.0
        %4452 = vmatprep.subr.mxu0 0.0
        %4453 = vmatpush1.xpose.msra.mxu0 0.0
        %4454 = vmatprep.subr.mxu0 0.0
        %4455 = vmatpush1.xpose.msra.mxu0 %v4422
        %4456 = vmatprep.subr.mxu0 0.0
        %4457 = vmatpush2.xpose.msra.mxu0 0.0
        %4458 = vmatprep.subr.mxu0 0.0
        %4459 = vmatpush2.xpose.msra.mxu0 0.0
        %4460 = vmatprep.subr.mxu0 0.0
        %4461 = vmatpush2.xpose.msra.mxu0 0.0
        %4462 = vmatprep.subr.mxu0 0.0
        %4463 = vmatpush2.xpose.msra.mxu0 0.0
        %4464 = vmatprep.subr.mxu0 0.0
        %4465 = vmatpush2.xpose.msra.mxu0 0.0
        %4466 = vmatprep.subr.mxu0 0.0
        %4467 = vmatpush2.xpose.msra.mxu0 0.0
        %4468 = vmatprep.subr.mxu0 0.0
        %4469 = vmatpush2.xpose.msra.mxu0 0.0
        %4470 = vmatprep.subr.mxu0 0.0
        %4471 = vmatpush2.xpose.msra.mxu0 0.0
        %4472 = vmatprep.subr.mxu0 0.0
        %4473 = vmatpush2.xpose.msra.mxu0 0.0
        %4474 = vmatprep.subr.mxu0 0.0
        %4475 = vmatpush2.xpose.msra.mxu0 0.0
        %4476 = vmatprep.subr.mxu0 0.0
        %4477 = vmatpush2.xpose.msra.mxu0 0.0
        %4478 = vmatprep.subr.mxu0 0.0
        %4479 = vmatpush2.xpose.msra.mxu0 0.0
        %4480 = vmatprep.subr.mxu0 0.0
        %4481 = vmatpush2.xpose.msra.mxu0 0.0
        %4482 = vmatprep.subr.mxu0 0.0
        %4483 = vmatpush2.xpose.msra.mxu0 0.0
        %4484 = vmatprep.subr.mxu0 0.0
        %4485 = vmatpush2.xpose.msra.mxu0 0.0
        %4486 = vmatprep.subr.mxu0 0.0
        %4487 = vmatpush2.xpose.msra.mxu0 0.0
        %4488 = vmatprep.mubr.f32.mxu0 0.0
        %4489 = vmatmul.mubr.f32.gmra.mxu0 %v4420
        %v4490 = vpop.f32.mrf.mxu0
        %v4491 = vadd.f32 0.0, %v4490
        %v4492 = vpop.f32.mrf.mxu0
        %4493 = vdwg.mxu0
        %v4494 = vsel %vm1195, %v4491, -inf
        %4495 = vmax.xlane.f32.xlu0 %v4494
        %v4496 = vpop.xlane.xlu0 %4495
        %v4497 = vsub.f32 %v4491, %v4496
        %v4498 = vmul.f32 %v4497, 1.442695
        %v4499 = vpow.pop %v4498
        %v4500 = vsel %vm1195, %v4499, 0.0
        %4501 = vadd.xlane.f32.xlu0 %v4500
        %v4502 = vpop.xlane.xlu0 %4501
        %v4503 = vrcp.pop %v4502
        %4504 = vrot.lane.b32.xlu0 %v3697, 40
        %v4505 = vpop.permute.xlu0 %4504
        %v4508 = vsel %vm1195, %v4499, 0
        %4510 = vmatprep.subr.mxu0 0.0
        %4511 = vmatpush1.msra.mxu0 0.0
        %4512 = vmatprep.subr.mxu0 0.0
        %4513 = vmatpush1.msra.mxu0 0.0
        %4514 = vmatprep.subr.mxu0 0.0
        %4515 = vmatpush1.msra.mxu0 0.0
        %4516 = vmatprep.subr.mxu0 0.0
        %4517 = vmatpush1.msra.mxu0 0.0
        %4518 = vmatprep.subr.mxu0 0.0
        %4519 = vmatpush1.msra.mxu0 0.0
        %4520 = vmatprep.subr.mxu0 0.0
        %4521 = vmatpush1.msra.mxu0 0.0
        %4522 = vmatprep.subr.mxu0 0.0
        %4523 = vmatpush1.msra.mxu0 0.0
        %4524 = vmatprep.subr.mxu0 0.0
        %4525 = vmatpush1.msra.mxu0 0.0
        %4526 = vmatprep.subr.mxu0 0.0
        %4527 = vmatpush1.msra.mxu0 0.0
        %4528 = vmatprep.subr.mxu0 0.0
        %4529 = vmatpush1.msra.mxu0 0.0
        %4530 = vmatprep.subr.mxu0 0.0
        %4531 = vmatpush1.msra.mxu0 0.0
        %4532 = vmatprep.subr.mxu0 0.0
        %4533 = vmatpush1.msra.mxu0 0.0
        %4534 = vmatprep.subr.mxu0 0.0
        %4535 = vmatpush1.msra.mxu0 0.0
        %4536 = vmatprep.subr.mxu0 0.0
        %4537 = vmatpush1.msra.mxu0 0.0
        %4538 = vmatprep.subr.mxu0 0.0
        %4539 = vmatpush1.msra.mxu0 0.0
        %4540 = vmatprep.subr.mxu0 0.0
        %4541 = vmatpush1.msra.mxu0 %v4505
        %4542 = vmatprep.subr.mxu0 0.0
        %4543 = vmatpush2.msra.mxu0 0.0
        %4544 = vmatprep.subr.mxu0 0.0
        %4545 = vmatpush2.msra.mxu0 0.0
        %4546 = vmatprep.subr.mxu0 0.0
        %4547 = vmatpush2.msra.mxu0 0.0
        %4548 = vmatprep.subr.mxu0 0.0
        %4549 = vmatpush2.msra.mxu0 0.0
        %4550 = vmatprep.subr.mxu0 0.0
        %4551 = vmatpush2.msra.mxu0 0.0
        %4552 = vmatprep.subr.mxu0 0.0
        %4553 = vmatpush2.msra.mxu0 0.0
        %4554 = vmatprep.subr.mxu0 0.0
        %4555 = vmatpush2.msra.mxu0 0.0
        %4556 = vmatprep.subr.mxu0 0.0
        %4557 = vmatpush2.msra.mxu0 0.0
        %4558 = vmatprep.subr.mxu0 0.0
        %4559 = vmatpush2.msra.mxu0 0.0
        %4560 = vmatprep.subr.mxu0 0.0
        %4561 = vmatpush2.msra.mxu0 0.0
        %4562 = vmatprep.subr.mxu0 0.0
        %4563 = vmatpush2.msra.mxu0 0.0
        %4564 = vmatprep.subr.mxu0 0.0
        %4565 = vmatpush2.msra.mxu0 0.0
        %4566 = vmatprep.subr.mxu0 0.0
        %4567 = vmatpush2.msra.mxu0 0.0
        %4568 = vmatprep.subr.mxu0 0.0
        %4569 = vmatpush2.msra.mxu0 0.0
        %4570 = vmatprep.subr.mxu0 0.0
        %4571 = vmatpush2.msra.mxu0 0.0
        %4572 = vmatprep.subr.mxu0 0.0
        %4573 = vmatpush2.msra.mxu0 0.0
        %4574 = vmatprep.mubr.f32.mxu0 0.0
        %4575 = vmatmul.mubr.f32.gmra.mxu0 %v4508
        %v4576 = vpop.f32.mrf.mxu0
        %v4577 = vadd.f32 0.0, %v4576
        %v4578 = vpop.f32.mrf.mxu0
        %4579 = vdwg.mxu0
        %v4580 = vmul.f32 %v4577, %v4503
        %v4582 = vsel %vm1195, %v4580, 0
        %4584 = vmatprep.subr.mxu0 0.0
        %4585 = vmatpush1.msra.mxu0 0.0
        %4586 = vmatprep.subr.mxu0 0.0
        %4587 = vmatpush1.msra.mxu0 0.0
        %4588 = vmatprep.subr.mxu0 0.0
        %4589 = vmatpush1.msra.mxu0 0.0
        %4590 = vmatprep.subr.mxu0 0.0
        %4591 = vmatpush1.msra.mxu0 0.0
        %4592 = vmatprep.subr.mxu0 0.0
        %4593 = vmatpush1.msra.mxu0 0.0
        %4594 = vmatprep.subr.mxu0 0.0
        %4595 = vmatpush1.msra.mxu0 0.0
        %4596 = vmatprep.subr.mxu0 0.0
        %4597 = vmatpush1.msra.mxu0 0.0
        %4598 = vmatprep.subr.mxu0 0.0
        %4599 = vmatpush1.msra.mxu0 0.0
        %4600 = vmatprep.subr.mxu0 0.0
        %4601 = vmatpush1.msra.mxu0 0.0
        %4602 = vmatprep.subr.mxu0 0.0
        %4603 = vmatpush1.msra.mxu0 0.0
        %4604 = vmatprep.subr.mxu0 0.0
        %4605 = vmatpush1.msra.mxu0 0.0
        %4606 = vmatprep.subr.mxu0 0.0
        %4607 = vmatpush1.msra.mxu0 0.0
        %4608 = vmatprep.subr.mxu0 0.0
        %4609 = vmatpush1.msra.mxu0 0.0
        %4610 = vmatprep.subr.mxu0 0.0
        %4611 = vmatpush1.msra.mxu0 0.0
        %4612 = vmatprep.subr.mxu0 0.0
        %4613 = vmatpush1.msra.mxu0 0.0
        %4614 = vmatprep.subr.mxu0 0.0
        %4615 = vmatpush1.msra.mxu0 %v3618
        %4616 = vmatprep.subr.mxu0 0.0
        %4617 = vmatpush2.msra.mxu0 0.0
        %4618 = vmatprep.subr.mxu0 0.0
        %4619 = vmatpush2.msra.mxu0 0.0
        %4620 = vmatprep.subr.mxu0 0.0
        %4621 = vmatpush2.msra.mxu0 0.0
        %4622 = vmatprep.subr.mxu0 0.0
        %4623 = vmatpush2.msra.mxu0 0.0
        %4624 = vmatprep.subr.mxu0 0.0
        %4625 = vmatpush2.msra.mxu0 0.0
        %4626 = vmatprep.subr.mxu0 0.0
        %4627 = vmatpush2.msra.mxu0 0.0
        %4628 = vmatprep.subr.mxu0 0.0
        %4629 = vmatpush2.msra.mxu0 0.0
        %4630 = vmatprep.subr.mxu0 0.0
        %4631 = vmatpush2.msra.mxu0 0.0
        %4632 = vmatprep.subr.mxu0 0.0
        %4633 = vmatpush2.msra.mxu0 0.0
        %4634 = vmatprep.subr.mxu0 0.0
        %4635 = vmatpush2.msra.mxu0 0.0
        %4636 = vmatprep.subr.mxu0 0.0
        %4637 = vmatpush2.msra.mxu0 0.0
        %4638 = vmatprep.subr.mxu0 0.0
        %4639 = vmatpush2.msra.mxu0 0.0
        %4640 = vmatprep.subr.mxu0 0.0
        %4641 = vmatpush2.msra.mxu0 0.0
        %4642 = vmatprep.subr.mxu0 0.0
        %4643 = vmatpush2.msra.mxu0 0.0
        %4644 = vmatprep.subr.mxu0 0.0
        %4645 = vmatpush2.msra.mxu0 0.0
        %4646 = vmatprep.subr.mxu0 0.0
        %4647 = vmatpush2.msra.mxu0 0.0
        %4648 = vmatprep.mubr.f32.mxu0 0.0
        %4649 = vmatmul.mubr.f32.gmra.mxu0 %v4582
        %v4650 = vpop.f32.mrf.mxu0
        %v4651 = vadd.f32 0.0, %v4650
        %v4652 = vpop.f32.mrf.mxu0
        %4653 = vdwg.mxu0
        %v4654 = vadd.f32 %v4415, %v4651
        %v4656 = vlaneseq
        %v4657 = vshrl.u32 %v4656, 7
        %v4658 = vsub.s32 0, %v4657
        %v4659 = vrot.slane %v3620, %v4658
        %v4661 = vadd.f32 %v4654, %v4659
        %v4662 = vadd.f32 %v3606, %v4661
        %s4663 = scalar_lea.vmem [#allocation9], 1
        %v4664 = vld [vmem:[%s4663] sm:$0x1]
        %s4665 = scalar_lea.vmem [#allocation11], 1
        %v4666 = vld [vmem:[%s4665] sm:$0x1]
        %v4667 = vsel %vm1117, %v4662, 0.0
        %4668 = vadd.xlane.f32.xlu0 %v4667
        %v4669 = vpop.xlane.xlu0 %4668
        %v4670 = vmul.f32 %v4669, %v2160
        %v4671 = vsub.f32 %v4662, %v4670
        %v4672 = vmul.f32 %v4671, %v4671
        %v4673 = vsel %vm1117, %v4672, 0.0
        %4674 = vadd.xlane.f32.xlu0 %v4673
        %v4675 = vpop.xlane.xlu0 %4674
        %v4676 = vmul.f32 %v4675, %v2160
        %v4677 = vadd.f32 %v4676, 1e-05
        %v4678 = vrsqrt.pop %v4677
        %v4679 = vmul.f32 %v4671, %v4678
        %v4681 = vlaneseq
        %v4682 = vshrl.u32 %v4681, 7
        %v4683 = vsub.s32 0, %v4682
        %v4684 = vrot.slane %v4664, %v4683
        %v4686 = vmul.f32 %v4679, %v4684
        %v4688 = vlaneseq
        %v4689 = vshrl.u32 %v4688, 7
        %v4690 = vsub.s32 0, %v4689
        %v4691 = vrot.slane %v4666, %v4690
        %v4693 = vadd.f32 %v4686, %v4691
        %s4694 = scalar_lea.vmem %s11, 32
        %v4695 = vld [vmem:[%s4694] sm:$0xff]
        %v4696 = vld [vmem:[%s4694 + $0x8] sm:$0xff]
        %v4697 = vld [vmem:[%s4694 + $0x10] sm:$0xff]
        %v4698 = vld [vmem:[%s4694 + $0x18] sm:$0xff]
        %s4699 = scalar_lea.vmem [#allocation12], 1
        %v4700 = vld [vmem:[%s4699] sm:$0x1]
        %s4701 = scalar_lea.vmem [#allocation14], 32
        %v4702 = vld [vmem:[%s4701] sm:$0xff]
        %v4703 = vld [vmem:[%s4701 + $0x8] sm:$0xff]
        %v4704 = vld [vmem:[%s4701 + $0x10] sm:$0xff]
        %v4705 = vld [vmem:[%s4701 + $0x18] sm:$0xff]
        %s4706 = scalar_lea.vmem [#allocation15], 1
        %v4707 = vld [vmem:[%s4706] sm:$0x1]
        %v4709 = vlaneseq
        %v4710 = vshrl.u32 %v4709, 7
        %v4711 = vsub.s32 0, %v4710
        %v4712 = vrot.slane %v4700, %v4711
        %v4715 = vsel %vm1117, %v4693, 0
        %4717 = vmatprep.subr.mxu0 0.0
        %4718 = vmatpush1.msra.mxu0 0.0
        %4719 = vmatprep.subr.mxu0 0.0
        %4720 = vmatpush1.msra.mxu0 0.0
        %4721 = vmatprep.subr.mxu0 0.0
        %4722 = vmatpush1.msra.mxu0 0.0
        %4723 = vmatprep.subr.mxu0 0.0
        %4724 = vmatpush1.msra.mxu0 0.0
        %4725 = vmatprep.subr.mxu0 0.0
        %4726 = vmatpush1.msra.mxu0 0.0
        %4727 = vmatprep.subr.mxu0 0.0
        %4728 = vmatpush1.msra.mxu0 0.0
        %4729 = vmatprep.subr.mxu0 0.0
        %4730 = vmatpush1.msra.mxu0 0.0
        %4731 = vmatprep.subr.mxu0 0.0
        %4732 = vmatpush1.msra.mxu0 0.0
        %4733 = vmatprep.subr.mxu0 0.0
        %4734 = vmatpush1.msra.mxu0 0.0
        %4735 = vmatprep.subr.mxu0 0.0
        %4736 = vmatpush1.msra.mxu0 0.0
        %4737 = vmatprep.subr.mxu0 0.0
        %4738 = vmatpush1.msra.mxu0 0.0
        %4739 = vmatprep.subr.mxu0 0.0
        %4740 = vmatpush1.msra.mxu0 0.0
        %4741 = vmatprep.subr.mxu0 0.0
        %4742 = vmatpush1.msra.mxu0 %v4698
        %4743 = vmatprep.subr.mxu0 0.0
        %4744 = vmatpush1.msra.mxu0 %v4697
        %4745 = vmatprep.subr.mxu0 0.0
        %4746 = vmatpush1.msra.mxu0 %v4696
        %4747 = vmatprep.subr.mxu0 0.0
        %4748 = vmatpush1.msra.mxu0 %v4695
        %4749 = vmatprep.subr.mxu0 0.0
        %4750 = vmatpush2.msra.mxu0 0.0
        %4751 = vmatprep.subr.mxu0 0.0
        %4752 = vmatpush2.msra.mxu0 0.0
        %4753 = vmatprep.subr.mxu0 0.0
        %4754 = vmatpush2.msra.mxu0 0.0
        %4755 = vmatprep.subr.mxu0 0.0
        %4756 = vmatpush2.msra.mxu0 0.0
        %4757 = vmatprep.subr.mxu0 0.0
        %4758 = vmatpush2.msra.mxu0 0.0
        %4759 = vmatprep.subr.mxu0 0.0
        %4760 = vmatpush2.msra.mxu0 0.0
        %4761 = vmatprep.subr.mxu0 0.0
        %4762 = vmatpush2.msra.mxu0 0.0
        %4763 = vmatprep.subr.mxu0 0.0
        %4764 = vmatpush2.msra.mxu0 0.0
        %4765 = vmatprep.subr.mxu0 0.0
        %4766 = vmatpush2.msra.mxu0 0.0
        %4767 = vmatprep.subr.mxu0 0.0
        %4768 = vmatpush2.msra.mxu0 0.0
        %4769 = vmatprep.subr.mxu0 0.0
        %4770 = vmatpush2.msra.mxu0 0.0
        %4771 = vmatprep.subr.mxu0 0.0
        %4772 = vmatpush2.msra.mxu0 0.0
        %4773 = vmatprep.subr.mxu0 0.0
        %4774 = vmatpush2.msra.mxu0 0.0
        %4775 = vmatprep.subr.mxu0 0.0
        %4776 = vmatpush2.msra.mxu0 0.0
        %4777 = vmatprep.subr.mxu0 0.0
        %4778 = vmatpush2.msra.mxu0 0.0
        %4779 = vmatprep.subr.mxu0 0.0
        %4780 = vmatpush2.msra.mxu0 0.0
        %4781 = vmatprep.mubr.f32.mxu0 0.0
        %4782 = vmatmul.mubr.f32.gmra.mxu0 %v4715
        %v4783 = vpop.f32.mrf.mxu0
        %v4784 = vadd.f32 %v4712, %v4783
        %v4785 = vpop.f32.mrf.mxu0
        %4786 = vdwg.mxu0
        %v4787 = vmul.f32 %v4784, 0.35355338
        %4792 = vrot.lane.b32.xlu0 %v4695, 96
        %v4793 = vpop.permute.xlu0 %4792
        %4794 = vrot.lane.b32.xlu0 %v4696, 96
        %v4795 = vpop.permute.xlu0 %4794
        %4796 = vrot.lane.b32.xlu0 %v4697, 96
        %v4797 = vpop.permute.xlu0 %4796
        %4798 = vrot.lane.b32.xlu0 %v4698, 96
        %v4799 = vpop.permute.xlu0 %4798
        %4804 = vrot.lane.b32.xlu0 %v4712, 96
        %v4805 = vpop.permute.xlu0 %4804
        %4807 = vmatprep.subr.mxu0 0.0
        %4808 = vmatpush1.msra.mxu0 0.0
        %4809 = vmatprep.subr.mxu0 0.0
        %4810 = vmatpush1.msra.mxu0 0.0
        %4811 = vmatprep.subr.mxu0 0.0
        %4812 = vmatpush1.msra.mxu0 0.0
        %4813 = vmatprep.subr.mxu0 0.0
        %4814 = vmatpush1.msra.mxu0 0.0
        %4815 = vmatprep.subr.mxu0 0.0
        %4816 = vmatpush1.msra.mxu0 0.0
        %4817 = vmatprep.subr.mxu0 0.0
        %4818 = vmatpush1.msra.mxu0 0.0
        %4819 = vmatprep.subr.mxu0 0.0
        %4820 = vmatpush1.msra.mxu0 0.0
        %4821 = vmatprep.subr.mxu0 0.0
        %4822 = vmatpush1.msra.mxu0 0.0
        %4823 = vmatprep.subr.mxu0 0.0
        %4824 = vmatpush1.msra.mxu0 0.0
        %4825 = vmatprep.subr.mxu0 0.0
        %4826 = vmatpush1.msra.mxu0 0.0
        %4827 = vmatprep.subr.mxu0 0.0
        %4828 = vmatpush1.msra.mxu0 0.0
        %4829 = vmatprep.subr.mxu0 0.0
        %4830 = vmatpush1.msra.mxu0 0.0
        %4831 = vmatprep.subr.mxu0 0.0
        %4832 = vmatpush1.msra.mxu0 %v4799
        %4833 = vmatprep.subr.mxu0 0.0
        %4834 = vmatpush1.msra.mxu0 %v4797
        %4835 = vmatprep.subr.mxu0 0.0
        %4836 = vmatpush1.msra.mxu0 %v4795
        %4837 = vmatprep.subr.mxu0 0.0
        %4838 = vmatpush1.msra.mxu0 %v4793
        %4839 = vmatprep.subr.mxu0 0.0
        %4840 = vmatpush2.msra.mxu0 0.0
        %4841 = vmatprep.subr.mxu0 0.0
        %4842 = vmatpush2.msra.mxu0 0.0
        %4843 = vmatprep.subr.mxu0 0.0
        %4844 = vmatpush2.msra.mxu0 0.0
        %4845 = vmatprep.subr.mxu0 0.0
        %4846 = vmatpush2.msra.mxu0 0.0
        %4847 = vmatprep.subr.mxu0 0.0
        %4848 = vmatpush2.msra.mxu0 0.0
        %4849 = vmatprep.subr.mxu0 0.0
        %4850 = vmatpush2.msra.mxu0 0.0
        %4851 = vmatprep.subr.mxu0 0.0
        %4852 = vmatpush2.msra.mxu0 0.0
        %4853 = vmatprep.subr.mxu0 0.0
        %4854 = vmatpush2.msra.mxu0 0.0
        %4855 = vmatprep.subr.mxu0 0.0
        %4856 = vmatpush2.msra.mxu0 0.0
        %4857 = vmatprep.subr.mxu0 0.0
        %4858 = vmatpush2.msra.mxu0 0.0
        %4859 = vmatprep.subr.mxu0 0.0
        %4860 = vmatpush2.msra.mxu0 0.0
        %4861 = vmatprep.subr.mxu0 0.0
        %4862 = vmatpush2.msra.mxu0 0.0
        %4863 = vmatprep.subr.mxu0 0.0
        %4864 = vmatpush2.msra.mxu0 0.0
        %4865 = vmatprep.subr.mxu0 0.0
        %4866 = vmatpush2.msra.mxu0 0.0
        %4867 = vmatprep.subr.mxu0 0.0
        %4868 = vmatpush2.msra.mxu0 0.0
        %4869 = vmatprep.subr.mxu0 0.0
        %4870 = vmatpush2.msra.mxu0 0.0
        %4871 = vmatprep.mubr.f32.mxu0 0.0
        %4872 = vmatmul.mubr.f32.gmra.mxu0 %v2295
        %v4873 = vpop.f32.mrf.mxu0
        %v4874 = vadd.f32 %v4805, %v4873
        %v4875 = vpop.f32.mrf.mxu0
        %4876 = vmatprep.mubr.f32.mxu0 0.0
        %4877 = vmatmul.mubr.f32.gmra.mxu0 %v2298
        %v4878 = vpop.f32.mrf.mxu0
        %v4879 = vadd.f32 %v4805, %v4878
        %v4880 = vpop.f32.mrf.mxu0
        %4881 = vdwg.mxu0
        %v4883 = vsel %vm1195, %v4787, 0
        %v4886 = vsel %vm1195, %v4874, 0
        %v4889 = vsel %vm1195, %v4879, 0
        %4891 = vmatprep.subr.mxu0 0.0
        %4892 = vmatpush1.xpose.msra.mxu0 0.0
        %4893 = vmatprep.subr.mxu0 0.0
        %4894 = vmatpush1.xpose.msra.mxu0 0.0
        %4895 = vmatprep.subr.mxu0 0.0
        %4896 = vmatpush1.xpose.msra.mxu0 0.0
        %4897 = vmatprep.subr.mxu0 0.0
        %4898 = vmatpush1.xpose.msra.mxu0 0.0
        %4899 = vmatprep.subr.mxu0 0.0
        %4900 = vmatpush1.xpose.msra.mxu0 0.0
        %4901 = vmatprep.subr.mxu0 0.0
        %4902 = vmatpush1.xpose.msra.mxu0 0.0
        %4903 = vmatprep.subr.mxu0 0.0
        %4904 = vmatpush1.xpose.msra.mxu0 0.0
        %4905 = vmatprep.subr.mxu0 0.0
        %4906 = vmatpush1.xpose.msra.mxu0 0.0
        %4907 = vmatprep.subr.mxu0 0.0
        %4908 = vmatpush1.xpose.msra.mxu0 0.0
        %4909 = vmatprep.subr.mxu0 0.0
        %4910 = vmatpush1.xpose.msra.mxu0 0.0
        %4911 = vmatprep.subr.mxu0 0.0
        %4912 = vmatpush1.xpose.msra.mxu0 0.0
        %4913 = vmatprep.subr.mxu0 0.0
        %4914 = vmatpush1.xpose.msra.mxu0 0.0
        %4915 = vmatprep.subr.mxu0 0.0
        %4916 = vmatpush1.xpose.msra.mxu0 0.0
        %4917 = vmatprep.subr.mxu0 0.0
        %4918 = vmatpush1.xpose.msra.mxu0 0.0
        %4919 = vmatprep.subr.mxu0 0.0
        %4920 = vmatpush1.xpose.msra.mxu0 %v4889
        %4921 = vmatprep.subr.mxu0 0.0
        %4922 = vmatpush1.xpose.msra.mxu0 %v4886
        %4923 = vmatprep.subr.mxu0 0.0
        %4924 = vmatpush2.xpose.msra.mxu0 0.0
        %4925 = vmatprep.subr.mxu0 0.0
        %4926 = vmatpush2.xpose.msra.mxu0 0.0
        %4927 = vmatprep.subr.mxu0 0.0
        %4928 = vmatpush2.xpose.msra.mxu0 0.0
        %4929 = vmatprep.subr.mxu0 0.0
        %4930 = vmatpush2.xpose.msra.mxu0 0.0
        %4931 = vmatprep.subr.mxu0 0.0
        %4932 = vmatpush2.xpose.msra.mxu0 0.0
        %4933 = vmatprep.subr.mxu0 0.0
        %4934 = vmatpush2.xpose.msra.mxu0 0.0
        %4935 = vmatprep.subr.mxu0 0.0
        %4936 = vmatpush2.xpose.msra.mxu0 0.0
        %4937 = vmatprep.subr.mxu0 0.0
        %4938 = vmatpush2.xpose.msra.mxu0 0.0
        %4939 = vmatprep.subr.mxu0 0.0
        %4940 = vmatpush2.xpose.msra.mxu0 0.0
        %4941 = vmatprep.subr.mxu0 0.0
        %4942 = vmatpush2.xpose.msra.mxu0 0.0
        %4943 = vmatprep.subr.mxu0 0.0
        %4944 = vmatpush2.xpose.msra.mxu0 0.0
        %4945 = vmatprep.subr.mxu0 0.0
        %4946 = vmatpush2.xpose.msra.mxu0 0.0
        %4947 = vmatprep.subr.mxu0 0.0
        %4948 = vmatpush2.xpose.msra.mxu0 0.0
        %4949 = vmatprep.subr.mxu0 0.0
        %4950 = vmatpush2.xpose.msra.mxu0 0.0
        %4951 = vmatprep.subr.mxu0 0.0
        %4952 = vmatpush2.xpose.msra.mxu0 0.0
        %4953 = vmatprep.subr.mxu0 0.0
        %4954 = vmatpush2.xpose.msra.mxu0 0.0
        %4955 = vmatprep.mubr.f32.mxu0 0.0
        %4956 = vmatmul.mubr.f32.gmra.mxu0 %v4883
        %v4957 = vpop.f32.mrf.mxu0
        %v4958 = vadd.f32 %v2379, %v4957
        %v4959 = vpop.f32.mrf.mxu0
        %4960 = vdwg.mxu0
        %v4961 = vsel %vm2460, %v4958, -inf
        %4962 = vmax.xlane.f32.xlu0 %v4961
        %v4963 = vpop.xlane.xlu0 %4962
        %v4964 = vsub.f32 %v4958, %v4963
        %v4965 = vmul.f32 %v4964, 1.442695
        %v4966 = vpow.pop %v4965
        %v4967 = vsel %vm2460, %v4966, 0.0
        %4968 = vadd.xlane.f32.xlu0 %v4967
        %v4969 = vpop.xlane.xlu0 %4968
        %v4970 = vrcp.pop %v4969
        %4971 = vrot.lane.b32.xlu0 %v4874, 96
        %v4972 = vpop.permute.xlu0 %4971
        %4973 = vrot.lane.b32.xlu0 %v4879, 96
        %v4974 = vpop.permute.xlu0 %4973
        %v4977 = vsel %vm2460, %v4966, 0
        %v4979 = vsel %vm2479, %v4974, 0
        %4981 = vmatprep.subr.mxu0 0.0
        %4982 = vmatpush1.msra.mxu0 0.0
        %4983 = vmatprep.subr.mxu0 0.0
        %4984 = vmatpush1.msra.mxu0 0.0
        %4985 = vmatprep.subr.mxu0 0.0
        %4986 = vmatpush1.msra.mxu0 0.0
        %4987 = vmatprep.subr.mxu0 0.0
        %4988 = vmatpush1.msra.mxu0 0.0
        %4989 = vmatprep.subr.mxu0 0.0
        %4990 = vmatpush1.msra.mxu0 0.0
        %4991 = vmatprep.subr.mxu0 0.0
        %4992 = vmatpush1.msra.mxu0 0.0
        %4993 = vmatprep.subr.mxu0 0.0
        %4994 = vmatpush1.msra.mxu0 0.0
        %4995 = vmatprep.subr.mxu0 0.0
        %4996 = vmatpush1.msra.mxu0 0.0
        %4997 = vmatprep.subr.mxu0 0.0
        %4998 = vmatpush1.msra.mxu0 0.0
        %4999 = vmatprep.subr.mxu0 0.0
        %5000 = vmatpush1.msra.mxu0 0.0
        %5001 = vmatprep.subr.mxu0 0.0
        %5002 = vmatpush1.msra.mxu0 0.0
        %5003 = vmatprep.subr.mxu0 0.0
        %5004 = vmatpush1.msra.mxu0 0.0
        %5005 = vmatprep.subr.mxu0 0.0
        %5006 = vmatpush1.msra.mxu0 0.0
        %5007 = vmatprep.subr.mxu0 0.0
        %5008 = vmatpush1.msra.mxu0 0.0
        %5009 = vmatprep.subr.mxu0 0.0
        %5010 = vmatpush1.msra.mxu0 %v4979
        %5011 = vmatprep.subr.mxu0 0.0
        %5012 = vmatpush1.msra.mxu0 %v4972
        %5013 = vmatprep.subr.mxu0 0.0
        %5014 = vmatpush2.msra.mxu0 0.0
        %5015 = vmatprep.subr.mxu0 0.0
        %5016 = vmatpush2.msra.mxu0 0.0
        %5017 = vmatprep.subr.mxu0 0.0
        %5018 = vmatpush2.msra.mxu0 0.0
        %5019 = vmatprep.subr.mxu0 0.0
        %5020 = vmatpush2.msra.mxu0 0.0
        %5021 = vmatprep.subr.mxu0 0.0
        %5022 = vmatpush2.msra.mxu0 0.0
        %5023 = vmatprep.subr.mxu0 0.0
        %5024 = vmatpush2.msra.mxu0 0.0
        %5025 = vmatprep.subr.mxu0 0.0
        %5026 = vmatpush2.msra.mxu0 0.0
        %5027 = vmatprep.subr.mxu0 0.0
        %5028 = vmatpush2.msra.mxu0 0.0
        %5029 = vmatprep.subr.mxu0 0.0
        %5030 = vmatpush2.msra.mxu0 0.0
        %5031 = vmatprep.subr.mxu0 0.0
        %5032 = vmatpush2.msra.mxu0 0.0
        %5033 = vmatprep.subr.mxu0 0.0
        %5034 = vmatpush2.msra.mxu0 0.0
        %5035 = vmatprep.subr.mxu0 0.0
        %5036 = vmatpush2.msra.mxu0 0.0
        %5037 = vmatprep.subr.mxu0 0.0
        %5038 = vmatpush2.msra.mxu0 0.0
        %5039 = vmatprep.subr.mxu0 0.0
        %5040 = vmatpush2.msra.mxu0 0.0
        %5041 = vmatprep.subr.mxu0 0.0
        %5042 = vmatpush2.msra.mxu0 0.0
        %5043 = vmatprep.subr.mxu0 0.0
        %5044 = vmatpush2.msra.mxu0 0.0
        %5045 = vmatprep.mubr.f32.mxu0 0.0
        %5046 = vmatmul.mubr.f32.gmra.mxu0 %v4977
        %v5047 = vpop.f32.mrf.mxu0
        %v5048 = vadd.f32 0.0, %v5047
        %v5049 = vpop.f32.mrf.mxu0
        %5050 = vdwg.mxu0
        %v5051 = vmul.f32 %v5048, %v4970
        %5052 = vrot.lane.b32.xlu0 %v4787, 120
        %v5053 = vpop.permute.xlu0 %5052
        %5054 = vrot.lane.b32.xlu0 %v4874, 120
        %v5055 = vpop.permute.xlu0 %5054
        %5056 = vrot.lane.b32.xlu0 %v4879, 120
        %v5057 = vpop.permute.xlu0 %5056
        %v5058 = vsel %vm1195, %v5053, 0
        %v5060 = vsel %vm1195, %v5055, 0
        %v5062 = vsel %vm1195, %v5057, 0
        %5064 = vmatprep.subr.mxu0 0.0
        %5065 = vmatpush1.xpose.msra.mxu0 0.0
        %5066 = vmatprep.subr.mxu0 0.0
        %5067 = vmatpush1.xpose.msra.mxu0 0.0
        %5068 = vmatprep.subr.mxu0 0.0
        %5069 = vmatpush1.xpose.msra.mxu0 0.0
        %5070 = vmatprep.subr.mxu0 0.0
        %5071 = vmatpush1.xpose.msra.mxu0 0.0
        %5072 = vmatprep.subr.mxu0 0.0
        %5073 = vmatpush1.xpose.msra.mxu0 0.0
        %5074 = vmatprep.subr.mxu0 0.0
        %5075 = vmatpush1.xpose.msra.mxu0 0.0
        %5076 = vmatprep.subr.mxu0 0.0
        %5077 = vmatpush1.xpose.msra.mxu0 0.0
        %5078 = vmatprep.subr.mxu0 0.0
        %5079 = vmatpush1.xpose.msra.mxu0 0.0
        %5080 = vmatprep.subr.mxu0 0.0
        %5081 = vmatpush1.xpose.msra.mxu0 0.0
        %5082 = vmatprep.subr.mxu0 0.0
        %5083 = vmatpush1.xpose.msra.mxu0 0.0
        %5084 = vmatprep.subr.mxu0 0.0
        %5085 = vmatpush1.xpose.msra.mxu0 0.0
        %5086 = vmatprep.subr.mxu0 0.0
        %5087 = vmatpush1.xpose.msra.mxu0 0.0
        %5088 = vmatprep.subr.mxu0 0.0
        %5089 = vmatpush1.xpose.msra.mxu0 0.0
        %5090 = vmatprep.subr.mxu0 0.0
        %5091 = vmatpush1.xpose.msra.mxu0 0.0
        %5092 = vmatprep.subr.mxu0 0.0
        %5093 = vmatpush1.xpose.msra.mxu0 %v5062
        %5094 = vmatprep.subr.mxu0 0.0
        %5095 = vmatpush1.xpose.msra.mxu0 %v5060
        %5096 = vmatprep.subr.mxu0 0.0
        %5097 = vmatpush2.xpose.msra.mxu0 0.0
        %5098 = vmatprep.subr.mxu0 0.0
        %5099 = vmatpush2.xpose.msra.mxu0 0.0
        %5100 = vmatprep.subr.mxu0 0.0
        %5101 = vmatpush2.xpose.msra.mxu0 0.0
        %5102 = vmatprep.subr.mxu0 0.0
        %5103 = vmatpush2.xpose.msra.mxu0 0.0
        %5104 = vmatprep.subr.mxu0 0.0
        %5105 = vmatpush2.xpose.msra.mxu0 0.0
        %5106 = vmatprep.subr.mxu0 0.0
        %5107 = vmatpush2.xpose.msra.mxu0 0.0
        %5108 = vmatprep.subr.mxu0 0.0
        %5109 = vmatpush2.xpose.msra.mxu0 0.0
        %5110 = vmatprep.subr.mxu0 0.0
        %5111 = vmatpush2.xpose.msra.mxu0 0.0
        %5112 = vmatprep.subr.mxu0 0.0
        %5113 = vmatpush2.xpose.msra.mxu0 0.0
        %5114 = vmatprep.subr.mxu0 0.0
        %5115 = vmatpush2.xpose.msra.mxu0 0.0
        %5116 = vmatprep.subr.mxu0 0.0
        %5117 = vmatpush2.xpose.msra.mxu0 0.0
        %5118 = vmatprep.subr.mxu0 0.0
        %5119 = vmatpush2.xpose.msra.mxu0 0.0
        %5120 = vmatprep.subr.mxu0 0.0
        %5121 = vmatpush2.xpose.msra.mxu0 0.0
        %5122 = vmatprep.subr.mxu0 0.0
        %5123 = vmatpush2.xpose.msra.mxu0 0.0
        %5124 = vmatprep.subr.mxu0 0.0
        %5125 = vmatpush2.xpose.msra.mxu0 0.0
        %5126 = vmatprep.subr.mxu0 0.0
        %5127 = vmatpush2.xpose.msra.mxu0 0.0
        %5128 = vmatprep.mubr.f32.mxu0 0.0
        %5129 = vmatmul.mubr.f32.gmra.mxu0 %v5058
        %v5130 = vpop.f32.mrf.mxu0
        %v5131 = vadd.f32 %v2379, %v5130
        %v5132 = vpop.f32.mrf.mxu0
        %5133 = vdwg.mxu0
        %v5134 = vsel %vm2460, %v5131, -inf
        %5135 = vmax.xlane.f32.xlu0 %v5134
        %v5136 = vpop.xlane.xlu0 %5135
        %v5137 = vsub.f32 %v5131, %v5136
        %v5138 = vmul.f32 %v5137, 1.442695
        %v5139 = vpow.pop %v5138
        %v5140 = vsel %vm2460, %v5139, 0.0
        %5141 = vadd.xlane.f32.xlu0 %v5140
        %v5142 = vpop.xlane.xlu0 %5141
        %v5143 = vrcp.pop %v5142
        %5144 = vrot.lane.b32.xlu0 %v4874, 88
        %v5145 = vpop.permute.xlu0 %5144
        %5146 = vrot.lane.b32.xlu0 %v4879, 88
        %v5147 = vpop.permute.xlu0 %5146
        %v5150 = vsel %vm2460, %v5139, 0
        %v5152 = vsel %vm2479, %v5147, 0
        %5154 = vmatprep.subr.mxu0 0.0
        %5155 = vmatpush1.msra.mxu0 0.0
        %5156 = vmatprep.subr.mxu0 0.0
        %5157 = vmatpush1.msra.mxu0 0.0
        %5158 = vmatprep.subr.mxu0 0.0
        %5159 = vmatpush1.msra.mxu0 0.0
        %5160 = vmatprep.subr.mxu0 0.0
        %5161 = vmatpush1.msra.mxu0 0.0
        %5162 = vmatprep.subr.mxu0 0.0
        %5163 = vmatpush1.msra.mxu0 0.0
        %5164 = vmatprep.subr.mxu0 0.0
        %5165 = vmatpush1.msra.mxu0 0.0
        %5166 = vmatprep.subr.mxu0 0.0
        %5167 = vmatpush1.msra.mxu0 0.0
        %5168 = vmatprep.subr.mxu0 0.0
        %5169 = vmatpush1.msra.mxu0 0.0
        %5170 = vmatprep.subr.mxu0 0.0
        %5171 = vmatpush1.msra.mxu0 0.0
        %5172 = vmatprep.subr.mxu0 0.0
        %5173 = vmatpush1.msra.mxu0 0.0
        %5174 = vmatprep.subr.mxu0 0.0
        %5175 = vmatpush1.msra.mxu0 0.0
        %5176 = vmatprep.subr.mxu0 0.0
        %5177 = vmatpush1.msra.mxu0 0.0
        %5178 = vmatprep.subr.mxu0 0.0
        %5179 = vmatpush1.msra.mxu0 0.0
        %5180 = vmatprep.subr.mxu0 0.0
        %5181 = vmatpush1.msra.mxu0 0.0
        %5182 = vmatprep.subr.mxu0 0.0
        %5183 = vmatpush1.msra.mxu0 %v5152
        %5184 = vmatprep.subr.mxu0 0.0
        %5185 = vmatpush1.msra.mxu0 %v5145
        %5186 = vmatprep.subr.mxu0 0.0
        %5187 = vmatpush2.msra.mxu0 0.0
        %5188 = vmatprep.subr.mxu0 0.0
        %5189 = vmatpush2.msra.mxu0 0.0
        %5190 = vmatprep.subr.mxu0 0.0
        %5191 = vmatpush2.msra.mxu0 0.0
        %5192 = vmatprep.subr.mxu0 0.0
        %5193 = vmatpush2.msra.mxu0 0.0
        %5194 = vmatprep.subr.mxu0 0.0
        %5195 = vmatpush2.msra.mxu0 0.0
        %5196 = vmatprep.subr.mxu0 0.0
        %5197 = vmatpush2.msra.mxu0 0.0
        %5198 = vmatprep.subr.mxu0 0.0
        %5199 = vmatpush2.msra.mxu0 0.0
        %5200 = vmatprep.subr.mxu0 0.0
        %5201 = vmatpush2.msra.mxu0 0.0
        %5202 = vmatprep.subr.mxu0 0.0
        %5203 = vmatpush2.msra.mxu0 0.0
        %5204 = vmatprep.subr.mxu0 0.0
        %5205 = vmatpush2.msra.mxu0 0.0
        %5206 = vmatprep.subr.mxu0 0.0
        %5207 = vmatpush2.msra.mxu0 0.0
        %5208 = vmatprep.subr.mxu0 0.0
        %5209 = vmatpush2.msra.mxu0 0.0
        %5210 = vmatprep.subr.mxu0 0.0
        %5211 = vmatpush2.msra.mxu0 0.0
        %5212 = vmatprep.subr.mxu0 0.0
        %5213 = vmatpush2.msra.mxu0 0.0
        %5214 = vmatprep.subr.mxu0 0.0
        %5215 = vmatpush2.msra.mxu0 0.0
        %5216 = vmatprep.subr.mxu0 0.0
        %5217 = vmatpush2.msra.mxu0 0.0
        %5218 = vmatprep.mubr.f32.mxu0 0.0
        %5219 = vmatmul.mubr.f32.gmra.mxu0 %v5150
        %v5220 = vpop.f32.mrf.mxu0
        %v5221 = vadd.f32 0.0, %v5220
        %v5222 = vpop.f32.mrf.mxu0
        %5223 = vdwg.mxu0
        %v5224 = vmul.f32 %v5221, %v5143
        %v5226 = vsel %vm1195, %v5224, 0
        %5228 = vmatprep.subr.mxu0 0.0
        %5229 = vmatpush1.msra.mxu0 0.0
        %5230 = vmatprep.subr.mxu0 0.0
        %5231 = vmatpush1.msra.mxu0 0.0
        %5232 = vmatprep.subr.mxu0 0.0
        %5233 = vmatpush1.msra.mxu0 0.0
        %5234 = vmatprep.subr.mxu0 0.0
        %5235 = vmatpush1.msra.mxu0 0.0
        %5236 = vmatprep.subr.mxu0 0.0
        %5237 = vmatpush1.msra.mxu0 0.0
        %5238 = vmatprep.subr.mxu0 0.0
        %5239 = vmatpush1.msra.mxu0 0.0
        %5240 = vmatprep.subr.mxu0 0.0
        %5241 = vmatpush1.msra.mxu0 0.0
        %5242 = vmatprep.subr.mxu0 0.0
        %5243 = vmatpush1.msra.mxu0 0.0
        %5244 = vmatprep.subr.mxu0 0.0
        %5245 = vmatpush1.msra.mxu0 0.0
        %5246 = vmatprep.subr.mxu0 0.0
        %5247 = vmatpush1.msra.mxu0 0.0
        %5248 = vmatprep.subr.mxu0 0.0
        %5249 = vmatpush1.msra.mxu0 0.0
        %5250 = vmatprep.subr.mxu0 0.0
        %5251 = vmatpush1.msra.mxu0 0.0
        %5252 = vmatprep.subr.mxu0 0.0
        %5253 = vmatpush1.msra.mxu0 0.0
        %5254 = vmatprep.subr.mxu0 0.0
        %5255 = vmatpush1.msra.mxu0 0.0
        %5256 = vmatprep.subr.mxu0 0.0
        %5257 = vmatpush1.msra.mxu0 0.0
        %5258 = vmatprep.subr.mxu0 0.0
        %5259 = vmatpush1.msra.mxu0 %v4703
        %5260 = vmatprep.subr.mxu0 0.0
        %5261 = vmatpush2.msra.mxu0 0.0
        %5262 = vmatprep.subr.mxu0 0.0
        %5263 = vmatpush2.msra.mxu0 0.0
        %5264 = vmatprep.subr.mxu0 0.0
        %5265 = vmatpush2.msra.mxu0 0.0
        %5266 = vmatprep.subr.mxu0 0.0
        %5267 = vmatpush2.msra.mxu0 0.0
        %5268 = vmatprep.subr.mxu0 0.0
        %5269 = vmatpush2.msra.mxu0 0.0
        %5270 = vmatprep.subr.mxu0 0.0
        %5271 = vmatpush2.msra.mxu0 0.0
        %5272 = vmatprep.subr.mxu0 0.0
        %5273 = vmatpush2.msra.mxu0 0.0
        %5274 = vmatprep.subr.mxu0 0.0
        %5275 = vmatpush2.msra.mxu0 0.0
        %5276 = vmatprep.subr.mxu0 0.0
        %5277 = vmatpush2.msra.mxu0 0.0
        %5278 = vmatprep.subr.mxu0 0.0
        %5279 = vmatpush2.msra.mxu0 0.0
        %5280 = vmatprep.subr.mxu0 0.0
        %5281 = vmatpush2.msra.mxu0 0.0
        %5282 = vmatprep.subr.mxu0 0.0
        %5283 = vmatpush2.msra.mxu0 0.0
        %5284 = vmatprep.subr.mxu0 0.0
        %5285 = vmatpush2.msra.mxu0 0.0
        %5286 = vmatprep.subr.mxu0 0.0
        %5287 = vmatpush2.msra.mxu0 0.0
        %5288 = vmatprep.subr.mxu0 0.0
        %5289 = vmatpush2.msra.mxu0 0.0
        %5290 = vmatprep.subr.mxu0 0.0
        %5291 = vmatpush2.msra.mxu0 0.0
        %5292 = vmatprep.mubr.f32.mxu0 0.0
        %5293 = vmatmul.mubr.f32.gmra.mxu0 %v5226
        %v5294 = vpop.f32.mrf.mxu0
        %v5295 = vadd.f32 0.0, %v5294
        %v5296 = vpop.f32.mrf.mxu0
        %5297 = vdwg.mxu0
        %v5299 = vsel %vm1195, %v5051, 0
        %5301 = vmatprep.subr.mxu0 0.0
        %5302 = vmatpush1.msra.mxu0 0.0
        %5303 = vmatprep.subr.mxu0 0.0
        %5304 = vmatpush1.msra.mxu0 0.0
        %5305 = vmatprep.subr.mxu0 0.0
        %5306 = vmatpush1.msra.mxu0 0.0
        %5307 = vmatprep.subr.mxu0 0.0
        %5308 = vmatpush1.msra.mxu0 0.0
        %5309 = vmatprep.subr.mxu0 0.0
        %5310 = vmatpush1.msra.mxu0 0.0
        %5311 = vmatprep.subr.mxu0 0.0
        %5312 = vmatpush1.msra.mxu0 0.0
        %5313 = vmatprep.subr.mxu0 0.0
        %5314 = vmatpush1.msra.mxu0 0.0
        %5315 = vmatprep.subr.mxu0 0.0
        %5316 = vmatpush1.msra.mxu0 0.0
        %5317 = vmatprep.subr.mxu0 0.0
        %5318 = vmatpush1.msra.mxu0 0.0
        %5319 = vmatprep.subr.mxu0 0.0
        %5320 = vmatpush1.msra.mxu0 0.0
        %5321 = vmatprep.subr.mxu0 0.0
        %5322 = vmatpush1.msra.mxu0 0.0
        %5323 = vmatprep.subr.mxu0 0.0
        %5324 = vmatpush1.msra.mxu0 0.0
        %5325 = vmatprep.subr.mxu0 0.0
        %5326 = vmatpush1.msra.mxu0 0.0
        %5327 = vmatprep.subr.mxu0 0.0
        %5328 = vmatpush1.msra.mxu0 0.0
        %5329 = vmatprep.subr.mxu0 0.0
        %5330 = vmatpush1.msra.mxu0 0.0
        %5331 = vmatprep.subr.mxu0 0.0
        %5332 = vmatpush1.msra.mxu0 %v4702
        %5333 = vmatprep.subr.mxu0 0.0
        %5334 = vmatpush2.msra.mxu0 0.0
        %5335 = vmatprep.subr.mxu0 0.0
        %5336 = vmatpush2.msra.mxu0 0.0
        %5337 = vmatprep.subr.mxu0 0.0
        %5338 = vmatpush2.msra.mxu0 0.0
        %5339 = vmatprep.subr.mxu0 0.0
        %5340 = vmatpush2.msra.mxu0 0.0
        %5341 = vmatprep.subr.mxu0 0.0
        %5342 = vmatpush2.msra.mxu0 0.0
        %5343 = vmatprep.subr.mxu0 0.0
        %5344 = vmatpush2.msra.mxu0 0.0
        %5345 = vmatprep.subr.mxu0 0.0
        %5346 = vmatpush2.msra.mxu0 0.0
        %5347 = vmatprep.subr.mxu0 0.0
        %5348 = vmatpush2.msra.mxu0 0.0
        %5349 = vmatprep.subr.mxu0 0.0
        %5350 = vmatpush2.msra.mxu0 0.0
        %5351 = vmatprep.subr.mxu0 0.0
        %5352 = vmatpush2.msra.mxu0 0.0
        %5353 = vmatprep.subr.mxu0 0.0
        %5354 = vmatpush2.msra.mxu0 0.0
        %5355 = vmatprep.subr.mxu0 0.0
        %5356 = vmatpush2.msra.mxu0 0.0
        %5357 = vmatprep.subr.mxu0 0.0
        %5358 = vmatpush2.msra.mxu0 0.0
        %5359 = vmatprep.subr.mxu0 0.0
        %5360 = vmatpush2.msra.mxu0 0.0
        %5361 = vmatprep.subr.mxu0 0.0
        %5362 = vmatpush2.msra.mxu0 0.0
        %5363 = vmatprep.subr.mxu0 0.0
        %5364 = vmatpush2.msra.mxu0 0.0
        %5365 = vmatprep.mubr.f32.mxu0 0.0
        %5366 = vmatmul.mubr.f32.gmra.mxu0 %v5299
        %v5367 = vpop.f32.mrf.mxu0
        %v5368 = vadd.f32 %v5295, %v5367
        %v5369 = vpop.f32.mrf.mxu0
        %5370 = vdwg.mxu0
        %5371 = vrot.lane.b32.xlu0 %v4787, 112
        %v5372 = vpop.permute.xlu0 %5371
        %5373 = vrot.lane.b32.xlu0 %v4874, 112
        %v5374 = vpop.permute.xlu0 %5373
        %5375 = vrot.lane.b32.xlu0 %v4879, 112
        %v5376 = vpop.permute.xlu0 %5375
        %v5377 = vsel %vm1195, %v5372, 0
        %v5379 = vsel %vm1195, %v5374, 0
        %v5381 = vsel %vm1195, %v5376, 0
        %5383 = vmatprep.subr.mxu0 0.0
        %5384 = vmatpush1.xpose.msra.mxu0 0.0
        %5385 = vmatprep.subr.mxu0 0.0
        %5386 = vmatpush1.xpose.msra.mxu0 0.0
        %5387 = vmatprep.subr.mxu0 0.0
        %5388 = vmatpush1.xpose.msra.mxu0 0.0
        %5389 = vmatprep.subr.mxu0 0.0
        %5390 = vmatpush1.xpose.msra.mxu0 0.0
        %5391 = vmatprep.subr.mxu0 0.0
        %5392 = vmatpush1.xpose.msra.mxu0 0.0
        %5393 = vmatprep.subr.mxu0 0.0
        %5394 = vmatpush1.xpose.msra.mxu0 0.0
        %5395 = vmatprep.subr.mxu0 0.0
        %5396 = vmatpush1.xpose.msra.mxu0 0.0
        %5397 = vmatprep.subr.mxu0 0.0
        %5398 = vmatpush1.xpose.msra.mxu0 0.0
        %5399 = vmatprep.subr.mxu0 0.0
        %5400 = vmatpush1.xpose.msra.mxu0 0.0
        %5401 = vmatprep.subr.mxu0 0.0
        %5402 = vmatpush1.xpose.msra.mxu0 0.0
        %5403 = vmatprep.subr.mxu0 0.0
        %5404 = vmatpush1.xpose.msra.mxu0 0.0
        %5405 = vmatprep.subr.mxu0 0.0
        %5406 = vmatpush1.xpose.msra.mxu0 0.0
        %5407 = vmatprep.subr.mxu0 0.0
        %5408 = vmatpush1.xpose.msra.mxu0 0.0
        %5409 = vmatprep.subr.mxu0 0.0
        %5410 = vmatpush1.xpose.msra.mxu0 0.0
        %5411 = vmatprep.subr.mxu0 0.0
        %5412 = vmatpush1.xpose.msra.mxu0 %v5381
        %5413 = vmatprep.subr.mxu0 0.0
        %5414 = vmatpush1.xpose.msra.mxu0 %v5379
        %5415 = vmatprep.subr.mxu0 0.0
        %5416 = vmatpush2.xpose.msra.mxu0 0.0
        %5417 = vmatprep.subr.mxu0 0.0
        %5418 = vmatpush2.xpose.msra.mxu0 0.0
        %5419 = vmatprep.subr.mxu0 0.0
        %5420 = vmatpush2.xpose.msra.mxu0 0.0
        %5421 = vmatprep.subr.mxu0 0.0
        %5422 = vmatpush2.xpose.msra.mxu0 0.0
        %5423 = vmatprep.subr.mxu0 0.0
        %5424 = vmatpush2.xpose.msra.mxu0 0.0
        %5425 = vmatprep.subr.mxu0 0.0
        %5426 = vmatpush2.xpose.msra.mxu0 0.0
        %5427 = vmatprep.subr.mxu0 0.0
        %5428 = vmatpush2.xpose.msra.mxu0 0.0
        %5429 = vmatprep.subr.mxu0 0.0
        %5430 = vmatpush2.xpose.msra.mxu0 0.0
        %5431 = vmatprep.subr.mxu0 0.0
        %5432 = vmatpush2.xpose.msra.mxu0 0.0
        %5433 = vmatprep.subr.mxu0 0.0
        %5434 = vmatpush2.xpose.msra.mxu0 0.0
        %5435 = vmatprep.subr.mxu0 0.0
        %5436 = vmatpush2.xpose.msra.mxu0 0.0
        %5437 = vmatprep.subr.mxu0 0.0
        %5438 = vmatpush2.xpose.msra.mxu0 0.0
        %5439 = vmatprep.subr.mxu0 0.0
        %5440 = vmatpush2.xpose.msra.mxu0 0.0
        %5441 = vmatprep.subr.mxu0 0.0
        %5442 = vmatpush2.xpose.msra.mxu0 0.0
        %5443 = vmatprep.subr.mxu0 0.0
        %5444 = vmatpush2.xpose.msra.mxu0 0.0
        %5445 = vmatprep.subr.mxu0 0.0
        %5446 = vmatpush2.xpose.msra.mxu0 0.0
        %5447 = vmatprep.mubr.f32.mxu0 0.0
        %5448 = vmatmul.mubr.f32.gmra.mxu0 %v5377
        %v5449 = vpop.f32.mrf.mxu0
        %v5450 = vadd.f32 %v2379, %v5449
        %v5451 = vpop.f32.mrf.mxu0
        %5452 = vdwg.mxu0
        %v5453 = vsel %vm2460, %v5450, -inf
        %5454 = vmax.xlane.f32.xlu0 %v5453
        %v5455 = vpop.xlane.xlu0 %5454
        %v5456 = vsub.f32 %v5450, %v5455
        %v5457 = vmul.f32 %v5456, 1.442695
        %v5458 = vpow.pop %v5457
        %v5459 = vsel %vm2460, %v5458, 0.0
        %5460 = vadd.xlane.f32.xlu0 %v5459
        %v5461 = vpop.xlane.xlu0 %5460
        %v5462 = vrcp.pop %v5461
        %5463 = vrot.lane.b32.xlu0 %v4874, 80
        %v5464 = vpop.permute.xlu0 %5463
        %5465 = vrot.lane.b32.xlu0 %v4879, 80
        %v5466 = vpop.permute.xlu0 %5465
        %v5469 = vsel %vm2460, %v5458, 0
        %v5471 = vsel %vm2479, %v5466, 0
        %5473 = vmatprep.subr.mxu0 0.0
        %5474 = vmatpush1.msra.mxu0 0.0
        %5475 = vmatprep.subr.mxu0 0.0
        %5476 = vmatpush1.msra.mxu0 0.0
        %5477 = vmatprep.subr.mxu0 0.0
        %5478 = vmatpush1.msra.mxu0 0.0
        %5479 = vmatprep.subr.mxu0 0.0
        %5480 = vmatpush1.msra.mxu0 0.0
        %5481 = vmatprep.subr.mxu0 0.0
        %5482 = vmatpush1.msra.mxu0 0.0
        %5483 = vmatprep.subr.mxu0 0.0
        %5484 = vmatpush1.msra.mxu0 0.0
        %5485 = vmatprep.subr.mxu0 0.0
        %5486 = vmatpush1.msra.mxu0 0.0
        %5487 = vmatprep.subr.mxu0 0.0
        %5488 = vmatpush1.msra.mxu0 0.0
        %5489 = vmatprep.subr.mxu0 0.0
        %5490 = vmatpush1.msra.mxu0 0.0
        %5491 = vmatprep.subr.mxu0 0.0
        %5492 = vmatpush1.msra.mxu0 0.0
        %5493 = vmatprep.subr.mxu0 0.0
        %5494 = vmatpush1.msra.mxu0 0.0
        %5495 = vmatprep.subr.mxu0 0.0
        %5496 = vmatpush1.msra.mxu0 0.0
        %5497 = vmatprep.subr.mxu0 0.0
        %5498 = vmatpush1.msra.mxu0 0.0
        %5499 = vmatprep.subr.mxu0 0.0
        %5500 = vmatpush1.msra.mxu0 0.0
        %5501 = vmatprep.subr.mxu0 0.0
        %5502 = vmatpush1.msra.mxu0 %v5471
        %5503 = vmatprep.subr.mxu0 0.0
        %5504 = vmatpush1.msra.mxu0 %v5464
        %5505 = vmatprep.subr.mxu0 0.0
        %5506 = vmatpush2.msra.mxu0 0.0
        %5507 = vmatprep.subr.mxu0 0.0
        %5508 = vmatpush2.msra.mxu0 0.0
        %5509 = vmatprep.subr.mxu0 0.0
        %5510 = vmatpush2.msra.mxu0 0.0
        %5511 = vmatprep.subr.mxu0 0.0
        %5512 = vmatpush2.msra.mxu0 0.0
        %5513 = vmatprep.subr.mxu0 0.0
        %5514 = vmatpush2.msra.mxu0 0.0
        %5515 = vmatprep.subr.mxu0 0.0
        %5516 = vmatpush2.msra.mxu0 0.0
        %5517 = vmatprep.subr.mxu0 0.0
        %5518 = vmatpush2.msra.mxu0 0.0
        %5519 = vmatprep.subr.mxu0 0.0
        %5520 = vmatpush2.msra.mxu0 0.0
        %5521 = vmatprep.subr.mxu0 0.0
        %5522 = vmatpush2.msra.mxu0 0.0
        %5523 = vmatprep.subr.mxu0 0.0
        %5524 = vmatpush2.msra.mxu0 0.0
        %5525 = vmatprep.subr.mxu0 0.0
        %5526 = vmatpush2.msra.mxu0 0.0
        %5527 = vmatprep.subr.mxu0 0.0
        %5528 = vmatpush2.msra.mxu0 0.0
        %5529 = vmatprep.subr.mxu0 0.0
        %5530 = vmatpush2.msra.mxu0 0.0
        %5531 = vmatprep.subr.mxu0 0.0
        %5532 = vmatpush2.msra.mxu0 0.0
        %5533 = vmatprep.subr.mxu0 0.0
        %5534 = vmatpush2.msra.mxu0 0.0
        %5535 = vmatprep.subr.mxu0 0.0
        %5536 = vmatpush2.msra.mxu0 0.0
        %5537 = vmatprep.mubr.f32.mxu0 0.0
        %5538 = vmatmul.mubr.f32.gmra.mxu0 %v5469
        %v5539 = vpop.f32.mrf.mxu0
        %v5540 = vadd.f32 0.0, %v5539
        %v5541 = vpop.f32.mrf.mxu0
        %5542 = vdwg.mxu0
        %v5543 = vmul.f32 %v5540, %v5462
        %v5545 = vsel %vm1195, %v5543, 0
        %5547 = vmatprep.subr.mxu0 0.0
        %5548 = vmatpush1.msra.mxu0 0.0
        %5549 = vmatprep.subr.mxu0 0.0
        %5550 = vmatpush1.msra.mxu0 0.0
        %5551 = vmatprep.subr.mxu0 0.0
        %5552 = vmatpush1.msra.mxu0 0.0
        %5553 = vmatprep.subr.mxu0 0.0
        %5554 = vmatpush1.msra.mxu0 0.0
        %5555 = vmatprep.subr.mxu0 0.0
        %5556 = vmatpush1.msra.mxu0 0.0
        %5557 = vmatprep.subr.mxu0 0.0
        %5558 = vmatpush1.msra.mxu0 0.0
        %5559 = vmatprep.subr.mxu0 0.0
        %5560 = vmatpush1.msra.mxu0 0.0
        %5561 = vmatprep.subr.mxu0 0.0
        %5562 = vmatpush1.msra.mxu0 0.0
        %5563 = vmatprep.subr.mxu0 0.0
        %5564 = vmatpush1.msra.mxu0 0.0
        %5565 = vmatprep.subr.mxu0 0.0
        %5566 = vmatpush1.msra.mxu0 0.0
        %5567 = vmatprep.subr.mxu0 0.0
        %5568 = vmatpush1.msra.mxu0 0.0
        %5569 = vmatprep.subr.mxu0 0.0
        %5570 = vmatpush1.msra.mxu0 0.0
        %5571 = vmatprep.subr.mxu0 0.0
        %5572 = vmatpush1.msra.mxu0 0.0
        %5573 = vmatprep.subr.mxu0 0.0
        %5574 = vmatpush1.msra.mxu0 0.0
        %5575 = vmatprep.subr.mxu0 0.0
        %5576 = vmatpush1.msra.mxu0 0.0
        %5577 = vmatprep.subr.mxu0 0.0
        %5578 = vmatpush1.msra.mxu0 %v4704
        %5579 = vmatprep.subr.mxu0 0.0
        %5580 = vmatpush2.msra.mxu0 0.0
        %5581 = vmatprep.subr.mxu0 0.0
        %5582 = vmatpush2.msra.mxu0 0.0
        %5583 = vmatprep.subr.mxu0 0.0
        %5584 = vmatpush2.msra.mxu0 0.0
        %5585 = vmatprep.subr.mxu0 0.0
        %5586 = vmatpush2.msra.mxu0 0.0
        %5587 = vmatprep.subr.mxu0 0.0
        %5588 = vmatpush2.msra.mxu0 0.0
        %5589 = vmatprep.subr.mxu0 0.0
        %5590 = vmatpush2.msra.mxu0 0.0
        %5591 = vmatprep.subr.mxu0 0.0
        %5592 = vmatpush2.msra.mxu0 0.0
        %5593 = vmatprep.subr.mxu0 0.0
        %5594 = vmatpush2.msra.mxu0 0.0
        %5595 = vmatprep.subr.mxu0 0.0
        %5596 = vmatpush2.msra.mxu0 0.0
        %5597 = vmatprep.subr.mxu0 0.0
        %5598 = vmatpush2.msra.mxu0 0.0
        %5599 = vmatprep.subr.mxu0 0.0
        %5600 = vmatpush2.msra.mxu0 0.0
        %5601 = vmatprep.subr.mxu0 0.0
        %5602 = vmatpush2.msra.mxu0 0.0
        %5603 = vmatprep.subr.mxu0 0.0
        %5604 = vmatpush2.msra.mxu0 0.0
        %5605 = vmatprep.subr.mxu0 0.0
        %5606 = vmatpush2.msra.mxu0 0.0
        %5607 = vmatprep.subr.mxu0 0.0
        %5608 = vmatpush2.msra.mxu0 0.0
        %5609 = vmatprep.subr.mxu0 0.0
        %5610 = vmatpush2.msra.mxu0 0.0
        %5611 = vmatprep.mubr.f32.mxu0 0.0
        %5612 = vmatmul.mubr.f32.gmra.mxu0 %v5545
        %v5613 = vpop.f32.mrf.mxu0
        %v5614 = vadd.f32 0.0, %v5613
        %v5615 = vpop.f32.mrf.mxu0
        %5616 = vdwg.mxu0
        %v5617 = vadd.f32 %v5368, %v5614
        %5618 = vrot.lane.b32.xlu0 %v4787, 104
        %v5619 = vpop.permute.xlu0 %5618
        %5620 = vrot.lane.b32.xlu0 %v4874, 104
        %v5621 = vpop.permute.xlu0 %5620
        %5622 = vrot.lane.b32.xlu0 %v4879, 104
        %v5623 = vpop.permute.xlu0 %5622
        %v5624 = vsel %vm1195, %v5619, 0
        %v5626 = vsel %vm1195, %v5621, 0
        %v5628 = vsel %vm1195, %v5623, 0
        %5630 = vmatprep.subr.mxu0 0.0
        %5631 = vmatpush1.xpose.msra.mxu0 0.0
        %5632 = vmatprep.subr.mxu0 0.0
        %5633 = vmatpush1.xpose.msra.mxu0 0.0
        %5634 = vmatprep.subr.mxu0 0.0
        %5635 = vmatpush1.xpose.msra.mxu0 0.0
        %5636 = vmatprep.subr.mxu0 0.0
        %5637 = vmatpush1.xpose.msra.mxu0 0.0
        %5638 = vmatprep.subr.mxu0 0.0
        %5639 = vmatpush1.xpose.msra.mxu0 0.0
        %5640 = vmatprep.subr.mxu0 0.0
        %5641 = vmatpush1.xpose.msra.mxu0 0.0
        %5642 = vmatprep.subr.mxu0 0.0
        %5643 = vmatpush1.xpose.msra.mxu0 0.0
        %5644 = vmatprep.subr.mxu0 0.0
        %5645 = vmatpush1.xpose.msra.mxu0 0.0
        %5646 = vmatprep.subr.mxu0 0.0
        %5647 = vmatpush1.xpose.msra.mxu0 0.0
        %5648 = vmatprep.subr.mxu0 0.0
        %5649 = vmatpush1.xpose.msra.mxu0 0.0
        %5650 = vmatprep.subr.mxu0 0.0
        %5651 = vmatpush1.xpose.msra.mxu0 0.0
        %5652 = vmatprep.subr.mxu0 0.0
        %5653 = vmatpush1.xpose.msra.mxu0 0.0
        %5654 = vmatprep.subr.mxu0 0.0
        %5655 = vmatpush1.xpose.msra.mxu0 0.0
        %5656 = vmatprep.subr.mxu0 0.0
        %5657 = vmatpush1.xpose.msra.mxu0 0.0
        %5658 = vmatprep.subr.mxu0 0.0
        %5659 = vmatpush1.xpose.msra.mxu0 %v5628
        %5660 = vmatprep.subr.mxu0 0.0
        %5661 = vmatpush1.xpose.msra.mxu0 %v5626
        %5662 = vmatprep.subr.mxu0 0.0
        %5663 = vmatpush2.xpose.msra.mxu0 0.0
        %5664 = vmatprep.subr.mxu0 0.0
        %5665 = vmatpush2.xpose.msra.mxu0 0.0
        %5666 = vmatprep.subr.mxu0 0.0
        %5667 = vmatpush2.xpose.msra.mxu0 0.0
        %5668 = vmatprep.subr.mxu0 0.0
        %5669 = vmatpush2.xpose.msra.mxu0 0.0
        %5670 = vmatprep.subr.mxu0 0.0
        %5671 = vmatpush2.xpose.msra.mxu0 0.0
        %5672 = vmatprep.subr.mxu0 0.0
        %5673 = vmatpush2.xpose.msra.mxu0 0.0
        %5674 = vmatprep.subr.mxu0 0.0
        %5675 = vmatpush2.xpose.msra.mxu0 0.0
        %5676 = vmatprep.subr.mxu0 0.0
        %5677 = vmatpush2.xpose.msra.mxu0 0.0
        %5678 = vmatprep.subr.mxu0 0.0
        %5679 = vmatpush2.xpose.msra.mxu0 0.0
        %5680 = vmatprep.subr.mxu0 0.0
        %5681 = vmatpush2.xpose.msra.mxu0 0.0
        %5682 = vmatprep.subr.mxu0 0.0
        %5683 = vmatpush2.xpose.msra.mxu0 0.0
        %5684 = vmatprep.subr.mxu0 0.0
        %5685 = vmatpush2.xpose.msra.mxu0 0.0
        %5686 = vmatprep.subr.mxu0 0.0
        %5687 = vmatpush2.xpose.msra.mxu0 0.0
        %5688 = vmatprep.subr.mxu0 0.0
        %5689 = vmatpush2.xpose.msra.mxu0 0.0
        %5690 = vmatprep.subr.mxu0 0.0
        %5691 = vmatpush2.xpose.msra.mxu0 0.0
        %5692 = vmatprep.subr.mxu0 0.0
        %5693 = vmatpush2.xpose.msra.mxu0 0.0
        %5694 = vmatprep.mubr.f32.mxu0 0.0
        %5695 = vmatmul.mubr.f32.gmra.mxu0 %v5624
        %v5696 = vpop.f32.mrf.mxu0
        %v5697 = vadd.f32 %v2379, %v5696
        %v5698 = vpop.f32.mrf.mxu0
        %5699 = vdwg.mxu0
        %v5700 = vsel %vm2460, %v5697, -inf
        %5701 = vmax.xlane.f32.xlu0 %v5700
        %v5702 = vpop.xlane.xlu0 %5701
        %v5703 = vsub.f32 %v5697, %v5702
        %v5704 = vmul.f32 %v5703, 1.442695
        %v5705 = vpow.pop %v5704
        %v5706 = vsel %vm2460, %v5705, 0.0
        %5707 = vadd.xlane.f32.xlu0 %v5706
        %v5708 = vpop.xlane.xlu0 %5707
        %v5709 = vrcp.pop %v5708
        %5710 = vrot.lane.b32.xlu0 %v4874, 72
        %v5711 = vpop.permute.xlu0 %5710
        %5712 = vrot.lane.b32.xlu0 %v4879, 72
        %v5713 = vpop.permute.xlu0 %5712
        %v5716 = vsel %vm2460, %v5705, 0
        %v5718 = vsel %vm2479, %v5713, 0
        %5720 = vmatprep.subr.mxu0 0.0
        %5721 = vmatpush1.msra.mxu0 0.0
        %5722 = vmatprep.subr.mxu0 0.0
        %5723 = vmatpush1.msra.mxu0 0.0
        %5724 = vmatprep.subr.mxu0 0.0
        %5725 = vmatpush1.msra.mxu0 0.0
        %5726 = vmatprep.subr.mxu0 0.0
        %5727 = vmatpush1.msra.mxu0 0.0
        %5728 = vmatprep.subr.mxu0 0.0
        %5729 = vmatpush1.msra.mxu0 0.0
        %5730 = vmatprep.subr.mxu0 0.0
        %5731 = vmatpush1.msra.mxu0 0.0
        %5732 = vmatprep.subr.mxu0 0.0
        %5733 = vmatpush1.msra.mxu0 0.0
        %5734 = vmatprep.subr.mxu0 0.0
        %5735 = vmatpush1.msra.mxu0 0.0
        %5736 = vmatprep.subr.mxu0 0.0
        %5737 = vmatpush1.msra.mxu0 0.0
        %5738 = vmatprep.subr.mxu0 0.0
        %5739 = vmatpush1.msra.mxu0 0.0
        %5740 = vmatprep.subr.mxu0 0.0
        %5741 = vmatpush1.msra.mxu0 0.0
        %5742 = vmatprep.subr.mxu0 0.0
        %5743 = vmatpush1.msra.mxu0 0.0
        %5744 = vmatprep.subr.mxu0 0.0
        %5745 = vmatpush1.msra.mxu0 0.0
        %5746 = vmatprep.subr.mxu0 0.0
        %5747 = vmatpush1.msra.mxu0 0.0
        %5748 = vmatprep.subr.mxu0 0.0
        %5749 = vmatpush1.msra.mxu0 %v5718
        %5750 = vmatprep.subr.mxu0 0.0
        %5751 = vmatpush1.msra.mxu0 %v5711
        %5752 = vmatprep.subr.mxu0 0.0
        %5753 = vmatpush2.msra.mxu0 0.0
        %5754 = vmatprep.subr.mxu0 0.0
        %5755 = vmatpush2.msra.mxu0 0.0
        %5756 = vmatprep.subr.mxu0 0.0
        %5757 = vmatpush2.msra.mxu0 0.0
        %5758 = vmatprep.subr.mxu0 0.0
        %5759 = vmatpush2.msra.mxu0 0.0
        %5760 = vmatprep.subr.mxu0 0.0
        %5761 = vmatpush2.msra.mxu0 0.0
        %5762 = vmatprep.subr.mxu0 0.0
        %5763 = vmatpush2.msra.mxu0 0.0
        %5764 = vmatprep.subr.mxu0 0.0
        %5765 = vmatpush2.msra.mxu0 0.0
        %5766 = vmatprep.subr.mxu0 0.0
        %5767 = vmatpush2.msra.mxu0 0.0
        %5768 = vmatprep.subr.mxu0 0.0
        %5769 = vmatpush2.msra.mxu0 0.0
        %5770 = vmatprep.subr.mxu0 0.0
        %5771 = vmatpush2.msra.mxu0 0.0
        %5772 = vmatprep.subr.mxu0 0.0
        %5773 = vmatpush2.msra.mxu0 0.0
        %5774 = vmatprep.subr.mxu0 0.0
        %5775 = vmatpush2.msra.mxu0 0.0
        %5776 = vmatprep.subr.mxu0 0.0
        %5777 = vmatpush2.msra.mxu0 0.0
        %5778 = vmatprep.subr.mxu0 0.0
        %5779 = vmatpush2.msra.mxu0 0.0
        %5780 = vmatprep.subr.mxu0 0.0
        %5781 = vmatpush2.msra.mxu0 0.0
        %5782 = vmatprep.subr.mxu0 0.0
        %5783 = vmatpush2.msra.mxu0 0.0
        %5784 = vmatprep.mubr.f32.mxu0 0.0
        %5785 = vmatmul.mubr.f32.gmra.mxu0 %v5716
        %v5786 = vpop.f32.mrf.mxu0
        %v5787 = vadd.f32 0.0, %v5786
        %v5788 = vpop.f32.mrf.mxu0
        %5789 = vdwg.mxu0
        %v5790 = vmul.f32 %v5787, %v5709
        %v5792 = vsel %vm1195, %v5790, 0
        %5794 = vmatprep.subr.mxu0 0.0
        %5795 = vmatpush1.msra.mxu0 0.0
        %5796 = vmatprep.subr.mxu0 0.0
        %5797 = vmatpush1.msra.mxu0 0.0
        %5798 = vmatprep.subr.mxu0 0.0
        %5799 = vmatpush1.msra.mxu0 0.0
        %5800 = vmatprep.subr.mxu0 0.0
        %5801 = vmatpush1.msra.mxu0 0.0
        %5802 = vmatprep.subr.mxu0 0.0
        %5803 = vmatpush1.msra.mxu0 0.0
        %5804 = vmatprep.subr.mxu0 0.0
        %5805 = vmatpush1.msra.mxu0 0.0
        %5806 = vmatprep.subr.mxu0 0.0
        %5807 = vmatpush1.msra.mxu0 0.0
        %5808 = vmatprep.subr.mxu0 0.0
        %5809 = vmatpush1.msra.mxu0 0.0
        %5810 = vmatprep.subr.mxu0 0.0
        %5811 = vmatpush1.msra.mxu0 0.0
        %5812 = vmatprep.subr.mxu0 0.0
        %5813 = vmatpush1.msra.mxu0 0.0
        %5814 = vmatprep.subr.mxu0 0.0
        %5815 = vmatpush1.msra.mxu0 0.0
        %5816 = vmatprep.subr.mxu0 0.0
        %5817 = vmatpush1.msra.mxu0 0.0
        %5818 = vmatprep.subr.mxu0 0.0
        %5819 = vmatpush1.msra.mxu0 0.0
        %5820 = vmatprep.subr.mxu0 0.0
        %5821 = vmatpush1.msra.mxu0 0.0
        %5822 = vmatprep.subr.mxu0 0.0
        %5823 = vmatpush1.msra.mxu0 0.0
        %5824 = vmatprep.subr.mxu0 0.0
        %5825 = vmatpush1.msra.mxu0 %v4705
        %5826 = vmatprep.subr.mxu0 0.0
        %5827 = vmatpush2.msra.mxu0 0.0
        %5828 = vmatprep.subr.mxu0 0.0
        %5829 = vmatpush2.msra.mxu0 0.0
        %5830 = vmatprep.subr.mxu0 0.0
        %5831 = vmatpush2.msra.mxu0 0.0
        %5832 = vmatprep.subr.mxu0 0.0
        %5833 = vmatpush2.msra.mxu0 0.0
        %5834 = vmatprep.subr.mxu0 0.0
        %5835 = vmatpush2.msra.mxu0 0.0
        %5836 = vmatprep.subr.mxu0 0.0
        %5837 = vmatpush2.msra.mxu0 0.0
        %5838 = vmatprep.subr.mxu0 0.0
        %5839 = vmatpush2.msra.mxu0 0.0
        %5840 = vmatprep.subr.mxu0 0.0
        %5841 = vmatpush2.msra.mxu0 0.0
        %5842 = vmatprep.subr.mxu0 0.0
        %5843 = vmatpush2.msra.mxu0 0.0
        %5844 = vmatprep.subr.mxu0 0.0
        %5845 = vmatpush2.msra.mxu0 0.0
        %5846 = vmatprep.subr.mxu0 0.0
        %5847 = vmatpush2.msra.mxu0 0.0
        %5848 = vmatprep.subr.mxu0 0.0
        %5849 = vmatpush2.msra.mxu0 0.0
        %5850 = vmatprep.subr.mxu0 0.0
        %5851 = vmatpush2.msra.mxu0 0.0
        %5852 = vmatprep.subr.mxu0 0.0
        %5853 = vmatpush2.msra.mxu0 0.0
        %5854 = vmatprep.subr.mxu0 0.0
        %5855 = vmatpush2.msra.mxu0 0.0
        %5856 = vmatprep.subr.mxu0 0.0
        %5857 = vmatpush2.msra.mxu0 0.0
        %5858 = vmatprep.mubr.f32.mxu0 0.0
        %5859 = vmatmul.mubr.f32.gmra.mxu0 %v5792
        %v5860 = vpop.f32.mrf.mxu0
        %v5861 = vadd.f32 0.0, %v5860
        %v5862 = vpop.f32.mrf.mxu0
        %5863 = vdwg.mxu0
        %v5864 = vadd.f32 %v5617, %v5861
        %v5866 = vlaneseq
        %v5867 = vshrl.u32 %v5866, 7
        %v5868 = vsub.s32 0, %v5867
        %v5869 = vrot.slane %v4707, %v5868
        %v5871 = vadd.f32 %v5864, %v5869
        %v5872 = vadd.f32 %v4693, %v5871
        %s5873 = scalar_lea.vmem [#allocation17], 1
        %v5874 = vld [vmem:[%s5873] sm:$0x1]
        %s5875 = scalar_lea.vmem [#allocation18], 1
        %v5876 = vld [vmem:[%s5875] sm:$0x1]
        %v5877 = vsel %vm1117, %v5872, 0.0
        %5878 = vadd.xlane.f32.xlu0 %v5877
        %v5879 = vpop.xlane.xlu0 %5878
        %v5880 = vmul.f32 %v5879, %v2160
        %v5881 = vsub.f32 %v5872, %v5880
        %v5882 = vmul.f32 %v5881, %v5881
        %v5883 = vsel %vm1117, %v5882, 0.0
        %5884 = vadd.xlane.f32.xlu0 %v5883
        %v5885 = vpop.xlane.xlu0 %5884
        %v5886 = vmul.f32 %v5885, %v2160
        %v5887 = vadd.f32 %v5886, 1e-05
        %v5888 = vrsqrt.pop %v5887
        %v5889 = vmul.f32 %v5881, %v5888
        %v5891 = vlaneseq
        %v5892 = vshrl.u32 %v5891, 7
        %v5893 = vsub.s32 0, %v5892
        %v5894 = vrot.slane %v5874, %v5893
        %v5896 = vmul.f32 %v5889, %v5894
        %v5898 = vlaneseq
        %v5899 = vshrl.u32 %v5898, 7
        %v5900 = vsub.s32 0, %v5899
        %v5901 = vrot.slane %v5876, %v5900
        %v5903 = vadd.f32 %v5896, %v5901
        %s5904 = scalar_lea.vmem [#allocation20], 32
        %v5905 = vld [vmem:[%s5904] sm:$0xff]
        %v5906 = vld [vmem:[%s5904 + $0x8] sm:$0xff]
        %v5907 = vld [vmem:[%s5904 + $0x10] sm:$0xff]
        %v5908 = vld [vmem:[%s5904 + $0x18] sm:$0xff]
        %s5909 = scalar_lea.vmem [#allocation21], 1
        %v5910 = vld [vmem:[%s5909] sm:$0x1]
        %v5912 = vlaneseq
        %v5913 = vshrl.u32 %v5912, 7
        %v5914 = vsub.s32 0, %v5913
        %v5915 = vrot.slane %v5910, %v5914
        %v5918 = vsel %vm1117, %v5903, 0
        %5920 = vmatprep.subr.mxu0 0.0
        %5921 = vmatpush1.msra.mxu0 0.0
        %5922 = vmatprep.subr.mxu0 0.0
        %5923 = vmatpush1.msra.mxu0 0.0
        %5924 = vmatprep.subr.mxu0 0.0
        %5925 = vmatpush1.msra.mxu0 0.0
        %5926 = vmatprep.subr.mxu0 0.0
        %5927 = vmatpush1.msra.mxu0 0.0
        %5928 = vmatprep.subr.mxu0 0.0
        %5929 = vmatpush1.msra.mxu0 0.0
        %5930 = vmatprep.subr.mxu0 0.0
        %5931 = vmatpush1.msra.mxu0 0.0
        %5932 = vmatprep.subr.mxu0 0.0
        %5933 = vmatpush1.msra.mxu0 0.0
        %5934 = vmatprep.subr.mxu0 0.0
        %5935 = vmatpush1.msra.mxu0 0.0
        %5936 = vmatprep.subr.mxu0 0.0
        %5937 = vmatpush1.msra.mxu0 0.0
        %5938 = vmatprep.subr.mxu0 0.0
        %5939 = vmatpush1.msra.mxu0 0.0
        %5940 = vmatprep.subr.mxu0 0.0
        %5941 = vmatpush1.msra.mxu0 0.0
        %5942 = vmatprep.subr.mxu0 0.0
        %5943 = vmatpush1.msra.mxu0 0.0
        %5944 = vmatprep.subr.mxu0 0.0
        %5945 = vmatpush1.msra.mxu0 %v5908
        %5946 = vmatprep.subr.mxu0 0.0
        %5947 = vmatpush1.msra.mxu0 %v5907
        %5948 = vmatprep.subr.mxu0 0.0
        %5949 = vmatpush1.msra.mxu0 %v5906
        %5950 = vmatprep.subr.mxu0 0.0
        %5951 = vmatpush1.msra.mxu0 %v5905
        %5952 = vmatprep.subr.mxu0 0.0
        %5953 = vmatpush2.msra.mxu0 0.0
        %5954 = vmatprep.subr.mxu0 0.0
        %5955 = vmatpush2.msra.mxu0 0.0
        %5956 = vmatprep.subr.mxu0 0.0
        %5957 = vmatpush2.msra.mxu0 0.0
        %5958 = vmatprep.subr.mxu0 0.0
        %5959 = vmatpush2.msra.mxu0 0.0
        %5960 = vmatprep.subr.mxu0 0.0
        %5961 = vmatpush2.msra.mxu0 0.0
        %5962 = vmatprep.subr.mxu0 0.0
        %5963 = vmatpush2.msra.mxu0 0.0
        %5964 = vmatprep.subr.mxu0 0.0
        %5965 = vmatpush2.msra.mxu0 0.0
        %5966 = vmatprep.subr.mxu0 0.0
        %5967 = vmatpush2.msra.mxu0 0.0
        %5968 = vmatprep.subr.mxu0 0.0
        %5969 = vmatpush2.msra.mxu0 0.0
        %5970 = vmatprep.subr.mxu0 0.0
        %5971 = vmatpush2.msra.mxu0 0.0
        %5972 = vmatprep.subr.mxu0 0.0
        %5973 = vmatpush2.msra.mxu0 0.0
        %5974 = vmatprep.subr.mxu0 0.0
        %5975 = vmatpush2.msra.mxu0 0.0
        %5976 = vmatprep.subr.mxu0 0.0
        %5977 = vmatpush2.msra.mxu0 0.0
        %5978 = vmatprep.subr.mxu0 0.0
        %5979 = vmatpush2.msra.mxu0 0.0
        %5980 = vmatprep.subr.mxu0 0.0
        %5981 = vmatpush2.msra.mxu0 0.0
        %5982 = vmatprep.subr.mxu0 0.0
        %5983 = vmatpush2.msra.mxu0 0.0
        %5984 = vmatprep.mubr.f32.mxu0 0.0
        %5985 = vmatmul.mubr.f32.gmra.mxu0 %v5918
        %v5986 = vpop.f32.mrf.mxu0
        %v5987 = vadd.f32 %v5915, %v5986
        %v5988 = vpop.f32.mrf.mxu0
        %5989 = vdwg.mxu0
        %v5990 = vmax.f32 %v5987, 0.0
        %s5991 = scalar_lea.vmem %s19, 64
        %v5992 = vld [vmem:[%s5991] sm:$0xff]
        %v5993 = vld [vmem:[%s5991 + $0x8] sm:$0xff]
        %v5994 = vld [vmem:[%s5991 + $0x10] sm:$0xff]
        %v5995 = vld [vmem:[%s5991 + $0x18] sm:$0xff]
        %v5996 = vld [vmem:[%s5991 + $0x20] sm:$0xff]
        %v5997 = vld [vmem:[%s5991 + $0x28] sm:$0xff]
        %v5998 = vld [vmem:[%s5991 + $0x30] sm:$0xff]
        %v5999 = vld [vmem:[%s5991 + $0x38] sm:$0xff]
        %s6000 = scalar_lea.vmem [#allocation23], 1
        %v6001 = vld [vmem:[%s6000] sm:$0x1]
        %v6003 = vlaneseq
        %v6004 = vshrl.u32 %v6003, 7
        %v6005 = vsub.s32 0, %v6004
        %v6006 = vrot.slane %v6001, %v6005
        %v6009 = vsel %vm3503, %v5990, 0
        %6011 = vmatprep.subr.mxu0 0.0
        %6012 = vmatpush1.msra.mxu0 0.0
        %6013 = vmatprep.subr.mxu0 0.0
        %6014 = vmatpush1.msra.mxu0 0.0
        %6015 = vmatprep.subr.mxu0 0.0
        %6016 = vmatpush1.msra.mxu0 0.0
        %6017 = vmatprep.subr.mxu0 0.0
        %6018 = vmatpush1.msra.mxu0 0.0
        %6019 = vmatprep.subr.mxu0 0.0
        %6020 = vmatpush1.msra.mxu0 0.0
        %6021 = vmatprep.subr.mxu0 0.0
        %6022 = vmatpush1.msra.mxu0 0.0
        %6023 = vmatprep.subr.mxu0 0.0
        %6024 = vmatpush1.msra.mxu0 0.0
        %6025 = vmatprep.subr.mxu0 0.0
        %6026 = vmatpush1.msra.mxu0 0.0
        %6027 = vmatprep.subr.mxu0 0.0
        %6028 = vmatpush1.msra.mxu0 %v5999
        %6029 = vmatprep.subr.mxu0 0.0
        %6030 = vmatpush1.msra.mxu0 %v5998
        %6031 = vmatprep.subr.mxu0 0.0
        %6032 = vmatpush1.msra.mxu0 %v5997
        %6033 = vmatprep.subr.mxu0 0.0
        %6034 = vmatpush1.msra.mxu0 %v5996
        %6035 = vmatprep.subr.mxu0 0.0
        %6036 = vmatpush1.msra.mxu0 %v5995
        %6037 = vmatprep.subr.mxu0 0.0
        %6038 = vmatpush1.msra.mxu0 %v5994
        %6039 = vmatprep.subr.mxu0 0.0
        %6040 = vmatpush1.msra.mxu0 %v5993
        %6041 = vmatprep.subr.mxu0 0.0
        %6042 = vmatpush1.msra.mxu0 %v5992
        %6043 = vmatprep.subr.mxu0 0.0
        %6044 = vmatpush2.msra.mxu0 0.0
        %6045 = vmatprep.subr.mxu0 0.0
        %6046 = vmatpush2.msra.mxu0 0.0
        %6047 = vmatprep.subr.mxu0 0.0
        %6048 = vmatpush2.msra.mxu0 0.0
        %6049 = vmatprep.subr.mxu0 0.0
        %6050 = vmatpush2.msra.mxu0 0.0
        %6051 = vmatprep.subr.mxu0 0.0
        %6052 = vmatpush2.msra.mxu0 0.0
        %6053 = vmatprep.subr.mxu0 0.0
        %6054 = vmatpush2.msra.mxu0 0.0
        %6055 = vmatprep.subr.mxu0 0.0
        %6056 = vmatpush2.msra.mxu0 0.0
        %6057 = vmatprep.subr.mxu0 0.0
        %6058 = vmatpush2.msra.mxu0 0.0
        %6059 = vmatprep.subr.mxu0 0.0
        %6060 = vmatpush2.msra.mxu0 0.0
        %6061 = vmatprep.subr.mxu0 0.0
        %6062 = vmatpush2.msra.mxu0 0.0
        %6063 = vmatprep.subr.mxu0 0.0
        %6064 = vmatpush2.msra.mxu0 0.0
        %6065 = vmatprep.subr.mxu0 0.0
        %6066 = vmatpush2.msra.mxu0 0.0
        %6067 = vmatprep.subr.mxu0 0.0
        %6068 = vmatpush2.msra.mxu0 0.0
        %6069 = vmatprep.subr.mxu0 0.0
        %6070 = vmatpush2.msra.mxu0 0.0
        %6071 = vmatprep.subr.mxu0 0.0
        %6072 = vmatpush2.msra.mxu0 0.0
        %6073 = vmatprep.subr.mxu0 0.0
        %6074 = vmatpush2.msra.mxu0 0.0
        %6075 = vmatprep.mubr.f32.mxu0 0.0
        %6076 = vmatmul.mubr.f32.gmra.mxu0 %v6009
        %v6077 = vpop.f32.mrf.mxu0
        %v6078 = vadd.f32 %v6006, %v6077
        %v6079 = vpop.f32.mrf.mxu0
        %6080 = vdwg.mxu0
        %v6081 = vadd.f32 %v5903, %v6078
        %s6082 = scalar_lea.vmem [#allocation24], 1
        %v6083 = vld [vmem:[%s6082] sm:$0x1]
        %s6084 = scalar_lea.vmem [#allocation26], 1
        %v6085 = vld [vmem:[%s6084] sm:$0x1]
        %v6086 = vsel %vm1117, %v6081, 0.0
        %6087 = vadd.xlane.f32.xlu0 %v6086
        %v6088 = vpop.xlane.xlu0 %6087
        %v6089 = vmul.f32 %v6088, %v2160
        %v6090 = vsub.f32 %v6081, %v6089
        %v6091 = vmul.f32 %v6090, %v6090
        %v6092 = vsel %vm1117, %v6091, 0.0
        %6093 = vadd.xlane.f32.xlu0 %v6092
        %v6094 = vpop.xlane.xlu0 %6093
        %v6095 = vmul.f32 %v6094, %v2160
        %v6096 = vadd.f32 %v6095, 1e-05
        %v6097 = vrsqrt.pop %v6096
        %v6098 = vmul.f32 %v6090, %v6097
        %v6100 = vlaneseq
        %v6101 = vshrl.u32 %v6100, 7
        %v6102 = vsub.s32 0, %v6101
        %v6103 = vrot.slane %v6083, %v6102
        %v6105 = vmul.f32 %v6098, %v6103
        %v6107 = vlaneseq
        %v6108 = vshrl.u32 %v6107, 7
        %v6109 = vsub.s32 0, %v6108
        %v6110 = vrot.slane %v6085, %v6109
        %v6112 = vadd.f32 %v6105, %v6110
        %v6113 = vld [vmem:[#allocation27] sm:$0x1]
        %v6114 = vld [vmem:[#allocation2] sm:$0x1]
        %6116 = vset.pattern.permute.xlu0 0
        %6117 = vperm.xlu0 %6116, %v6114
        %v6118 = vpop.permute.xlu0 %6117
        %v6120 = vlaneseq
        %v6121 = vshrl.u32 %v6120, 7
        %v6122 = vsub.s32 0, %v6121
        %v6123 = vrot.slane %v6118, %v6122
        %v6125 = vsel %vm1117, %v6113, 0
        %v6128 = vsel %vm1117, %v6112, 0
        %6130 = vmatprep.subr.mxu0 0.0
        %6131 = vmatpush1.xpose.msra.mxu0 0.0
        %6132 = vmatprep.subr.mxu0 0.0
        %6133 = vmatpush1.xpose.msra.mxu0 0.0
        %6134 = vmatprep.subr.mxu0 0.0
        %6135 = vmatpush1.xpose.msra.mxu0 0.0
        %6136 = vmatprep.subr.mxu0 0.0
        %6137 = vmatpush1.xpose.msra.mxu0 0.0
        %6138 = vmatprep.subr.mxu0 0.0
        %6139 = vmatpush1.xpose.msra.mxu0 0.0
        %6140 = vmatprep.subr.mxu0 0.0
        %6141 = vmatpush1.xpose.msra.mxu0 0.0
        %6142 = vmatprep.subr.mxu0 0.0
        %6143 = vmatpush1.xpose.msra.mxu0 0.0
        %6144 = vmatprep.subr.mxu0 0.0
        %6145 = vmatpush1.xpose.msra.mxu0 0.0
        %6146 = vmatprep.subr.mxu0 0.0
        %6147 = vmatpush1.xpose.msra.mxu0 0.0
        %6148 = vmatprep.subr.mxu0 0.0
        %6149 = vmatpush1.xpose.msra.mxu0 0.0
        %6150 = vmatprep.subr.mxu0 0.0
        %6151 = vmatpush1.xpose.msra.mxu0 0.0
        %6152 = vmatprep.subr.mxu0 0.0
        %6153 = vmatpush1.xpose.msra.mxu0 0.0
        %6154 = vmatprep.subr.mxu0 0.0
        %6155 = vmatpush1.xpose.msra.mxu0 0.0
        %6156 = vmatprep.subr.mxu0 0.0
        %6157 = vmatpush1.xpose.msra.mxu0 0.0
        %6158 = vmatprep.subr.mxu0 0.0
        %6159 = vmatpush1.xpose.msra.mxu0 0.0
        %6160 = vmatprep.subr.mxu0 0.0
        %6161 = vmatpush1.xpose.msra.mxu0 %v6128
        %6162 = vmatprep.subr.mxu0 0.0
        %6163 = vmatpush2.xpose.msra.mxu0 0.0
        %6164 = vmatprep.subr.mxu0 0.0
        %6165 = vmatpush2.xpose.msra.mxu0 0.0
        %6166 = vmatprep.subr.mxu0 0.0
        %6167 = vmatpush2.xpose.msra.mxu0 0.0
        %6168 = vmatprep.subr.mxu0 0.0
        %6169 = vmatpush2.xpose.msra.mxu0 0.0
        %6170 = vmatprep.subr.mxu0 0.0
        %6171 = vmatpush2.xpose.msra.mxu0 0.0
        %6172 = vmatprep.subr.mxu0 0.0
        %6173 = vmatpush2.xpose.msra.mxu0 0.0
        %6174 = vmatprep.subr.mxu0 0.0
        %6175 = vmatpush2.xpose.msra.mxu0 0.0
        %6176 = vmatprep.subr.mxu0 0.0
        %6177 = vmatpush2.xpose.msra.mxu0 0.0
        %6178 = vmatprep.subr.mxu0 0.0
        %6179 = vmatpush2.xpose.msra.mxu0 0.0
        %6180 = vmatprep.subr.mxu0 0.0
        %6181 = vmatpush2.xpose.msra.mxu0 0.0
        %6182 = vmatprep.subr.mxu0 0.0
        %6183 = vmatpush2.xpose.msra.mxu0 0.0
        %6184 = vmatprep.subr.mxu0 0.0
        %6185 = vmatpush2.xpose.msra.mxu0 0.0
        %6186 = vmatprep.subr.mxu0 0.0
        %6187 = vmatpush2.xpose.msra.mxu0 0.0
        %6188 = vmatprep.subr.mxu0 0.0
        %6189 = vmatpush2.xpose.msra.mxu0 0.0
        %6190 = vmatprep.subr.mxu0 0.0
        %6191 = vmatpush2.xpose.msra.mxu0 0.0
        %6192 = vmatprep.subr.mxu0 0.0
        %6193 = vmatpush2.xpose.msra.mxu0 0.0
        %6194 = vmatprep.mubr.f32.mxu0 0.0
        %6195 = vmatmul.mubr.f32.gmra.mxu0 %v6125
        %v6196 = vpop.f32.mrf.mxu0
        %v6197 = vadd.f32 %v6123, %v6196
        %v6198 = vpop.f32.mrf.mxu0
        %6199 = vdwg.mxu0
        %vm6200 = vcmask 57344
        %6201 = vst.msk [vmem:[%s994] sm:$0x1] %vm6200, %v6197
        %s6202 = sand.u32 %s593, 1
        %s6203 = scalar_lea.sflag [#allocation5], %s6202
        %s6204 = sand.u32 %s593, 1
        %s6205 = scalar_lea.vmem [#allocation29], %s6204
        // Predicated region
        $region185: #{radar_encoder_forward.1} parent=119 // pred_check
          %p6206 = pneg %p603
        $region186: #{radar_encoder_forward.1} parent=119 // pred_check_branch
          %6208 = sbr.rel (%p6206) target = $region188
        $region187: #{radar_encoder_forward.1} parent=119 // pred_region
          %s6210 = ssub.s32 16, 16
          %6211 = vsyncadd %s6203, %s6210
          %s6212 = smul.addr %s50, 16
          %s6213 = scalar_lea.hbm %s25, %s6212
          %s6215 = sshll.u32 %s6205, 4
          %s6216 = int_to_ptr.vmem [resolvable:$true] %s6215
          %6218 = dma.vmem_to_hbm [thread:$0]  %s6216, 16, %s6213, %s6203
        $region188: #{radar_encoder_forward.1} parent=119 // pred_fallthru
          _
      $region120: #{radar_encoder_forward.1} parent=5 // pred_fallthru
        _
      %p6219 = scmp.le.s32.totalorder 2, %s45
      // Predicated region
      $region189: #{radar_encoder_forward.1} parent=5 // pred_check
        %p6220 = pneg %p6219
      $region190: #{radar_encoder_forward.1} parent=5 // pred_check_branch
        %6222 = sbr.rel (%p6220) target = $region192
      $region191: #{radar_encoder_forward.1} parent=5 // pred_region
        %s6223 = ssub.s32 %s45, 2
        // Predicated region
        $region193: #{radar_encoder_forward.1} parent=191 // pred_check
          %p6224 = pneg %p609
        $region194: #{radar_encoder_forward.1} parent=191 // pred_check_branch
          %6226 = sbr.rel (%p6224) target = $region196
        $region195: #{radar_encoder_forward.1} parent=191 // pred_region
          %s6227 = sand.u32 %s594, 1
          %s6228 = scalar_lea.sflag [#allocation5], %s6227
          %s6229 = sand.u32 %s594, 1
          %s6230 = scalar_lea.vmem [#allocation29], %s6229
          %6231 = dma.done %s6228, 16
        $region196: #{radar_encoder_forward.1} parent=191 // pred_fallthru
          _
      $region192: #{radar_encoder_forward.1} parent=5 // pred_fallthru
        _
    $region6: #{radar_encoder_forward.1} parent=1 // loop_footer
      %s49 = sadd.s32 1, %s45
    $region7: #{radar_encoder_forward.1} parent=1 // loop_footer_branch
      %44 = sbr.rel target = $region3
    $region8: #{radar_encoder_forward.1} parent=1 // loop_exit
      _
    %6232 = vsyncpa [#allocation4], 1
    %s6233 = scalar_lea.sflag [#allocation4], 1
    %6234 = vsyncpa %s6233, 1
    %6235 = vsyncpa [#allocation7], 1
    %6236 = vsyncpa [#allocation10], 1
    %6237 = vsyncpa [#allocation13], 1
    %6238 = vsyncpa [#allocation16], 1
    %6239 = vsyncpa [#allocation19], 1
    %6240 = vsyncpa [#allocation22], 1
    %6241 = vsyncpa [#allocation25], 1
    %6242 = vsyncpa [#allocation28], 1
    %6243 = vsyncpa [#allocation5], 1
    %s6244 = scalar_lea.sflag [#allocation5], 1
    %6245 = vsyncpa %s6244, 1

</llo_original>
